<compile_context>
chip_gen: v7x
topology: tpu7x:2x2x1
jax: 0.10.0
libtpu: 0.0.40
codegen_flags: <defaults>
</compile_context>

<pallas_src>
import functools

import jax
import jax.numpy as jnp
from jax.experimental import pallas as pl
from jax.experimental.pallas import tpu as pltpu

_BN_EPS = 1e-5
_VMEM_LIMIT = 48 * 1024 * 1024   # below v7x's 64 MiB physical, above scoped defaults


def _silu(z):
    return z / (1.0 + jnp.exp(-z))


def _sigmoid(z):
    return 1.0 / (1.0 + jnp.exp(-z))


def _hw_tile(hw, max_lanes=2048):
    """Pick a lane-dense HW tile (multiple of 128 dividing HW), up to max_lanes."""
    if hw % 128 != 0:
        return hw                      # full-extent block is always legal
    t = min(hw, max_lanes)
    t -= t % 128
    while hw % t != 0:
        t -= 128
    return t


# ---------------------------------------------------------------------------
# In-kernel helpers
# ---------------------------------------------------------------------------
def _make_edge_masks(H, W):
    """Per-tap image-boundary masks for a 3x3 'same' conv on a flat H*W axis."""
    HW = H * W
    pos = jax.lax.broadcasted_iota(jnp.int32, (1, HW), 1)
    col = pos % W
    masks = {}
    for dy in (-1, 0, 1):
        for dx in (-1, 0, 1):
            conds = []
            if dy == -1:
                conds.append(pos >= W)                 # row - 1 >= 0
            if dy == 1:
                conds.append(pos < (H - 1) * W)        # row + 1 < H
            if dx == -1:
                conds.append(col >= 1)                 # col - 1 >= 0
            if dx == 1:
                conds.append(col < W - 1)              # col + 1 < W
            if conds:
                valid = conds[0]
                for extra in conds[1:]:
                    valid = jnp.logical_and(valid, extra)
                masks[(dy, dx)] = valid.astype(jnp.float32)
            else:
                masks[(dy, dx)] = None
    return masks


def _conv3x3_slab(x, w9_ref, b, masks, *, W, apply_act):
    """3x3 'same' conv (stride 1, BN folded) on a (Cin, H*W) VMEM slab.

    Nine lane-rolled MXU matmuls; image-boundary taps are masked out.
    """
    HW = x.shape[1]
    c_out = w9_ref.shape[1]
    acc = jnp.zeros((c_out, HW), jnp.float32)
    for dy in (-1, 0, 1):
        for dx in (-1, 0, 1):
            tap = (dy + 1) * 3 + (dx + 1)
            d = dy * W + dx
            xs = x if d == 0 else pltpu.roll(x, shift=(-d) % HW, axis=1)
            m = masks[(dy, dx)]
            if m is not None:
                xs = xs * m
            acc = acc + jnp.dot(w9_ref[tap], xs, preferred_element_type=jnp.float32)
    z = acc + b
    return _silu(z) if apply_act else z


# ---------------------------------------------------------------------------
# Kernels
# ---------------------------------------------------------------------------
def _cv1_kernel(x_ref, w_ref, b_ref, o0_ref, o1_ref, *, c):
    """1x1 conv (BN folded) + SiLU, output chunked into two c-channel halves."""
    x = x_ref[0]                                                   # (Cin, T)
    z = jnp.dot(w_ref[...], x, preferred_element_type=jnp.float32) + b_ref[...]
    z = _silu(z)                                                   # (2c, T)
    o0_ref[0] = z[:c, :]
    o1_ref[0] = z[c:, :]


def _bottleneck_kernel(x_ref, w1_ref, b1_ref, w2_ref, b2_ref, o_ref, *, H, W):
    """Fused Bottleneck (shortcut=False): two 3x3 Conv+BN+SiLU, intermediate in VMEM."""
    # TODO(synk): shortcut=True residual add and grouped conv (g>1) variants.
    masks = _make_edge_masks(H, W)
    h = _conv3x3_slab(x_ref[0], w1_ref, b1_ref[...], masks, W=W, apply_act=True)
    o_ref[0] = _conv3x3_slab(h, w2_ref, b2_ref[...], masks, W=W, apply_act=True)


def _attn_kernel(x_ref, g_ref, wp_ref, bp_ref, wgl_ref, bgl_ref, abias_ref, o_ref,
                 *, nh, hc, H, W):
    """Fused MaxSigmoidAttnBlock: 3x3 proj conv + guide Linear + max-sim sigmoid gate."""
    masks = _make_edge_masks(H, W)
    x = x_ref[0]                                                   # (nh*hc, HW), embed
    xp = _conv3x3_slab(x, wp_ref, bp_ref[...], masks, W=W, apply_act=False)
    g = g_ref[0]                                                   # (n_txt, gc)
    ge = jnp.dot(g, wgl_ref[...],
                 preferred_element_type=jnp.float32) + bgl_ref[...]  # (n_txt, ec)
    inv_sqrt_hc = 1.0 / (float(hc) ** 0.5)
    outs = []
    for m in range(nh):
        emb_m = x[m * hc:(m + 1) * hc, :]                          # (hc, HW)
        g_m = ge[:, m * hc:(m + 1) * hc]                           # (n_txt, hc)
        scores = jnp.dot(g_m, emb_m,
                         preferred_element_type=jnp.float32)       # (n_txt, HW)
        aw = jnp.max(scores, axis=0, keepdims=True)                # (1, HW)
        aw = aw * inv_sqrt_hc + abias_ref[m]
        gate = _sigmoid(aw)                                        # scale=False -> 1.0
        outs.append(xp[m * hc:(m + 1) * hc, :] * gate)
    o_ref[0] = outs[0] if nh == 1 else jnp.concatenate(outs, axis=0)


def _cv2_kernel(*refs, num_branches):
    """Fused concat + 1x1 conv (BN folded) + SiLU: sum of per-branch matmuls."""
    ys = refs[:num_branches]                                       # each (1, c, T)
    ws = refs[num_branches:2 * num_branches]                       # each (Cout, c)
    b_ref = refs[2 * num_branches]                                 # (Cout, 1)
    o_ref = refs[2 * num_branches + 1]                             # (1, Cout, T)
    acc = jnp.dot(ws[0][...], ys[0][0], preferred_element_type=jnp.float32)
    for i in range(1, num_branches):
        acc = acc + jnp.dot(ws[i][...], ys[i][0],
                            preferred_element_type=jnp.float32)
    o_ref[0] = _silu(acc + b_ref[...])


# ---------------------------------------------------------------------------
# pallas_call wrappers
# ---------------------------------------------------------------------------
def _cparams(semantics):
    return pltpu.CompilerParams(dimension_semantics=semantics,
                                vmem_limit_bytes=_VMEM_LIMIT)


def conv1x1_cv1(x, w, b, c, t_hw):
    B, Cin, HW = x.shape
    C2 = w.shape[0]
    grid = (B, HW // t_hw)
    return pl.pallas_call(
        functools.partial(_cv1_kernel, c=c),
        out_shape=(jax.ShapeDtypeStruct((B, c, HW), jnp.float32),
                   jax.ShapeDtypeStruct((B, c, HW), jnp.float32)),
        grid_spec=pltpu.PrefetchScalarGridSpec(
            num_scalar_prefetch=0, grid=grid,
            in_specs=[
                pl.BlockSpec((1, Cin, t_hw), lambda bb, t: (bb, 0, t)),
                pl.BlockSpec((C2, Cin), lambda bb, t: (0, 0)),
                pl.BlockSpec((C2, 1), lambda bb, t: (0, 0)),
            ],
            out_specs=(pl.BlockSpec((1, c, t_hw), lambda bb, t: (bb, 0, t)),
                       pl.BlockSpec((1, c, t_hw), lambda bb, t: (bb, 0, t))),
        ),
        compiler_params=_cparams(("parallel", "parallel")),
    )(x, w, b)


def bottleneck_block(x, w1_9, b1, w2_9, b2, *, H, W):
    # TODO(synk): for very large H*W, add row-tiling with halo exchange instead
    # of a whole-image block per batch.
    B, Cin, HW = x.shape
    Cmid = w1_9.shape[1]
    Cout = w2_9.shape[1]
    return pl.pallas_call(
        functools.partial(_bottleneck_kernel, H=H, W=W),
        out_shape=jax.ShapeDtypeStruct((B, Cout, HW), jnp.float32),
        grid_spec=pltpu.PrefetchScalarGridSpec(
            num_scalar_prefetch=0, grid=(B,),
            in_specs=[
                pl.BlockSpec((1, Cin, HW), lambda bb: (bb, 0, 0)),
                pl.BlockSpec((9, Cmid, Cin), lambda bb: (0, 0, 0)),
                pl.BlockSpec((Cmid, 1), lambda bb: (0, 0)),
                pl.BlockSpec((9, Cout, Cmid), lambda bb: (0, 0, 0)),
                pl.BlockSpec((Cout, 1), lambda bb: (0, 0)),
            ],
            out_specs=pl.BlockSpec((1, Cout, HW), lambda bb: (bb, 0, 0)),
        ),
        compiler_params=_cparams(("parallel",)),
    )(x, w1_9, b1, w2_9, b2)


def max_sigmoid_attn(x, guide, wp9, bp, w_gl_t, b_gl, attn_bias, *, nh, hc, H, W):
    B, C, HW = x.shape
    n_txt, gc = guide.shape[1], guide.shape[2]
    ec = nh * hc
    return pl.pallas_call(
        functools.partial(_attn_kernel, nh=nh, hc=hc, H=H, W=W),
        out_shape=jax.ShapeDtypeStruct((B, C, HW), jnp.float32),
        grid_spec=pltpu.PrefetchScalarGridSpec(
            num_scalar_prefetch=0, grid=(B,),
            in_specs=[
                pl.BlockSpec((1, C, HW), lambda bb: (bb, 0, 0)),       # embed (= x)
                pl.BlockSpec((1, n_txt, gc), lambda bb: (bb, 0, 0)),   # guide
                pl.BlockSpec((9, C, C), lambda bb: (0, 0, 0)),         # proj taps
                pl.BlockSpec((C, 1), lambda bb: (0, 0)),               # proj bias
                pl.BlockSpec((gc, ec), lambda bb: (0, 0)),             # gl weight^T
                pl.BlockSpec((1, ec), lambda bb: (0, 0)),              # gl bias
                pl.BlockSpec(memory_space=pltpu.MemorySpace.SMEM),     # head bias (nh,)
            ],
            out_specs=pl.BlockSpec((1, C, HW), lambda bb: (bb, 0, 0)),
        ),
        compiler_params=_cparams(("parallel",)),
    )(x, guide, wp9, bp, w_gl_t, b_gl, attn_bias)


def conv1x1_cv2_fused(ys, w_chunks, b, t_hw):
    m = len(ys)
    B, c, HW = ys[0].shape
    Cout = w_chunks[0].shape[0]
    grid = (B, HW // t_hw)
    in_specs = (
        [pl.BlockSpec((1, c, t_hw), lambda bb, t: (bb, 0, t)) for _ in range(m)]
        + [pl.BlockSpec((Cout, c), lambda bb, t: (0, 0)) for _ in range(m)]
        + [pl.BlockSpec((Cout, 1), lambda bb, t: (0, 0))])
    return pl.pallas_call(
        functools.partial(_cv2_kernel, num_branches=m),
        out_shape=jax.ShapeDtypeStruct((B, Cout, HW), jnp.float32),
        grid_spec=pltpu.PrefetchScalarGridSpec(
            num_scalar_prefetch=0, grid=grid,
            in_specs=in_specs,
            out_specs=pl.BlockSpec((1, Cout, t_hw), lambda bb, t: (bb, 0, t)),
        ),
        compiler_params=_cparams(("parallel", "parallel")),
    )(*ys, *w_chunks, b)


# ---------------------------------------------------------------------------
# Parameter folding + full forward
# ---------------------------------------------------------------------------
def _fold_bn(w, gamma, beta, mean, var):
    """Fold eval-mode BatchNorm2d into a bias-free conv -> (w', b')."""
    s = gamma / jnp.sqrt(var + _BN_EPS)
    return w * s[:, None, None, None], beta - mean * s


def _tapify(w):
    """(Cout, Cin, 3, 3) -> (9, Cout, Cin) with tap = (dy+1)*3 + (dx+1)."""
    co, ci = w.shape[0], w.shape[1]
    return jnp.transpose(w, (2, 3, 0, 1)).reshape(9, co, ci)


def c2f_attn_forward(x, guide, params, *, c, nh, H, W):
    """x: (B, c1, H, W), guide: (B, n_txt, gc) -> (B, c2, H, W)."""
    B, c1 = x.shape[0], x.shape[1]
    HW = H * W
    hc = c // nh
    t_hw = _hw_tile(HW)
    x3 = x.reshape(B, c1, HW).astype(jnp.float32)

    # cv1: 1x1 conv + BN + SiLU, channel-chunked inside the kernel.
    w_cv1, b_cv1 = _fold_bn(params['cv1']['w'], *params['cv1']['bn'])
    y0, y1 = conv1x1_cv1(x3, w_cv1.reshape(w_cv1.shape[0], -1),
                         b_cv1.reshape(-1, 1), c, t_hw)

    # Bottlenecks (shortcut=False, g=1): one fused kernel each (two 3x3 convs).
    ys = [y0, y1]
    cur = y1
    for blk in params['m']:
        w1, b1 = _fold_bn(blk['w1'], *blk['bn1'])
        w2, b2 = _fold_bn(blk['w2'], *blk['bn2'])
        cur = bottleneck_block(cur, _tapify(w1), b1.reshape(-1, 1),
                               _tapify(w2), b2.reshape(-1, 1), H=H, W=W)
        ys.append(cur)

    # MaxSigmoidAttnBlock on ys[-1], fully fused (proj conv + gate).
    # Inside C2fAttn the attn forward requires ec == self.c, so the optional
    # 1x1 `ec` embedding conv is None and embed == input.
    wp, bp = _fold_bn(params['proj']['w'], *params['proj']['bn'])
    attn_out = max_sigmoid_attn(
        cur, guide.astype(jnp.float32), _tapify(wp), bp.reshape(-1, 1),
        params['gl_w'].T, params['gl_b'].reshape(1, -1), params['attn_bias'],
        nh=nh, hc=hc, H=H, W=W)
    ys.append(attn_out)

    # cv2: fused concat + 1x1 conv + BN + SiLU.
    w_cv2, b_cv2 = _fold_bn(params['cv2']['w'], *params['cv2']['bn'])
    w_cv2 = w_cv2.reshape(w_cv2.shape[0], -1)
    w_chunks = [w_cv2[:, i * c:(i + 1) * c] for i in range(len(ys))]
    out = conv1x1_cv2_fused(ys, w_chunks, b_cv2.reshape(-1, 1), t_hw)
    return out.reshape(B, out.shape[1], H, W)


# ---------------------------------------------------------------------------
# Pure-JAX reference mirroring the PyTorch module (eval-mode BN)
# ---------------------------------------------------------------------------
def _c2f_attn_reference(x, guide, params, *, c, nh):
    def conv_bn(xx, w, bn, act):
        y = jax.lax.conv_general_dilated(
            xx, w, window_strides=(1, 1), padding='SAME',
            dimension_numbers=('NCHW', 'OIHW', 'NCHW'))
        gamma, beta, mean, var = bn
        y = (y - mean.reshape(1, -1, 1, 1)) * (
            gamma.reshape(1, -1, 1, 1) / jnp.sqrt(var.reshape(1, -1, 1, 1) + _BN_EPS)
        ) + beta.reshape(1, -1, 1, 1)
        return y * jax.nn.sigmoid(y) if act else y

    B, _, H, W = x.shape
    hc = c // nh
    y = conv_bn(x, params['cv1']['w'], params['cv1']['bn'], True)
    ys = [y[:, :c], y[:, c:]]
    cur = ys[-1]
    for blk in params['m']:
        cur = conv_bn(cur, blk['w1'], blk['bn1'], True)
        cur = conv_bn(cur, blk['w2'], blk['bn2'], True)
        ys.append(cur)
    ge = guide @ params['gl_w'].T + params['gl_b']            # (B, n_txt, ec)
    ge = ge.reshape(B, -1, nh, hc)
    embed = cur.reshape(B, nh, hc, H, W)
    aw = jnp.einsum('bmchw,bnmc->bmhwn', embed, ge)
    aw = jnp.max(aw, axis=-1) / (hc ** 0.5)
    aw = aw + params['attn_bias'].reshape(1, nh, 1, 1)
    aw = jax.nn.sigmoid(aw)                                    # scale=False -> 1.0
    xp = conv_bn(cur, params['proj']['w'], params['proj']['bn'], False)
    xp = xp.reshape(B, nh, hc, H, W) * aw[:, :, None]
    ys.append(xp.reshape(B, nh * hc, H, W))
    return conv_bn(jnp.concatenate(ys, axis=1),
                   params['cv2']['w'], params['cv2']['bn'], True)


# ---------------------------------------------------------------------------
if __name__ == "__main__":
    B, C1, C2_OUT, H, W = 2, 32, 32, 16, 16      # HW = 256 (lane-dense)
    N_BOTTLENECK, NH, GC, N_TXT, E = 1, 1, 32, 8, 0.5
    C = int(C2_OUT * E)                          # self.c = 16
    EC = C                                       # ec must equal self.c inside C2fAttn
    HC = C // NH

    key = jax.random.PRNGKey(0)
    keys = iter(jax.random.split(key, 64))

    def nrm(shape, scale=1.0):
        return scale * jax.random.normal(next(keys), shape, dtype=jnp.float32)

    def bn_params(ch):
        return (1.0 + 0.1 * nrm((ch,)),                 # weight (gamma)
                0.1 * nrm((ch,)),                        # bias (beta)
                0.1 * nrm((ch,)),                        # running_mean
                1.0 + 0.1 * jnp.abs(nrm((ch,))))         # running_var

    def conv_w(co, ci, k):
        return nrm((co, ci, k, k), scale=1.0 / ((ci * k * k) ** 0.5))

    params = {
        'cv1': {'w': conv_w(2 * C, C1, 1), 'bn': bn_params(2 * C)},
        'm': [{'w1': conv_w(C, C, 3), 'bn1': bn_params(C),
               'w2': conv_w(C, C, 3), 'bn2': bn_params(C)}
              for _ in range(N_BOTTLENECK)],
        'proj': {'w': conv_w(C, C, 3), 'bn': bn_params(C)},
        'gl_w': nrm((EC, GC), scale=1.0 / (GC ** 0.5)),
        'gl_b': 0.1 * nrm((EC,)),
        'attn_bias': 0.2 * nrm((NH,)),
        'cv2': {'w': conv_w(C2_OUT, (3 + N_BOTTLENECK) * C, 1),
                'bn': bn_params(C2_OUT)},
    }

    x = nrm((B, C1, H, W))
    guide = nrm((B, N_TXT, GC))

    fwd = jax.jit(functools.partial(c2f_attn_forward, c=C, nh=NH, H=H, W=W))
    out = jax.block_until_ready(fwd(x, guide, params))

    ref = _c2f_attn_reference(x, guide, params, c=C, nh=NH)
    assert out.shape == (B, C2_OUT, H, W), out.shape
    err = float(jnp.max(jnp.abs(out - ref)))
    assert err < 2e-3, f"max abs err {err}"
    print("KERNEL_OK")
</pallas_src>

<mosaic_0001>
module attributes {stable_mosaic.version = 11 : i64} {
  func.func @_bottleneck_kernel(%arg0: i32, %arg1: memref<1x16x256xf32, #tpu.memory_space<vmem>>, %arg2: memref<9x16x16xf32, #tpu.memory_space<vmem>>, %arg3: memref<16x1xf32, #tpu.memory_space<vmem>>, %arg4: memref<9x16x16xf32, #tpu.memory_space<vmem>>, %arg5: memref<16x1xf32, #tpu.memory_space<vmem>>, %arg6: memref<1x16x256xf32, #tpu.memory_space<vmem>>) attributes {dimension_semantics = [#tpu.dimension_semantics<parallel>], iteration_bounds = array<i64: 2>, scalar_prefetch = 0 : i64, scratch_operands = 0 : i64, tpu.core_type = #tpu.core_type<tc>, window_params = [{transform_indices = @transform_0, window_bounds = array<i64: 1, 16, 256>}, {pipeline_mode = #tpu.pipeline_mode<synchronous>, transform_indices = @transform_1, window_bounds = array<i64: 9, 16, 16>}, {pipeline_mode = #tpu.pipeline_mode<synchronous>, transform_indices = @transform_2, window_bounds = array<i64: 16, 1>}, {pipeline_mode = #tpu.pipeline_mode<synchronous>, transform_indices = @transform_3, window_bounds = array<i64: 9, 16, 16>}, {pipeline_mode = #tpu.pipeline_mode<synchronous>, transform_indices = @transform_4, window_bounds = array<i64: 16, 1>}, {transform_indices = @transform_5, window_bounds = array<i64: 1, 16, 256>}]} {
    %0 = tpu.iota {dimensions = array<i32: 1>} : vector<1x256xi32>
    %c16_i32 = arith.constant 16 : i32
    %c0_i32 = arith.constant 0 : i32
    %1 = arith.cmpi eq, %c16_i32, %c0_i32 : i32
    %c1_i32 = arith.constant 1 : i32
    %2 = arith.select %1, %c1_i32, %c16_i32 : i32
    %3 = vector.broadcast %2 : i32 to vector<1x256xi32>
    %4 = arith.remsi %0, %3 : vector<1x256xi32>
    %c0_i32_0 = arith.constant 0 : i32
    %5 = vector.broadcast %c0_i32_0 : i32 to vector<1x256xi32>
    %6 = arith.cmpi ne, %4, %5 : vector<1x256xi32>
    %c0_i32_1 = arith.constant 0 : i32
    %7 = vector.broadcast %c0_i32_1 : i32 to vector<1x256xi32>
    %8 = arith.cmpi slt, %4, %7 : vector<1x256xi32>
    %c0_i32_2 = arith.constant 0 : i32
    %9 = arith.cmpi slt, %2, %c0_i32_2 : i32
    %10 = vector.broadcast %9 : i1 to vector<1x256xi1>
    %11 = vector.broadcast %10 : vector<1x256xi1> to vector<1x256xi1>
    %12 = arith.xori %8, %11 : vector<1x256xi1>
    %13 = arith.andi %12, %6 : vector<1x256xi1>
    %14 = vector.broadcast %2 : i32 to vector<1x256xi32>
    %15 = arith.addi %4, %14 : vector<1x256xi32>
    %16 = arith.select %13, %15, %4 : vector<1x256xi1>, vector<1x256xi32>
    %c16_i32_3 = arith.constant 16 : i32
    %17 = vector.broadcast %c16_i32_3 : i32 to vector<1x256xi32>
    %18 = arith.cmpi sge, %0, %17 : vector<1x256xi32>
    %c1_i32_4 = arith.constant 1 : i32
    %19 = vector.broadcast %c1_i32_4 : i32 to vector<1x256xi32>
    %20 = arith.cmpi sge, %16, %19 : vector<1x256xi32>
    %21 = arith.andi %18, %20 : vector<1x256xi1>
    %22 = arith.extui %21 : vector<1x256xi1> to vector<1x256xi32>
    %23 = arith.sitofp %22 : vector<1x256xi32> to vector<1x256xf32>
    %c16_i32_5 = arith.constant 16 : i32
    %24 = vector.broadcast %c16_i32_5 : i32 to vector<1x256xi32>
    %25 = arith.cmpi sge, %0, %24 : vector<1x256xi32>
    %26 = arith.extui %25 : vector<1x256xi1> to vector<1x256xi32>
    %27 = arith.sitofp %26 : vector<1x256xi32> to vector<1x256xf32>
    %c16_i32_6 = arith.constant 16 : i32
    %28 = vector.broadcast %c16_i32_6 : i32 to vector<1x256xi32>
    %29 = arith.cmpi sge, %0, %28 : vector<1x256xi32>
    %c15_i32 = arith.constant 15 : i32
    %30 = vector.broadcast %c15_i32 : i32 to vector<1x256xi32>
    %31 = arith.cmpi slt, %16, %30 : vector<1x256xi32>
    %32 = arith.andi %29, %31 : vector<1x256xi1>
    %33 = arith.extui %32 : vector<1x256xi1> to vector<1x256xi32>
    %34 = arith.sitofp %33 : vector<1x256xi32> to vector<1x256xf32>
    %c1_i32_7 = arith.constant 1 : i32
    %35 = vector.broadcast %c1_i32_7 : i32 to vector<1x256xi32>
    %36 = arith.cmpi sge, %16, %35 : vector<1x256xi32>
    %37 = arith.extui %36 : vector<1x256xi1> to vector<1x256xi32>
    %38 = arith.sitofp %37 : vector<1x256xi32> to vector<1x256xf32>
    %c15_i32_8 = arith.constant 15 : i32
    %39 = vector.broadcast %c15_i32_8 : i32 to vector<1x256xi32>
    %40 = arith.cmpi slt, %16, %39 : vector<1x256xi32>
    %41 = arith.extui %40 : vector<1x256xi1> to vector<1x256xi32>
    %42 = arith.sitofp %41 : vector<1x256xi32> to vector<1x256xf32>
    %c240_i32 = arith.constant 240 : i32
    %43 = vector.broadcast %c240_i32 : i32 to vector<1x256xi32>
    %44 = arith.cmpi slt, %0, %43 : vector<1x256xi32>
    %c1_i32_9 = arith.constant 1 : i32
    %45 = vector.broadcast %c1_i32_9 : i32 to vector<1x256xi32>
    %46 = arith.cmpi sge, %16, %45 : vector<1x256xi32>
    %47 = arith.andi %44, %46 : vector<1x256xi1>
    %48 = arith.extui %47 : vector<1x256xi1> to vector<1x256xi32>
    %49 = arith.sitofp %48 : vector<1x256xi32> to vector<1x256xf32>
    %c240_i32_10 = arith.constant 240 : i32
    %50 = vector.broadcast %c240_i32_10 : i32 to vector<1x256xi32>
    %51 = arith.cmpi slt, %0, %50 : vector<1x256xi32>
    %52 = arith.extui %51 : vector<1x256xi1> to vector<1x256xi32>
    %53 = arith.sitofp %52 : vector<1x256xi32> to vector<1x256xf32>
    %c240_i32_11 = arith.constant 240 : i32
    %54 = vector.broadcast %c240_i32_11 : i32 to vector<1x256xi32>
    %55 = arith.cmpi slt, %0, %54 : vector<1x256xi32>
    %c15_i32_12 = arith.constant 15 : i32
    %56 = vector.broadcast %c15_i32_12 : i32 to vector<1x256xi32>
    %57 = arith.cmpi slt, %16, %56 : vector<1x256xi32>
    %58 = arith.andi %55, %57 : vector<1x256xi1>
    %59 = arith.extui %58 : vector<1x256xi1> to vector<1x256xi32>
    %60 = arith.sitofp %59 : vector<1x256xi32> to vector<1x256xf32>
    %c0 = arith.constant 0 : index
    %c0_13 = arith.constant 0 : index
    %c0_14 = arith.constant 0 : index
    %61 = vector.load %arg1[%c0, %c0_13, %c0_14] : memref<1x16x256xf32, #tpu.memory_space<vmem>>, vector<1x16x256xf32>
    %62 = vector.shape_cast %61 : vector<1x16x256xf32> to vector<16x256xf32>
    %c0_15 = arith.constant 0 : index
    %c0_16 = arith.constant 0 : index
    %63 = vector.load %arg3[%c0_15, %c0_16] : memref<16x1xf32, #tpu.memory_space<vmem>>, vector<16x1xf32>
    %cst = arith.constant 0.000000e+00 : f32
    %64 = vector.broadcast %cst : f32 to vector<16x256xf32>
    %c17_i32 = arith.constant 17 : i32
    %65 = tpu.dynamic_rotate %62 by %c17_i32 dim 1 : vector<16x256xf32>, i32 -> vector<16x256xf32>
    %66 = vector.broadcast %23 : vector<1x256xf32> to vector<16x256xf32>
    %67 = arith.mulf %65, %66 : vector<16x256xf32>
    %c0_17 = arith.constant 0 : index
    %c0_18 = arith.constant 0 : index
    %c0_19 = arith.constant 0 : index
    %68 = vector.load %arg2[%c0_17, %c0_18, %c0_19] : memref<9x16x16xf32, #tpu.memory_space<vmem>>, vector<1x16x16xf32>
    %69 = vector.shape_cast %68 : vector<1x16x16xf32> to vector<16x16xf32>
    %cst_20 = arith.constant dense<0.000000e+00> : vector<16x256xf32>
    %70 = tpu.matmul %69, %67, %cst_20 {dimension_numbers = #tpu.dot_dimension_numbers<[1], [0], [0], [1], [0, 0, 1, 1], [], []>} : vector<16x16xf32>, vector<16x256xf32>, vector<16x256xf32> -> vector<16x256xf32>
    %71 = arith.addf %64, %70 : vector<16x256xf32>
    %c16_i32_21 = arith.constant 16 : i32
    %72 = tpu.dynamic_rotate %62 by %c16_i32_21 dim 1 : vector<16x256xf32>, i32 -> vector<16x256xf32>
    %73 = vector.broadcast %27 : vector<1x256xf32> to vector<16x256xf32>
    %74 = arith.mulf %72, %73 : vector<16x256xf32>
    %c1 = arith.constant 1 : index
    %c0_22 = arith.constant 0 : index
    %c0_23 = arith.constant 0 : index
    %75 = vector.load %arg2[%c1, %c0_22, %c0_23] : memref<9x16x16xf32, #tpu.memory_space<vmem>>, vector<1x16x16xf32>
    %76 = vector.shape_cast %75 : vector<1x16x16xf32> to vector<16x16xf32>
    %cst_24 = arith.constant dense<0.000000e+00> : vector<16x256xf32>
    %77 = tpu.matmul %76, %74, %cst_24 {dimension_numbers = #tpu.dot_dimension_numbers<[1], [0], [0], [1], [0, 0, 1, 1], [], []>} : vector<16x16xf32>, vector<16x256xf32>, vector<16x256xf32> -> vector<16x256xf32>
    %78 = arith.addf %71, %77 : vector<16x256xf32>
    %c15_i32_25 = arith.constant 15 : i32
    %79 = tpu.dynamic_rotate %62 by %c15_i32_25 dim 1 : vector<16x256xf32>, i32 -> vector<16x256xf32>
    %80 = vector.broadcast %34 : vector<1x256xf32> to vector<16x256xf32>
    %81 = arith.mulf %79, %80 : vector<16x256xf32>
    %c2 = arith.constant 2 : index
    %c0_26 = arith.constant 0 : index
    %c0_27 = arith.constant 0 : index
    %82 = vector.load %arg2[%c2, %c0_26, %c0_27] : memref<9x16x16xf32, #tpu.memory_space<vmem>>, vector<1x16x16xf32>
    %83 = vector.shape_cast %82 : vector<1x16x16xf32> to vector<16x16xf32>
    %cst_28 = arith.constant dense<0.000000e+00> : vector<16x256xf32>
    %84 = tpu.matmul %83, %81, %cst_28 {dimension_numbers = #tpu.dot_dimension_numbers<[1], [0], [0], [1], [0, 0, 1, 1], [], []>} : vector<16x16xf32>, vector<16x256xf32>, vector<16x256xf32> -> vector<16x256xf32>
    %85 = arith.addf %78, %84 : vector<16x256xf32>
    %c1_i32_29 = arith.constant 1 : i32
    %86 = tpu.dynamic_rotate %62 by %c1_i32_29 dim 1 : vector<16x256xf32>, i32 -> vector<16x256xf32>
    %87 = vector.broadcast %38 : vector<1x256xf32> to vector<16x256xf32>
    %88 = arith.mulf %86, %87 : vector<16x256xf32>
    %c3 = arith.constant 3 : index
    %c0_30 = arith.constant 0 : index
    %c0_31 = arith.constant 0 : index
    %89 = vector.load %arg2[%c3, %c0_30, %c0_31] : memref<9x16x16xf32, #tpu.memory_space<vmem>>, vector<1x16x16xf32>
    %90 = vector.shape_cast %89 : vector<1x16x16xf32> to vector<16x16xf32>
    %cst_32 = arith.constant dense<0.000000e+00> : vector<16x256xf32>
    %91 = tpu.matmul %90, %88, %cst_32 {dimension_numbers = #tpu.dot_dimension_numbers<[1], [0], [0], [1], [0, 0, 1, 1], [], []>} : vector<16x16xf32>, vector<16x256xf32>, vector<16x256xf32> -> vector<16x256xf32>
    %92 = arith.addf %85, %91 : vector<16x256xf32>
    %c4 = arith.constant 4 : index
    %c0_33 = arith.constant 0 : index
    %c0_34 = arith.constant 0 : index
    %93 = vector.load %arg2[%c4, %c0_33, %c0_34] : memref<9x16x16xf32, #tpu.memory_space<vmem>>, vector<1x16x16xf32>
    %94 = vector.shape_cast %93 : vector<1x16x16xf32> to vector<16x16xf32>
    %cst_35 = arith.constant dense<0.000000e+00> : vector<16x256xf32>
    %95 = tpu.matmul %94, %62, %cst_35 {dimension_numbers = #tpu.dot_dimension_numbers<[1], [0], [0], [1], [0, 0, 1, 1], [], []>} : vector<16x16xf32>, vector<16x256xf32>, vector<16x256xf32> -> vector<16x256xf32>
    %96 = arith.addf %92, %95 : vector<16x256xf32>
    %c255_i32 = arith.constant 255 : i32
    %97 = tpu.dynamic_rotate %62 by %c255_i32 dim 1 : vector<16x256xf32>, i32 -> vector<16x256xf32>
    %98 = vector.broadcast %42 : vector<1x256xf32> to vector<16x256xf32>
    %99 = arith.mulf %97, %98 : vector<16x256xf32>
    %c5 = arith.constant 5 : index
    %c0_36 = arith.constant 0 : index
    %c0_37 = arith.constant 0 : index
    %100 = vector.load %arg2[%c5, %c0_36, %c0_37] : memref<9x16x16xf32, #tpu.memory_space<vmem>>, vector<1x16x16xf32>
    %101 = vector.shape_cast %100 : vector<1x16x16xf32> to vector<16x16xf32>
    %cst_38 = arith.constant dense<0.000000e+00> : vector<16x256xf32>
    %102 = tpu.matmul %101, %99, %cst_38 {dimension_numbers = #tpu.dot_dimension_numbers<[1], [0], [0], [1], [0, 0, 1, 1], [], []>} : vector<16x16xf32>, vector<16x256xf32>, vector<16x256xf32> -> vector<16x256xf32>
    %103 = arith.addf %96, %102 : vector<16x256xf32>
    %c241_i32 = arith.constant 241 : i32
    %104 = tpu.dynamic_rotate %62 by %c241_i32 dim 1 : vector<16x256xf32>, i32 -> vector<16x256xf32>
    %105 = vector.broadcast %49 : vector<1x256xf32> to vector<16x256xf32>
    %106 = arith.mulf %104, %105 : vector<16x256xf32>
    %c6 = arith.constant 6 : index
    %c0_39 = arith.constant 0 : index
    %c0_40 = arith.constant 0 : index
    %107 = vector.load %arg2[%c6, %c0_39, %c0_40] : memref<9x16x16xf32, #tpu.memory_space<vmem>>, vector<1x16x16xf32>
    %108 = vector.shape_cast %107 : vector<1x16x16xf32> to vector<16x16xf32>
    %cst_41 = arith.constant dense<0.000000e+00> : vector<16x256xf32>
    %109 = tpu.matmul %108, %106, %cst_41 {dimension_numbers = #tpu.dot_dimension_numbers<[1], [0], [0], [1], [0, 0, 1, 1], [], []>} : vector<16x16xf32>, vector<16x256xf32>, vector<16x256xf32> -> vector<16x256xf32>
    %110 = arith.addf %103, %109 : vector<16x256xf32>
    %c240_i32_42 = arith.constant 240 : i32
    %111 = tpu.dynamic_rotate %62 by %c240_i32_42 dim 1 : vector<16x256xf32>, i32 -> vector<16x256xf32>
    %112 = vector.broadcast %53 : vector<1x256xf32> to vector<16x256xf32>
    %113 = arith.mulf %111, %112 : vector<16x256xf32>
    %c7 = arith.constant 7 : index
    %c0_43 = arith.constant 0 : index
    %c0_44 = arith.constant 0 : index
    %114 = vector.load %arg2[%c7, %c0_43, %c0_44] : memref<9x16x16xf32, #tpu.memory_space<vmem>>, vector<1x16x16xf32>
    %115 = vector.shape_cast %114 : vector<1x16x16xf32> to vector<16x16xf32>
    %cst_45 = arith.constant dense<0.000000e+00> : vector<16x256xf32>
    %116 = tpu.matmul %115, %113, %cst_45 {dimension_numbers = #tpu.dot_dimension_numbers<[1], [0], [0], [1], [0, 0, 1, 1], [], []>} : vector<16x16xf32>, vector<16x256xf32>, vector<16x256xf32> -> vector<16x256xf32>
    %117 = arith.addf %110, %116 : vector<16x256xf32>
    %c239_i32 = arith.constant 239 : i32
    %118 = tpu.dynamic_rotate %62 by %c239_i32 dim 1 : vector<16x256xf32>, i32 -> vector<16x256xf32>
    %119 = vector.broadcast %60 : vector<1x256xf32> to vector<16x256xf32>
    %120 = arith.mulf %118, %119 : vector<16x256xf32>
    %c8 = arith.constant 8 : index
    %c0_46 = arith.constant 0 : index
    %c0_47 = arith.constant 0 : index
    %121 = vector.load %arg2[%c8, %c0_46, %c0_47] : memref<9x16x16xf32, #tpu.memory_space<vmem>>, vector<1x16x16xf32>
    %122 = vector.shape_cast %121 : vector<1x16x16xf32> to vector<16x16xf32>
    %cst_48 = arith.constant dense<0.000000e+00> : vector<16x256xf32>
    %123 = tpu.matmul %122, %120, %cst_48 {dimension_numbers = #tpu.dot_dimension_numbers<[1], [0], [0], [1], [0, 0, 1, 1], [], []>} : vector<16x16xf32>, vector<16x256xf32>, vector<16x256xf32> -> vector<16x256xf32>
    %124 = arith.addf %117, %123 : vector<16x256xf32>
    %125 = vector.broadcast %63 : vector<16x1xf32> to vector<16x256xf32>
    %126 = arith.addf %124, %125 : vector<16x256xf32>
    %cst_49 = arith.constant 0.000000e+00 : f32
    %127 = vector.broadcast %cst_49 : f32 to vector<16x256xf32>
    %128 = arith.subf %127, %126 : vector<16x256xf32>
    %129 = math.exp %128 : vector<16x256xf32>
    %cst_50 = arith.constant 1.000000e+00 : f32
    %130 = vector.broadcast %cst_50 : f32 to vector<16x256xf32>
    %131 = arith.addf %130, %129 : vector<16x256xf32>
    %132 = arith.divf %126, %131 : vector<16x256xf32>
    %c0_51 = arith.constant 0 : index
    %c0_52 = arith.constant 0 : index
    %133 = vector.load %arg5[%c0_51, %c0_52] : memref<16x1xf32, #tpu.memory_space<vmem>>, vector<16x1xf32>
    %cst_53 = arith.constant 0.000000e+00 : f32
    %134 = vector.broadcast %cst_53 : f32 to vector<16x256xf32>
    %c17_i32_54 = arith.constant 17 : i32
    %135 = tpu.dynamic_rotate %132 by %c17_i32_54 dim 1 : vector<16x256xf32>, i32 -> vector<16x256xf32>
    %136 = vector.broadcast %23 : vector<1x256xf32> to vector<16x256xf32>
    %137 = arith.mulf %135, %136 : vector<16x256xf32>
    %c0_55 = arith.constant 0 : index
    %c0_56 = arith.constant 0 : index
    %c0_57 = arith.constant 0 : index
    %138 = vector.load %arg4[%c0_55, %c0_56, %c0_57] : memref<9x16x16xf32, #tpu.memory_space<vmem>>, vector<1x16x16xf32>
    %139 = vector.shape_cast %138 : vector<1x16x16xf32> to vector<16x16xf32>
    %cst_58 = arith.constant dense<0.000000e+00> : vector<16x256xf32>
    %140 = tpu.matmul %139, %137, %cst_58 {dimension_numbers = #tpu.dot_dimension_numbers<[1], [0], [0], [1], [0, 0, 1, 1], [], []>} : vector<16x16xf32>, vector<16x256xf32>, vector<16x256xf32> -> vector<16x256xf32>
    %141 = arith.addf %134, %140 : vector<16x256xf32>
    %c16_i32_59 = arith.constant 16 : i32
    %142 = tpu.dynamic_rotate %132 by %c16_i32_59 dim 1 : vector<16x256xf32>, i32 -> vector<16x256xf32>
    %143 = vector.broadcast %27 : vector<1x256xf32> to vector<16x256xf32>
    %144 = arith.mulf %142, %143 : vector<16x256xf32>
    %c1_60 = arith.constant 1 : index
    %c0_61 = arith.constant 0 : index
    %c0_62 = arith.constant 0 : index
    %145 = vector.load %arg4[%c1_60, %c0_61, %c0_62] : memref<9x16x16xf32, #tpu.memory_space<vmem>>, vector<1x16x16xf32>
    %146 = vector.shape_cast %145 : vector<1x16x16xf32> to vector<16x16xf32>
    %cst_63 = arith.constant dense<0.000000e+00> : vector<16x256xf32>
    %147 = tpu.matmul %146, %144, %cst_63 {dimension_numbers = #tpu.dot_dimension_numbers<[1], [0], [0], [1], [0, 0, 1, 1], [], []>} : vector<16x16xf32>, vector<16x256xf32>, vector<16x256xf32> -> vector<16x256xf32>
    %148 = arith.addf %141, %147 : vector<16x256xf32>
    %c15_i32_64 = arith.constant 15 : i32
    %149 = tpu.dynamic_rotate %132 by %c15_i32_64 dim 1 : vector<16x256xf32>, i32 -> vector<16x256xf32>
    %150 = vector.broadcast %34 : vector<1x256xf32> to vector<16x256xf32>
    %151 = arith.mulf %149, %150 : vector<16x256xf32>
    %c2_65 = arith.constant 2 : index
    %c0_66 = arith.constant 0 : index
    %c0_67 = arith.constant 0 : index
    %152 = vector.load %arg4[%c2_65, %c0_66, %c0_67] : memref<9x16x16xf32, #tpu.memory_space<vmem>>, vector<1x16x16xf32>
    %153 = vector.shape_cast %152 : vector<1x16x16xf32> to vector<16x16xf32>
    %cst_68 = arith.constant dense<0.000000e+00> : vector<16x256xf32>
    %154 = tpu.matmul %153, %151, %cst_68 {dimension_numbers = #tpu.dot_dimension_numbers<[1], [0], [0], [1], [0, 0, 1, 1], [], []>} : vector<16x16xf32>, vector<16x256xf32>, vector<16x256xf32> -> vector<16x256xf32>
    %155 = arith.addf %148, %154 : vector<16x256xf32>
    %c1_i32_69 = arith.constant 1 : i32
    %156 = tpu.dynamic_rotate %132 by %c1_i32_69 dim 1 : vector<16x256xf32>, i32 -> vector<16x256xf32>
    %157 = vector.broadcast %38 : vector<1x256xf32> to vector<16x256xf32>
    %158 = arith.mulf %156, %157 : vector<16x256xf32>
    %c3_70 = arith.constant 3 : index
    %c0_71 = arith.constant 0 : index
    %c0_72 = arith.constant 0 : index
    %159 = vector.load %arg4[%c3_70, %c0_71, %c0_72] : memref<9x16x16xf32, #tpu.memory_space<vmem>>, vector<1x16x16xf32>
    %160 = vector.shape_cast %159 : vector<1x16x16xf32> to vector<16x16xf32>
    %cst_73 = arith.constant dense<0.000000e+00> : vector<16x256xf32>
    %161 = tpu.matmul %160, %158, %cst_73 {dimension_numbers = #tpu.dot_dimension_numbers<[1], [0], [0], [1], [0, 0, 1, 1], [], []>} : vector<16x16xf32>, vector<16x256xf32>, vector<16x256xf32> -> vector<16x256xf32>
    %162 = arith.addf %155, %161 : vector<16x256xf32>
    %c4_74 = arith.constant 4 : index
    %c0_75 = arith.constant 0 : index
    %c0_76 = arith.constant 0 : index
    %163 = vector.load %arg4[%c4_74, %c0_75, %c0_76] : memref<9x16x16xf32, #tpu.memory_space<vmem>>, vector<1x16x16xf32>
    %164 = vector.shape_cast %163 : vector<1x16x16xf32> to vector<16x16xf32>
    %cst_77 = arith.constant dense<0.000000e+00> : vector<16x256xf32>
    %165 = tpu.matmul %164, %132, %cst_77 {dimension_numbers = #tpu.dot_dimension_numbers<[1], [0], [0], [1], [0, 0, 1, 1], [], []>} : vector<16x16xf32>, vector<16x256xf32>, vector<16x256xf32> -> vector<16x256xf32>
    %166 = arith.addf %162, %165 : vector<16x256xf32>
    %c255_i32_78 = arith.constant 255 : i32
    %167 = tpu.dynamic_rotate %132 by %c255_i32_78 dim 1 : vector<16x256xf32>, i32 -> vector<16x256xf32>
    %168 = vector.broadcast %42 : vector<1x256xf32> to vector<16x256xf32>
    %169 = arith.mulf %167, %168 : vector<16x256xf32>
    %c5_79 = arith.constant 5 : index
    %c0_80 = arith.constant 0 : index
    %c0_81 = arith.constant 0 : index
    %170 = vector.load %arg4[%c5_79, %c0_80, %c0_81] : memref<9x16x16xf32, #tpu.memory_space<vmem>>, vector<1x16x16xf32>
    %171 = vector.shape_cast %170 : vector<1x16x16xf32> to vector<16x16xf32>
    %cst_82 = arith.constant dense<0.000000e+00> : vector<16x256xf32>
    %172 = tpu.matmul %171, %169, %cst_82 {dimension_numbers = #tpu.dot_dimension_numbers<[1], [0], [0], [1], [0, 0, 1, 1], [], []>} : vector<16x16xf32>, vector<16x256xf32>, vector<16x256xf32> -> vector<16x256xf32>
    %173 = arith.addf %166, %172 : vector<16x256xf32>
    %c241_i32_83 = arith.constant 241 : i32
    %174 = tpu.dynamic_rotate %132 by %c241_i32_83 dim 1 : vector<16x256xf32>, i32 -> vector<16x256xf32>
    %175 = vector.broadcast %49 : vector<1x256xf32> to vector<16x256xf32>
    %176 = arith.mulf %174, %175 : vector<16x256xf32>
    %c6_84 = arith.constant 6 : index
    %c0_85 = arith.constant 0 : index
    %c0_86 = arith.constant 0 : index
    %177 = vector.load %arg4[%c6_84, %c0_85, %c0_86] : memref<9x16x16xf32, #tpu.memory_space<vmem>>, vector<1x16x16xf32>
    %178 = vector.shape_cast %177 : vector<1x16x16xf32> to vector<16x16xf32>
    %cst_87 = arith.constant dense<0.000000e+00> : vector<16x256xf32>
    %179 = tpu.matmul %178, %176, %cst_87 {dimension_numbers = #tpu.dot_dimension_numbers<[1], [0], [0], [1], [0, 0, 1, 1], [], []>} : vector<16x16xf32>, vector<16x256xf32>, vector<16x256xf32> -> vector<16x256xf32>
    %180 = arith.addf %173, %179 : vector<16x256xf32>
    %c240_i32_88 = arith.constant 240 : i32
    %181 = tpu.dynamic_rotate %132 by %c240_i32_88 dim 1 : vector<16x256xf32>, i32 -> vector<16x256xf32>
    %182 = vector.broadcast %53 : vector<1x256xf32> to vector<16x256xf32>
    %183 = arith.mulf %181, %182 : vector<16x256xf32>
    %c7_89 = arith.constant 7 : index
    %c0_90 = arith.constant 0 : index
    %c0_91 = arith.constant 0 : index
    %184 = vector.load %arg4[%c7_89, %c0_90, %c0_91] : memref<9x16x16xf32, #tpu.memory_space<vmem>>, vector<1x16x16xf32>
    %185 = vector.shape_cast %184 : vector<1x16x16xf32> to vector<16x16xf32>
    %cst_92 = arith.constant dense<0.000000e+00> : vector<16x256xf32>
    %186 = tpu.matmul %185, %183, %cst_92 {dimension_numbers = #tpu.dot_dimension_numbers<[1], [0], [0], [1], [0, 0, 1, 1], [], []>} : vector<16x16xf32>, vector<16x256xf32>, vector<16x256xf32> -> vector<16x256xf32>
    %187 = arith.addf %180, %186 : vector<16x256xf32>
    %c239_i32_93 = arith.constant 239 : i32
    %188 = tpu.dynamic_rotate %132 by %c239_i32_93 dim 1 : vector<16x256xf32>, i32 -> vector<16x256xf32>
    %189 = vector.broadcast %60 : vector<1x256xf32> to vector<16x256xf32>
    %190 = arith.mulf %188, %189 : vector<16x256xf32>
    %c8_94 = arith.constant 8 : index
    %c0_95 = arith.constant 0 : index
    %c0_96 = arith.constant 0 : index
    %191 = vector.load %arg4[%c8_94, %c0_95, %c0_96] : memref<9x16x16xf32, #tpu.memory_space<vmem>>, vector<1x16x16xf32>
    %192 = vector.shape_cast %191 : vector<1x16x16xf32> to vector<16x16xf32>
    %cst_97 = arith.constant dense<0.000000e+00> : vector<16x256xf32>
    %193 = tpu.matmul %192, %190, %cst_97 {dimension_numbers = #tpu.dot_dimension_numbers<[1], [0], [0], [1], [0, 0, 1, 1], [], []>} : vector<16x16xf32>, vector<16x256xf32>, vector<16x256xf32> -> vector<16x256xf32>
    %194 = arith.addf %187, %193 : vector<16x256xf32>
    %195 = vector.broadcast %133 : vector<16x1xf32> to vector<16x256xf32>
    %196 = arith.addf %194, %195 : vector<16x256xf32>
    %cst_98 = arith.constant 0.000000e+00 : f32
    %197 = vector.broadcast %cst_98 : f32 to vector<16x256xf32>
    %198 = arith.subf %197, %196 : vector<16x256xf32>
    %199 = math.exp %198 : vector<16x256xf32>
    %cst_99 = arith.constant 1.000000e+00 : f32
    %200 = vector.broadcast %cst_99 : f32 to vector<16x256xf32>
    %201 = arith.addf %200, %199 : vector<16x256xf32>
    %202 = arith.divf %196, %201 : vector<16x256xf32>
    %c0_100 = arith.constant 0 : index
    %c0_101 = arith.constant 0 : index
    %c0_102 = arith.constant 0 : index
    %203 = vector.load %arg6[%c0_100, %c0_101, %c0_102] : memref<1x16x256xf32, #tpu.memory_space<vmem>>, vector<1x16x256xf32>
    %204 = vector.shape_cast %203 : vector<1x16x256xf32> to vector<16x256xf32>
    %205 = vector.shape_cast %202 : vector<16x256xf32> to vector<1x16x256xf32>
    tpu.vector_store %arg6[%c0_100, %c0_101, %c0_102], %205 {strides = array<i32>} : memref<1x16x256xf32, #tpu.memory_space<vmem>>, vector<1x16x256xf32>,
    return
  }
  func.func @transform_0(%arg0: i32) -> (i32, i32, i32) {
    %c0_i32 = arith.constant 0 : i32
    %c0_i32_0 = arith.constant 0 : i32
    %c0_i32_1 = arith.constant 0 : i32
    return %arg0, %c0_i32, %c0_i32_0 : i32, i32, i32
  }
  func.func @transform_1(%arg0: i32) -> (i32, i32, i32) {
    %c0_i32 = arith.constant 0 : i32
    %c0_i32_0 = arith.constant 0 : i32
    %c0_i32_1 = arith.constant 0 : i32
    %c0_i32_2 = arith.constant 0 : i32
    return %c0_i32, %c0_i32_0, %c0_i32_1 : i32, i32, i32
  }
  func.func @transform_2(%arg0: i32) -> (i32, i32) {
    %c0_i32 = arith.constant 0 : i32
    %c0_i32_0 = arith.constant 0 : i32
    %c0_i32_1 = arith.constant 0 : i32
    return %c0_i32, %c0_i32_0 : i32, i32
  }
  func.func @transform_3(%arg0: i32) -> (i32, i32, i32) {
    %c0_i32 = arith.constant 0 : i32
    %c0_i32_0 = arith.constant 0 : i32
    %c0_i32_1 = arith.constant 0 : i32
    %c0_i32_2 = arith.constant 0 : i32
    return %c0_i32, %c0_i32_0, %c0_i32_1 : i32, i32, i32
  }
  func.func @transform_4(%arg0: i32) -> (i32, i32) {
    %c0_i32 = arith.constant 0 : i32
    %c0_i32_0 = arith.constant 0 : i32
    %c0_i32_1 = arith.constant 0 : i32
    return %c0_i32, %c0_i32_0 : i32, i32
  }
  func.func @transform_5(%arg0: i32) -> (i32, i32, i32) {
    %c0_i32 = arith.constant 0 : i32
    %c0_i32_0 = arith.constant 0 : i32
    %c0_i32_1 = arith.constant 0 : i32
    return %arg0, %c0_i32, %c0_i32_0 : i32, i32, i32
  }
}

module attributes {stable_mosaic.version = 11 : i64} {
  func.func @_cv1_kernel(%arg0: i32, %arg1: i32, %arg2: memref<1x32x256xf32, #tpu.memory_space<vmem>>, %arg3: memref<32x32xf32, #tpu.memory_space<vmem>>, %arg4: memref<32x1xf32, #tpu.memory_space<vmem>>, %arg5: memref<1x16x256xf32, #tpu.memory_space<vmem>>, %arg6: memref<1x16x256xf32, #tpu.memory_space<vmem>>) attributes {dimension_semantics = [#tpu.dimension_semantics<parallel>, #tpu.dimension_semantics<parallel>], iteration_bounds = array<i64: 2, 1>, scalar_prefetch = 0 : i64, scratch_operands = 0 : i64, tpu.core_type = #tpu.core_type<tc>, window_params = [{transform_indices = @transform_0, window_bounds = array<i64: 1, 32, 256>}, {pipeline_mode = #tpu.pipeline_mode<synchronous>, transform_indices = @transform_1, window_bounds = array<i64: 32, 32>}, {pipeline_mode = #tpu.pipeline_mode<synchronous>, transform_indices = @transform_2, window_bounds = array<i64: 32, 1>}, {transform_indices = @transform_3, window_bounds = array<i64: 1, 16, 256>}, {transform_indices = @transform_4, window_bounds = array<i64: 1, 16, 256>}]} {
    %c0 = arith.constant 0 : index
    %c0_0 = arith.constant 0 : index
    %c0_1 = arith.constant 0 : index
    %0 = vector.load %arg2[%c0, %c0_0, %c0_1] : memref<1x32x256xf32, #tpu.memory_space<vmem>>, vector<1x32x256xf32>
    %1 = vector.shape_cast %0 : vector<1x32x256xf32> to vector<32x256xf32>
    %c0_2 = arith.constant 0 : index
    %c0_3 = arith.constant 0 : index
    %2 = vector.load %arg3[%c0_2, %c0_3] : memref<32x32xf32, #tpu.memory_space<vmem>>, vector<32x32xf32>
    %cst = arith.constant dense<0.000000e+00> : vector<32x256xf32>
    %3 = tpu.matmul %2, %1, %cst {dimension_numbers = #tpu.dot_dimension_numbers<[1], [0], [0], [1], [0, 0, 1, 1], [], []>} : vector<32x32xf32>, vector<32x256xf32>, vector<32x256xf32> -> vector<32x256xf32>
    %c0_4 = arith.constant 0 : index
    %c0_5 = arith.constant 0 : index
    %4 = vector.load %arg4[%c0_4, %c0_5] : memref<32x1xf32, #tpu.memory_space<vmem>>, vector<32x1xf32>
    %5 = vector.broadcast %4 : vector<32x1xf32> to vector<32x256xf32>
    %6 = arith.addf %3, %5 : vector<32x256xf32>
    %cst_6 = arith.constant 0.000000e+00 : f32
    %7 = vector.broadcast %cst_6 : f32 to vector<32x256xf32>
    %8 = arith.subf %7, %6 : vector<32x256xf32>
    %9 = math.exp %8 : vector<32x256xf32>
    %cst_7 = arith.constant 1.000000e+00 : f32
    %10 = vector.broadcast %cst_7 : f32 to vector<32x256xf32>
    %11 = arith.addf %10, %9 : vector<32x256xf32>
    %12 = arith.divf %6, %11 : vector<32x256xf32>
    %13 = vector.extract_strided_slice %12 {offsets = [0, 0], sizes = [16, 256], strides = [1, 1]} : vector<32x256xf32> to vector<16x256xf32>
    %c0_8 = arith.constant 0 : index
    %c0_9 = arith.constant 0 : index
    %c0_10 = arith.constant 0 : index
    %14 = vector.load %arg5[%c0_8, %c0_9, %c0_10] : memref<1x16x256xf32, #tpu.memory_space<vmem>>, vector<1x16x256xf32>
    %15 = vector.shape_cast %14 : vector<1x16x256xf32> to vector<16x256xf32>
    %16 = vector.shape_cast %13 : vector<16x256xf32> to vector<1x16x256xf32>
    tpu.vector_store %arg5[%c0_8, %c0_9, %c0_10], %16 {strides = array<i32>} : memref<1x16x256xf32, #tpu.memory_space<vmem>>, vector<1x16x256xf32>,
    %17 = vector.extract_strided_slice %12 {offsets = [16, 0], sizes = [16, 256], strides = [1, 1]} : vector<32x256xf32> to vector<16x256xf32>
    %c0_11 = arith.constant 0 : index
    %c0_12 = arith.constant 0 : index
    %c0_13 = arith.constant 0 : index
    %18 = vector.load %arg6[%c0_11, %c0_12, %c0_13] : memref<1x16x256xf32, #tpu.memory_space<vmem>>, vector<1x16x256xf32>
    %19 = vector.shape_cast %18 : vector<1x16x256xf32> to vector<16x256xf32>
    %20 = vector.shape_cast %17 : vector<16x256xf32> to vector<1x16x256xf32>
    tpu.vector_store %arg6[%c0_11, %c0_12, %c0_13], %20 {strides = array<i32>} : memref<1x16x256xf32, #tpu.memory_space<vmem>>, vector<1x16x256xf32>,
    return
  }
  func.func @transform_0(%arg0: i32, %arg1: i32) -> (i32, i32, i32) {
    %c0_i32 = arith.constant 0 : i32
    %c0_i32_0 = arith.constant 0 : i32
    return %arg0, %c0_i32, %arg1 : i32, i32, i32
  }
  func.func @transform_1(%arg0: i32, %arg1: i32) -> (i32, i32) {
    %c0_i32 = arith.constant 0 : i32
    %c0_i32_0 = arith.constant 0 : i32
    %c0_i32_1 = arith.constant 0 : i32
    return %c0_i32, %c0_i32_0 : i32, i32
  }
  func.func @transform_2(%arg0: i32, %arg1: i32) -> (i32, i32) {
    %c0_i32 = arith.constant 0 : i32
    %c0_i32_0 = arith.constant 0 : i32
    %c0_i32_1 = arith.constant 0 : i32
    return %c0_i32, %c0_i32_0 : i32, i32
  }
  func.func @transform_3(%arg0: i32, %arg1: i32) -> (i32, i32, i32) {
    %c0_i32 = arith.constant 0 : i32
    %c0_i32_0 = arith.constant 0 : i32
    return %arg0, %c0_i32, %arg1 : i32, i32, i32
  }
  func.func @transform_4(%arg0: i32, %arg1: i32) -> (i32, i32, i32) {
    %c0_i32 = arith.constant 0 : i32
    %c0_i32_0 = arith.constant 0 : i32
    return %arg0, %c0_i32, %arg1 : i32, i32, i32
  }
}

module attributes {stable_mosaic.version = 11 : i64} {
  func.func @_attn_kernel(%arg0: i32, %arg1: memref<1x16x256xf32, #tpu.memory_space<vmem>>, %arg2: memref<1x8x32xf32, #tpu.memory_space<vmem>>, %arg3: memref<9x16x16xf32, #tpu.memory_space<vmem>>, %arg4: memref<16x1xf32, #tpu.memory_space<vmem>>, %arg5: memref<32x16xf32, #tpu.memory_space<vmem>>, %arg6: memref<1x16xf32, #tpu.memory_space<vmem>>, %arg7: memref<1xf32, #tpu.memory_space<smem>>, %arg8: memref<1x16x256xf32, #tpu.memory_space<vmem>>) attributes {dimension_semantics = [#tpu.dimension_semantics<parallel>], iteration_bounds = array<i64: 2>, scalar_prefetch = 0 : i64, scratch_operands = 0 : i64, tpu.core_type = #tpu.core_type<tc>, window_params = [{transform_indices = @transform_0, window_bounds = array<i64: 1, 16, 256>}, {transform_indices = @transform_1, window_bounds = array<i64: 1, 8, 32>}, {pipeline_mode = #tpu.pipeline_mode<synchronous>, transform_indices = @transform_2, window_bounds = array<i64: 9, 16, 16>}, {pipeline_mode = #tpu.pipeline_mode<synchronous>, transform_indices = @transform_3, window_bounds = array<i64: 16, 1>}, {pipeline_mode = #tpu.pipeline_mode<synchronous>, transform_indices = @transform_4, window_bounds = array<i64: 32, 16>}, {pipeline_mode = #tpu.pipeline_mode<synchronous>, transform_indices = @transform_5, window_bounds = array<i64: 1, 16>}, {transform_indices = @transform_6, window_bounds = array<i64: 1>}, {transform_indices = @transform_7, window_bounds = array<i64: 1, 16, 256>}]} {
    %0 = tpu.iota {dimensions = array<i32: 1>} : vector<1x256xi32>
    %c16_i32 = arith.constant 16 : i32
    %c0_i32 = arith.constant 0 : i32
    %1 = arith.cmpi eq, %c16_i32, %c0_i32 : i32
    %c1_i32 = arith.constant 1 : i32
    %2 = arith.select %1, %c1_i32, %c16_i32 : i32
    %3 = vector.broadcast %2 : i32 to vector<1x256xi32>
    %4 = arith.remsi %0, %3 : vector<1x256xi32>
    %c0_i32_0 = arith.constant 0 : i32
    %5 = vector.broadcast %c0_i32_0 : i32 to vector<1x256xi32>
    %6 = arith.cmpi ne, %4, %5 : vector<1x256xi32>
    %c0_i32_1 = arith.constant 0 : i32
    %7 = vector.broadcast %c0_i32_1 : i32 to vector<1x256xi32>
    %8 = arith.cmpi slt, %4, %7 : vector<1x256xi32>
    %c0_i32_2 = arith.constant 0 : i32
    %9 = arith.cmpi slt, %2, %c0_i32_2 : i32
    %10 = vector.broadcast %9 : i1 to vector<1x256xi1>
    %11 = vector.broadcast %10 : vector<1x256xi1> to vector<1x256xi1>
    %12 = arith.xori %8, %11 : vector<1x256xi1>
    %13 = arith.andi %12, %6 : vector<1x256xi1>
    %14 = vector.broadcast %2 : i32 to vector<1x256xi32>
    %15 = arith.addi %4, %14 : vector<1x256xi32>
    %16 = arith.select %13, %15, %4 : vector<1x256xi1>, vector<1x256xi32>
    %c16_i32_3 = arith.constant 16 : i32
    %17 = vector.broadcast %c16_i32_3 : i32 to vector<1x256xi32>
    %18 = arith.cmpi sge, %0, %17 : vector<1x256xi32>
    %c1_i32_4 = arith.constant 1 : i32
    %19 = vector.broadcast %c1_i32_4 : i32 to vector<1x256xi32>
    %20 = arith.cmpi sge, %16, %19 : vector<1x256xi32>
    %21 = arith.andi %18, %20 : vector<1x256xi1>
    %22 = arith.extui %21 : vector<1x256xi1> to vector<1x256xi32>
    %23 = arith.sitofp %22 : vector<1x256xi32> to vector<1x256xf32>
    %c16_i32_5 = arith.constant 16 : i32
    %24 = vector.broadcast %c16_i32_5 : i32 to vector<1x256xi32>
    %25 = arith.cmpi sge, %0, %24 : vector<1x256xi32>
    %26 = arith.extui %25 : vector<1x256xi1> to vector<1x256xi32>
    %27 = arith.sitofp %26 : vector<1x256xi32> to vector<1x256xf32>
    %c16_i32_6 = arith.constant 16 : i32
    %28 = vector.broadcast %c16_i32_6 : i32 to vector<1x256xi32>
    %29 = arith.cmpi sge, %0, %28 : vector<1x256xi32>
    %c15_i32 = arith.constant 15 : i32
    %30 = vector.broadcast %c15_i32 : i32 to vector<1x256xi32>
    %31 = arith.cmpi slt, %16, %30 : vector<1x256xi32>
    %32 = arith.andi %29, %31 : vector<1x256xi1>
    %33 = arith.extui %32 : vector<1x256xi1> to vector<1x256xi32>
    %34 = arith.sitofp %33 : vector<1x256xi32> to vector<1x256xf32>
    %c1_i32_7 = arith.constant 1 : i32
    %35 = vector.broadcast %c1_i32_7 : i32 to vector<1x256xi32>
    %36 = arith.cmpi sge, %16, %35 : vector<1x256xi32>
    %37 = arith.extui %36 : vector<1x256xi1> to vector<1x256xi32>
    %38 = arith.sitofp %37 : vector<1x256xi32> to vector<1x256xf32>
    %c15_i32_8 = arith.constant 15 : i32
    %39 = vector.broadcast %c15_i32_8 : i32 to vector<1x256xi32>
    %40 = arith.cmpi slt, %16, %39 : vector<1x256xi32>
    %41 = arith.extui %40 : vector<1x256xi1> to vector<1x256xi32>
    %42 = arith.sitofp %41 : vector<1x256xi32> to vector<1x256xf32>
    %c240_i32 = arith.constant 240 : i32
    %43 = vector.broadcast %c240_i32 : i32 to vector<1x256xi32>
    %44 = arith.cmpi slt, %0, %43 : vector<1x256xi32>
    %c1_i32_9 = arith.constant 1 : i32
    %45 = vector.broadcast %c1_i32_9 : i32 to vector<1x256xi32>
    %46 = arith.cmpi sge, %16, %45 : vector<1x256xi32>
    %47 = arith.andi %44, %46 : vector<1x256xi1>
    %48 = arith.extui %47 : vector<1x256xi1> to vector<1x256xi32>
    %49 = arith.sitofp %48 : vector<1x256xi32> to vector<1x256xf32>
    %c240_i32_10 = arith.constant 240 : i32
    %50 = vector.broadcast %c240_i32_10 : i32 to vector<1x256xi32>
    %51 = arith.cmpi slt, %0, %50 : vector<1x256xi32>
    %52 = arith.extui %51 : vector<1x256xi1> to vector<1x256xi32>
    %53 = arith.sitofp %52 : vector<1x256xi32> to vector<1x256xf32>
    %c240_i32_11 = arith.constant 240 : i32
    %54 = vector.broadcast %c240_i32_11 : i32 to vector<1x256xi32>
    %55 = arith.cmpi slt, %0, %54 : vector<1x256xi32>
    %c15_i32_12 = arith.constant 15 : i32
    %56 = vector.broadcast %c15_i32_12 : i32 to vector<1x256xi32>
    %57 = arith.cmpi slt, %16, %56 : vector<1x256xi32>
    %58 = arith.andi %55, %57 : vector<1x256xi1>
    %59 = arith.extui %58 : vector<1x256xi1> to vector<1x256xi32>
    %60 = arith.sitofp %59 : vector<1x256xi32> to vector<1x256xf32>
    %c0 = arith.constant 0 : index
    %c0_13 = arith.constant 0 : index
    %c0_14 = arith.constant 0 : index
    %61 = vector.load %arg1[%c0, %c0_13, %c0_14] : memref<1x16x256xf32, #tpu.memory_space<vmem>>, vector<1x16x256xf32>
    %62 = vector.shape_cast %61 : vector<1x16x256xf32> to vector<16x256xf32>
    %c0_15 = arith.constant 0 : index
    %c0_16 = arith.constant 0 : index
    %63 = vector.load %arg4[%c0_15, %c0_16] : memref<16x1xf32, #tpu.memory_space<vmem>>, vector<16x1xf32>
    %cst = arith.constant 0.000000e+00 : f32
    %64 = vector.broadcast %cst : f32 to vector<16x256xf32>
    %c17_i32 = arith.constant 17 : i32
    %65 = tpu.dynamic_rotate %62 by %c17_i32 dim 1 : vector<16x256xf32>, i32 -> vector<16x256xf32>
    %66 = vector.broadcast %23 : vector<1x256xf32> to vector<16x256xf32>
    %67 = arith.mulf %65, %66 : vector<16x256xf32>
    %c0_17 = arith.constant 0 : index
    %c0_18 = arith.constant 0 : index
    %c0_19 = arith.constant 0 : index
    %68 = vector.load %arg3[%c0_17, %c0_18, %c0_19] : memref<9x16x16xf32, #tpu.memory_space<vmem>>, vector<1x16x16xf32>
    %69 = vector.shape_cast %68 : vector<1x16x16xf32> to vector<16x16xf32>
    %cst_20 = arith.constant dense<0.000000e+00> : vector<16x256xf32>
    %70 = tpu.matmul %69, %67, %cst_20 {dimension_numbers = #tpu.dot_dimension_numbers<[1], [0], [0], [1], [0, 0, 1, 1], [], []>} : vector<16x16xf32>, vector<16x256xf32>, vector<16x256xf32> -> vector<16x256xf32>
    %71 = arith.addf %64, %70 : vector<16x256xf32>
    %c16_i32_21 = arith.constant 16 : i32
    %72 = tpu.dynamic_rotate %62 by %c16_i32_21 dim 1 : vector<16x256xf32>, i32 -> vector<16x256xf32>
    %73 = vector.broadcast %27 : vector<1x256xf32> to vector<16x256xf32>
    %74 = arith.mulf %72, %73 : vector<16x256xf32>
    %c1 = arith.constant 1 : index
    %c0_22 = arith.constant 0 : index
    %c0_23 = arith.constant 0 : index
    %75 = vector.load %arg3[%c1, %c0_22, %c0_23] : memref<9x16x16xf32, #tpu.memory_space<vmem>>, vector<1x16x16xf32>
    %76 = vector.shape_cast %75 : vector<1x16x16xf32> to vector<16x16xf32>
    %cst_24 = arith.constant dense<0.000000e+00> : vector<16x256xf32>
    %77 = tpu.matmul %76, %74, %cst_24 {dimension_numbers = #tpu.dot_dimension_numbers<[1], [0], [0], [1], [0, 0, 1, 1], [], []>} : vector<16x16xf32>, vector<16x256xf32>, vector<16x256xf32> -> vector<16x256xf32>
    %78 = arith.addf %71, %77 : vector<16x256xf32>
    %c15_i32_25 = arith.constant 15 : i32
    %79 = tpu.dynamic_rotate %62 by %c15_i32_25 dim 1 : vector<16x256xf32>, i32 -> vector<16x256xf32>
    %80 = vector.broadcast %34 : vector<1x256xf32> to vector<16x256xf32>
    %81 = arith.mulf %79, %80 : vector<16x256xf32>
    %c2 = arith.constant 2 : index
    %c0_26 = arith.constant 0 : index
    %c0_27 = arith.constant 0 : index
    %82 = vector.load %arg3[%c2, %c0_26, %c0_27] : memref<9x16x16xf32, #tpu.memory_space<vmem>>, vector<1x16x16xf32>
    %83 = vector.shape_cast %82 : vector<1x16x16xf32> to vector<16x16xf32>
    %cst_28 = arith.constant dense<0.000000e+00> : vector<16x256xf32>
    %84 = tpu.matmul %83, %81, %cst_28 {dimension_numbers = #tpu.dot_dimension_numbers<[1], [0], [0], [1], [0, 0, 1, 1], [], []>} : vector<16x16xf32>, vector<16x256xf32>, vector<16x256xf32> -> vector<16x256xf32>
    %85 = arith.addf %78, %84 : vector<16x256xf32>
    %c1_i32_29 = arith.constant 1 : i32
    %86 = tpu.dynamic_rotate %62 by %c1_i32_29 dim 1 : vector<16x256xf32>, i32 -> vector<16x256xf32>
    %87 = vector.broadcast %38 : vector<1x256xf32> to vector<16x256xf32>
    %88 = arith.mulf %86, %87 : vector<16x256xf32>
    %c3 = arith.constant 3 : index
    %c0_30 = arith.constant 0 : index
    %c0_31 = arith.constant 0 : index
    %89 = vector.load %arg3[%c3, %c0_30, %c0_31] : memref<9x16x16xf32, #tpu.memory_space<vmem>>, vector<1x16x16xf32>
    %90 = vector.shape_cast %89 : vector<1x16x16xf32> to vector<16x16xf32>
    %cst_32 = arith.constant dense<0.000000e+00> : vector<16x256xf32>
    %91 = tpu.matmul %90, %88, %cst_32 {dimension_numbers = #tpu.dot_dimension_numbers<[1], [0], [0], [1], [0, 0, 1, 1], [], []>} : vector<16x16xf32>, vector<16x256xf32>, vector<16x256xf32> -> vector<16x256xf32>
    %92 = arith.addf %85, %91 : vector<16x256xf32>
    %c4 = arith.constant 4 : index
    %c0_33 = arith.constant 0 : index
    %c0_34 = arith.constant 0 : index
    %93 = vector.load %arg3[%c4, %c0_33, %c0_34] : memref<9x16x16xf32, #tpu.memory_space<vmem>>, vector<1x16x16xf32>
    %94 = vector.shape_cast %93 : vector<1x16x16xf32> to vector<16x16xf32>
    %cst_35 = arith.constant dense<0.000000e+00> : vector<16x256xf32>
    %95 = tpu.matmul %94, %62, %cst_35 {dimension_numbers = #tpu.dot_dimension_numbers<[1], [0], [0], [1], [0, 0, 1, 1], [], []>} : vector<16x16xf32>, vector<16x256xf32>, vector<16x256xf32> -> vector<16x256xf32>
    %96 = arith.addf %92, %95 : vector<16x256xf32>
    %c255_i32 = arith.constant 255 : i32
    %97 = tpu.dynamic_rotate %62 by %c255_i32 dim 1 : vector<16x256xf32>, i32 -> vector<16x256xf32>
    %98 = vector.broadcast %42 : vector<1x256xf32> to vector<16x256xf32>
    %99 = arith.mulf %97, %98 : vector<16x256xf32>
    %c5 = arith.constant 5 : index
    %c0_36 = arith.constant 0 : index
    %c0_37 = arith.constant 0 : index
    %100 = vector.load %arg3[%c5, %c0_36, %c0_37] : memref<9x16x16xf32, #tpu.memory_space<vmem>>, vector<1x16x16xf32>
    %101 = vector.shape_cast %100 : vector<1x16x16xf32> to vector<16x16xf32>
    %cst_38 = arith.constant dense<0.000000e+00> : vector<16x256xf32>
    %102 = tpu.matmul %101, %99, %cst_38 {dimension_numbers = #tpu.dot_dimension_numbers<[1], [0], [0], [1], [0, 0, 1, 1], [], []>} : vector<16x16xf32>, vector<16x256xf32>, vector<16x256xf32> -> vector<16x256xf32>
    %103 = arith.addf %96, %102 : vector<16x256xf32>
    %c241_i32 = arith.constant 241 : i32
    %104 = tpu.dynamic_rotate %62 by %c241_i32 dim 1 : vector<16x256xf32>, i32 -> vector<16x256xf32>
    %105 = vector.broadcast %49 : vector<1x256xf32> to vector<16x256xf32>
    %106 = arith.mulf %104, %105 : vector<16x256xf32>
    %c6 = arith.constant 6 : index
    %c0_39 = arith.constant 0 : index
    %c0_40 = arith.constant 0 : index
    %107 = vector.load %arg3[%c6, %c0_39, %c0_40] : memref<9x16x16xf32, #tpu.memory_space<vmem>>, vector<1x16x16xf32>
    %108 = vector.shape_cast %107 : vector<1x16x16xf32> to vector<16x16xf32>
    %cst_41 = arith.constant dense<0.000000e+00> : vector<16x256xf32>
    %109 = tpu.matmul %108, %106, %cst_41 {dimension_numbers = #tpu.dot_dimension_numbers<[1], [0], [0], [1], [0, 0, 1, 1], [], []>} : vector<16x16xf32>, vector<16x256xf32>, vector<16x256xf32> -> vector<16x256xf32>
    %110 = arith.addf %103, %109 : vector<16x256xf32>
    %c240_i32_42 = arith.constant 240 : i32
    %111 = tpu.dynamic_rotate %62 by %c240_i32_42 dim 1 : vector<16x256xf32>, i32 -> vector<16x256xf32>
    %112 = vector.broadcast %53 : vector<1x256xf32> to vector<16x256xf32>
    %113 = arith.mulf %111, %112 : vector<16x256xf32>
    %c7 = arith.constant 7 : index
    %c0_43 = arith.constant 0 : index
    %c0_44 = arith.constant 0 : index
    %114 = vector.load %arg3[%c7, %c0_43, %c0_44] : memref<9x16x16xf32, #tpu.memory_space<vmem>>, vector<1x16x16xf32>
    %115 = vector.shape_cast %114 : vector<1x16x16xf32> to vector<16x16xf32>
    %cst_45 = arith.constant dense<0.000000e+00> : vector<16x256xf32>
    %116 = tpu.matmul %115, %113, %cst_45 {dimension_numbers = #tpu.dot_dimension_numbers<[1], [0], [0], [1], [0, 0, 1, 1], [], []>} : vector<16x16xf32>, vector<16x256xf32>, vector<16x256xf32> -> vector<16x256xf32>
    %117 = arith.addf %110, %116 : vector<16x256xf32>
    %c239_i32 = arith.constant 239 : i32
    %118 = tpu.dynamic_rotate %62 by %c239_i32 dim 1 : vector<16x256xf32>, i32 -> vector<16x256xf32>
    %119 = vector.broadcast %60 : vector<1x256xf32> to vector<16x256xf32>
    %120 = arith.mulf %118, %119 : vector<16x256xf32>
    %c8 = arith.constant 8 : index
    %c0_46 = arith.constant 0 : index
    %c0_47 = arith.constant 0 : index
    %121 = vector.load %arg3[%c8, %c0_46, %c0_47] : memref<9x16x16xf32, #tpu.memory_space<vmem>>, vector<1x16x16xf32>
    %122 = vector.shape_cast %121 : vector<1x16x16xf32> to vector<16x16xf32>
    %cst_48 = arith.constant dense<0.000000e+00> : vector<16x256xf32>
    %123 = tpu.matmul %122, %120, %cst_48 {dimension_numbers = #tpu.dot_dimension_numbers<[1], [0], [0], [1], [0, 0, 1, 1], [], []>} : vector<16x16xf32>, vector<16x256xf32>, vector<16x256xf32> -> vector<16x256xf32>
    %124 = arith.addf %117, %123 : vector<16x256xf32>
    %125 = vector.broadcast %63 : vector<16x1xf32> to vector<16x256xf32>
    %126 = arith.addf %124, %125 : vector<16x256xf32>
    %c0_49 = arith.constant 0 : index
    %c0_50 = arith.constant 0 : index
    %c0_51 = arith.constant 0 : index
    %127 = vector.load %arg2[%c0_49, %c0_50, %c0_51] : memref<1x8x32xf32, #tpu.memory_space<vmem>>, vector<1x8x32xf32>
    %128 = vector.shape_cast %127 : vector<1x8x32xf32> to vector<8x32xf32>
    %c0_52 = arith.constant 0 : index
    %c0_53 = arith.constant 0 : index
    %129 = vector.load %arg5[%c0_52, %c0_53] : memref<32x16xf32, #tpu.memory_space<vmem>>, vector<32x16xf32>
    %cst_54 = arith.constant dense<0.000000e+00> : vector<8x16xf32>
    %130 = tpu.matmul %128, %129, %cst_54 {dimension_numbers = #tpu.dot_dimension_numbers<[1], [0], [0], [1], [0, 0, 1, 1], [], []>} : vector<8x32xf32>, vector<32x16xf32>, vector<8x16xf32> -> vector<8x16xf32>
    %c0_55 = arith.constant 0 : index
    %c0_56 = arith.constant 0 : index
    %131 = vector.load %arg6[%c0_55, %c0_56] : memref<1x16xf32, #tpu.memory_space<vmem>>, vector<1x16xf32>
    %132 = vector.broadcast %131 : vector<1x16xf32> to vector<8x16xf32>
    %133 = arith.addf %130, %132 : vector<8x16xf32>
    %cst_57 = arith.constant dense<0.000000e+00> : vector<8x256xf32>
    %134 = tpu.matmul %133, %62, %cst_57 {dimension_numbers = #tpu.dot_dimension_numbers<[1], [0], [0], [1], [0, 0, 1, 1], [], []>} : vector<8x16xf32>, vector<16x256xf32>, vector<8x256xf32> -> vector<8x256xf32>
    %cst_58 = arith.constant dense<0xFF800000> : vector<256xf32>
    %135 = vector.multi_reduction <maximumf>, %134, %cst_58 [0] : vector<8x256xf32> to vector<256xf32>
    %136 = vector.shape_cast %135 : vector<256xf32> to vector<1x256xf32>
    %cst_59 = arith.constant 2.500000e-01 : f32
    %137 = vector.broadcast %cst_59 : f32 to vector<1x256xf32>
    %138 = arith.mulf %136, %137 : vector<1x256xf32>
    %c0_60 = arith.constant 0 : index
    %139 = memref.load %arg7[%c0_60] : memref<1xf32, #tpu.memory_space<smem>>
    %140 = vector.broadcast %139 : f32 to vector<1x256xf32>
    %141 = arith.addf %138, %140 : vector<1x256xf32>
    %cst_61 = arith.constant 0.000000e+00 : f32
    %142 = vector.broadcast %cst_61 : f32 to vector<1x256xf32>
    %143 = arith.subf %142, %141 : vector<1x256xf32>
    %144 = math.exp %143 : vector<1x256xf32>
    %cst_62 = arith.constant 1.000000e+00 : f32
    %145 = vector.broadcast %cst_62 : f32 to vector<1x256xf32>
    %146 = arith.addf %145, %144 : vector<1x256xf32>
    %cst_63 = arith.constant 1.000000e+00 : f32
    %147 = vector.broadcast %cst_63 : f32 to vector<1x256xf32>
    %148 = arith.divf %147, %146 : vector<1x256xf32>
    %149 = vector.broadcast %148 : vector<1x256xf32> to vector<16x256xf32>
    %150 = arith.mulf %126, %149 : vector<16x256xf32>
    %c0_64 = arith.constant 0 : index
    %c0_65 = arith.constant 0 : index
    %c0_66 = arith.constant 0 : index
    %151 = vector.load %arg8[%c0_64, %c0_65, %c0_66] : memref<1x16x256xf32, #tpu.memory_space<vmem>>, vector<1x16x256xf32>
    %152 = vector.shape_cast %151 : vector<1x16x256xf32> to vector<16x256xf32>
    %153 = vector.shape_cast %150 : vector<16x256xf32> to vector<1x16x256xf32>
    tpu.vector_store %arg8[%c0_64, %c0_65, %c0_66], %153 {strides = array<i32>} : memref<1x16x256xf32, #tpu.memory_space<vmem>>, vector<1x16x256xf32>,
    return
  }
  func.func @transform_0(%arg0: i32) -> (i32, i32, i32) {
    %c0_i32 = arith.constant 0 : i32
    %c0_i32_0 = arith.constant 0 : i32
    %c0_i32_1 = arith.constant 0 : i32
    return %arg0, %c0_i32, %c0_i32_0 : i32, i32, i32
  }
  func.func @transform_1(%arg0: i32) -> (i32, i32, i32) {
    %c0_i32 = arith.constant 0 : i32
    %c0_i32_0 = arith.constant 0 : i32
    %c0_i32_1 = arith.constant 0 : i32
    return %arg0, %c0_i32, %c0_i32_0 : i32, i32, i32
  }
  func.func @transform_2(%arg0: i32) -> (i32, i32, i32) {
    %c0_i32 = arith.constant 0 : i32
    %c0_i32_0 = arith.constant 0 : i32
    %c0_i32_1 = arith.constant 0 : i32
    %c0_i32_2 = arith.constant 0 : i32
    return %c0_i32, %c0_i32_0, %c0_i32_1 : i32, i32, i32
  }
  func.func @transform_3(%arg0: i32) -> (i32, i32) {
    %c0_i32 = arith.constant 0 : i32
    %c0_i32_0 = arith.constant 0 : i32
    %c0_i32_1 = arith.constant 0 : i32
    return %c0_i32, %c0_i32_0 : i32, i32
  }
  func.func @transform_4(%arg0: i32) -> (i32, i32) {
    %c0_i32 = arith.constant 0 : i32
    %c0_i32_0 = arith.constant 0 : i32
    %c0_i32_1 = arith.constant 0 : i32
    return %c0_i32, %c0_i32_0 : i32, i32
  }
  func.func @transform_5(%arg0: i32) -> (i32, i32) {
    %c0_i32 = arith.constant 0 : i32
    %c0_i32_0 = arith.constant 0 : i32
    %c0_i32_1 = arith.constant 0 : i32
    return %c0_i32, %c0_i32_0 : i32, i32
  }
  func.func @transform_6(%arg0: i32) -> i32 {
    %c0_i32 = arith.constant 0 : i32
    %c0_i32_0 = arith.constant 0 : i32
    return %c0_i32 : i32
  }
  func.func @transform_7(%arg0: i32) -> (i32, i32, i32) {
    %c0_i32 = arith.constant 0 : i32
    %c0_i32_0 = arith.constant 0 : i32
    %c0_i32_1 = arith.constant 0 : i32
    return %arg0, %c0_i32, %c0_i32_0 : i32, i32, i32
  }
}

module attributes {stable_mosaic.version = 11 : i64} {
  func.func @_cv2_kernel(%arg0: i32, %arg1: i32, %arg2: memref<1x16x256xf32, #tpu.memory_space<vmem>>, %arg3: memref<1x16x256xf32, #tpu.memory_space<vmem>>, %arg4: memref<1x16x256xf32, #tpu.memory_space<vmem>>, %arg5: memref<1x16x256xf32, #tpu.memory_space<vmem>>, %arg6: memref<32x16xf32, #tpu.memory_space<vmem>>, %arg7: memref<32x16xf32, #tpu.memory_space<vmem>>, %arg8: memref<32x16xf32, #tpu.memory_space<vmem>>, %arg9: memref<32x16xf32, #tpu.memory_space<vmem>>, %arg10: memref<32x1xf32, #tpu.memory_space<vmem>>, %arg11: memref<1x32x256xf32, #tpu.memory_space<vmem>>) attributes {dimension_semantics = [#tpu.dimension_semantics<parallel>, #tpu.dimension_semantics<parallel>], iteration_bounds = array<i64: 2, 1>, scalar_prefetch = 0 : i64, scratch_operands = 0 : i64, tpu.core_type = #tpu.core_type<tc>, window_params = [{transform_indices = @transform_0, window_bounds = array<i64: 1, 16, 256>}, {transform_indices = @transform_1, window_bounds = array<i64: 1, 16, 256>}, {transform_indices = @transform_2, window_bounds = array<i64: 1, 16, 256>}, {transform_indices = @transform_3, window_bounds = array<i64: 1, 16, 256>}, {pipeline_mode = #tpu.pipeline_mode<synchronous>, transform_indices = @transform_4, window_bounds = array<i64: 32, 16>}, {pipeline_mode = #tpu.pipeline_mode<synchronous>, transform_indices = @transform_5, window_bounds = array<i64: 32, 16>}, {pipeline_mode = #tpu.pipeline_mode<synchronous>, transform_indices = @transform_6, window_bounds = array<i64: 32, 16>}, {pipeline_mode = #tpu.pipeline_mode<synchronous>, transform_indices = @transform_7, window_bounds = array<i64: 32, 16>}, {pipeline_mode = #tpu.pipeline_mode<synchronous>, transform_indices = @transform_8, window_bounds = array<i64: 32, 1>}, {transform_indices = @transform_9, window_bounds = array<i64: 1, 32, 256>}]} {
    %c0 = arith.constant 0 : index
    %c0_0 = arith.constant 0 : index
    %0 = vector.load %arg6[%c0, %c0_0] : memref<32x16xf32, #tpu.memory_space<vmem>>, vector<32x16xf32>
    %c0_1 = arith.constant 0 : index
    %c0_2 = arith.constant 0 : index
    %c0_3 = arith.constant 0 : index
    %1 = vector.load %arg2[%c0_1, %c0_2, %c0_3] : memref<1x16x256xf32, #tpu.memory_space<vmem>>, vector<1x16x256xf32>
    %2 = vector.shape_cast %1 : vector<1x16x256xf32> to vector<16x256xf32>
    %cst = arith.constant dense<0.000000e+00> : vector<32x256xf32>
    %3 = tpu.matmul %0, %2, %cst {dimension_numbers = #tpu.dot_dimension_numbers<[1], [0], [0], [1], [0, 0, 1, 1], [], []>} : vector<32x16xf32>, vector<16x256xf32>, vector<32x256xf32> -> vector<32x256xf32>
    %c0_4 = arith.constant 0 : index
    %c0_5 = arith.constant 0 : index
    %4 = vector.load %arg7[%c0_4, %c0_5] : memref<32x16xf32, #tpu.memory_space<vmem>>, vector<32x16xf32>
    %c0_6 = arith.constant 0 : index
    %c0_7 = arith.constant 0 : index
    %c0_8 = arith.constant 0 : index
    %5 = vector.load %arg3[%c0_6, %c0_7, %c0_8] : memref<1x16x256xf32, #tpu.memory_space<vmem>>, vector<1x16x256xf32>
    %6 = vector.shape_cast %5 : vector<1x16x256xf32> to vector<16x256xf32>
    %cst_9 = arith.constant dense<0.000000e+00> : vector<32x256xf32>
    %7 = tpu.matmul %4, %6, %cst_9 {dimension_numbers = #tpu.dot_dimension_numbers<[1], [0], [0], [1], [0, 0, 1, 1], [], []>} : vector<32x16xf32>, vector<16x256xf32>, vector<32x256xf32> -> vector<32x256xf32>
    %8 = arith.addf %3, %7 : vector<32x256xf32>
    %c0_10 = arith.constant 0 : index
    %c0_11 = arith.constant 0 : index
    %9 = vector.load %arg8[%c0_10, %c0_11] : memref<32x16xf32, #tpu.memory_space<vmem>>, vector<32x16xf32>
    %c0_12 = arith.constant 0 : index
    %c0_13 = arith.constant 0 : index
    %c0_14 = arith.constant 0 : index
    %10 = vector.load %arg4[%c0_12, %c0_13, %c0_14] : memref<1x16x256xf32, #tpu.memory_space<vmem>>, vector<1x16x256xf32>
    %11 = vector.shape_cast %10 : vector<1x16x256xf32> to vector<16x256xf32>
    %cst_15 = arith.constant dense<0.000000e+00> : vector<32x256xf32>
    %12 = tpu.matmul %9, %11, %cst_15 {dimension_numbers = #tpu.dot_dimension_numbers<[1], [0], [0], [1], [0, 0, 1, 1], [], []>} : vector<32x16xf32>, vector<16x256xf32>, vector<32x256xf32> -> vector<32x256xf32>
    %13 = arith.addf %8, %12 : vector<32x256xf32>
    %c0_16 = arith.constant 0 : index
    %c0_17 = arith.constant 0 : index
    %14 = vector.load %arg9[%c0_16, %c0_17] : memref<32x16xf32, #tpu.memory_space<vmem>>, vector<32x16xf32>
    %c0_18 = arith.constant 0 : index
    %c0_19 = arith.constant 0 : index
    %c0_20 = arith.constant 0 : index
    %15 = vector.load %arg5[%c0_18, %c0_19, %c0_20] : memref<1x16x256xf32, #tpu.memory_space<vmem>>, vector<1x16x256xf32>
    %16 = vector.shape_cast %15 : vector<1x16x256xf32> to vector<16x256xf32>
    %cst_21 = arith.constant dense<0.000000e+00> : vector<32x256xf32>
    %17 = tpu.matmul %14, %16, %cst_21 {dimension_numbers = #tpu.dot_dimension_numbers<[1], [0], [0], [1], [0, 0, 1, 1], [], []>} : vector<32x16xf32>, vector<16x256xf32>, vector<32x256xf32> -> vector<32x256xf32>
    %18 = arith.addf %13, %17 : vector<32x256xf32>
    %c0_22 = arith.constant 0 : index
    %c0_23 = arith.constant 0 : index
    %19 = vector.load %arg10[%c0_22, %c0_23] : memref<32x1xf32, #tpu.memory_space<vmem>>, vector<32x1xf32>
    %20 = vector.broadcast %19 : vector<32x1xf32> to vector<32x256xf32>
    %21 = arith.addf %18, %20 : vector<32x256xf32>
    %cst_24 = arith.constant 0.000000e+00 : f32
    %22 = vector.broadcast %cst_24 : f32 to vector<32x256xf32>
    %23 = arith.subf %22, %21 : vector<32x256xf32>
    %24 = math.exp %23 : vector<32x256xf32>
    %cst_25 = arith.constant 1.000000e+00 : f32
    %25 = vector.broadcast %cst_25 : f32 to vector<32x256xf32>
    %26 = arith.addf %25, %24 : vector<32x256xf32>
    %27 = arith.divf %21, %26 : vector<32x256xf32>
    %c0_26 = arith.constant 0 : index
    %c0_27 = arith.constant 0 : index
    %c0_28 = arith.constant 0 : index
    %28 = vector.load %arg11[%c0_26, %c0_27, %c0_28] : memref<1x32x256xf32, #tpu.memory_space<vmem>>, vector<1x32x256xf32>
    %29 = vector.shape_cast %28 : vector<1x32x256xf32> to vector<32x256xf32>
    %30 = vector.shape_cast %27 : vector<32x256xf32> to vector<1x32x256xf32>
    tpu.vector_store %arg11[%c0_26, %c0_27, %c0_28], %30 {strides = array<i32>} : memref<1x32x256xf32, #tpu.memory_space<vmem>>, vector<1x32x256xf32>,
    return
  }
  func.func @transform_0(%arg0: i32, %arg1: i32) -> (i32, i32, i32) {
    %c0_i32 = arith.constant 0 : i32
    %c0_i32_0 = arith.constant 0 : i32
    return %arg0, %c0_i32, %arg1 : i32, i32, i32
  }
  func.func @transform_1(%arg0: i32, %arg1: i32) -> (i32, i32, i32) {
    %c0_i32 = arith.constant 0 : i32
    %c0_i32_0 = arith.constant 0 : i32
    return %arg0, %c0_i32, %arg1 : i32, i32, i32
  }
  func.func @transform_2(%arg0: i32, %arg1: i32) -> (i32, i32, i32) {
    %c0_i32 = arith.constant 0 : i32
    %c0_i32_0 = arith.constant 0 : i32
    return %arg0, %c0_i32, %arg1 : i32, i32, i32
  }
  func.func @transform_3(%arg0: i32, %arg1: i32) -> (i32, i32, i32) {
    %c0_i32 = arith.constant 0 : i32
    %c0_i32_0 = arith.constant 0 : i32
    return %arg0, %c0_i32, %arg1 : i32, i32, i32
  }
  func.func @transform_4(%arg0: i32, %arg1: i32) -> (i32, i32) {
    %c0_i32 = arith.constant 0 : i32
    %c0_i32_0 = arith.constant 0 : i32
    %c0_i32_1 = arith.constant 0 : i32
    return %c0_i32, %c0_i32_0 : i32, i32
  }
  func.func @transform_5(%arg0: i32, %arg1: i32) -> (i32, i32) {
    %c0_i32 = arith.constant 0 : i32
    %c0_i32_0 = arith.constant 0 : i32
    %c0_i32_1 = arith.constant 0 : i32
    return %c0_i32, %c0_i32_0 : i32, i32
  }
  func.func @transform_6(%arg0: i32, %arg1: i32) -> (i32, i32) {
    %c0_i32 = arith.constant 0 : i32
    %c0_i32_0 = arith.constant 0 : i32
    %c0_i32_1 = arith.constant 0 : i32
    return %c0_i32, %c0_i32_0 : i32, i32
  }
  func.func @transform_7(%arg0: i32, %arg1: i32) -> (i32, i32) {
    %c0_i32 = arith.constant 0 : i32
    %c0_i32_0 = arith.constant 0 : i32
    %c0_i32_1 = arith.constant 0 : i32
    return %c0_i32, %c0_i32_0 : i32, i32
  }
  func.func @transform_8(%arg0: i32, %arg1: i32) -> (i32, i32) {
    %c0_i32 = arith.constant 0 : i32
    %c0_i32_0 = arith.constant 0 : i32
    %c0_i32_1 = arith.constant 0 : i32
    return %c0_i32, %c0_i32_0 : i32, i32
  }
  func.func @transform_9(%arg0: i32, %arg1: i32) -> (i32, i32, i32) {
    %c0_i32 = arith.constant 0 : i32
    %c0_i32_0 = arith.constant 0 : i32
    return %arg0, %c0_i32, %arg1 : i32, i32, i32
  }
}

</mosaic_0001>

<llo_original>
// kernel: c2f_attn_forward.7
$region0: #{c2f_attn_forward.7}
  #allocation0 [shape = 'u32[]', space=smem, size = 0x4, offset = 0x4, fixed_abs, tag = 'smem constant byte address 0x4 - core index']
  #allocation1 [shape = 'u32[144,128]{1,0:T(1,128)}', space=vmem, size = 0x12000, scoped, tag = 'internal scratch']
  %s0 = inlined_call_operand.vmem [shape: f32[2,16,256], index: 0, kind: input, shape index: {}]
  %s1 = inlined_call_operand.vmem [shape: f32[2,16,256], index: 1, kind: input, shape index: {}]
  %s2 = inlined_call_operand.vmem [shape: f32[2,16,256], index: 2, kind: input, shape index: {}]
  %s3 = inlined_call_operand.vmem [shape: f32[2,16,256], index: 3, kind: input, shape index: {}]
  %s4 = inlined_call_operand.vmem [shape: f32[32,16], index: 4, kind: input, shape index: {}]
  %s5 = inlined_call_operand.vmem [shape: f32[32,16], index: 5, kind: input, shape index: {}]
  %s6 = inlined_call_operand.vmem [shape: f32[32,16], index: 6, kind: input, shape index: {}]
  %s7 = inlined_call_operand.vmem [shape: f32[32,16], index: 7, kind: input, shape index: {}]
  %s8 = inlined_call_operand.vmem [shape: f32[32,1], index: 8, kind: input, shape index: {}]
  %s9 = inlined_call_operand.vmem [shape: f32[2,32,256], index: 9, kind: output, shape index: {}]
  %s10 = sld [smem:[#allocation0]]
  $region69: #{c2f_attn_forward.7} parent=0
    _
  %s12 = ssub.s32 1, %s10
  %s13 = scalar_select 0, %s12, %s10
  loop: start=0, step=1, limit=4
  $region2: #{c2f_attn_forward.7} parent=0 // loop_pre_header
    _
  $region3: #{c2f_attn_forward.7} parent=0 // loop_header
    %s15 = sphi 0, %s19
    %p16 = scmp.ge.s32.totalorder %s15, 4
    %s22 = sphi 0, %s34
    %s23 = sphi 0, %s30
    %s24 = sphi 0, %s22
    %s25 = sphi 0, %s23
    %s26 = sphi 0, %s24
    %s27 = sphi 0, %s25
    %s39 = sphi 0, %s41
    %s42 = sphi 0, %s39
    %s43 = sphi 0, %s42
    %s59 = sphi 0, %s43
    %s67 = sphi 0, %s69
    %s70 = sphi 0, %s67
    %s71 = sphi 0, %s70
    %s87 = sphi 0, %s71
    %s95 = sphi 0, %s97
    %s98 = sphi 0, %s95
    %s99 = sphi 0, %s98
    %s115 = sphi 0, %s99
    %s123 = sphi 0, %s125
    %s126 = sphi 0, %s123
    %s127 = sphi 0, %s126
    %s143 = sphi 0, %s127
    %s147 = sphi 0, %s147
    %s149 = sphi 0, %s147
    %s150 = sphi 0, %s149
    %s164 = sphi 0, %s150
    %s168 = sphi 0, %s168
    %s170 = sphi 0, %s168
    %s171 = sphi 0, %s170
    %s185 = sphi 0, %s171
    %s189 = sphi 0, %s189
    %s191 = sphi 0, %s189
    %s192 = sphi 0, %s191
    %s206 = sphi 0, %s192
    %s210 = sphi 0, %s210
    %s212 = sphi 0, %s210
    %s213 = sphi 0, %s212
    %s227 = sphi 0, %s213
    %s231 = sphi 0, %s231
    %s233 = sphi 0, %s231
    %s234 = sphi 0, %s233
    %s248 = sphi 0, %s234
    %s256 = sphi 0, %s258
    %s259 = sphi 0, %s256
    %s260 = sphi 0, %s259
    %s276 = sphi 0, %s260
  $region4: #{c2f_attn_forward.7} parent=0 // loop_header_branch
    %18 = sbr.rel (%p16) target = $region8
  $region5: #{c2f_attn_forward.7} parent=0 // loop_body
    %s20 = ssub.s32 %s15, 1
    %s21 = ssub.s32 %s15, 2
    %s28 = sadd.s32 1, %s23
    %p29 = scmp.ge.s32.totalorder %s28, 1
    %s30 = scalar_select %p29, 0, %s28
    %s31 = sadd.s32 1, %s22
    %s32 = scalar_select %p29, %s31, %s22
    %p33 = scmp.ge.s32.totalorder %s32, 2
    %s34 = scalar_select %p33, 0, %s32
    %s35 = ssub.s32 %s22, %s34
    %s36 = ssub.s32 %s23, %s30
    %s37 = sor.u32 %s35, %s36
    %p38 = scmp.eq.s32.totalorder %s37, 0
    %s40 = sadd.s32 %s39, 1
    %s41 = scalar_select %p38, %s39, %s40
    %p44 = pneg %p38
    %p45 = scmp.eq.s32.totalorder %s15, 1
    %p46 = por %p44, %p45
    %p47 = scmp.ne.s32.totalorder %s39, %s42
    %p48 = scmp.eq.s32.totalorder %s15, 0
    %p49 = por %p47, %p48
    %p50 = scmp.ne.s32.totalorder %s39, %s42
    %p51 = scmp.eq.s32.totalorder %s20, 1
    %p52 = por %p50, %p51
    %p53 = scmp.ne.s32.totalorder %s42, %s43
    %p54 = scmp.eq.s32.totalorder %s20, 0
    %p55 = por %p53, %p54
    %p56 = scmp.ne.s32.totalorder %s42, %s43
    %p57 = scmp.eq.s32.totalorder %s21, 1
    %p58 = por %p56, %p57
    %p60 = scmp.ne.s32.totalorder %s43, %s59
    %p61 = scmp.eq.s32.totalorder %s21, 0
    %p62 = por %p60, %p61
    %s63 = ssub.s32 %s22, %s34
    %s64 = ssub.s32 %s23, %s30
    %s65 = sor.u32 %s63, %s64
    %p66 = scmp.eq.s32.totalorder %s65, 0
    %s68 = sadd.s32 %s67, 1
    %s69 = scalar_select %p66, %s67, %s68
    %p72 = pneg %p66
    %p73 = scmp.eq.s32.totalorder %s15, 1
    %p74 = por %p72, %p73
    %p75 = scmp.ne.s32.totalorder %s67, %s70
    %p76 = scmp.eq.s32.totalorder %s15, 0
    %p77 = por %p75, %p76
    %p78 = scmp.ne.s32.totalorder %s67, %s70
    %p79 = scmp.eq.s32.totalorder %s20, 1
    %p80 = por %p78, %p79
    %p81 = scmp.ne.s32.totalorder %s70, %s71
    %p82 = scmp.eq.s32.totalorder %s20, 0
    %p83 = por %p81, %p82
    %p84 = scmp.ne.s32.totalorder %s70, %s71
    %p85 = scmp.eq.s32.totalorder %s21, 1
    %p86 = por %p84, %p85
    %p88 = scmp.ne.s32.totalorder %s71, %s87
    %p89 = scmp.eq.s32.totalorder %s21, 0
    %p90 = por %p88, %p89
    %s91 = ssub.s32 %s22, %s34
    %s92 = ssub.s32 %s23, %s30
    %s93 = sor.u32 %s91, %s92
    %p94 = scmp.eq.s32.totalorder %s93, 0
    %s96 = sadd.s32 %s95, 1
    %s97 = scalar_select %p94, %s95, %s96
    %p100 = pneg %p94
    %p101 = scmp.eq.s32.totalorder %s15, 1
    %p102 = por %p100, %p101
    %p103 = scmp.ne.s32.totalorder %s95, %s98
    %p104 = scmp.eq.s32.totalorder %s15, 0
    %p105 = por %p103, %p104
    %p106 = scmp.ne.s32.totalorder %s95, %s98
    %p107 = scmp.eq.s32.totalorder %s20, 1
    %p108 = por %p106, %p107
    %p109 = scmp.ne.s32.totalorder %s98, %s99
    %p110 = scmp.eq.s32.totalorder %s20, 0
    %p111 = por %p109, %p110
    %p112 = scmp.ne.s32.totalorder %s98, %s99
    %p113 = scmp.eq.s32.totalorder %s21, 1
    %p114 = por %p112, %p113
    %p116 = scmp.ne.s32.totalorder %s99, %s115
    %p117 = scmp.eq.s32.totalorder %s21, 0
    %p118 = por %p116, %p117
    %s119 = ssub.s32 %s22, %s34
    %s120 = ssub.s32 %s23, %s30
    %s121 = sor.u32 %s119, %s120
    %p122 = scmp.eq.s32.totalorder %s121, 0
    %s124 = sadd.s32 %s123, 1
    %s125 = scalar_select %p122, %s123, %s124
    %p128 = pneg %p122
    %p129 = scmp.eq.s32.totalorder %s15, 1
    %p130 = por %p128, %p129
    %p131 = scmp.ne.s32.totalorder %s123, %s126
    %p132 = scmp.eq.s32.totalorder %s15, 0
    %p133 = por %p131, %p132
    %p134 = scmp.ne.s32.totalorder %s123, %s126
    %p135 = scmp.eq.s32.totalorder %s20, 1
    %p136 = por %p134, %p135
    %p137 = scmp.ne.s32.totalorder %s126, %s127
    %p138 = scmp.eq.s32.totalorder %s20, 0
    %p139 = por %p137, %p138
    %p140 = scmp.ne.s32.totalorder %s126, %s127
    %p141 = scmp.eq.s32.totalorder %s21, 1
    %p142 = por %p140, %p141
    %p144 = scmp.ne.s32.totalorder %s127, %s143
    %p145 = scmp.eq.s32.totalorder %s21, 0
    %p146 = por %p144, %p145
    %s148 = sadd.s32 %s147, 1
    %p151 = scmp.eq.s32.totalorder %s15, 1
    %p152 = scmp.ne.s32.totalorder %s147, %s149
    %p153 = scmp.eq.s32.totalorder %s15, 0
    %p154 = por %p152, %p153
    %p155 = scmp.ne.s32.totalorder %s147, %s149
    %p156 = scmp.eq.s32.totalorder %s20, 1
    %p157 = por %p155, %p156
    %p158 = scmp.ne.s32.totalorder %s149, %s150
    %p159 = scmp.eq.s32.totalorder %s20, 0
    %p160 = por %p158, %p159
    %p161 = scmp.ne.s32.totalorder %s149, %s150
    %p162 = scmp.eq.s32.totalorder %s21, 1
    %p163 = por %p161, %p162
    %p165 = scmp.ne.s32.totalorder %s150, %s164
    %p166 = scmp.eq.s32.totalorder %s21, 0
    %p167 = por %p165, %p166
    %s169 = sadd.s32 %s168, 1
    %p172 = scmp.eq.s32.totalorder %s15, 1
    %p173 = scmp.ne.s32.totalorder %s168, %s170
    %p174 = scmp.eq.s32.totalorder %s15, 0
    %p175 = por %p173, %p174
    %p176 = scmp.ne.s32.totalorder %s168, %s170
    %p177 = scmp.eq.s32.totalorder %s20, 1
    %p178 = por %p176, %p177
    %p179 = scmp.ne.s32.totalorder %s170, %s171
    %p180 = scmp.eq.s32.totalorder %s20, 0
    %p181 = por %p179, %p180
    %p182 = scmp.ne.s32.totalorder %s170, %s171
    %p183 = scmp.eq.s32.totalorder %s21, 1
    %p184 = por %p182, %p183
    %p186 = scmp.ne.s32.totalorder %s171, %s185
    %p187 = scmp.eq.s32.totalorder %s21, 0
    %p188 = por %p186, %p187
    %s190 = sadd.s32 %s189, 1
    %p193 = scmp.eq.s32.totalorder %s15, 1
    %p194 = scmp.ne.s32.totalorder %s189, %s191
    %p195 = scmp.eq.s32.totalorder %s15, 0
    %p196 = por %p194, %p195
    %p197 = scmp.ne.s32.totalorder %s189, %s191
    %p198 = scmp.eq.s32.totalorder %s20, 1
    %p199 = por %p197, %p198
    %p200 = scmp.ne.s32.totalorder %s191, %s192
    %p201 = scmp.eq.s32.totalorder %s20, 0
    %p202 = por %p200, %p201
    %p203 = scmp.ne.s32.totalorder %s191, %s192
    %p204 = scmp.eq.s32.totalorder %s21, 1
    %p205 = por %p203, %p204
    %p207 = scmp.ne.s32.totalorder %s192, %s206
    %p208 = scmp.eq.s32.totalorder %s21, 0
    %p209 = por %p207, %p208
    %s211 = sadd.s32 %s210, 1
    %p214 = scmp.eq.s32.totalorder %s15, 1
    %p215 = scmp.ne.s32.totalorder %s210, %s212
    %p216 = scmp.eq.s32.totalorder %s15, 0
    %p217 = por %p215, %p216
    %p218 = scmp.ne.s32.totalorder %s210, %s212
    %p219 = scmp.eq.s32.totalorder %s20, 1
    %p220 = por %p218, %p219
    %p221 = scmp.ne.s32.totalorder %s212, %s213
    %p222 = scmp.eq.s32.totalorder %s20, 0
    %p223 = por %p221, %p222
    %p224 = scmp.ne.s32.totalorder %s212, %s213
    %p225 = scmp.eq.s32.totalorder %s21, 1
    %p226 = por %p224, %p225
    %p228 = scmp.ne.s32.totalorder %s213, %s227
    %p229 = scmp.eq.s32.totalorder %s21, 0
    %p230 = por %p228, %p229
    %s232 = sadd.s32 %s231, 1
    %p235 = scmp.eq.s32.totalorder %s15, 1
    %p236 = scmp.ne.s32.totalorder %s231, %s233
    %p237 = scmp.eq.s32.totalorder %s15, 0
    %p238 = por %p236, %p237
    %p239 = scmp.ne.s32.totalorder %s231, %s233
    %p240 = scmp.eq.s32.totalorder %s20, 1
    %p241 = por %p239, %p240
    %p242 = scmp.ne.s32.totalorder %s233, %s234
    %p243 = scmp.eq.s32.totalorder %s20, 0
    %p244 = por %p242, %p243
    %p245 = scmp.ne.s32.totalorder %s233, %s234
    %p246 = scmp.eq.s32.totalorder %s21, 1
    %p247 = por %p245, %p246
    %p249 = scmp.ne.s32.totalorder %s234, %s248
    %p250 = scmp.eq.s32.totalorder %s21, 0
    %p251 = por %p249, %p250
    %s252 = ssub.s32 %s22, %s34
    %s253 = ssub.s32 %s23, %s30
    %s254 = sor.u32 %s252, %s253
    %p255 = scmp.eq.s32.totalorder %s254, 0
    %s257 = sadd.s32 %s256, 1
    %s258 = scalar_select %p255, %s256, %s257
    %p261 = pneg %p255
    %p262 = scmp.eq.s32.totalorder %s15, 1
    %p263 = por %p261, %p262
    %p264 = scmp.ne.s32.totalorder %s256, %s259
    %p265 = scmp.eq.s32.totalorder %s15, 0
    %p266 = por %p264, %p265
    %p267 = scmp.ne.s32.totalorder %s256, %s259
    %p268 = scmp.eq.s32.totalorder %s20, 1
    %p269 = por %p267, %p268
    %p270 = scmp.ne.s32.totalorder %s259, %s260
    %p271 = scmp.eq.s32.totalorder %s20, 0
    %p272 = por %p270, %p271
    %p273 = scmp.ne.s32.totalorder %s259, %s260
    %p274 = scmp.eq.s32.totalorder %s21, 1
    %p275 = por %p273, %p274
    %p277 = scmp.ne.s32.totalorder %s260, %s276
    %p278 = scmp.eq.s32.totalorder %s21, 0
    %p279 = por %p277, %p278
    %p280 = scmp.le.s32.totalorder 1, %s15
    %p281 = scmp.lt.s32.totalorder %s15, 3
    %p282 = pnand %p280, %p281
    %p283 = pneg %p282
    // Predicated region
    $region9: #{c2f_attn_forward.7} parent=5 // pred_check
      _
    $region10: #{c2f_attn_forward.7} parent=5 // pred_check_branch
      %285 = sbr.rel (%p282) target = $region12
    $region11: #{c2f_attn_forward.7} parent=5 // pred_region
      %s286 = ssub.s32 %s15, 1
      // Predicated region
      $region13: #{c2f_attn_forward.7} parent=11 // pred_check
        %p287 = pneg %p160
      $region14: #{c2f_attn_forward.7} parent=11 // pred_check_branch
        %289 = sbr.rel (%p287) target = $region16
      $region15: #{c2f_attn_forward.7} parent=11 // pred_region
        _
      $region16: #{c2f_attn_forward.7} parent=11 // pred_fallthru
        _
      // Predicated region
      $region17: #{c2f_attn_forward.7} parent=11 // pred_check
        %p290 = pneg %p181
      $region18: #{c2f_attn_forward.7} parent=11 // pred_check_branch
        %292 = sbr.rel (%p290) target = $region20
      $region19: #{c2f_attn_forward.7} parent=11 // pred_region
        _
      $region20: #{c2f_attn_forward.7} parent=11 // pred_fallthru
        _
      // Predicated region
      $region21: #{c2f_attn_forward.7} parent=11 // pred_check
        %p293 = pneg %p202
      $region22: #{c2f_attn_forward.7} parent=11 // pred_check_branch
        %295 = sbr.rel (%p293) target = $region24
      $region23: #{c2f_attn_forward.7} parent=11 // pred_region
        _
      $region24: #{c2f_attn_forward.7} parent=11 // pred_fallthru
        _
      // Predicated region
      $region25: #{c2f_attn_forward.7} parent=11 // pred_check
        %p296 = pneg %p223
      $region26: #{c2f_attn_forward.7} parent=11 // pred_check_branch
        %298 = sbr.rel (%p296) target = $region28
      $region27: #{c2f_attn_forward.7} parent=11 // pred_region
        _
      $region28: #{c2f_attn_forward.7} parent=11 // pred_fallthru
        _
      // Predicated region
      $region29: #{c2f_attn_forward.7} parent=11 // pred_check
        %p299 = pneg %p244
      $region30: #{c2f_attn_forward.7} parent=11 // pred_check_branch
        %301 = sbr.rel (%p299) target = $region32
      $region31: #{c2f_attn_forward.7} parent=11 // pred_region
        _
      $region32: #{c2f_attn_forward.7} parent=11 // pred_fallthru
        _
    $region12: #{c2f_attn_forward.7} parent=5 // pred_fallthru
      _
    %p302 = scmp.lt.s32.totalorder %s15, 2
    // Predicated region
    $region33: #{c2f_attn_forward.7} parent=5 // pred_check
      %p303 = pneg %p302
    $region34: #{c2f_attn_forward.7} parent=5 // pred_check_branch
      %305 = sbr.rel (%p303) target = $region36
    $region35: #{c2f_attn_forward.7} parent=5 // pred_region
      // Predicated region
      $region37: #{c2f_attn_forward.7} parent=35 // pred_check
        %p306 = pneg %p49
      $region38: #{c2f_attn_forward.7} parent=35 // pred_check_branch
        %308 = sbr.rel (%p306) target = $region40
      $region39: #{c2f_attn_forward.7} parent=35 // pred_region
        %s309 = smul.u32 2, %s23
        %p310 = scmp.lt.s32.totalorder %s22, 1
        %s311 = scalar_select %p310, %s22, 1
        %p312 = scmp.lt.s32.totalorder %s309, 1
        %s313 = scalar_select %p312, %s309, 1
        %s314 = smul.addr %s311, 4
        %s315 = sadd.s32 %s313, %s314
        %s316 = smul.addr %s315, 8
        %s317 = scalar_lea.vmem %s0, %s316
        %s318 = smul.u32 2, %s23
      $region40: #{c2f_attn_forward.7} parent=35 // pred_fallthru
        _
      // Predicated region
      $region41: #{c2f_attn_forward.7} parent=35 // pred_check
        %p319 = pneg %p77
      $region42: #{c2f_attn_forward.7} parent=35 // pred_check_branch
        %321 = sbr.rel (%p319) target = $region44
      $region43: #{c2f_attn_forward.7} parent=35 // pred_region
        %s322 = smul.u32 2, %s23
        %p323 = scmp.lt.s32.totalorder %s22, 1
        %s324 = scalar_select %p323, %s22, 1
        %p325 = scmp.lt.s32.totalorder %s322, 1
        %s326 = scalar_select %p325, %s322, 1
        %s327 = smul.addr %s324, 4
        %s328 = sadd.s32 %s326, %s327
        %s329 = smul.addr %s328, 8
        %s330 = scalar_lea.vmem %s1, %s329
        %s331 = smul.u32 2, %s23
      $region44: #{c2f_attn_forward.7} parent=35 // pred_fallthru
        _
      // Predicated region
      $region45: #{c2f_attn_forward.7} parent=35 // pred_check
        %p332 = pneg %p105
      $region46: #{c2f_attn_forward.7} parent=35 // pred_check_branch
        %334 = sbr.rel (%p332) target = $region48
      $region47: #{c2f_attn_forward.7} parent=35 // pred_region
        %s335 = smul.u32 2, %s23
        %p336 = scmp.lt.s32.totalorder %s22, 1
        %s337 = scalar_select %p336, %s22, 1
        %p338 = scmp.lt.s32.totalorder %s335, 1
        %s339 = scalar_select %p338, %s335, 1
        %s340 = smul.addr %s337, 4
        %s341 = sadd.s32 %s339, %s340
        %s342 = smul.addr %s341, 8
        %s343 = scalar_lea.vmem %s2, %s342
        %s344 = smul.u32 2, %s23
      $region48: #{c2f_attn_forward.7} parent=35 // pred_fallthru
        _
      // Predicated region
      $region49: #{c2f_attn_forward.7} parent=35 // pred_check
        %p345 = pneg %p133
      $region50: #{c2f_attn_forward.7} parent=35 // pred_check_branch
        %347 = sbr.rel (%p345) target = $region52
      $region51: #{c2f_attn_forward.7} parent=35 // pred_region
        %s348 = smul.u32 2, %s23
        %p349 = scmp.lt.s32.totalorder %s22, 1
        %s350 = scalar_select %p349, %s22, 1
        %p351 = scmp.lt.s32.totalorder %s348, 1
        %s352 = scalar_select %p351, %s348, 1
        %s353 = smul.addr %s350, 4
        %s354 = sadd.s32 %s352, %s353
        %s355 = smul.addr %s354, 8
        %s356 = scalar_lea.vmem %s3, %s355
        %s357 = smul.u32 2, %s23
      $region52: #{c2f_attn_forward.7} parent=35 // pred_fallthru
        _
    $region36: #{c2f_attn_forward.7} parent=5 // pred_fallthru
      _
    %p358 = scmp.le.s32.totalorder 1, %s15
    %p359 = scmp.lt.s32.totalorder %s15, 3
    %p360 = pnand %p358, %p359
    %p361 = pneg %p360
    // Predicated region
    $region53: #{c2f_attn_forward.7} parent=5 // pred_check
      _
    $region54: #{c2f_attn_forward.7} parent=5 // pred_check_branch
      %363 = sbr.rel (%p360) target = $region56
    $region55: #{c2f_attn_forward.7} parent=5 // pred_region
      %s364 = ssub.s32 %s15, 1
      %s365 = smul.u32 2, %s25
      %p366 = scmp.lt.s32.totalorder %s24, 1
      %s367 = scalar_select %p366, %s24, 1
      %p368 = scmp.lt.s32.totalorder %s365, 1
      %s369 = scalar_select %p368, %s365, 1
      %s370 = smul.addr %s367, 4
      %s371 = sadd.s32 %s369, %s370
      %s372 = smul.addr %s371, 8
      %s373 = scalar_lea.vmem %s0, %s372
      %p374 = pneg %p55
      %p375 = pneg %p52
      %s376 = smul.u32 2, %s25
      %p377 = scmp.lt.s32.totalorder %s24, 1
      %s378 = scalar_select %p377, %s24, 1
      %p379 = scmp.lt.s32.totalorder %s376, 1
      %s380 = scalar_select %p379, %s376, 1
      %s381 = smul.addr %s378, 4
      %s382 = sadd.s32 %s380, %s381
      %s383 = smul.addr %s382, 8
      %s384 = scalar_lea.vmem %s1, %s383
      %p385 = pneg %p83
      %p386 = pneg %p80
      %s387 = smul.u32 2, %s25
      %p388 = scmp.lt.s32.totalorder %s24, 1
      %s389 = scalar_select %p388, %s24, 1
      %p390 = scmp.lt.s32.totalorder %s387, 1
      %s391 = scalar_select %p390, %s387, 1
      %s392 = smul.addr %s389, 4
      %s393 = sadd.s32 %s391, %s392
      %s394 = smul.addr %s393, 8
      %s395 = scalar_lea.vmem %s2, %s394
      %p396 = pneg %p111
      %p397 = pneg %p108
      %s398 = smul.u32 2, %s25
      %p399 = scmp.lt.s32.totalorder %s24, 1
      %s400 = scalar_select %p399, %s24, 1
      %p401 = scmp.lt.s32.totalorder %s398, 1
      %s402 = scalar_select %p401, %s398, 1
      %s403 = smul.addr %s400, 4
      %s404 = sadd.s32 %s402, %s403
      %s405 = smul.addr %s404, 8
      %s406 = scalar_lea.vmem %s3, %s405
      %p407 = pneg %p139
      %p408 = pneg %p136
      %p409 = pneg %p160
      %p410 = pneg %p157
      %p411 = pneg %p181
      %p412 = pneg %p178
      %p413 = pneg %p202
      %p414 = pneg %p199
      %p415 = pneg %p223
      %p416 = pneg %p220
      %p417 = pneg %p244
      %p418 = pneg %p241
      %p419 = pneg %p272
      %p420 = pneg %p269
      %s421 = smul.u32 2, %s25
      %p422 = scmp.lt.s32.totalorder %s24, 1
      %s423 = scalar_select %p422, %s24, 1
      %p424 = scmp.lt.s32.totalorder %s421, 1
      %s425 = scalar_select %p424, %s421, 1
      %s426 = smul.addr %s423, 8
      %s427 = sadd.s32 %s425, %s426
      %s428 = smul.addr %s427, 8
      %s429 = scalar_lea.vmem %s9, %s428
      %s430 = smul.u32 2, %s25
      %p431 = scmp.lt.s32.totalorder %s24, 1
      %s432 = scalar_select %p431, %s24, 1
      %p433 = scmp.lt.s32.totalorder %s430, 1
      %s434 = scalar_select %p433, %s430, 1
      %s435 = smul.addr %s432, 4
      %s436 = sadd.s32 %s434, %s435
      %s437 = smul.addr %s436, 8
      %s438 = scalar_lea.vmem %s0, %s437
      %s439 = smul.u32 2, %s25
      %s440 = smul.u32 2, %s25
      %p441 = scmp.lt.s32.totalorder %s24, 1
      %s442 = scalar_select %p441, %s24, 1
      %p443 = scmp.lt.s32.totalorder %s440, 1
      %s444 = scalar_select %p443, %s440, 1
      %s445 = smul.addr %s442, 4
      %s446 = sadd.s32 %s444, %s445
      %s447 = smul.addr %s446, 8
      %s448 = scalar_lea.vmem %s1, %s447
      %s449 = smul.u32 2, %s25
      %s450 = smul.u32 2, %s25
      %p451 = scmp.lt.s32.totalorder %s24, 1
      %s452 = scalar_select %p451, %s24, 1
      %p453 = scmp.lt.s32.totalorder %s450, 1
      %s454 = scalar_select %p453, %s450, 1
      %s455 = smul.addr %s452, 4
      %s456 = sadd.s32 %s454, %s455
      %s457 = smul.addr %s456, 8
      %s458 = scalar_lea.vmem %s2, %s457
      %s459 = smul.u32 2, %s25
      %s460 = smul.u32 2, %s25
      %p461 = scmp.lt.s32.totalorder %s24, 1
      %s462 = scalar_select %p461, %s24, 1
      %p463 = scmp.lt.s32.totalorder %s460, 1
      %s464 = scalar_select %p463, %s460, 1
      %s465 = smul.addr %s462, 4
      %s466 = sadd.s32 %s464, %s465
      %s467 = smul.addr %s466, 8
      %s468 = scalar_lea.vmem %s3, %s467
      %s469 = smul.u32 2, %s25
      %s470 = smul.u32 2, %s25
      %p471 = scmp.lt.s32.totalorder %s24, 1
      %s472 = scalar_select %p471, %s24, 1
      %p473 = scmp.lt.s32.totalorder %s470, 1
      %s474 = scalar_select %p473, %s470, 1
      %s475 = smul.addr %s472, 8
      %s476 = sadd.s32 %s474, %s475
      %s477 = smul.addr %s476, 8
      %s478 = scalar_lea.vmem %s9, %s477
      %s479 = smul.u32 2, %s25
      %v480 = vld [vmem:[%s4] sm:$0xff]
      %v481 = vld [vmem:[%s4 + $0x8] sm:$0xff]
      %v482 = vld [vmem:[%s4 + $0x10] sm:$0xff]
      %v483 = vld [vmem:[%s4 + $0x18] sm:$0xff]
      %v484 = vld [vmem:[%s438] sm:$0xff]
      %v485 = vld [vmem:[%s438 + $0x8] sm:$0xff]
      %v486 = vld [vmem:[%s438 + $0x10] sm:$0xff]
      %v487 = vld [vmem:[%s438 + $0x18] sm:$0xff]
      %v488 = vld [vmem:[%s5] sm:$0xff]
      %v489 = vld [vmem:[%s5 + $0x8] sm:$0xff]
      %v490 = vld [vmem:[%s5 + $0x10] sm:$0xff]
      %v491 = vld [vmem:[%s5 + $0x18] sm:$0xff]
      %v492 = vld [vmem:[%s448] sm:$0xff]
      %v493 = vld [vmem:[%s448 + $0x8] sm:$0xff]
      %v494 = vld [vmem:[%s448 + $0x10] sm:$0xff]
      %v495 = vld [vmem:[%s448 + $0x18] sm:$0xff]
      %vm496 = vcmask 130048
      %v498 = vsel %vm496, %v488, 0
      %v501 = vsel %vm496, %v489, 0
      %v504 = vsel %vm496, %v490, 0
      %v507 = vsel %vm496, %v491, 0
      %509 = vmatprep.subr.mxu0 %v493
      %510 = vmatpush1.msra.mxu0 %v492
      %511 = vmatprep.subr.mxu0 %v495
      %512 = vmatpush1.msra.mxu0 %v494
      %513 = vmatprep.subr.mxu0 0.0
      %514 = vmatpush1.msra.mxu0 0.0
      %515 = vmatprep.subr.mxu0 0.0
      %516 = vmatpush1.msra.mxu0 0.0
      %517 = vmatprep.subr.mxu0 0.0
      %518 = vmatpush1.msra.mxu0 0.0
      %519 = vmatprep.subr.mxu0 0.0
      %520 = vmatpush1.msra.mxu0 0.0
      %521 = vmatprep.subr.mxu0 0.0
      %522 = vmatpush1.msra.mxu0 0.0
      %523 = vmatprep.subr.mxu0 0.0
      %524 = vmatpush1.msra.mxu0 0.0
      %525 = vmatprep.subr.mxu0 0.0
      %526 = vmatpush1.msra.mxu0 0.0
      %527 = vmatprep.subr.mxu0 0.0
      %528 = vmatpush1.msra.mxu0 0.0
      %529 = vmatprep.subr.mxu0 0.0
      %530 = vmatpush1.msra.mxu0 0.0
      %531 = vmatprep.subr.mxu0 0.0
      %532 = vmatpush1.msra.mxu0 0.0
      %533 = vmatprep.subr.mxu0 0.0
      %534 = vmatpush1.msra.mxu0 0.0
      %535 = vmatprep.subr.mxu0 0.0
      %536 = vmatpush1.msra.mxu0 0.0
      %537 = vmatprep.subr.mxu0 0.0
      %538 = vmatpush1.msra.mxu0 0.0
      %539 = vmatprep.subr.mxu0 0.0
      %540 = vmatpush1.msra.mxu0 0.0
      %541 = vmatprep.subr.mxu0 0.0
      %542 = vmatpush1.msra.mxu0 0.0
      %543 = vmatprep.subr.mxu0 0.0
      %544 = vmatpush1.msra.mxu0 0.0
      %545 = vmatprep.subr.mxu0 0.0
      %546 = vmatpush1.msra.mxu0 0.0
      %547 = vmatprep.subr.mxu0 0.0
      %548 = vmatpush1.msra.mxu0 0.0
      %549 = vmatprep.subr.mxu0 0.0
      %550 = vmatpush1.msra.mxu0 0.0
      %551 = vmatprep.subr.mxu0 0.0
      %552 = vmatpush1.msra.mxu0 0.0
      %553 = vmatprep.subr.mxu0 0.0
      %554 = vmatpush1.msra.mxu0 0.0
      %555 = vmatprep.subr.mxu0 0.0
      %556 = vmatpush1.msra.mxu0 0.0
      %557 = vmatprep.subr.mxu0 0.0
      %558 = vmatpush1.msra.mxu0 0.0
      %559 = vmatprep.subr.mxu0 0.0
      %560 = vmatpush1.msra.mxu0 0.0
      %561 = vmatprep.subr.mxu0 0.0
      %562 = vmatpush1.msra.mxu0 0.0
      %563 = vmatprep.subr.mxu0 0.0
      %564 = vmatpush1.msra.mxu0 0.0
      %565 = vmatprep.subr.mxu0 0.0
      %566 = vmatpush1.msra.mxu0 0.0
      %567 = vmatprep.subr.mxu0 0.0
      %568 = vmatpush1.msra.mxu0 0.0
      %569 = vmatprep.subr.mxu0 0.0
      %570 = vmatpush1.msra.mxu0 0.0
      %571 = vmatprep.subr.mxu0 0.0
      %572 = vmatpush1.msra.mxu0 0.0
      %573 = vmatprep.mubr.f32.mxu0 0.0
      %574 = vmatmul.mubr.f32.gmra.mrb[0].mxu0 %v498
      %v575 = vpop.f32.mrb[0].mxu0
      %v576 = vadd.f32 0.0, %v575
      %v577 = vpop.f32.mrb[0].mxu0
      %v578 = vadd.f32 0.0, %v577
      %579 = vmatprep.mubr.f32.mxu0 0.0
      %580 = vmatmul.mubr.f32.gmra.mrb[0].mxu0 %v501
      %v581 = vpop.f32.mrb[0].mxu0
      %v582 = vadd.f32 0.0, %v581
      %v583 = vpop.f32.mrb[0].mxu0
      %v584 = vadd.f32 0.0, %v583
      %585 = vmatprep.mubr.f32.mxu0 0.0
      %586 = vmatmul.mubr.f32.gmra.mrb[0].mxu0 %v504
      %v587 = vpop.f32.mrb[0].mxu0
      %v588 = vadd.f32 0.0, %v587
      %v589 = vpop.f32.mrb[0].mxu0
      %v590 = vadd.f32 0.0, %v589
      %591 = vmatprep.mubr.f32.mxu0 0.0
      %592 = vmatmul.mubr.f32.gmra.mrb[0].mxu0 %v507
      %v593 = vpop.f32.mrb[0].mxu0
      %v594 = vadd.f32 0.0, %v593
      %v595 = vpop.f32.mrb[0].mxu0
      %v596 = vadd.f32 0.0, %v595
      %597 = vdwg.mxu0
      %v599 = vsel %vm496, %v480, 0
      %v602 = vsel %vm496, %v481, 0
      %v605 = vsel %vm496, %v482, 0
      %v608 = vsel %vm496, %v483, 0
      %610 = vmatprep.subr.mxu0 %v485
      %611 = vmatpush1.msra.mxu0 %v484
      %612 = vmatprep.subr.mxu0 %v487
      %613 = vmatpush1.msra.mxu0 %v486
      %614 = vmatprep.subr.mxu0 0.0
      %615 = vmatpush1.msra.mxu0 0.0
      %616 = vmatprep.subr.mxu0 0.0
      %617 = vmatpush1.msra.mxu0 0.0
      %618 = vmatprep.subr.mxu0 0.0
      %619 = vmatpush1.msra.mxu0 0.0
      %620 = vmatprep.subr.mxu0 0.0
      %621 = vmatpush1.msra.mxu0 0.0
      %622 = vmatprep.subr.mxu0 0.0
      %623 = vmatpush1.msra.mxu0 0.0
      %624 = vmatprep.subr.mxu0 0.0
      %625 = vmatpush1.msra.mxu0 0.0
      %626 = vmatprep.subr.mxu0 0.0
      %627 = vmatpush1.msra.mxu0 0.0
      %628 = vmatprep.subr.mxu0 0.0
      %629 = vmatpush1.msra.mxu0 0.0
      %630 = vmatprep.subr.mxu0 0.0
      %631 = vmatpush1.msra.mxu0 0.0
      %632 = vmatprep.subr.mxu0 0.0
      %633 = vmatpush1.msra.mxu0 0.0
      %634 = vmatprep.subr.mxu0 0.0
      %635 = vmatpush1.msra.mxu0 0.0
      %636 = vmatprep.subr.mxu0 0.0
      %637 = vmatpush1.msra.mxu0 0.0
      %638 = vmatprep.subr.mxu0 0.0
      %639 = vmatpush1.msra.mxu0 0.0
      %640 = vmatprep.subr.mxu0 0.0
      %641 = vmatpush1.msra.mxu0 0.0
      %642 = vmatprep.subr.mxu0 0.0
      %643 = vmatpush1.msra.mxu0 0.0
      %644 = vmatprep.subr.mxu0 0.0
      %645 = vmatpush1.msra.mxu0 0.0
      %646 = vmatprep.subr.mxu0 0.0
      %647 = vmatpush1.msra.mxu0 0.0
      %648 = vmatprep.subr.mxu0 0.0
      %649 = vmatpush1.msra.mxu0 0.0
      %650 = vmatprep.subr.mxu0 0.0
      %651 = vmatpush1.msra.mxu0 0.0
      %652 = vmatprep.subr.mxu0 0.0
      %653 = vmatpush1.msra.mxu0 0.0
      %654 = vmatprep.subr.mxu0 0.0
      %655 = vmatpush1.msra.mxu0 0.0
      %656 = vmatprep.subr.mxu0 0.0
      %657 = vmatpush1.msra.mxu0 0.0
      %658 = vmatprep.subr.mxu0 0.0
      %659 = vmatpush1.msra.mxu0 0.0
      %660 = vmatprep.subr.mxu0 0.0
      %661 = vmatpush1.msra.mxu0 0.0
      %662 = vmatprep.subr.mxu0 0.0
      %663 = vmatpush1.msra.mxu0 0.0
      %664 = vmatprep.subr.mxu0 0.0
      %665 = vmatpush1.msra.mxu0 0.0
      %666 = vmatprep.subr.mxu0 0.0
      %667 = vmatpush1.msra.mxu0 0.0
      %668 = vmatprep.subr.mxu0 0.0
      %669 = vmatpush1.msra.mxu0 0.0
      %670 = vmatprep.subr.mxu0 0.0
      %671 = vmatpush1.msra.mxu0 0.0
      %672 = vmatprep.subr.mxu0 0.0
      %673 = vmatpush1.msra.mxu0 0.0
      %674 = vmatprep.mubr.f32.mxu0 0.0
      %675 = vmatmul.mubr.f32.gmra.mrb[0].mxu0 %v599
      %v676 = vpop.f32.mrb[0].mxu0
      %v677 = vadd.f32 %v576, %v676
      %v678 = vpop.f32.mrb[0].mxu0
      %v679 = vadd.f32 %v578, %v678
      %680 = vmatprep.mubr.f32.mxu0 0.0
      %681 = vmatmul.mubr.f32.gmra.mrb[0].mxu0 %v602
      %v682 = vpop.f32.mrb[0].mxu0
      %v683 = vadd.f32 %v582, %v682
      %v684 = vpop.f32.mrb[0].mxu0
      %v685 = vadd.f32 %v584, %v684
      %686 = vmatprep.mubr.f32.mxu0 0.0
      %687 = vmatmul.mubr.f32.gmra.mrb[0].mxu0 %v605
      %v688 = vpop.f32.mrb[0].mxu0
      %v689 = vadd.f32 %v588, %v688
      %v690 = vpop.f32.mrb[0].mxu0
      %v691 = vadd.f32 %v590, %v690
      %692 = vmatprep.mubr.f32.mxu0 0.0
      %693 = vmatmul.mubr.f32.gmra.mrb[0].mxu0 %v608
      %v694 = vpop.f32.mrb[0].mxu0
      %v695 = vadd.f32 %v594, %v694
      %v696 = vpop.f32.mrb[0].mxu0
      %v697 = vadd.f32 %v596, %v696
      %698 = vdwg.mxu0
      %v699 = vld [vmem:[%s6] sm:$0xff]
      %v700 = vld [vmem:[%s6 + $0x8] sm:$0xff]
      %v701 = vld [vmem:[%s6 + $0x10] sm:$0xff]
      %v702 = vld [vmem:[%s6 + $0x18] sm:$0xff]
      %v703 = vld [vmem:[%s458] sm:$0xff]
      %v704 = vld [vmem:[%s458 + $0x8] sm:$0xff]
      %v705 = vld [vmem:[%s458 + $0x10] sm:$0xff]
      %v706 = vld [vmem:[%s458 + $0x18] sm:$0xff]
      %v708 = vsel %vm496, %v699, 0
      %v711 = vsel %vm496, %v700, 0
      %v714 = vsel %vm496, %v701, 0
      %v717 = vsel %vm496, %v702, 0
      %719 = vmatprep.subr.mxu0 %v704
      %720 = vmatpush1.msra.mxu0 %v703
      %721 = vmatprep.subr.mxu0 %v706
      %722 = vmatpush1.msra.mxu0 %v705
      %723 = vmatprep.subr.mxu0 0.0
      %724 = vmatpush1.msra.mxu0 0.0
      %725 = vmatprep.subr.mxu0 0.0
      %726 = vmatpush1.msra.mxu0 0.0
      %727 = vmatprep.subr.mxu0 0.0
      %728 = vmatpush1.msra.mxu0 0.0
      %729 = vmatprep.subr.mxu0 0.0
      %730 = vmatpush1.msra.mxu0 0.0
      %731 = vmatprep.subr.mxu0 0.0
      %732 = vmatpush1.msra.mxu0 0.0
      %733 = vmatprep.subr.mxu0 0.0
      %734 = vmatpush1.msra.mxu0 0.0
      %735 = vmatprep.subr.mxu0 0.0
      %736 = vmatpush1.msra.mxu0 0.0
      %737 = vmatprep.subr.mxu0 0.0
      %738 = vmatpush1.msra.mxu0 0.0
      %739 = vmatprep.subr.mxu0 0.0
      %740 = vmatpush1.msra.mxu0 0.0
      %741 = vmatprep.subr.mxu0 0.0
      %742 = vmatpush1.msra.mxu0 0.0
      %743 = vmatprep.subr.mxu0 0.0
      %744 = vmatpush1.msra.mxu0 0.0
      %745 = vmatprep.subr.mxu0 0.0
      %746 = vmatpush1.msra.mxu0 0.0
      %747 = vmatprep.subr.mxu0 0.0
      %748 = vmatpush1.msra.mxu0 0.0
      %749 = vmatprep.subr.mxu0 0.0
      %750 = vmatpush1.msra.mxu0 0.0
      %751 = vmatprep.subr.mxu0 0.0
      %752 = vmatpush1.msra.mxu0 0.0
      %753 = vmatprep.subr.mxu0 0.0
      %754 = vmatpush1.msra.mxu0 0.0
      %755 = vmatprep.subr.mxu0 0.0
      %756 = vmatpush1.msra.mxu0 0.0
      %757 = vmatprep.subr.mxu0 0.0
      %758 = vmatpush1.msra.mxu0 0.0
      %759 = vmatprep.subr.mxu0 0.0
      %760 = vmatpush1.msra.mxu0 0.0
      %761 = vmatprep.subr.mxu0 0.0
      %762 = vmatpush1.msra.mxu0 0.0
      %763 = vmatprep.subr.mxu0 0.0
      %764 = vmatpush1.msra.mxu0 0.0
      %765 = vmatprep.subr.mxu0 0.0
      %766 = vmatpush1.msra.mxu0 0.0
      %767 = vmatprep.subr.mxu0 0.0
      %768 = vmatpush1.msra.mxu0 0.0
      %769 = vmatprep.subr.mxu0 0.0
      %770 = vmatpush1.msra.mxu0 0.0
      %771 = vmatprep.subr.mxu0 0.0
      %772 = vmatpush1.msra.mxu0 0.0
      %773 = vmatprep.subr.mxu0 0.0
      %774 = vmatpush1.msra.mxu0 0.0
      %775 = vmatprep.subr.mxu0 0.0
      %776 = vmatpush1.msra.mxu0 0.0
      %777 = vmatprep.subr.mxu0 0.0
      %778 = vmatpush1.msra.mxu0 0.0
      %779 = vmatprep.subr.mxu0 0.0
      %780 = vmatpush1.msra.mxu0 0.0
      %781 = vmatprep.subr.mxu0 0.0
      %782 = vmatpush1.msra.mxu0 0.0
      %783 = vmatprep.mubr.f32.mxu0 0.0
      %784 = vmatmul.mubr.f32.gmra.mrb[0].mxu0 %v708
      %v785 = vpop.f32.mrb[0].mxu0
      %v786 = vadd.f32 0.0, %v785
      %v787 = vpop.f32.mrb[0].mxu0
      %v788 = vadd.f32 0.0, %v787
      %789 = vmatprep.mubr.f32.mxu0 0.0
      %790 = vmatmul.mubr.f32.gmra.mrb[0].mxu0 %v711
      %v791 = vpop.f32.mrb[0].mxu0
      %v792 = vadd.f32 0.0, %v791
      %v793 = vpop.f32.mrb[0].mxu0
      %v794 = vadd.f32 0.0, %v793
      %795 = vmatprep.mubr.f32.mxu0 0.0
      %796 = vmatmul.mubr.f32.gmra.mrb[0].mxu0 %v714
      %v797 = vpop.f32.mrb[0].mxu0
      %v798 = vadd.f32 0.0, %v797
      %v799 = vpop.f32.mrb[0].mxu0
      %v800 = vadd.f32 0.0, %v799
      %801 = vmatprep.mubr.f32.mxu0 0.0
      %802 = vmatmul.mubr.f32.gmra.mrb[0].mxu0 %v717
      %v803 = vpop.f32.mrb[0].mxu0
      %v804 = vadd.f32 0.0, %v803
      %v805 = vpop.f32.mrb[0].mxu0
      %v806 = vadd.f32 0.0, %v805
      %807 = vdwg.mxu0
      %v808 = vadd.f32 %v677, %v786
      %v809 = vadd.f32 %v679, %v788
      %v810 = vadd.f32 %v683, %v792
      %v811 = vadd.f32 %v685, %v794
      %v812 = vadd.f32 %v689, %v798
      %v813 = vadd.f32 %v691, %v800
      %v814 = vadd.f32 %v695, %v804
      %v815 = vadd.f32 %v697, %v806
      %v816 = vld [vmem:[%s7] sm:$0xff]
      %v817 = vld [vmem:[%s7 + $0x8] sm:$0xff]
      %v818 = vld [vmem:[%s7 + $0x10] sm:$0xff]
      %v819 = vld [vmem:[%s7 + $0x18] sm:$0xff]
      %v820 = vld [vmem:[%s468] sm:$0xff]
      %v821 = vld [vmem:[%s468 + $0x8] sm:$0xff]
      %v822 = vld [vmem:[%s468 + $0x10] sm:$0xff]
      %v823 = vld [vmem:[%s468 + $0x18] sm:$0xff]
      %v825 = vsel %vm496, %v816, 0
      %v828 = vsel %vm496, %v817, 0
      %v831 = vsel %vm496, %v818, 0
      %v834 = vsel %vm496, %v819, 0
      %836 = vmatprep.subr.mxu0 %v821
      %837 = vmatpush1.msra.mxu0 %v820
      %838 = vmatprep.subr.mxu0 %v823
      %839 = vmatpush1.msra.mxu0 %v822
      %840 = vmatprep.subr.mxu0 0.0
      %841 = vmatpush1.msra.mxu0 0.0
      %842 = vmatprep.subr.mxu0 0.0
      %843 = vmatpush1.msra.mxu0 0.0
      %844 = vmatprep.subr.mxu0 0.0
      %845 = vmatpush1.msra.mxu0 0.0
      %846 = vmatprep.subr.mxu0 0.0
      %847 = vmatpush1.msra.mxu0 0.0
      %848 = vmatprep.subr.mxu0 0.0
      %849 = vmatpush1.msra.mxu0 0.0
      %850 = vmatprep.subr.mxu0 0.0
      %851 = vmatpush1.msra.mxu0 0.0
      %852 = vmatprep.subr.mxu0 0.0
      %853 = vmatpush1.msra.mxu0 0.0
      %854 = vmatprep.subr.mxu0 0.0
      %855 = vmatpush1.msra.mxu0 0.0
      %856 = vmatprep.subr.mxu0 0.0
      %857 = vmatpush1.msra.mxu0 0.0
      %858 = vmatprep.subr.mxu0 0.0
      %859 = vmatpush1.msra.mxu0 0.0
      %860 = vmatprep.subr.mxu0 0.0
      %861 = vmatpush1.msra.mxu0 0.0
      %862 = vmatprep.subr.mxu0 0.0
      %863 = vmatpush1.msra.mxu0 0.0
      %864 = vmatprep.subr.mxu0 0.0
      %865 = vmatpush1.msra.mxu0 0.0
      %866 = vmatprep.subr.mxu0 0.0
      %867 = vmatpush1.msra.mxu0 0.0
      %868 = vmatprep.subr.mxu0 0.0
      %869 = vmatpush1.msra.mxu0 0.0
      %870 = vmatprep.subr.mxu0 0.0
      %871 = vmatpush1.msra.mxu0 0.0
      %872 = vmatprep.subr.mxu0 0.0
      %873 = vmatpush1.msra.mxu0 0.0
      %874 = vmatprep.subr.mxu0 0.0
      %875 = vmatpush1.msra.mxu0 0.0
      %876 = vmatprep.subr.mxu0 0.0
      %877 = vmatpush1.msra.mxu0 0.0
      %878 = vmatprep.subr.mxu0 0.0
      %879 = vmatpush1.msra.mxu0 0.0
      %880 = vmatprep.subr.mxu0 0.0
      %881 = vmatpush1.msra.mxu0 0.0
      %882 = vmatprep.subr.mxu0 0.0
      %883 = vmatpush1.msra.mxu0 0.0
      %884 = vmatprep.subr.mxu0 0.0
      %885 = vmatpush1.msra.mxu0 0.0
      %886 = vmatprep.subr.mxu0 0.0
      %887 = vmatpush1.msra.mxu0 0.0
      %888 = vmatprep.subr.mxu0 0.0
      %889 = vmatpush1.msra.mxu0 0.0
      %890 = vmatprep.subr.mxu0 0.0
      %891 = vmatpush1.msra.mxu0 0.0
      %892 = vmatprep.subr.mxu0 0.0
      %893 = vmatpush1.msra.mxu0 0.0
      %894 = vmatprep.subr.mxu0 0.0
      %895 = vmatpush1.msra.mxu0 0.0
      %896 = vmatprep.subr.mxu0 0.0
      %897 = vmatpush1.msra.mxu0 0.0
      %898 = vmatprep.subr.mxu0 0.0
      %899 = vmatpush1.msra.mxu0 0.0
      %900 = vmatprep.mubr.f32.mxu0 0.0
      %901 = vmatmul.mubr.f32.gmra.mrb[0].mxu0 %v825
      %v902 = vpop.f32.mrb[0].mxu0
      %v903 = vadd.f32 0.0, %v902
      %v904 = vpop.f32.mrb[0].mxu0
      %v905 = vadd.f32 0.0, %v904
      %906 = vmatprep.mubr.f32.mxu0 0.0
      %907 = vmatmul.mubr.f32.gmra.mrb[0].mxu0 %v828
      %v908 = vpop.f32.mrb[0].mxu0
      %v909 = vadd.f32 0.0, %v908
      %v910 = vpop.f32.mrb[0].mxu0
      %v911 = vadd.f32 0.0, %v910
      %912 = vmatprep.mubr.f32.mxu0 0.0
      %913 = vmatmul.mubr.f32.gmra.mrb[0].mxu0 %v831
      %v914 = vpop.f32.mrb[0].mxu0
      %v915 = vadd.f32 0.0, %v914
      %v916 = vpop.f32.mrb[0].mxu0
      %v917 = vadd.f32 0.0, %v916
      %918 = vmatprep.mubr.f32.mxu0 0.0
      %919 = vmatmul.mubr.f32.gmra.mrb[0].mxu0 %v834
      %v920 = vpop.f32.mrb[0].mxu0
      %v921 = vadd.f32 0.0, %v920
      %v922 = vpop.f32.mrb[0].mxu0
      %v923 = vadd.f32 0.0, %v922
      %924 = vdwg.mxu0
      %v925 = vadd.f32 %v808, %v903
      %v926 = vadd.f32 %v809, %v905
      %v927 = vadd.f32 %v810, %v909
      %v928 = vadd.f32 %v811, %v911
      %v929 = vadd.f32 %v812, %v915
      %v930 = vadd.f32 %v813, %v917
      %v931 = vadd.f32 %v814, %v921
      %v932 = vadd.f32 %v815, %v923
      %v933 = vld [vmem:[%s8] sm:$0xff]
      %v934 = vld [vmem:[%s8 + $0x8] sm:$0xff]
      %v935 = vld [vmem:[%s8 + $0x10] sm:$0xff]
      %v936 = vld [vmem:[%s8 + $0x18] sm:$0xff]
      %938 = vset.pattern.permute.xlu0 0
      %939 = vperm.xlu0 %938, %v933
      %v940 = vpop.permute.xlu0 %939
      %943 = vset.pattern.permute.xlu0 0
      %944 = vperm.xlu0 %943, %v934
      %v945 = vpop.permute.xlu0 %944
      %948 = vset.pattern.permute.xlu0 0
      %949 = vperm.xlu0 %948, %v935
      %v950 = vpop.permute.xlu0 %949
      %953 = vset.pattern.permute.xlu0 0
      %954 = vperm.xlu0 %953, %v936
      %v955 = vpop.permute.xlu0 %954
      %v957 = vadd.f32 %v925, %v940
      %v958 = vadd.f32 %v926, %v940
      %v959 = vadd.f32 %v927, %v945
      %v960 = vadd.f32 %v928, %v945
      %v961 = vadd.f32 %v929, %v950
      %v962 = vadd.f32 %v930, %v950
      %v963 = vadd.f32 %v931, %v955
      %v964 = vadd.f32 %v932, %v955
      %v965 = vsub.f32 0.0, %v957
      %v966 = vsub.f32 0.0, %v958
      %v967 = vsub.f32 0.0, %v959
      %v968 = vsub.f32 0.0, %v960
      %v969 = vsub.f32 0.0, %v961
      %v970 = vsub.f32 0.0, %v962
      %v971 = vsub.f32 0.0, %v963
      %v972 = vsub.f32 0.0, %v964
      %v973 = vmul.f32 %v965, 1.442695
      %v974 = vpow.pop %v973
      %v975 = vmul.f32 %v966, 1.442695
      %v976 = vpow.pop %v975
      %v977 = vmul.f32 %v967, 1.442695
      %v978 = vpow.pop %v977
      %v979 = vmul.f32 %v968, 1.442695
      %v980 = vpow.pop %v979
      %v981 = vmul.f32 %v969, 1.442695
      %v982 = vpow.pop %v981
      %v983 = vmul.f32 %v970, 1.442695
      %v984 = vpow.pop %v983
      %v985 = vmul.f32 %v971, 1.442695
      %v986 = vpow.pop %v985
      %v987 = vmul.f32 %v972, 1.442695
      %v988 = vpow.pop %v987
      %v989 = vadd.f32 %v974, 1.0
      %v990 = vadd.f32 %v976, 1.0
      %v991 = vadd.f32 %v978, 1.0
      %v992 = vadd.f32 %v980, 1.0
      %v993 = vadd.f32 %v982, 1.0
      %v994 = vadd.f32 %v984, 1.0
      %v995 = vadd.f32 %v986, 1.0
      %v996 = vadd.f32 %v988, 1.0
      %v997 = vrcp.pop %v989
      %v998 = vmul.f32 %v957, %v997
      %v999 = vrcp.pop %v990
      %v1000 = vmul.f32 %v958, %v999
      %v1001 = vrcp.pop %v991
      %v1002 = vmul.f32 %v959, %v1001
      %v1003 = vrcp.pop %v992
      %v1004 = vmul.f32 %v960, %v1003
      %v1005 = vrcp.pop %v993
      %v1006 = vmul.f32 %v961, %v1005
      %v1007 = vrcp.pop %v994
      %v1008 = vmul.f32 %v962, %v1007
      %v1009 = vrcp.pop %v995
      %v1010 = vmul.f32 %v963, %v1009
      %v1011 = vrcp.pop %v996
      %v1012 = vmul.f32 %v964, %v1011
      %1013 = vst [vmem:[%s478] sm:$0xff] %v998
      %1014 = vst [vmem:[%s478 + $0x8] sm:$0xff] %v1000
      %1015 = vst [vmem:[%s478 + $0x10] sm:$0xff] %v1002
      %1016 = vst [vmem:[%s478 + $0x18] sm:$0xff] %v1004
      %1017 = vst [vmem:[%s478 + $0x20] sm:$0xff] %v1006
      %1018 = vst [vmem:[%s478 + $0x28] sm:$0xff] %v1008
      %1019 = vst [vmem:[%s478 + $0x30] sm:$0xff] %v1010
      %1020 = vst [vmem:[%s478 + $0x38] sm:$0xff] %v1012
      %s1021 = smul.u32 2, %s25
      %p1022 = scmp.lt.s32.totalorder %s24, 1
      %s1023 = scalar_select %p1022, %s24, 1
      %p1024 = scmp.lt.s32.totalorder %s1021, 1
      %s1025 = scalar_select %p1024, %s1021, 1
      %s1026 = smul.addr %s1023, 8
      %s1027 = sadd.s32 %s1025, %s1026
      %s1028 = smul.addr %s1027, 8
      %s1029 = scalar_lea.vmem %s9, %s1028
      // Predicated region
      $region57: #{c2f_attn_forward.7} parent=55 // pred_check
        %p1030 = pneg %p269
      $region58: #{c2f_attn_forward.7} parent=55 // pred_check_branch
        %1032 = sbr.rel (%p1030) target = $region60
      $region59: #{c2f_attn_forward.7} parent=55 // pred_region
        %s1033 = smul.u32 2, %s25
      $region60: #{c2f_attn_forward.7} parent=55 // pred_fallthru
        _
    $region56: #{c2f_attn_forward.7} parent=5 // pred_fallthru
      _
    %p1034 = scmp.le.s32.totalorder 2, %s15
    // Predicated region
    $region61: #{c2f_attn_forward.7} parent=5 // pred_check
      %p1035 = pneg %p1034
    $region62: #{c2f_attn_forward.7} parent=5 // pred_check_branch
      %1037 = sbr.rel (%p1035) target = $region64
    $region63: #{c2f_attn_forward.7} parent=5 // pred_region
      %s1038 = ssub.s32 %s15, 2
      // Predicated region
      $region65: #{c2f_attn_forward.7} parent=63 // pred_check
        %p1039 = pneg %p275
      $region66: #{c2f_attn_forward.7} parent=63 // pred_check_branch
        %1041 = sbr.rel (%p1039) target = $region68
      $region67: #{c2f_attn_forward.7} parent=63 // pred_region
        %s1042 = smul.u32 2, %s27
        %p1043 = scmp.lt.s32.totalorder %s26, 1
        %s1044 = scalar_select %p1043, %s26, 1
        %p1045 = scmp.lt.s32.totalorder %s1042, 1
        %s1046 = scalar_select %p1045, %s1042, 1
        %s1047 = smul.addr %s1044, 8
        %s1048 = sadd.s32 %s1046, %s1047
        %s1049 = smul.addr %s1048, 8
        %s1050 = scalar_lea.vmem %s9, %s1049
      $region68: #{c2f_attn_forward.7} parent=63 // pred_fallthru
        _
    $region64: #{c2f_attn_forward.7} parent=5 // pred_fallthru
      _
  $region6: #{c2f_attn_forward.7} parent=0 // loop_footer
    %s19 = sadd.s32 1, %s15
  $region7: #{c2f_attn_forward.7} parent=0 // loop_footer_branch
    %14 = sbr.rel target = $region3
  $region8: #{c2f_attn_forward.7} parent=0 // loop_exit
    _

// kernel: c2f_attn_forward.4
$region0: #{c2f_attn_forward.4}
  #allocation0 [shape = 'u32[]', space=smem, size = 0x4, offset = 0x4, fixed_abs, tag = 'smem constant byte address 0x4 - core index']
  #allocation1 [shape = 'u32[144,128]{1,0:T(1,128)}', space=vmem, size = 0x12000, scoped, tag = 'internal scratch']
  %s0 = inlined_call_operand.vmem [shape: f32[2,32,256], index: 0, kind: input, shape index: {}]
  %s1 = inlined_call_operand.vmem [shape: f32[32,32], index: 1, kind: input, shape index: {}]
  %s2 = inlined_call_operand.vmem [shape: f32[32,1], index: 2, kind: input, shape index: {}]
  %s3 = inlined_call_operand.vmem [shape: f32[2,16,256], index: 3, kind: output, shape index: {0}]
  %s4 = inlined_call_operand.vmem [shape: f32[2,16,256], index: 4, kind: output, shape index: {1}]
  %5 = xla_tuple %s3, %s4
  %s6 = sld [smem:[#allocation0]]
  $region53: #{c2f_attn_forward.4} parent=0
    _
  %s8 = ssub.s32 1, %s6
  %s9 = scalar_select 0, %s8, %s6
  loop: start=0, step=1, limit=4
  $region2: #{c2f_attn_forward.4} parent=0 // loop_pre_header
    _
  $region3: #{c2f_attn_forward.4} parent=0 // loop_header
    %s11 = sphi 0, %s15
    %p12 = scmp.ge.s32.totalorder %s11, 4
    %s18 = sphi 0, %s30
    %s19 = sphi 0, %s26
    %s20 = sphi 0, %s18
    %s21 = sphi 0, %s19
    %s22 = sphi 0, %s20
    %s23 = sphi 0, %s21
    %s35 = sphi 0, %s37
    %s38 = sphi 0, %s35
    %s39 = sphi 0, %s38
    %s55 = sphi 0, %s39
    %s59 = sphi 0, %s59
    %s61 = sphi 0, %s59
    %s62 = sphi 0, %s61
    %s76 = sphi 0, %s62
    %s80 = sphi 0, %s80
    %s82 = sphi 0, %s80
    %s83 = sphi 0, %s82
    %s97 = sphi 0, %s83
    %s105 = sphi 0, %s107
    %s108 = sphi 0, %s105
    %s109 = sphi 0, %s108
    %s125 = sphi 0, %s109
    %s133 = sphi 0, %s135
    %s136 = sphi 0, %s133
    %s137 = sphi 0, %s136
    %s153 = sphi 0, %s137
  $region4: #{c2f_attn_forward.4} parent=0 // loop_header_branch
    %14 = sbr.rel (%p12) target = $region8
  $region5: #{c2f_attn_forward.4} parent=0 // loop_body
    %s16 = ssub.s32 %s11, 1
    %s17 = ssub.s32 %s11, 2
    %s24 = sadd.s32 1, %s19
    %p25 = scmp.ge.s32.totalorder %s24, 1
    %s26 = scalar_select %p25, 0, %s24
    %s27 = sadd.s32 1, %s18
    %s28 = scalar_select %p25, %s27, %s18
    %p29 = scmp.ge.s32.totalorder %s28, 2
    %s30 = scalar_select %p29, 0, %s28
    %s31 = ssub.s32 %s18, %s30
    %s32 = ssub.s32 %s19, %s26
    %s33 = sor.u32 %s31, %s32
    %p34 = scmp.eq.s32.totalorder %s33, 0
    %s36 = sadd.s32 %s35, 1
    %s37 = scalar_select %p34, %s35, %s36
    %p40 = pneg %p34
    %p41 = scmp.eq.s32.totalorder %s11, 1
    %p42 = por %p40, %p41
    %p43 = scmp.ne.s32.totalorder %s35, %s38
    %p44 = scmp.eq.s32.totalorder %s11, 0
    %p45 = por %p43, %p44
    %p46 = scmp.ne.s32.totalorder %s35, %s38
    %p47 = scmp.eq.s32.totalorder %s16, 1
    %p48 = por %p46, %p47
    %p49 = scmp.ne.s32.totalorder %s38, %s39
    %p50 = scmp.eq.s32.totalorder %s16, 0
    %p51 = por %p49, %p50
    %p52 = scmp.ne.s32.totalorder %s38, %s39
    %p53 = scmp.eq.s32.totalorder %s17, 1
    %p54 = por %p52, %p53
    %p56 = scmp.ne.s32.totalorder %s39, %s55
    %p57 = scmp.eq.s32.totalorder %s17, 0
    %p58 = por %p56, %p57
    %s60 = sadd.s32 %s59, 1
    %p63 = scmp.eq.s32.totalorder %s11, 1
    %p64 = scmp.ne.s32.totalorder %s59, %s61
    %p65 = scmp.eq.s32.totalorder %s11, 0
    %p66 = por %p64, %p65
    %p67 = scmp.ne.s32.totalorder %s59, %s61
    %p68 = scmp.eq.s32.totalorder %s16, 1
    %p69 = por %p67, %p68
    %p70 = scmp.ne.s32.totalorder %s61, %s62
    %p71 = scmp.eq.s32.totalorder %s16, 0
    %p72 = por %p70, %p71
    %p73 = scmp.ne.s32.totalorder %s61, %s62
    %p74 = scmp.eq.s32.totalorder %s17, 1
    %p75 = por %p73, %p74
    %p77 = scmp.ne.s32.totalorder %s62, %s76
    %p78 = scmp.eq.s32.totalorder %s17, 0
    %p79 = por %p77, %p78
    %s81 = sadd.s32 %s80, 1
    %p84 = scmp.eq.s32.totalorder %s11, 1
    %p85 = scmp.ne.s32.totalorder %s80, %s82
    %p86 = scmp.eq.s32.totalorder %s11, 0
    %p87 = por %p85, %p86
    %p88 = scmp.ne.s32.totalorder %s80, %s82
    %p89 = scmp.eq.s32.totalorder %s16, 1
    %p90 = por %p88, %p89
    %p91 = scmp.ne.s32.totalorder %s82, %s83
    %p92 = scmp.eq.s32.totalorder %s16, 0
    %p93 = por %p91, %p92
    %p94 = scmp.ne.s32.totalorder %s82, %s83
    %p95 = scmp.eq.s32.totalorder %s17, 1
    %p96 = por %p94, %p95
    %p98 = scmp.ne.s32.totalorder %s83, %s97
    %p99 = scmp.eq.s32.totalorder %s17, 0
    %p100 = por %p98, %p99
    %s101 = ssub.s32 %s18, %s30
    %s102 = ssub.s32 %s19, %s26
    %s103 = sor.u32 %s101, %s102
    %p104 = scmp.eq.s32.totalorder %s103, 0
    %s106 = sadd.s32 %s105, 1
    %s107 = scalar_select %p104, %s105, %s106
    %p110 = pneg %p104
    %p111 = scmp.eq.s32.totalorder %s11, 1
    %p112 = por %p110, %p111
    %p113 = scmp.ne.s32.totalorder %s105, %s108
    %p114 = scmp.eq.s32.totalorder %s11, 0
    %p115 = por %p113, %p114
    %p116 = scmp.ne.s32.totalorder %s105, %s108
    %p117 = scmp.eq.s32.totalorder %s16, 1
    %p118 = por %p116, %p117
    %p119 = scmp.ne.s32.totalorder %s108, %s109
    %p120 = scmp.eq.s32.totalorder %s16, 0
    %p121 = por %p119, %p120
    %p122 = scmp.ne.s32.totalorder %s108, %s109
    %p123 = scmp.eq.s32.totalorder %s17, 1
    %p124 = por %p122, %p123
    %p126 = scmp.ne.s32.totalorder %s109, %s125
    %p127 = scmp.eq.s32.totalorder %s17, 0
    %p128 = por %p126, %p127
    %s129 = ssub.s32 %s18, %s30
    %s130 = ssub.s32 %s19, %s26
    %s131 = sor.u32 %s129, %s130
    %p132 = scmp.eq.s32.totalorder %s131, 0
    %s134 = sadd.s32 %s133, 1
    %s135 = scalar_select %p132, %s133, %s134
    %p138 = pneg %p132
    %p139 = scmp.eq.s32.totalorder %s11, 1
    %p140 = por %p138, %p139
    %p141 = scmp.ne.s32.totalorder %s133, %s136
    %p142 = scmp.eq.s32.totalorder %s11, 0
    %p143 = por %p141, %p142
    %p144 = scmp.ne.s32.totalorder %s133, %s136
    %p145 = scmp.eq.s32.totalorder %s16, 1
    %p146 = por %p144, %p145
    %p147 = scmp.ne.s32.totalorder %s136, %s137
    %p148 = scmp.eq.s32.totalorder %s16, 0
    %p149 = por %p147, %p148
    %p150 = scmp.ne.s32.totalorder %s136, %s137
    %p151 = scmp.eq.s32.totalorder %s17, 1
    %p152 = por %p150, %p151
    %p154 = scmp.ne.s32.totalorder %s137, %s153
    %p155 = scmp.eq.s32.totalorder %s17, 0
    %p156 = por %p154, %p155
    %p157 = scmp.le.s32.totalorder 1, %s11
    %p158 = scmp.lt.s32.totalorder %s11, 3
    %p159 = pnand %p157, %p158
    %p160 = pneg %p159
    // Predicated region
    $region9: #{c2f_attn_forward.4} parent=5 // pred_check
      _
    $region10: #{c2f_attn_forward.4} parent=5 // pred_check_branch
      %162 = sbr.rel (%p159) target = $region12
    $region11: #{c2f_attn_forward.4} parent=5 // pred_region
      %s163 = ssub.s32 %s11, 1
      // Predicated region
      $region13: #{c2f_attn_forward.4} parent=11 // pred_check
        %p164 = pneg %p72
      $region14: #{c2f_attn_forward.4} parent=11 // pred_check_branch
        %166 = sbr.rel (%p164) target = $region16
      $region15: #{c2f_attn_forward.4} parent=11 // pred_region
        _
      $region16: #{c2f_attn_forward.4} parent=11 // pred_fallthru
        _
      // Predicated region
      $region17: #{c2f_attn_forward.4} parent=11 // pred_check
        %p167 = pneg %p93
      $region18: #{c2f_attn_forward.4} parent=11 // pred_check_branch
        %169 = sbr.rel (%p167) target = $region20
      $region19: #{c2f_attn_forward.4} parent=11 // pred_region
        _
      $region20: #{c2f_attn_forward.4} parent=11 // pred_fallthru
        _
    $region12: #{c2f_attn_forward.4} parent=5 // pred_fallthru
      _
    %p170 = scmp.lt.s32.totalorder %s11, 2
    // Predicated region
    $region21: #{c2f_attn_forward.4} parent=5 // pred_check
      %p171 = pneg %p170
    $region22: #{c2f_attn_forward.4} parent=5 // pred_check_branch
      %173 = sbr.rel (%p171) target = $region24
    $region23: #{c2f_attn_forward.4} parent=5 // pred_region
      // Predicated region
      $region25: #{c2f_attn_forward.4} parent=23 // pred_check
        %p174 = pneg %p45
      $region26: #{c2f_attn_forward.4} parent=23 // pred_check_branch
        %176 = sbr.rel (%p174) target = $region28
      $region27: #{c2f_attn_forward.4} parent=23 // pred_region
        %s177 = smul.u32 2, %s19
        %p178 = scmp.lt.s32.totalorder %s18, 1
        %s179 = scalar_select %p178, %s18, 1
        %p180 = scmp.lt.s32.totalorder %s177, 1
        %s181 = scalar_select %p180, %s177, 1
        %s182 = smul.addr %s179, 8
        %s183 = sadd.s32 %s181, %s182
        %s184 = smul.addr %s183, 8
        %s185 = scalar_lea.vmem %s0, %s184
        %s186 = smul.u32 2, %s19
      $region28: #{c2f_attn_forward.4} parent=23 // pred_fallthru
        _
    $region24: #{c2f_attn_forward.4} parent=5 // pred_fallthru
      _
    %p187 = scmp.le.s32.totalorder 1, %s11
    %p188 = scmp.lt.s32.totalorder %s11, 3
    %p189 = pnand %p187, %p188
    %p190 = pneg %p189
    // Predicated region
    $region29: #{c2f_attn_forward.4} parent=5 // pred_check
      _
    $region30: #{c2f_attn_forward.4} parent=5 // pred_check_branch
      %192 = sbr.rel (%p189) target = $region32
    $region31: #{c2f_attn_forward.4} parent=5 // pred_region
      %s193 = ssub.s32 %s11, 1
      %s194 = smul.u32 2, %s21
      %p195 = scmp.lt.s32.totalorder %s20, 1
      %s196 = scalar_select %p195, %s20, 1
      %p197 = scmp.lt.s32.totalorder %s194, 1
      %s198 = scalar_select %p197, %s194, 1
      %s199 = smul.addr %s196, 8
      %s200 = sadd.s32 %s198, %s199
      %s201 = smul.addr %s200, 8
      %s202 = scalar_lea.vmem %s0, %s201
      %p203 = pneg %p51
      %p204 = pneg %p48
      %p205 = pneg %p72
      %p206 = pneg %p69
      %p207 = pneg %p93
      %p208 = pneg %p90
      %p209 = pneg %p121
      %p210 = pneg %p118
      %s211 = smul.u32 2, %s21
      %p212 = scmp.lt.s32.totalorder %s20, 1
      %s213 = scalar_select %p212, %s20, 1
      %p214 = scmp.lt.s32.totalorder %s211, 1
      %s215 = scalar_select %p214, %s211, 1
      %s216 = smul.addr %s213, 4
      %s217 = sadd.s32 %s215, %s216
      %s218 = smul.addr %s217, 8
      %s219 = scalar_lea.vmem %s3, %s218
      %p220 = pneg %p149
      %p221 = pneg %p146
      %s222 = smul.u32 2, %s21
      %p223 = scmp.lt.s32.totalorder %s20, 1
      %s224 = scalar_select %p223, %s20, 1
      %p225 = scmp.lt.s32.totalorder %s222, 1
      %s226 = scalar_select %p225, %s222, 1
      %s227 = smul.addr %s224, 4
      %s228 = sadd.s32 %s226, %s227
      %s229 = smul.addr %s228, 8
      %s230 = scalar_lea.vmem %s4, %s229
      %s231 = smul.u32 2, %s21
      %p232 = scmp.lt.s32.totalorder %s20, 1
      %s233 = scalar_select %p232, %s20, 1
      %p234 = scmp.lt.s32.totalorder %s231, 1
      %s235 = scalar_select %p234, %s231, 1
      %s236 = smul.addr %s233, 8
      %s237 = sadd.s32 %s235, %s236
      %s238 = smul.addr %s237, 8
      %s239 = scalar_lea.vmem %s0, %s238
      %s240 = smul.u32 2, %s21
      %s241 = smul.u32 2, %s21
      %p242 = scmp.lt.s32.totalorder %s20, 1
      %s243 = scalar_select %p242, %s20, 1
      %p244 = scmp.lt.s32.totalorder %s241, 1
      %s245 = scalar_select %p244, %s241, 1
      %s246 = smul.addr %s243, 4
      %s247 = sadd.s32 %s245, %s246
      %s248 = smul.addr %s247, 8
      %s249 = scalar_lea.vmem %s3, %s248
      %s250 = smul.u32 2, %s21
      %s251 = smul.u32 2, %s21
      %p252 = scmp.lt.s32.totalorder %s20, 1
      %s253 = scalar_select %p252, %s20, 1
      %p254 = scmp.lt.s32.totalorder %s251, 1
      %s255 = scalar_select %p254, %s251, 1
      %s256 = smul.addr %s253, 4
      %s257 = sadd.s32 %s255, %s256
      %s258 = smul.addr %s257, 8
      %s259 = scalar_lea.vmem %s4, %s258
      %s260 = smul.u32 2, %s21
      %v261 = vld [vmem:[%s239] sm:$0xff]
      %v262 = vld [vmem:[%s239 + $0x8] sm:$0xff]
      %v263 = vld [vmem:[%s239 + $0x10] sm:$0xff]
      %v264 = vld [vmem:[%s239 + $0x18] sm:$0xff]
      %v265 = vld [vmem:[%s239 + $0x20] sm:$0xff]
      %v266 = vld [vmem:[%s239 + $0x28] sm:$0xff]
      %v267 = vld [vmem:[%s239 + $0x30] sm:$0xff]
      %v268 = vld [vmem:[%s239 + $0x38] sm:$0xff]
      %v269 = vld [vmem:[%s1] sm:$0xff]
      %v270 = vld [vmem:[%s1 + $0x8] sm:$0xff]
      %v271 = vld [vmem:[%s1 + $0x10] sm:$0xff]
      %v272 = vld [vmem:[%s1 + $0x18] sm:$0xff]
      %v273 = vld [vmem:[%s2] sm:$0xff]
      %v274 = vld [vmem:[%s2 + $0x8] sm:$0xff]
      %v275 = vld [vmem:[%s2 + $0x10] sm:$0xff]
      %v276 = vld [vmem:[%s2 + $0x18] sm:$0xff]
      %278 = vset.pattern.permute.xlu0 0
      %279 = vperm.xlu0 %278, %v273
      %v280 = vpop.permute.xlu0 %279
      %283 = vset.pattern.permute.xlu0 0
      %284 = vperm.xlu0 %283, %v274
      %v285 = vpop.permute.xlu0 %284
      %288 = vset.pattern.permute.xlu0 0
      %289 = vperm.xlu0 %288, %v275
      %v290 = vpop.permute.xlu0 %289
      %293 = vset.pattern.permute.xlu0 0
      %294 = vperm.xlu0 %293, %v276
      %v295 = vpop.permute.xlu0 %294
      %vm297 = vcmask 261120
      %v299 = vsel %vm297, %v269, 0
      %v302 = vsel %vm297, %v270, 0
      %v305 = vsel %vm297, %v271, 0
      %v308 = vsel %vm297, %v272, 0
      %310 = vmatprep.subr.mxu0 %v262
      %311 = vmatpush1.msra.mxu0 %v261
      %312 = vmatprep.subr.mxu0 %v264
      %313 = vmatpush1.msra.mxu0 %v263
      %314 = vmatprep.subr.mxu0 %v266
      %315 = vmatpush1.msra.mxu0 %v265
      %316 = vmatprep.subr.mxu0 %v268
      %317 = vmatpush1.msra.mxu0 %v267
      %318 = vmatprep.subr.mxu0 0.0
      %319 = vmatpush1.msra.mxu0 0.0
      %320 = vmatprep.subr.mxu0 0.0
      %321 = vmatpush1.msra.mxu0 0.0
      %322 = vmatprep.subr.mxu0 0.0
      %323 = vmatpush1.msra.mxu0 0.0
      %324 = vmatprep.subr.mxu0 0.0
      %325 = vmatpush1.msra.mxu0 0.0
      %326 = vmatprep.subr.mxu0 0.0
      %327 = vmatpush1.msra.mxu0 0.0
      %328 = vmatprep.subr.mxu0 0.0
      %329 = vmatpush1.msra.mxu0 0.0
      %330 = vmatprep.subr.mxu0 0.0
      %331 = vmatpush1.msra.mxu0 0.0
      %332 = vmatprep.subr.mxu0 0.0
      %333 = vmatpush1.msra.mxu0 0.0
      %334 = vmatprep.subr.mxu0 0.0
      %335 = vmatpush1.msra.mxu0 0.0
      %336 = vmatprep.subr.mxu0 0.0
      %337 = vmatpush1.msra.mxu0 0.0
      %338 = vmatprep.subr.mxu0 0.0
      %339 = vmatpush1.msra.mxu0 0.0
      %340 = vmatprep.subr.mxu0 0.0
      %341 = vmatpush1.msra.mxu0 0.0
      %342 = vmatprep.subr.mxu0 0.0
      %343 = vmatpush1.msra.mxu0 0.0
      %344 = vmatprep.subr.mxu0 0.0
      %345 = vmatpush1.msra.mxu0 0.0
      %346 = vmatprep.subr.mxu0 0.0
      %347 = vmatpush1.msra.mxu0 0.0
      %348 = vmatprep.subr.mxu0 0.0
      %349 = vmatpush1.msra.mxu0 0.0
      %350 = vmatprep.subr.mxu0 0.0
      %351 = vmatpush1.msra.mxu0 0.0
      %352 = vmatprep.subr.mxu0 0.0
      %353 = vmatpush1.msra.mxu0 0.0
      %354 = vmatprep.subr.mxu0 0.0
      %355 = vmatpush1.msra.mxu0 0.0
      %356 = vmatprep.subr.mxu0 0.0
      %357 = vmatpush1.msra.mxu0 0.0
      %358 = vmatprep.subr.mxu0 0.0
      %359 = vmatpush1.msra.mxu0 0.0
      %360 = vmatprep.subr.mxu0 0.0
      %361 = vmatpush1.msra.mxu0 0.0
      %362 = vmatprep.subr.mxu0 0.0
      %363 = vmatpush1.msra.mxu0 0.0
      %364 = vmatprep.subr.mxu0 0.0
      %365 = vmatpush1.msra.mxu0 0.0
      %366 = vmatprep.subr.mxu0 0.0
      %367 = vmatpush1.msra.mxu0 0.0
      %368 = vmatprep.subr.mxu0 0.0
      %369 = vmatpush1.msra.mxu0 0.0
      %370 = vmatprep.subr.mxu0 0.0
      %371 = vmatpush1.msra.mxu0 0.0
      %372 = vmatprep.subr.mxu0 0.0
      %373 = vmatpush1.msra.mxu0 0.0
      %374 = vmatprep.mubr.f32.mxu0 0.0
      %375 = vmatmul.mubr.f32.gmra.mrb[0].mxu0 %v299
      %v376 = vpop.f32.mrb[0].mxu0
      %v377 = vadd.f32 %v280, %v376
      %v378 = vpop.f32.mrb[0].mxu0
      %v379 = vadd.f32 %v280, %v378
      %380 = vmatprep.mubr.f32.mxu0 0.0
      %381 = vmatmul.mubr.f32.gmra.mrb[0].mxu0 %v302
      %v382 = vpop.f32.mrb[0].mxu0
      %v383 = vadd.f32 %v285, %v382
      %v384 = vpop.f32.mrb[0].mxu0
      %v385 = vadd.f32 %v285, %v384
      %386 = vmatprep.mubr.f32.mxu0 0.0
      %387 = vmatmul.mubr.f32.gmra.mrb[0].mxu0 %v305
      %v388 = vpop.f32.mrb[0].mxu0
      %v389 = vadd.f32 %v290, %v388
      %v390 = vpop.f32.mrb[0].mxu0
      %v391 = vadd.f32 %v290, %v390
      %392 = vmatprep.mubr.f32.mxu0 0.0
      %393 = vmatmul.mubr.f32.gmra.mrb[0].mxu0 %v308
      %v394 = vpop.f32.mrb[0].mxu0
      %v395 = vadd.f32 %v295, %v394
      %v396 = vpop.f32.mrb[0].mxu0
      %v397 = vadd.f32 %v295, %v396
      %398 = vdwg.mxu0
      %v399 = vsub.f32 0.0, %v377
      %v400 = vsub.f32 0.0, %v379
      %v401 = vsub.f32 0.0, %v383
      %v402 = vsub.f32 0.0, %v385
      %v403 = vsub.f32 0.0, %v389
      %v404 = vsub.f32 0.0, %v391
      %v405 = vsub.f32 0.0, %v395
      %v406 = vsub.f32 0.0, %v397
      %v407 = vmul.f32 %v399, 1.442695
      %v408 = vpow.pop %v407
      %v409 = vmul.f32 %v400, 1.442695
      %v410 = vpow.pop %v409
      %v411 = vmul.f32 %v401, 1.442695
      %v412 = vpow.pop %v411
      %v413 = vmul.f32 %v402, 1.442695
      %v414 = vpow.pop %v413
      %v415 = vmul.f32 %v403, 1.442695
      %v416 = vpow.pop %v415
      %v417 = vmul.f32 %v404, 1.442695
      %v418 = vpow.pop %v417
      %v419 = vmul.f32 %v405, 1.442695
      %v420 = vpow.pop %v419
      %v421 = vmul.f32 %v406, 1.442695
      %v422 = vpow.pop %v421
      %v423 = vadd.f32 %v408, 1.0
      %v424 = vadd.f32 %v410, 1.0
      %v425 = vadd.f32 %v412, 1.0
      %v426 = vadd.f32 %v414, 1.0
      %v427 = vadd.f32 %v416, 1.0
      %v428 = vadd.f32 %v418, 1.0
      %v429 = vadd.f32 %v420, 1.0
      %v430 = vadd.f32 %v422, 1.0
      %v431 = vrcp.pop %v423
      %v432 = vmul.f32 %v377, %v431
      %v433 = vrcp.pop %v424
      %v434 = vmul.f32 %v379, %v433
      %v435 = vrcp.pop %v425
      %v436 = vmul.f32 %v383, %v435
      %v437 = vrcp.pop %v426
      %v438 = vmul.f32 %v385, %v437
      %v439 = vrcp.pop %v427
      %v440 = vmul.f32 %v389, %v439
      %v441 = vrcp.pop %v428
      %v442 = vmul.f32 %v391, %v441
      %v443 = vrcp.pop %v429
      %v444 = vmul.f32 %v395, %v443
      %v445 = vrcp.pop %v430
      %v446 = vmul.f32 %v397, %v445
      %447 = vst [vmem:[%s249] sm:$0xff] %v432
      %448 = vst [vmem:[%s249 + $0x8] sm:$0xff] %v434
      %449 = vst [vmem:[%s249 + $0x10] sm:$0xff] %v436
      %450 = vst [vmem:[%s249 + $0x18] sm:$0xff] %v438
      %451 = vst [vmem:[%s259] sm:$0xff] %v440
      %452 = vst [vmem:[%s259 + $0x8] sm:$0xff] %v442
      %453 = vst [vmem:[%s259 + $0x10] sm:$0xff] %v444
      %454 = vst [vmem:[%s259 + $0x18] sm:$0xff] %v446
      %s455 = smul.u32 2, %s21
      %p456 = scmp.lt.s32.totalorder %s20, 1
      %s457 = scalar_select %p456, %s20, 1
      %p458 = scmp.lt.s32.totalorder %s455, 1
      %s459 = scalar_select %p458, %s455, 1
      %s460 = smul.addr %s457, 4
      %s461 = sadd.s32 %s459, %s460
      %s462 = smul.addr %s461, 8
      %s463 = scalar_lea.vmem %s3, %s462
      %s464 = smul.u32 2, %s21
      %p465 = scmp.lt.s32.totalorder %s20, 1
      %s466 = scalar_select %p465, %s20, 1
      %p467 = scmp.lt.s32.totalorder %s464, 1
      %s468 = scalar_select %p467, %s464, 1
      %s469 = smul.addr %s466, 4
      %s470 = sadd.s32 %s468, %s469
      %s471 = smul.addr %s470, 8
      %s472 = scalar_lea.vmem %s4, %s471
      // Predicated region
      $region33: #{c2f_attn_forward.4} parent=31 // pred_check
        %p473 = pneg %p118
      $region34: #{c2f_attn_forward.4} parent=31 // pred_check_branch
        %475 = sbr.rel (%p473) target = $region36
      $region35: #{c2f_attn_forward.4} parent=31 // pred_region
        %s476 = smul.u32 2, %s21
      $region36: #{c2f_attn_forward.4} parent=31 // pred_fallthru
        _
      // Predicated region
      $region37: #{c2f_attn_forward.4} parent=31 // pred_check
        %p477 = pneg %p146
      $region38: #{c2f_attn_forward.4} parent=31 // pred_check_branch
        %479 = sbr.rel (%p477) target = $region40
      $region39: #{c2f_attn_forward.4} parent=31 // pred_region
        %s480 = smul.u32 2, %s21
      $region40: #{c2f_attn_forward.4} parent=31 // pred_fallthru
        _
    $region32: #{c2f_attn_forward.4} parent=5 // pred_fallthru
      _
    %p481 = scmp.le.s32.totalorder 2, %s11
    // Predicated region
    $region41: #{c2f_attn_forward.4} parent=5 // pred_check
      %p482 = pneg %p481
    $region42: #{c2f_attn_forward.4} parent=5 // pred_check_branch
      %484 = sbr.rel (%p482) target = $region44
    $region43: #{c2f_attn_forward.4} parent=5 // pred_region
      %s485 = ssub.s32 %s11, 2
      // Predicated region
      $region45: #{c2f_attn_forward.4} parent=43 // pred_check
        %p486 = pneg %p124
      $region46: #{c2f_attn_forward.4} parent=43 // pred_check_branch
        %488 = sbr.rel (%p486) target = $region48
      $region47: #{c2f_attn_forward.4} parent=43 // pred_region
        %s489 = smul.u32 2, %s23
        %p490 = scmp.lt.s32.totalorder %s22, 1
        %s491 = scalar_select %p490, %s22, 1
        %p492 = scmp.lt.s32.totalorder %s489, 1
        %s493 = scalar_select %p492, %s489, 1
        %s494 = smul.addr %s491, 4
        %s495 = sadd.s32 %s493, %s494
        %s496 = smul.addr %s495, 8
        %s497 = scalar_lea.vmem %s3, %s496
      $region48: #{c2f_attn_forward.4} parent=43 // pred_fallthru
        _
      // Predicated region
      $region49: #{c2f_attn_forward.4} parent=43 // pred_check
        %p498 = pneg %p152
      $region50: #{c2f_attn_forward.4} parent=43 // pred_check_branch
        %500 = sbr.rel (%p498) target = $region52
      $region51: #{c2f_attn_forward.4} parent=43 // pred_region
        %s501 = smul.u32 2, %s23
        %p502 = scmp.lt.s32.totalorder %s22, 1
        %s503 = scalar_select %p502, %s22, 1
        %p504 = scmp.lt.s32.totalorder %s501, 1
        %s505 = scalar_select %p504, %s501, 1
        %s506 = smul.addr %s503, 4
        %s507 = sadd.s32 %s505, %s506
        %s508 = smul.addr %s507, 8
        %s509 = scalar_lea.vmem %s4, %s508
      $region52: #{c2f_attn_forward.4} parent=43 // pred_fallthru
        _
    $region44: #{c2f_attn_forward.4} parent=5 // pred_fallthru
      _
  $region6: #{c2f_attn_forward.4} parent=0 // loop_footer
    %s15 = sadd.s32 1, %s11
  $region7: #{c2f_attn_forward.4} parent=0 // loop_footer_branch
    %10 = sbr.rel target = $region3
  $region8: #{c2f_attn_forward.4} parent=0 // loop_exit
    _

// kernel: c2f_attn_forward.6
$region0: #{c2f_attn_forward.6}
  #allocation0 [shape = 'u32[]', space=smem, size = 0x4, offset = 0x4, fixed_abs, tag = 'smem constant byte address 0x4 - core index']
  #allocation1 [shape = 'u32[144,128]{1,0:T(1,128)}', space=vmem, size = 0x12000, scoped, tag = 'internal scratch']
  #allocation2 [shape = 'f32[1]{0:T(128)S(6)}', space=smem, size = 0x200, scoped, tag = 'scoped memory for c2f_attn_forward.6']
  %s0 = inlined_call_operand.vmem [shape: f32[2,16,256], index: 0, kind: input, shape index: {}]
  %s1 = inlined_call_operand.vmem [shape: f32[2,8,32], index: 1, kind: input, shape index: {}]
  %s2 = inlined_call_operand.vmem [shape: f32[9,16,16], index: 2, kind: input, shape index: {}]
  %s3 = inlined_call_operand.vmem [shape: f32[16,1], index: 3, kind: input, shape index: {}]
  %s4 = inlined_call_operand.vmem [shape: f32[32,16], index: 4, kind: input, shape index: {}]
  %s5 = inlined_call_operand.vmem [shape: f32[1,16], index: 5, kind: input, shape index: {}]
  %s6 = inlined_call_operand.<no memory space> [shape: f32[1], index: 6, kind: input, shape index: {}]
  %s7 = inlined_call_operand.vmem [shape: f32[2,16,256], index: 7, kind: output, shape index: {}]
  %s8 = sld [smem:[#allocation0]]
  $region61: #{c2f_attn_forward.6} parent=0
    _
  %s10 = ssub.s32 1, %s8
  %s11 = scalar_select 0, %s10, %s8
  %12 = sst [smem:[#allocation2]] %s6
  loop: start=0, step=1, limit=4
  $region2: #{c2f_attn_forward.6} parent=0 // loop_pre_header
    _
  $region3: #{c2f_attn_forward.6} parent=0 // loop_header
    %s14 = sphi 0, %s18
    %p15 = scmp.ge.s32.totalorder %s14, 4
    %s24 = sphi 0, %s26
    %s27 = sphi 0, %s24
    %s28 = sphi 0, %s27
    %s44 = sphi 0, %s28
    %s50 = sphi 0, %s52
    %s53 = sphi 0, %s50
    %s54 = sphi 0, %s53
    %s70 = sphi 0, %s54
    %s74 = sphi 0, %s74
    %s76 = sphi 0, %s74
    %s77 = sphi 0, %s76
    %s91 = sphi 0, %s77
    %s95 = sphi 0, %s95
    %s97 = sphi 0, %s95
    %s98 = sphi 0, %s97
    %s112 = sphi 0, %s98
    %s116 = sphi 0, %s116
    %s118 = sphi 0, %s116
    %s119 = sphi 0, %s118
    %s133 = sphi 0, %s119
    %s137 = sphi 0, %s137
    %s139 = sphi 0, %s137
    %s140 = sphi 0, %s139
    %s154 = sphi 0, %s140
    %s158 = sphi 0, %s158
    %s160 = sphi 0, %s158
    %s161 = sphi 0, %s160
    %s175 = sphi 0, %s161
    %s181 = sphi 0, %s183
    %s184 = sphi 0, %s181
    %s185 = sphi 0, %s184
    %s201 = sphi 0, %s185
  $region4: #{c2f_attn_forward.6} parent=0 // loop_header_branch
    %17 = sbr.rel (%p15) target = $region8
  $region5: #{c2f_attn_forward.6} parent=0 // loop_body
    %s19 = ssub.s32 %s14, 1
    %s20 = ssub.s32 %s14, 2
    %s21 = sadd.s32 %s14, 1
    %s22 = ssub.s32 %s14, %s21
    %p23 = scmp.eq.s32.totalorder %s22, 0
    %s25 = sadd.s32 %s24, 1
    %s26 = scalar_select %p23, %s24, %s25
    %p29 = pneg %p23
    %p30 = scmp.eq.s32.totalorder %s14, 1
    %p31 = por %p29, %p30
    %p32 = scmp.ne.s32.totalorder %s24, %s27
    %p33 = scmp.eq.s32.totalorder %s14, 0
    %p34 = por %p32, %p33
    %p35 = scmp.ne.s32.totalorder %s24, %s27
    %p36 = scmp.eq.s32.totalorder %s19, 1
    %p37 = por %p35, %p36
    %p38 = scmp.ne.s32.totalorder %s27, %s28
    %p39 = scmp.eq.s32.totalorder %s19, 0
    %p40 = por %p38, %p39
    %p41 = scmp.ne.s32.totalorder %s27, %s28
    %p42 = scmp.eq.s32.totalorder %s20, 1
    %p43 = por %p41, %p42
    %p45 = scmp.ne.s32.totalorder %s28, %s44
    %p46 = scmp.eq.s32.totalorder %s20, 0
    %p47 = por %p45, %p46
    %s48 = ssub.s32 %s14, %s21
    %p49 = scmp.eq.s32.totalorder %s48, 0
    %s51 = sadd.s32 %s50, 1
    %s52 = scalar_select %p49, %s50, %s51
    %p55 = pneg %p49
    %p56 = scmp.eq.s32.totalorder %s14, 1
    %p57 = por %p55, %p56
    %p58 = scmp.ne.s32.totalorder %s50, %s53
    %p59 = scmp.eq.s32.totalorder %s14, 0
    %p60 = por %p58, %p59
    %p61 = scmp.ne.s32.totalorder %s50, %s53
    %p62 = scmp.eq.s32.totalorder %s19, 1
    %p63 = por %p61, %p62
    %p64 = scmp.ne.s32.totalorder %s53, %s54
    %p65 = scmp.eq.s32.totalorder %s19, 0
    %p66 = por %p64, %p65
    %p67 = scmp.ne.s32.totalorder %s53, %s54
    %p68 = scmp.eq.s32.totalorder %s20, 1
    %p69 = por %p67, %p68
    %p71 = scmp.ne.s32.totalorder %s54, %s70
    %p72 = scmp.eq.s32.totalorder %s20, 0
    %p73 = por %p71, %p72
    %s75 = sadd.s32 %s74, 1
    %p78 = scmp.eq.s32.totalorder %s14, 1
    %p79 = scmp.ne.s32.totalorder %s74, %s76
    %p80 = scmp.eq.s32.totalorder %s14, 0
    %p81 = por %p79, %p80
    %p82 = scmp.ne.s32.totalorder %s74, %s76
    %p83 = scmp.eq.s32.totalorder %s19, 1
    %p84 = por %p82, %p83
    %p85 = scmp.ne.s32.totalorder %s76, %s77
    %p86 = scmp.eq.s32.totalorder %s19, 0
    %p87 = por %p85, %p86
    %p88 = scmp.ne.s32.totalorder %s76, %s77
    %p89 = scmp.eq.s32.totalorder %s20, 1
    %p90 = por %p88, %p89
    %p92 = scmp.ne.s32.totalorder %s77, %s91
    %p93 = scmp.eq.s32.totalorder %s20, 0
    %p94 = por %p92, %p93
    %s96 = sadd.s32 %s95, 1
    %p99 = scmp.eq.s32.totalorder %s14, 1
    %p100 = scmp.ne.s32.totalorder %s95, %s97
    %p101 = scmp.eq.s32.totalorder %s14, 0
    %p102 = por %p100, %p101
    %p103 = scmp.ne.s32.totalorder %s95, %s97
    %p104 = scmp.eq.s32.totalorder %s19, 1
    %p105 = por %p103, %p104
    %p106 = scmp.ne.s32.totalorder %s97, %s98
    %p107 = scmp.eq.s32.totalorder %s19, 0
    %p108 = por %p106, %p107
    %p109 = scmp.ne.s32.totalorder %s97, %s98
    %p110 = scmp.eq.s32.totalorder %s20, 1
    %p111 = por %p109, %p110
    %p113 = scmp.ne.s32.totalorder %s98, %s112
    %p114 = scmp.eq.s32.totalorder %s20, 0
    %p115 = por %p113, %p114
    %s117 = sadd.s32 %s116, 1
    %p120 = scmp.eq.s32.totalorder %s14, 1
    %p121 = scmp.ne.s32.totalorder %s116, %s118
    %p122 = scmp.eq.s32.totalorder %s14, 0
    %p123 = por %p121, %p122
    %p124 = scmp.ne.s32.totalorder %s116, %s118
    %p125 = scmp.eq.s32.totalorder %s19, 1
    %p126 = por %p124, %p125
    %p127 = scmp.ne.s32.totalorder %s118, %s119
    %p128 = scmp.eq.s32.totalorder %s19, 0
    %p129 = por %p127, %p128
    %p130 = scmp.ne.s32.totalorder %s118, %s119
    %p131 = scmp.eq.s32.totalorder %s20, 1
    %p132 = por %p130, %p131
    %p134 = scmp.ne.s32.totalorder %s119, %s133
    %p135 = scmp.eq.s32.totalorder %s20, 0
    %p136 = por %p134, %p135
    %s138 = sadd.s32 %s137, 1
    %p141 = scmp.eq.s32.totalorder %s14, 1
    %p142 = scmp.ne.s32.totalorder %s137, %s139
    %p143 = scmp.eq.s32.totalorder %s14, 0
    %p144 = por %p142, %p143
    %p145 = scmp.ne.s32.totalorder %s137, %s139
    %p146 = scmp.eq.s32.totalorder %s19, 1
    %p147 = por %p145, %p146
    %p148 = scmp.ne.s32.totalorder %s139, %s140
    %p149 = scmp.eq.s32.totalorder %s19, 0
    %p150 = por %p148, %p149
    %p151 = scmp.ne.s32.totalorder %s139, %s140
    %p152 = scmp.eq.s32.totalorder %s20, 1
    %p153 = por %p151, %p152
    %p155 = scmp.ne.s32.totalorder %s140, %s154
    %p156 = scmp.eq.s32.totalorder %s20, 0
    %p157 = por %p155, %p156
    %s159 = sadd.s32 %s158, 1
    %p162 = scmp.eq.s32.totalorder %s14, 1
    %p163 = scmp.ne.s32.totalorder %s158, %s160
    %p164 = scmp.eq.s32.totalorder %s14, 0
    %p165 = por %p163, %p164
    %p166 = scmp.ne.s32.totalorder %s158, %s160
    %p167 = scmp.eq.s32.totalorder %s19, 1
    %p168 = por %p166, %p167
    %p169 = scmp.ne.s32.totalorder %s160, %s161
    %p170 = scmp.eq.s32.totalorder %s19, 0
    %p171 = por %p169, %p170
    %p172 = scmp.ne.s32.totalorder %s160, %s161
    %p173 = scmp.eq.s32.totalorder %s20, 1
    %p174 = por %p172, %p173
    %p176 = scmp.ne.s32.totalorder %s161, %s175
    %p177 = scmp.eq.s32.totalorder %s20, 0
    %p178 = por %p176, %p177
    %s179 = ssub.s32 %s14, %s21
    %p180 = scmp.eq.s32.totalorder %s179, 0
    %s182 = sadd.s32 %s181, 1
    %s183 = scalar_select %p180, %s181, %s182
    %p186 = pneg %p180
    %p187 = scmp.eq.s32.totalorder %s14, 1
    %p188 = por %p186, %p187
    %p189 = scmp.ne.s32.totalorder %s181, %s184
    %p190 = scmp.eq.s32.totalorder %s14, 0
    %p191 = por %p189, %p190
    %p192 = scmp.ne.s32.totalorder %s181, %s184
    %p193 = scmp.eq.s32.totalorder %s19, 1
    %p194 = por %p192, %p193
    %p195 = scmp.ne.s32.totalorder %s184, %s185
    %p196 = scmp.eq.s32.totalorder %s19, 0
    %p197 = por %p195, %p196
    %p198 = scmp.ne.s32.totalorder %s184, %s185
    %p199 = scmp.eq.s32.totalorder %s20, 1
    %p200 = por %p198, %p199
    %p202 = scmp.ne.s32.totalorder %s185, %s201
    %p203 = scmp.eq.s32.totalorder %s20, 0
    %p204 = por %p202, %p203
    %p205 = scmp.le.s32.totalorder 1, %s14
    %p206 = scmp.lt.s32.totalorder %s14, 3
    %p207 = pnand %p205, %p206
    %p208 = pneg %p207
    // Predicated region
    $region9: #{c2f_attn_forward.6} parent=5 // pred_check
      _
    $region10: #{c2f_attn_forward.6} parent=5 // pred_check_branch
      %210 = sbr.rel (%p207) target = $region12
    $region11: #{c2f_attn_forward.6} parent=5 // pred_region
      %s211 = ssub.s32 %s14, 1
      // Predicated region
      $region13: #{c2f_attn_forward.6} parent=11 // pred_check
        %p212 = pneg %p87
      $region14: #{c2f_attn_forward.6} parent=11 // pred_check_branch
        %214 = sbr.rel (%p212) target = $region16
      $region15: #{c2f_attn_forward.6} parent=11 // pred_region
        _
      $region16: #{c2f_attn_forward.6} parent=11 // pred_fallthru
        _
      // Predicated region
      $region17: #{c2f_attn_forward.6} parent=11 // pred_check
        %p215 = pneg %p108
      $region18: #{c2f_attn_forward.6} parent=11 // pred_check_branch
        %217 = sbr.rel (%p215) target = $region20
      $region19: #{c2f_attn_forward.6} parent=11 // pred_region
        _
      $region20: #{c2f_attn_forward.6} parent=11 // pred_fallthru
        _
      // Predicated region
      $region21: #{c2f_attn_forward.6} parent=11 // pred_check
        %p218 = pneg %p129
      $region22: #{c2f_attn_forward.6} parent=11 // pred_check_branch
        %220 = sbr.rel (%p218) target = $region24
      $region23: #{c2f_attn_forward.6} parent=11 // pred_region
        _
      $region24: #{c2f_attn_forward.6} parent=11 // pred_fallthru
        _
      // Predicated region
      $region25: #{c2f_attn_forward.6} parent=11 // pred_check
        %p221 = pneg %p150
      $region26: #{c2f_attn_forward.6} parent=11 // pred_check_branch
        %223 = sbr.rel (%p221) target = $region28
      $region27: #{c2f_attn_forward.6} parent=11 // pred_region
        _
      $region28: #{c2f_attn_forward.6} parent=11 // pred_fallthru
        _
      // Predicated region
      $region29: #{c2f_attn_forward.6} parent=11 // pred_check
        %p224 = pneg %p171
      $region30: #{c2f_attn_forward.6} parent=11 // pred_check_branch
        %226 = sbr.rel (%p224) target = $region32
      $region31: #{c2f_attn_forward.6} parent=11 // pred_region
        _
      $region32: #{c2f_attn_forward.6} parent=11 // pred_fallthru
        _
    $region12: #{c2f_attn_forward.6} parent=5 // pred_fallthru
      _
    %p227 = scmp.lt.s32.totalorder %s14, 2
    // Predicated region
    $region33: #{c2f_attn_forward.6} parent=5 // pred_check
      %p228 = pneg %p227
    $region34: #{c2f_attn_forward.6} parent=5 // pred_check_branch
      %230 = sbr.rel (%p228) target = $region36
    $region35: #{c2f_attn_forward.6} parent=5 // pred_region
      // Predicated region
      $region37: #{c2f_attn_forward.6} parent=35 // pred_check
        %p231 = pneg %p34
      $region38: #{c2f_attn_forward.6} parent=35 // pred_check_branch
        %233 = sbr.rel (%p231) target = $region40
      $region39: #{c2f_attn_forward.6} parent=35 // pred_region
        %p234 = scmp.lt.s32.totalorder %s14, 1
        %s235 = scalar_select %p234, %s14, 1
        %s236 = smul.addr %s235, 4
        %s237 = smul.addr %s236, 8
        %s238 = scalar_lea.vmem %s0, %s237
      $region40: #{c2f_attn_forward.6} parent=35 // pred_fallthru
        _
      // Predicated region
      $region41: #{c2f_attn_forward.6} parent=35 // pred_check
        %p239 = pneg %p60
      $region42: #{c2f_attn_forward.6} parent=35 // pred_check_branch
        %241 = sbr.rel (%p239) target = $region44
      $region43: #{c2f_attn_forward.6} parent=35 // pred_region
        %p242 = scmp.lt.s32.totalorder %s14, 1
        %s243 = scalar_select %p242, %s14, 1
        %s244 = smul.addr %s243, 8
        %s245 = scalar_lea.vmem %s1, %s244
      $region44: #{c2f_attn_forward.6} parent=35 // pred_fallthru
        _
    $region36: #{c2f_attn_forward.6} parent=5 // pred_fallthru
      _
    %p246 = scmp.le.s32.totalorder 1, %s14
    %p247 = scmp.lt.s32.totalorder %s14, 3
    %p248 = pnand %p246, %p247
    %p249 = pneg %p248
    // Predicated region
    $region45: #{c2f_attn_forward.6} parent=5 // pred_check
      _
    $region46: #{c2f_attn_forward.6} parent=5 // pred_check_branch
      %251 = sbr.rel (%p248) target = $region48
    $region47: #{c2f_attn_forward.6} parent=5 // pred_region
      %s252 = ssub.s32 %s14, 1
      %p253 = scmp.lt.s32.totalorder %s19, 1
      %s254 = scalar_select %p253, %s19, 1
      %s255 = smul.addr %s254, 4
      %s256 = smul.addr %s255, 8
      %s257 = scalar_lea.vmem %s0, %s256
      %p258 = pneg %p40
      %p259 = pneg %p37
      %p260 = scmp.lt.s32.totalorder %s19, 1
      %s261 = scalar_select %p260, %s19, 1
      %s262 = smul.addr %s261, 8
      %s263 = scalar_lea.vmem %s1, %s262
      %p264 = pneg %p66
      %p265 = pneg %p63
      %p266 = pneg %p87
      %p267 = pneg %p84
      %p268 = pneg %p108
      %p269 = pneg %p105
      %p270 = pneg %p129
      %p271 = pneg %p126
      %p272 = pneg %p150
      %p273 = pneg %p147
      %p274 = pneg %p171
      %p275 = pneg %p168
      %p276 = pneg %p197
      %p277 = pneg %p194
      %p278 = scmp.lt.s32.totalorder %s19, 1
      %s279 = scalar_select %p278, %s19, 1
      %s280 = smul.addr %s279, 4
      %s281 = smul.addr %s280, 8
      %s282 = scalar_lea.vmem %s7, %s281
      %p283 = scmp.lt.s32.totalorder %s19, 1
      %s284 = scalar_select %p283, %s19, 1
      %s285 = smul.addr %s284, 4
      %s286 = smul.addr %s285, 8
      %s287 = scalar_lea.vmem %s0, %s286
      %p288 = scmp.lt.s32.totalorder %s19, 1
      %s289 = scalar_select %p288, %s19, 1
      %s290 = smul.addr %s289, 8
      %s291 = scalar_lea.vmem %s1, %s290
      %p292 = scmp.lt.s32.totalorder %s19, 1
      %s293 = scalar_select %p292, %s19, 1
      %s294 = smul.addr %s293, 4
      %s295 = smul.addr %s294, 8
      %s296 = scalar_lea.vmem %s7, %s295
      %v297 = vlaneseq
      %v298 = vand.u32 %v297, 127
      %v299 = vadd.s32 %v298, 128
      %vm300 = vcmp.lt.s32.totalorder %v298, 0
      %v301 = vsub.s32 0, %v298
      %v302 = vsel %vm300, %v301, %v298
      %v303 = vshrl.u32 %v302, 4
      %v304 = vand.u32 %v302, 15
      %v305 = vsub.s32 0, %v304
      %v306 = vsel %vm300, %v305, %v304
      %vm307 = vcmp.lt.s32.totalorder %v299, 0
      %v308 = vsub.s32 0, %v299
      %v309 = vsel %vm307, %v308, %v299
      %v310 = vshrl.u32 %v309, 4
      %v311 = vand.u32 %v309, 15
      %v312 = vsub.s32 0, %v311
      %v313 = vsel %vm307, %v312, %v311
      %vm314 = vcmp.ne.s32.totalorder %v306, 0
      %vm315 = vcmp.ne.s32.totalorder %v313, 0
      %vm316 = vcmp.lt.s32.totalorder %v306, 0
      %vm317 = vcmp.lt.s32.totalorder %v313, 0
      %vm318 = vmand %vm316, %vm314
      %vm319 = vmand %vm317, %vm315
      %v320 = vadd.s32 %v306, 16
      %v321 = vadd.s32 %v313, 16
      %v322 = vsel %vm318, %v320, %v306
      %v323 = vsel %vm319, %v321, %v313
      %vm324 = vcmp.ge.s32.totalorder %v298, 16
      %vm325 = vcmp.ge.s32.totalorder %v299, 16
      %vm326 = vcmp.ge.s32.totalorder %v322, 1
      %vm327 = vcmp.ge.s32.totalorder %v323, 1
      %vm328 = vmand %vm324, %vm326
      %vm329 = vmand %vm325, %vm327
      %v330 = vsel %vm328, 1, 0
      %v331 = vsel %vm329, 1, 0
      %v332 = vcvt.s32.f32 %v330
      %v333 = vcvt.s32.f32 %v331
      %v334 = vsel %vm324, 1, 0
      %v335 = vsel %vm325, 1, 0
      %v336 = vcvt.s32.f32 %v334
      %v337 = vcvt.s32.f32 %v335
      %vm338 = vcmp.lt.s32.totalorder %v322, 15
      %vm339 = vcmp.lt.s32.totalorder %v323, 15
      %vm340 = vmand %vm324, %vm338
      %vm341 = vmand %vm325, %vm339
      %v342 = vsel %vm340, 1, 0
      %v343 = vsel %vm341, 1, 0
      %v344 = vcvt.s32.f32 %v342
      %v345 = vcvt.s32.f32 %v343
      %v346 = vsel %vm326, 1, 0
      %v347 = vsel %vm327, 1, 0
      %v348 = vcvt.s32.f32 %v346
      %v349 = vcvt.s32.f32 %v347
      %v350 = vsel %vm338, 1, 0
      %v351 = vsel %vm339, 1, 0
      %v352 = vcvt.s32.f32 %v350
      %v353 = vcvt.s32.f32 %v351
      %vm354 = vcmp.lt.s32.totalorder %v298, 240
      %vm355 = vcmp.lt.s32.totalorder %v299, 240
      %vm356 = vmand %vm354, %vm326
      %vm357 = vmand %vm355, %vm327
      %v358 = vsel %vm356, 1, 0
      %v359 = vsel %vm357, 1, 0
      %v360 = vcvt.s32.f32 %v358
      %v361 = vcvt.s32.f32 %v359
      %v362 = vsel %vm354, 1, 0
      %v363 = vsel %vm355, 1, 0
      %v364 = vcvt.s32.f32 %v362
      %v365 = vcvt.s32.f32 %v363
      %vm366 = vmand %vm354, %vm338
      %vm367 = vmand %vm355, %vm339
      %v368 = vsel %vm366, 1, 0
      %v369 = vsel %vm367, 1, 0
      %v370 = vcvt.s32.f32 %v368
      %v371 = vcvt.s32.f32 %v369
      %v372 = vld [vmem:[%s287] sm:$0xff]
      %v373 = vld [vmem:[%s287 + $0x8] sm:$0xff]
      %v374 = vld [vmem:[%s287 + $0x10] sm:$0xff]
      %v375 = vld [vmem:[%s287 + $0x18] sm:$0xff]
      %v376 = vld [vmem:[%s3] sm:$0xff]
      %v377 = vld [vmem:[%s3 + $0x8] sm:$0xff]
      %378 = vrot.lane.b32.xlu0 %v372, 17
      %v379 = vpop.permute.xlu0 %378
      %380 = vrot.lane.b32.xlu0 %v374, 17
      %v381 = vpop.permute.xlu0 %380
      %382 = vrot.lane.b32.xlu0 %v373, 17
      %v383 = vpop.permute.xlu0 %382
      %384 = vrot.lane.b32.xlu0 %v375, 17
      %v385 = vpop.permute.xlu0 %384
      %vm386 = vcmp.lt.s32.totalorder %v298, 17
      %v387 = vsel %vm386, %v379, %v383
      %v388 = vsel %vm386, %v381, %v385
      %v389 = vsel %vm386, %v383, %v379
      %v390 = vsel %vm386, %v385, %v381
      %v391 = vmul.f32 %v389, %v332
      %v392 = vmul.f32 %v387, %v333
      %v393 = vmul.f32 %v390, %v332
      %v394 = vmul.f32 %v388, %v333
      %v395 = vld [vmem:[%s2] sm:$0xff]
      %v396 = vld [vmem:[%s2 + $0x8] sm:$0xff]
      %397 = vrot.lane.b32.xlu0 %v372, 16
      %v398 = vpop.permute.xlu0 %397
      %399 = vrot.lane.b32.xlu0 %v374, 16
      %v400 = vpop.permute.xlu0 %399
      %401 = vrot.lane.b32.xlu0 %v373, 16
      %v402 = vpop.permute.xlu0 %401
      %403 = vrot.lane.b32.xlu0 %v375, 16
      %v404 = vpop.permute.xlu0 %403
      %vm405 = vcmp.lt.s32.totalorder %v298, 16
      %v406 = vsel %vm405, %v398, %v402
      %v407 = vsel %vm405, %v400, %v404
      %v408 = vsel %vm405, %v402, %v398
      %v409 = vsel %vm405, %v404, %v400
      %v410 = vmul.f32 %v408, %v336
      %v411 = vmul.f32 %v406, %v337
      %v412 = vmul.f32 %v409, %v336
      %v413 = vmul.f32 %v407, %v337
      %s414 = scalar_lea.vmem %s2, 16
      %v415 = vld [vmem:[%s414] sm:$0xff]
      %v416 = vld [vmem:[%s414 + $0x8] sm:$0xff]
      %vm417 = vcmask 130048
      %v419 = vsel %vm417, %v415, 0
      %v422 = vsel %vm417, %v416, 0
      %424 = vmatprep.subr.mxu0 %v411
      %425 = vmatpush1.msra.mxu0 %v410
      %426 = vmatprep.subr.mxu0 %v413
      %427 = vmatpush1.msra.mxu0 %v412
      %428 = vmatprep.subr.mxu0 0.0
      %429 = vmatpush1.msra.mxu0 0.0
      %430 = vmatprep.subr.mxu0 0.0
      %431 = vmatpush1.msra.mxu0 0.0
      %432 = vmatprep.subr.mxu0 0.0
      %433 = vmatpush1.msra.mxu0 0.0
      %434 = vmatprep.subr.mxu0 0.0
      %435 = vmatpush1.msra.mxu0 0.0
      %436 = vmatprep.subr.mxu0 0.0
      %437 = vmatpush1.msra.mxu0 0.0
      %438 = vmatprep.subr.mxu0 0.0
      %439 = vmatpush1.msra.mxu0 0.0
      %440 = vmatprep.subr.mxu0 0.0
      %441 = vmatpush1.msra.mxu0 0.0
      %442 = vmatprep.subr.mxu0 0.0
      %443 = vmatpush1.msra.mxu0 0.0
      %444 = vmatprep.subr.mxu0 0.0
      %445 = vmatpush1.msra.mxu0 0.0
      %446 = vmatprep.subr.mxu0 0.0
      %447 = vmatpush1.msra.mxu0 0.0
      %448 = vmatprep.subr.mxu0 0.0
      %449 = vmatpush1.msra.mxu0 0.0
      %450 = vmatprep.subr.mxu0 0.0
      %451 = vmatpush1.msra.mxu0 0.0
      %452 = vmatprep.subr.mxu0 0.0
      %453 = vmatpush1.msra.mxu0 0.0
      %454 = vmatprep.subr.mxu0 0.0
      %455 = vmatpush1.msra.mxu0 0.0
      %456 = vmatprep.subr.mxu0 0.0
      %457 = vmatpush1.msra.mxu0 0.0
      %458 = vmatprep.subr.mxu0 0.0
      %459 = vmatpush1.msra.mxu0 0.0
      %460 = vmatprep.subr.mxu0 0.0
      %461 = vmatpush1.msra.mxu0 0.0
      %462 = vmatprep.subr.mxu0 0.0
      %463 = vmatpush1.msra.mxu0 0.0
      %464 = vmatprep.subr.mxu0 0.0
      %465 = vmatpush1.msra.mxu0 0.0
      %466 = vmatprep.subr.mxu0 0.0
      %467 = vmatpush1.msra.mxu0 0.0
      %468 = vmatprep.subr.mxu0 0.0
      %469 = vmatpush1.msra.mxu0 0.0
      %470 = vmatprep.subr.mxu0 0.0
      %471 = vmatpush1.msra.mxu0 0.0
      %472 = vmatprep.subr.mxu0 0.0
      %473 = vmatpush1.msra.mxu0 0.0
      %474 = vmatprep.subr.mxu0 0.0
      %475 = vmatpush1.msra.mxu0 0.0
      %476 = vmatprep.subr.mxu0 0.0
      %477 = vmatpush1.msra.mxu0 0.0
      %478 = vmatprep.subr.mxu0 0.0
      %479 = vmatpush1.msra.mxu0 0.0
      %480 = vmatprep.subr.mxu0 0.0
      %481 = vmatpush1.msra.mxu0 0.0
      %482 = vmatprep.subr.mxu0 0.0
      %483 = vmatpush1.msra.mxu0 0.0
      %484 = vmatprep.subr.mxu0 0.0
      %485 = vmatpush1.msra.mxu0 0.0
      %486 = vmatprep.subr.mxu0 0.0
      %487 = vmatpush1.msra.mxu0 0.0
      %488 = vmatprep.mubr.f32.mxu0 0.0
      %489 = vmatmul.mubr.f32.gmra.mrb[0].mxu0 %v419
      %v490 = vpop.f32.mrb[0].mxu0
      %v491 = vadd.f32 0.0, %v490
      %v492 = vpop.f32.mrb[0].mxu0
      %v493 = vadd.f32 0.0, %v492
      %494 = vmatprep.mubr.f32.mxu0 0.0
      %495 = vmatmul.mubr.f32.gmra.mrb[0].mxu0 %v422
      %v496 = vpop.f32.mrb[0].mxu0
      %v497 = vadd.f32 0.0, %v496
      %v498 = vpop.f32.mrb[0].mxu0
      %v499 = vadd.f32 0.0, %v498
      %500 = vdwg.mxu0
      %v502 = vsel %vm417, %v395, 0
      %v505 = vsel %vm417, %v396, 0
      %507 = vmatprep.subr.mxu0 %v392
      %508 = vmatpush1.msra.mxu0 %v391
      %509 = vmatprep.subr.mxu0 %v394
      %510 = vmatpush1.msra.mxu0 %v393
      %511 = vmatprep.subr.mxu0 0.0
      %512 = vmatpush1.msra.mxu0 0.0
      %513 = vmatprep.subr.mxu0 0.0
      %514 = vmatpush1.msra.mxu0 0.0
      %515 = vmatprep.subr.mxu0 0.0
      %516 = vmatpush1.msra.mxu0 0.0
      %517 = vmatprep.subr.mxu0 0.0
      %518 = vmatpush1.msra.mxu0 0.0
      %519 = vmatprep.subr.mxu0 0.0
      %520 = vmatpush1.msra.mxu0 0.0
      %521 = vmatprep.subr.mxu0 0.0
      %522 = vmatpush1.msra.mxu0 0.0
      %523 = vmatprep.subr.mxu0 0.0
      %524 = vmatpush1.msra.mxu0 0.0
      %525 = vmatprep.subr.mxu0 0.0
      %526 = vmatpush1.msra.mxu0 0.0
      %527 = vmatprep.subr.mxu0 0.0
      %528 = vmatpush1.msra.mxu0 0.0
      %529 = vmatprep.subr.mxu0 0.0
      %530 = vmatpush1.msra.mxu0 0.0
      %531 = vmatprep.subr.mxu0 0.0
      %532 = vmatpush1.msra.mxu0 0.0
      %533 = vmatprep.subr.mxu0 0.0
      %534 = vmatpush1.msra.mxu0 0.0
      %535 = vmatprep.subr.mxu0 0.0
      %536 = vmatpush1.msra.mxu0 0.0
      %537 = vmatprep.subr.mxu0 0.0
      %538 = vmatpush1.msra.mxu0 0.0
      %539 = vmatprep.subr.mxu0 0.0
      %540 = vmatpush1.msra.mxu0 0.0
      %541 = vmatprep.subr.mxu0 0.0
      %542 = vmatpush1.msra.mxu0 0.0
      %543 = vmatprep.subr.mxu0 0.0
      %544 = vmatpush1.msra.mxu0 0.0
      %545 = vmatprep.subr.mxu0 0.0
      %546 = vmatpush1.msra.mxu0 0.0
      %547 = vmatprep.subr.mxu0 0.0
      %548 = vmatpush1.msra.mxu0 0.0
      %549 = vmatprep.subr.mxu0 0.0
      %550 = vmatpush1.msra.mxu0 0.0
      %551 = vmatprep.subr.mxu0 0.0
      %552 = vmatpush1.msra.mxu0 0.0
      %553 = vmatprep.subr.mxu0 0.0
      %554 = vmatpush1.msra.mxu0 0.0
      %555 = vmatprep.subr.mxu0 0.0
      %556 = vmatpush1.msra.mxu0 0.0
      %557 = vmatprep.subr.mxu0 0.0
      %558 = vmatpush1.msra.mxu0 0.0
      %559 = vmatprep.subr.mxu0 0.0
      %560 = vmatpush1.msra.mxu0 0.0
      %561 = vmatprep.subr.mxu0 0.0
      %562 = vmatpush1.msra.mxu0 0.0
      %563 = vmatprep.subr.mxu0 0.0
      %564 = vmatpush1.msra.mxu0 0.0
      %565 = vmatprep.subr.mxu0 0.0
      %566 = vmatpush1.msra.mxu0 0.0
      %567 = vmatprep.subr.mxu0 0.0
      %568 = vmatpush1.msra.mxu0 0.0
      %569 = vmatprep.subr.mxu0 0.0
      %570 = vmatpush1.msra.mxu0 0.0
      %571 = vmatprep.mubr.f32.mxu0 0.0
      %572 = vmatmul.mubr.f32.gmra.mrb[0].mxu0 %v502
      %v573 = vpop.f32.mrb[0].mxu0
      %v574 = vadd.f32 %v491, %v573
      %v575 = vpop.f32.mrb[0].mxu0
      %v576 = vadd.f32 %v493, %v575
      %577 = vmatprep.mubr.f32.mxu0 0.0
      %578 = vmatmul.mubr.f32.gmra.mrb[0].mxu0 %v505
      %v579 = vpop.f32.mrb[0].mxu0
      %v580 = vadd.f32 %v497, %v579
      %v581 = vpop.f32.mrb[0].mxu0
      %v582 = vadd.f32 %v499, %v581
      %583 = vdwg.mxu0
      %584 = vrot.lane.b32.xlu0 %v372, 15
      %v585 = vpop.permute.xlu0 %584
      %586 = vrot.lane.b32.xlu0 %v374, 15
      %v587 = vpop.permute.xlu0 %586
      %588 = vrot.lane.b32.xlu0 %v373, 15
      %v589 = vpop.permute.xlu0 %588
      %590 = vrot.lane.b32.xlu0 %v375, 15
      %v591 = vpop.permute.xlu0 %590
      %vm592 = vcmp.lt.s32.totalorder %v298, 15
      %v593 = vsel %vm592, %v585, %v589
      %v594 = vsel %vm592, %v587, %v591
      %v595 = vsel %vm592, %v589, %v585
      %v596 = vsel %vm592, %v591, %v587
      %v597 = vmul.f32 %v595, %v344
      %v598 = vmul.f32 %v593, %v345
      %v599 = vmul.f32 %v596, %v344
      %v600 = vmul.f32 %v594, %v345
      %s601 = scalar_lea.vmem %s2, 32
      %v602 = vld [vmem:[%s601] sm:$0xff]
      %v603 = vld [vmem:[%s601 + $0x8] sm:$0xff]
      %v605 = vsel %vm417, %v602, 0
      %v608 = vsel %vm417, %v603, 0
      %610 = vmatprep.subr.mxu0 %v598
      %611 = vmatpush1.msra.mxu0 %v597
      %612 = vmatprep.subr.mxu0 %v600
      %613 = vmatpush1.msra.mxu0 %v599
      %614 = vmatprep.subr.mxu0 0.0
      %615 = vmatpush1.msra.mxu0 0.0
      %616 = vmatprep.subr.mxu0 0.0
      %617 = vmatpush1.msra.mxu0 0.0
      %618 = vmatprep.subr.mxu0 0.0
      %619 = vmatpush1.msra.mxu0 0.0
      %620 = vmatprep.subr.mxu0 0.0
      %621 = vmatpush1.msra.mxu0 0.0
      %622 = vmatprep.subr.mxu0 0.0
      %623 = vmatpush1.msra.mxu0 0.0
      %624 = vmatprep.subr.mxu0 0.0
      %625 = vmatpush1.msra.mxu0 0.0
      %626 = vmatprep.subr.mxu0 0.0
      %627 = vmatpush1.msra.mxu0 0.0
      %628 = vmatprep.subr.mxu0 0.0
      %629 = vmatpush1.msra.mxu0 0.0
      %630 = vmatprep.subr.mxu0 0.0
      %631 = vmatpush1.msra.mxu0 0.0
      %632 = vmatprep.subr.mxu0 0.0
      %633 = vmatpush1.msra.mxu0 0.0
      %634 = vmatprep.subr.mxu0 0.0
      %635 = vmatpush1.msra.mxu0 0.0
      %636 = vmatprep.subr.mxu0 0.0
      %637 = vmatpush1.msra.mxu0 0.0
      %638 = vmatprep.subr.mxu0 0.0
      %639 = vmatpush1.msra.mxu0 0.0
      %640 = vmatprep.subr.mxu0 0.0
      %641 = vmatpush1.msra.mxu0 0.0
      %642 = vmatprep.subr.mxu0 0.0
      %643 = vmatpush1.msra.mxu0 0.0
      %644 = vmatprep.subr.mxu0 0.0
      %645 = vmatpush1.msra.mxu0 0.0
      %646 = vmatprep.subr.mxu0 0.0
      %647 = vmatpush1.msra.mxu0 0.0
      %648 = vmatprep.subr.mxu0 0.0
      %649 = vmatpush1.msra.mxu0 0.0
      %650 = vmatprep.subr.mxu0 0.0
      %651 = vmatpush1.msra.mxu0 0.0
      %652 = vmatprep.subr.mxu0 0.0
      %653 = vmatpush1.msra.mxu0 0.0
      %654 = vmatprep.subr.mxu0 0.0
      %655 = vmatpush1.msra.mxu0 0.0
      %656 = vmatprep.subr.mxu0 0.0
      %657 = vmatpush1.msra.mxu0 0.0
      %658 = vmatprep.subr.mxu0 0.0
      %659 = vmatpush1.msra.mxu0 0.0
      %660 = vmatprep.subr.mxu0 0.0
      %661 = vmatpush1.msra.mxu0 0.0
      %662 = vmatprep.subr.mxu0 0.0
      %663 = vmatpush1.msra.mxu0 0.0
      %664 = vmatprep.subr.mxu0 0.0
      %665 = vmatpush1.msra.mxu0 0.0
      %666 = vmatprep.subr.mxu0 0.0
      %667 = vmatpush1.msra.mxu0 0.0
      %668 = vmatprep.subr.mxu0 0.0
      %669 = vmatpush1.msra.mxu0 0.0
      %670 = vmatprep.subr.mxu0 0.0
      %671 = vmatpush1.msra.mxu0 0.0
      %672 = vmatprep.subr.mxu0 0.0
      %673 = vmatpush1.msra.mxu0 0.0
      %674 = vmatprep.mubr.f32.mxu0 0.0
      %675 = vmatmul.mubr.f32.gmra.mrb[0].mxu0 %v605
      %v676 = vpop.f32.mrb[0].mxu0
      %v677 = vadd.f32 0.0, %v676
      %v678 = vpop.f32.mrb[0].mxu0
      %v679 = vadd.f32 0.0, %v678
      %680 = vmatprep.mubr.f32.mxu0 0.0
      %681 = vmatmul.mubr.f32.gmra.mrb[0].mxu0 %v608
      %v682 = vpop.f32.mrb[0].mxu0
      %v683 = vadd.f32 0.0, %v682
      %v684 = vpop.f32.mrb[0].mxu0
      %v685 = vadd.f32 0.0, %v684
      %686 = vdwg.mxu0
      %v687 = vadd.f32 %v574, %v677
      %v688 = vadd.f32 %v576, %v679
      %v689 = vadd.f32 %v580, %v683
      %v690 = vadd.f32 %v582, %v685
      %691 = vrot.lane.b32.xlu0 %v372, 1
      %v692 = vpop.permute.xlu0 %691
      %693 = vrot.lane.b32.xlu0 %v374, 1
      %v694 = vpop.permute.xlu0 %693
      %695 = vrot.lane.b32.xlu0 %v373, 1
      %v696 = vpop.permute.xlu0 %695
      %697 = vrot.lane.b32.xlu0 %v375, 1
      %v698 = vpop.permute.xlu0 %697
      %vm699 = vcmp.lt.s32.totalorder %v298, 1
      %v700 = vsel %vm699, %v692, %v696
      %v701 = vsel %vm699, %v694, %v698
      %v702 = vsel %vm699, %v696, %v692
      %v703 = vsel %vm699, %v698, %v694
      %v704 = vmul.f32 %v702, %v348
      %v705 = vmul.f32 %v700, %v349
      %v706 = vmul.f32 %v703, %v348
      %v707 = vmul.f32 %v701, %v349
      %s708 = scalar_lea.vmem %s2, 48
      %v709 = vld [vmem:[%s708] sm:$0xff]
      %v710 = vld [vmem:[%s708 + $0x8] sm:$0xff]
      %v712 = vsel %vm417, %v709, 0
      %v715 = vsel %vm417, %v710, 0
      %717 = vmatprep.subr.mxu0 %v705
      %718 = vmatpush1.msra.mxu0 %v704
      %719 = vmatprep.subr.mxu0 %v707
      %720 = vmatpush1.msra.mxu0 %v706
      %721 = vmatprep.subr.mxu0 0.0
      %722 = vmatpush1.msra.mxu0 0.0
      %723 = vmatprep.subr.mxu0 0.0
      %724 = vmatpush1.msra.mxu0 0.0
      %725 = vmatprep.subr.mxu0 0.0
      %726 = vmatpush1.msra.mxu0 0.0
      %727 = vmatprep.subr.mxu0 0.0
      %728 = vmatpush1.msra.mxu0 0.0
      %729 = vmatprep.subr.mxu0 0.0
      %730 = vmatpush1.msra.mxu0 0.0
      %731 = vmatprep.subr.mxu0 0.0
      %732 = vmatpush1.msra.mxu0 0.0
      %733 = vmatprep.subr.mxu0 0.0
      %734 = vmatpush1.msra.mxu0 0.0
      %735 = vmatprep.subr.mxu0 0.0
      %736 = vmatpush1.msra.mxu0 0.0
      %737 = vmatprep.subr.mxu0 0.0
      %738 = vmatpush1.msra.mxu0 0.0
      %739 = vmatprep.subr.mxu0 0.0
      %740 = vmatpush1.msra.mxu0 0.0
      %741 = vmatprep.subr.mxu0 0.0
      %742 = vmatpush1.msra.mxu0 0.0
      %743 = vmatprep.subr.mxu0 0.0
      %744 = vmatpush1.msra.mxu0 0.0
      %745 = vmatprep.subr.mxu0 0.0
      %746 = vmatpush1.msra.mxu0 0.0
      %747 = vmatprep.subr.mxu0 0.0
      %748 = vmatpush1.msra.mxu0 0.0
      %749 = vmatprep.subr.mxu0 0.0
      %750 = vmatpush1.msra.mxu0 0.0
      %751 = vmatprep.subr.mxu0 0.0
      %752 = vmatpush1.msra.mxu0 0.0
      %753 = vmatprep.subr.mxu0 0.0
      %754 = vmatpush1.msra.mxu0 0.0
      %755 = vmatprep.subr.mxu0 0.0
      %756 = vmatpush1.msra.mxu0 0.0
      %757 = vmatprep.subr.mxu0 0.0
      %758 = vmatpush1.msra.mxu0 0.0
      %759 = vmatprep.subr.mxu0 0.0
      %760 = vmatpush1.msra.mxu0 0.0
      %761 = vmatprep.subr.mxu0 0.0
      %762 = vmatpush1.msra.mxu0 0.0
      %763 = vmatprep.subr.mxu0 0.0
      %764 = vmatpush1.msra.mxu0 0.0
      %765 = vmatprep.subr.mxu0 0.0
      %766 = vmatpush1.msra.mxu0 0.0
      %767 = vmatprep.subr.mxu0 0.0
      %768 = vmatpush1.msra.mxu0 0.0
      %769 = vmatprep.subr.mxu0 0.0
      %770 = vmatpush1.msra.mxu0 0.0
      %771 = vmatprep.subr.mxu0 0.0
      %772 = vmatpush1.msra.mxu0 0.0
      %773 = vmatprep.subr.mxu0 0.0
      %774 = vmatpush1.msra.mxu0 0.0
      %775 = vmatprep.subr.mxu0 0.0
      %776 = vmatpush1.msra.mxu0 0.0
      %777 = vmatprep.subr.mxu0 0.0
      %778 = vmatpush1.msra.mxu0 0.0
      %779 = vmatprep.subr.mxu0 0.0
      %780 = vmatpush1.msra.mxu0 0.0
      %781 = vmatprep.mubr.f32.mxu0 0.0
      %782 = vmatmul.mubr.f32.gmra.mrb[0].mxu0 %v712
      %v783 = vpop.f32.mrb[0].mxu0
      %v784 = vadd.f32 0.0, %v783
      %v785 = vpop.f32.mrb[0].mxu0
      %v786 = vadd.f32 0.0, %v785
      %787 = vmatprep.mubr.f32.mxu0 0.0
      %788 = vmatmul.mubr.f32.gmra.mrb[0].mxu0 %v715
      %v789 = vpop.f32.mrb[0].mxu0
      %v790 = vadd.f32 0.0, %v789
      %v791 = vpop.f32.mrb[0].mxu0
      %v792 = vadd.f32 0.0, %v791
      %793 = vdwg.mxu0
      %v794 = vadd.f32 %v687, %v784
      %v795 = vadd.f32 %v688, %v786
      %v796 = vadd.f32 %v689, %v790
      %v797 = vadd.f32 %v690, %v792
      %s798 = scalar_lea.vmem %s2, 64
      %v799 = vld [vmem:[%s798] sm:$0xff]
      %v800 = vld [vmem:[%s798 + $0x8] sm:$0xff]
      %v802 = vsel %vm417, %v799, 0
      %v805 = vsel %vm417, %v800, 0
      %807 = vmatprep.subr.mxu0 %v373
      %808 = vmatpush1.msra.mxu0 %v372
      %809 = vmatprep.subr.mxu0 %v375
      %810 = vmatpush1.msra.mxu0 %v374
      %811 = vmatprep.subr.mxu0 0.0
      %812 = vmatpush1.msra.mxu0 0.0
      %813 = vmatprep.subr.mxu0 0.0
      %814 = vmatpush1.msra.mxu0 0.0
      %815 = vmatprep.subr.mxu0 0.0
      %816 = vmatpush1.msra.mxu0 0.0
      %817 = vmatprep.subr.mxu0 0.0
      %818 = vmatpush1.msra.mxu0 0.0
      %819 = vmatprep.subr.mxu0 0.0
      %820 = vmatpush1.msra.mxu0 0.0
      %821 = vmatprep.subr.mxu0 0.0
      %822 = vmatpush1.msra.mxu0 0.0
      %823 = vmatprep.subr.mxu0 0.0
      %824 = vmatpush1.msra.mxu0 0.0
      %825 = vmatprep.subr.mxu0 0.0
      %826 = vmatpush1.msra.mxu0 0.0
      %827 = vmatprep.subr.mxu0 0.0
      %828 = vmatpush1.msra.mxu0 0.0
      %829 = vmatprep.subr.mxu0 0.0
      %830 = vmatpush1.msra.mxu0 0.0
      %831 = vmatprep.subr.mxu0 0.0
      %832 = vmatpush1.msra.mxu0 0.0
      %833 = vmatprep.subr.mxu0 0.0
      %834 = vmatpush1.msra.mxu0 0.0
      %835 = vmatprep.subr.mxu0 0.0
      %836 = vmatpush1.msra.mxu0 0.0
      %837 = vmatprep.subr.mxu0 0.0
      %838 = vmatpush1.msra.mxu0 0.0
      %839 = vmatprep.subr.mxu0 0.0
      %840 = vmatpush1.msra.mxu0 0.0
      %841 = vmatprep.subr.mxu0 0.0
      %842 = vmatpush1.msra.mxu0 0.0
      %843 = vmatprep.subr.mxu0 0.0
      %844 = vmatpush1.msra.mxu0 0.0
      %845 = vmatprep.subr.mxu0 0.0
      %846 = vmatpush1.msra.mxu0 0.0
      %847 = vmatprep.subr.mxu0 0.0
      %848 = vmatpush1.msra.mxu0 0.0
      %849 = vmatprep.subr.mxu0 0.0
      %850 = vmatpush1.msra.mxu0 0.0
      %851 = vmatprep.subr.mxu0 0.0
      %852 = vmatpush1.msra.mxu0 0.0
      %853 = vmatprep.subr.mxu0 0.0
      %854 = vmatpush1.msra.mxu0 0.0
      %855 = vmatprep.subr.mxu0 0.0
      %856 = vmatpush1.msra.mxu0 0.0
      %857 = vmatprep.subr.mxu0 0.0
      %858 = vmatpush1.msra.mxu0 0.0
      %859 = vmatprep.subr.mxu0 0.0
      %860 = vmatpush1.msra.mxu0 0.0
      %861 = vmatprep.subr.mxu0 0.0
      %862 = vmatpush1.msra.mxu0 0.0
      %863 = vmatprep.subr.mxu0 0.0
      %864 = vmatpush1.msra.mxu0 0.0
      %865 = vmatprep.subr.mxu0 0.0
      %866 = vmatpush1.msra.mxu0 0.0
      %867 = vmatprep.subr.mxu0 0.0
      %868 = vmatpush1.msra.mxu0 0.0
      %869 = vmatprep.subr.mxu0 0.0
      %870 = vmatpush1.msra.mxu0 0.0
      %871 = vmatprep.mubr.f32.mxu0 0.0
      %872 = vmatmul.mubr.f32.gmra.mrb[0].mxu0 %v802
      %v873 = vpop.f32.mrb[0].mxu0
      %v874 = vadd.f32 0.0, %v873
      %v875 = vpop.f32.mrb[0].mxu0
      %v876 = vadd.f32 0.0, %v875
      %877 = vmatprep.mubr.f32.mxu0 0.0
      %878 = vmatmul.mubr.f32.gmra.mrb[0].mxu0 %v805
      %v879 = vpop.f32.mrb[0].mxu0
      %v880 = vadd.f32 0.0, %v879
      %v881 = vpop.f32.mrb[0].mxu0
      %v882 = vadd.f32 0.0, %v881
      %883 = vdwg.mxu0
      %v884 = vadd.f32 %v794, %v874
      %v885 = vadd.f32 %v795, %v876
      %v886 = vadd.f32 %v796, %v880
      %v887 = vadd.f32 %v797, %v882
      %888 = vrot.lane.b32.xlu0 %v372, 127
      %v889 = vpop.permute.xlu0 %888
      %890 = vrot.lane.b32.xlu0 %v374, 127
      %v891 = vpop.permute.xlu0 %890
      %892 = vrot.lane.b32.xlu0 %v373, 127
      %v893 = vpop.permute.xlu0 %892
      %894 = vrot.lane.b32.xlu0 %v375, 127
      %v895 = vpop.permute.xlu0 %894
      %vm896 = vcmp.lt.s32.totalorder %v298, 127
      %v897 = vsel %vm896, %v889, %v893
      %v898 = vsel %vm896, %v891, %v895
      %v899 = vsel %vm896, %v893, %v889
      %v900 = vsel %vm896, %v895, %v891
      %v901 = vmul.f32 %v897, %v352
      %v902 = vmul.f32 %v899, %v353
      %v903 = vmul.f32 %v898, %v352
      %v904 = vmul.f32 %v900, %v353
      %s905 = scalar_lea.vmem %s2, 80
      %v906 = vld [vmem:[%s905] sm:$0xff]
      %v907 = vld [vmem:[%s905 + $0x8] sm:$0xff]
      %v909 = vsel %vm417, %v906, 0
      %v912 = vsel %vm417, %v907, 0
      %914 = vmatprep.subr.mxu0 %v902
      %915 = vmatpush1.msra.mxu0 %v901
      %916 = vmatprep.subr.mxu0 %v904
      %917 = vmatpush1.msra.mxu0 %v903
      %918 = vmatprep.subr.mxu0 0.0
      %919 = vmatpush1.msra.mxu0 0.0
      %920 = vmatprep.subr.mxu0 0.0
      %921 = vmatpush1.msra.mxu0 0.0
      %922 = vmatprep.subr.mxu0 0.0
      %923 = vmatpush1.msra.mxu0 0.0
      %924 = vmatprep.subr.mxu0 0.0
      %925 = vmatpush1.msra.mxu0 0.0
      %926 = vmatprep.subr.mxu0 0.0
      %927 = vmatpush1.msra.mxu0 0.0
      %928 = vmatprep.subr.mxu0 0.0
      %929 = vmatpush1.msra.mxu0 0.0
      %930 = vmatprep.subr.mxu0 0.0
      %931 = vmatpush1.msra.mxu0 0.0
      %932 = vmatprep.subr.mxu0 0.0
      %933 = vmatpush1.msra.mxu0 0.0
      %934 = vmatprep.subr.mxu0 0.0
      %935 = vmatpush1.msra.mxu0 0.0
      %936 = vmatprep.subr.mxu0 0.0
      %937 = vmatpush1.msra.mxu0 0.0
      %938 = vmatprep.subr.mxu0 0.0
      %939 = vmatpush1.msra.mxu0 0.0
      %940 = vmatprep.subr.mxu0 0.0
      %941 = vmatpush1.msra.mxu0 0.0
      %942 = vmatprep.subr.mxu0 0.0
      %943 = vmatpush1.msra.mxu0 0.0
      %944 = vmatprep.subr.mxu0 0.0
      %945 = vmatpush1.msra.mxu0 0.0
      %946 = vmatprep.subr.mxu0 0.0
      %947 = vmatpush1.msra.mxu0 0.0
      %948 = vmatprep.subr.mxu0 0.0
      %949 = vmatpush1.msra.mxu0 0.0
      %950 = vmatprep.subr.mxu0 0.0
      %951 = vmatpush1.msra.mxu0 0.0
      %952 = vmatprep.subr.mxu0 0.0
      %953 = vmatpush1.msra.mxu0 0.0
      %954 = vmatprep.subr.mxu0 0.0
      %955 = vmatpush1.msra.mxu0 0.0
      %956 = vmatprep.subr.mxu0 0.0
      %957 = vmatpush1.msra.mxu0 0.0
      %958 = vmatprep.subr.mxu0 0.0
      %959 = vmatpush1.msra.mxu0 0.0
      %960 = vmatprep.subr.mxu0 0.0
      %961 = vmatpush1.msra.mxu0 0.0
      %962 = vmatprep.subr.mxu0 0.0
      %963 = vmatpush1.msra.mxu0 0.0
      %964 = vmatprep.subr.mxu0 0.0
      %965 = vmatpush1.msra.mxu0 0.0
      %966 = vmatprep.subr.mxu0 0.0
      %967 = vmatpush1.msra.mxu0 0.0
      %968 = vmatprep.subr.mxu0 0.0
      %969 = vmatpush1.msra.mxu0 0.0
      %970 = vmatprep.subr.mxu0 0.0
      %971 = vmatpush1.msra.mxu0 0.0
      %972 = vmatprep.subr.mxu0 0.0
      %973 = vmatpush1.msra.mxu0 0.0
      %974 = vmatprep.subr.mxu0 0.0
      %975 = vmatpush1.msra.mxu0 0.0
      %976 = vmatprep.subr.mxu0 0.0
      %977 = vmatpush1.msra.mxu0 0.0
      %978 = vmatprep.mubr.f32.mxu0 0.0
      %979 = vmatmul.mubr.f32.gmra.mrb[0].mxu0 %v909
      %v980 = vpop.f32.mrb[0].mxu0
      %v981 = vadd.f32 0.0, %v980
      %v982 = vpop.f32.mrb[0].mxu0
      %v983 = vadd.f32 0.0, %v982
      %984 = vmatprep.mubr.f32.mxu0 0.0
      %985 = vmatmul.mubr.f32.gmra.mrb[0].mxu0 %v912
      %v986 = vpop.f32.mrb[0].mxu0
      %v987 = vadd.f32 0.0, %v986
      %v988 = vpop.f32.mrb[0].mxu0
      %v989 = vadd.f32 0.0, %v988
      %990 = vdwg.mxu0
      %v991 = vadd.f32 %v884, %v981
      %v992 = vadd.f32 %v885, %v983
      %v993 = vadd.f32 %v886, %v987
      %v994 = vadd.f32 %v887, %v989
      %995 = vrot.lane.b32.xlu0 %v372, 113
      %v996 = vpop.permute.xlu0 %995
      %997 = vrot.lane.b32.xlu0 %v374, 113
      %v998 = vpop.permute.xlu0 %997
      %999 = vrot.lane.b32.xlu0 %v373, 113
      %v1000 = vpop.permute.xlu0 %999
      %1001 = vrot.lane.b32.xlu0 %v375, 113
      %v1002 = vpop.permute.xlu0 %1001
      %vm1003 = vcmp.lt.s32.totalorder %v298, 113
      %v1004 = vsel %vm1003, %v996, %v1000
      %v1005 = vsel %vm1003, %v998, %v1002
      %v1006 = vsel %vm1003, %v1000, %v996
      %v1007 = vsel %vm1003, %v1002, %v998
      %v1008 = vmul.f32 %v1004, %v360
      %v1009 = vmul.f32 %v1006, %v361
      %v1010 = vmul.f32 %v1005, %v360
      %v1011 = vmul.f32 %v1007, %v361
      %s1012 = scalar_lea.vmem %s2, 96
      %v1013 = vld [vmem:[%s1012] sm:$0xff]
      %v1014 = vld [vmem:[%s1012 + $0x8] sm:$0xff]
      %v1016 = vsel %vm417, %v1013, 0
      %v1019 = vsel %vm417, %v1014, 0
      %1021 = vmatprep.subr.mxu0 %v1009
      %1022 = vmatpush1.msra.mxu0 %v1008
      %1023 = vmatprep.subr.mxu0 %v1011
      %1024 = vmatpush1.msra.mxu0 %v1010
      %1025 = vmatprep.subr.mxu0 0.0
      %1026 = vmatpush1.msra.mxu0 0.0
      %1027 = vmatprep.subr.mxu0 0.0
      %1028 = vmatpush1.msra.mxu0 0.0
      %1029 = vmatprep.subr.mxu0 0.0
      %1030 = vmatpush1.msra.mxu0 0.0
      %1031 = vmatprep.subr.mxu0 0.0
      %1032 = vmatpush1.msra.mxu0 0.0
      %1033 = vmatprep.subr.mxu0 0.0
      %1034 = vmatpush1.msra.mxu0 0.0
      %1035 = vmatprep.subr.mxu0 0.0
      %1036 = vmatpush1.msra.mxu0 0.0
      %1037 = vmatprep.subr.mxu0 0.0
      %1038 = vmatpush1.msra.mxu0 0.0
      %1039 = vmatprep.subr.mxu0 0.0
      %1040 = vmatpush1.msra.mxu0 0.0
      %1041 = vmatprep.subr.mxu0 0.0
      %1042 = vmatpush1.msra.mxu0 0.0
      %1043 = vmatprep.subr.mxu0 0.0
      %1044 = vmatpush1.msra.mxu0 0.0
      %1045 = vmatprep.subr.mxu0 0.0
      %1046 = vmatpush1.msra.mxu0 0.0
      %1047 = vmatprep.subr.mxu0 0.0
      %1048 = vmatpush1.msra.mxu0 0.0
      %1049 = vmatprep.subr.mxu0 0.0
      %1050 = vmatpush1.msra.mxu0 0.0
      %1051 = vmatprep.subr.mxu0 0.0
      %1052 = vmatpush1.msra.mxu0 0.0
      %1053 = vmatprep.subr.mxu0 0.0
      %1054 = vmatpush1.msra.mxu0 0.0
      %1055 = vmatprep.subr.mxu0 0.0
      %1056 = vmatpush1.msra.mxu0 0.0
      %1057 = vmatprep.subr.mxu0 0.0
      %1058 = vmatpush1.msra.mxu0 0.0
      %1059 = vmatprep.subr.mxu0 0.0
      %1060 = vmatpush1.msra.mxu0 0.0
      %1061 = vmatprep.subr.mxu0 0.0
      %1062 = vmatpush1.msra.mxu0 0.0
      %1063 = vmatprep.subr.mxu0 0.0
      %1064 = vmatpush1.msra.mxu0 0.0
      %1065 = vmatprep.subr.mxu0 0.0
      %1066 = vmatpush1.msra.mxu0 0.0
      %1067 = vmatprep.subr.mxu0 0.0
      %1068 = vmatpush1.msra.mxu0 0.0
      %1069 = vmatprep.subr.mxu0 0.0
      %1070 = vmatpush1.msra.mxu0 0.0
      %1071 = vmatprep.subr.mxu0 0.0
      %1072 = vmatpush1.msra.mxu0 0.0
      %1073 = vmatprep.subr.mxu0 0.0
      %1074 = vmatpush1.msra.mxu0 0.0
      %1075 = vmatprep.subr.mxu0 0.0
      %1076 = vmatpush1.msra.mxu0 0.0
      %1077 = vmatprep.subr.mxu0 0.0
      %1078 = vmatpush1.msra.mxu0 0.0
      %1079 = vmatprep.subr.mxu0 0.0
      %1080 = vmatpush1.msra.mxu0 0.0
      %1081 = vmatprep.subr.mxu0 0.0
      %1082 = vmatpush1.msra.mxu0 0.0
      %1083 = vmatprep.subr.mxu0 0.0
      %1084 = vmatpush1.msra.mxu0 0.0
      %1085 = vmatprep.mubr.f32.mxu0 0.0
      %1086 = vmatmul.mubr.f32.gmra.mrb[0].mxu0 %v1016
      %v1087 = vpop.f32.mrb[0].mxu0
      %v1088 = vadd.f32 0.0, %v1087
      %v1089 = vpop.f32.mrb[0].mxu0
      %v1090 = vadd.f32 0.0, %v1089
      %1091 = vmatprep.mubr.f32.mxu0 0.0
      %1092 = vmatmul.mubr.f32.gmra.mrb[0].mxu0 %v1019
      %v1093 = vpop.f32.mrb[0].mxu0
      %v1094 = vadd.f32 0.0, %v1093
      %v1095 = vpop.f32.mrb[0].mxu0
      %v1096 = vadd.f32 0.0, %v1095
      %1097 = vdwg.mxu0
      %v1098 = vadd.f32 %v991, %v1088
      %v1099 = vadd.f32 %v992, %v1090
      %v1100 = vadd.f32 %v993, %v1094
      %v1101 = vadd.f32 %v994, %v1096
      %1102 = vrot.lane.b32.xlu0 %v372, 112
      %v1103 = vpop.permute.xlu0 %1102
      %1104 = vrot.lane.b32.xlu0 %v374, 112
      %v1105 = vpop.permute.xlu0 %1104
      %1106 = vrot.lane.b32.xlu0 %v373, 112
      %v1107 = vpop.permute.xlu0 %1106
      %1108 = vrot.lane.b32.xlu0 %v375, 112
      %v1109 = vpop.permute.xlu0 %1108
      %vm1110 = vcmp.lt.s32.totalorder %v298, 112
      %v1111 = vsel %vm1110, %v1103, %v1107
      %v1112 = vsel %vm1110, %v1105, %v1109
      %v1113 = vsel %vm1110, %v1107, %v1103
      %v1114 = vsel %vm1110, %v1109, %v1105
      %v1115 = vmul.f32 %v1111, %v364
      %v1116 = vmul.f32 %v1113, %v365
      %v1117 = vmul.f32 %v1112, %v364
      %v1118 = vmul.f32 %v1114, %v365
      %s1119 = scalar_lea.vmem %s2, 112
      %v1120 = vld [vmem:[%s1119] sm:$0xff]
      %v1121 = vld [vmem:[%s1119 + $0x8] sm:$0xff]
      %v1123 = vsel %vm417, %v1120, 0
      %v1126 = vsel %vm417, %v1121, 0
      %1128 = vmatprep.subr.mxu0 %v1116
      %1129 = vmatpush1.msra.mxu0 %v1115
      %1130 = vmatprep.subr.mxu0 %v1118
      %1131 = vmatpush1.msra.mxu0 %v1117
      %1132 = vmatprep.subr.mxu0 0.0
      %1133 = vmatpush1.msra.mxu0 0.0
      %1134 = vmatprep.subr.mxu0 0.0
      %1135 = vmatpush1.msra.mxu0 0.0
      %1136 = vmatprep.subr.mxu0 0.0
      %1137 = vmatpush1.msra.mxu0 0.0
      %1138 = vmatprep.subr.mxu0 0.0
      %1139 = vmatpush1.msra.mxu0 0.0
      %1140 = vmatprep.subr.mxu0 0.0
      %1141 = vmatpush1.msra.mxu0 0.0
      %1142 = vmatprep.subr.mxu0 0.0
      %1143 = vmatpush1.msra.mxu0 0.0
      %1144 = vmatprep.subr.mxu0 0.0
      %1145 = vmatpush1.msra.mxu0 0.0
      %1146 = vmatprep.subr.mxu0 0.0
      %1147 = vmatpush1.msra.mxu0 0.0
      %1148 = vmatprep.subr.mxu0 0.0
      %1149 = vmatpush1.msra.mxu0 0.0
      %1150 = vmatprep.subr.mxu0 0.0
      %1151 = vmatpush1.msra.mxu0 0.0
      %1152 = vmatprep.subr.mxu0 0.0
      %1153 = vmatpush1.msra.mxu0 0.0
      %1154 = vmatprep.subr.mxu0 0.0
      %1155 = vmatpush1.msra.mxu0 0.0
      %1156 = vmatprep.subr.mxu0 0.0
      %1157 = vmatpush1.msra.mxu0 0.0
      %1158 = vmatprep.subr.mxu0 0.0
      %1159 = vmatpush1.msra.mxu0 0.0
      %1160 = vmatprep.subr.mxu0 0.0
      %1161 = vmatpush1.msra.mxu0 0.0
      %1162 = vmatprep.subr.mxu0 0.0
      %1163 = vmatpush1.msra.mxu0 0.0
      %1164 = vmatprep.subr.mxu0 0.0
      %1165 = vmatpush1.msra.mxu0 0.0
      %1166 = vmatprep.subr.mxu0 0.0
      %1167 = vmatpush1.msra.mxu0 0.0
      %1168 = vmatprep.subr.mxu0 0.0
      %1169 = vmatpush1.msra.mxu0 0.0
      %1170 = vmatprep.subr.mxu0 0.0
      %1171 = vmatpush1.msra.mxu0 0.0
      %1172 = vmatprep.subr.mxu0 0.0
      %1173 = vmatpush1.msra.mxu0 0.0
      %1174 = vmatprep.subr.mxu0 0.0
      %1175 = vmatpush1.msra.mxu0 0.0
      %1176 = vmatprep.subr.mxu0 0.0
      %1177 = vmatpush1.msra.mxu0 0.0
      %1178 = vmatprep.subr.mxu0 0.0
      %1179 = vmatpush1.msra.mxu0 0.0
      %1180 = vmatprep.subr.mxu0 0.0
      %1181 = vmatpush1.msra.mxu0 0.0
      %1182 = vmatprep.subr.mxu0 0.0
      %1183 = vmatpush1.msra.mxu0 0.0
      %1184 = vmatprep.subr.mxu0 0.0
      %1185 = vmatpush1.msra.mxu0 0.0
      %1186 = vmatprep.subr.mxu0 0.0
      %1187 = vmatpush1.msra.mxu0 0.0
      %1188 = vmatprep.subr.mxu0 0.0
      %1189 = vmatpush1.msra.mxu0 0.0
      %1190 = vmatprep.subr.mxu0 0.0
      %1191 = vmatpush1.msra.mxu0 0.0
      %1192 = vmatprep.mubr.f32.mxu0 0.0
      %1193 = vmatmul.mubr.f32.gmra.mrb[0].mxu0 %v1123
      %v1194 = vpop.f32.mrb[0].mxu0
      %v1195 = vadd.f32 0.0, %v1194
      %v1196 = vpop.f32.mrb[0].mxu0
      %v1197 = vadd.f32 0.0, %v1196
      %1198 = vmatprep.mubr.f32.mxu0 0.0
      %1199 = vmatmul.mubr.f32.gmra.mrb[0].mxu0 %v1126
      %v1200 = vpop.f32.mrb[0].mxu0
      %v1201 = vadd.f32 0.0, %v1200
      %v1202 = vpop.f32.mrb[0].mxu0
      %v1203 = vadd.f32 0.0, %v1202
      %1204 = vdwg.mxu0
      %v1205 = vadd.f32 %v1098, %v1195
      %v1206 = vadd.f32 %v1099, %v1197
      %v1207 = vadd.f32 %v1100, %v1201
      %v1208 = vadd.f32 %v1101, %v1203
      %1209 = vrot.lane.b32.xlu0 %v372, 111
      %v1210 = vpop.permute.xlu0 %1209
      %1211 = vrot.lane.b32.xlu0 %v374, 111
      %v1212 = vpop.permute.xlu0 %1211
      %1213 = vrot.lane.b32.xlu0 %v373, 111
      %v1214 = vpop.permute.xlu0 %1213
      %1215 = vrot.lane.b32.xlu0 %v375, 111
      %v1216 = vpop.permute.xlu0 %1215
      %vm1217 = vcmp.lt.s32.totalorder %v298, 111
      %v1218 = vsel %vm1217, %v1210, %v1214
      %v1219 = vsel %vm1217, %v1212, %v1216
      %v1220 = vsel %vm1217, %v1214, %v1210
      %v1221 = vsel %vm1217, %v1216, %v1212
      %v1222 = vmul.f32 %v1218, %v370
      %v1223 = vmul.f32 %v1220, %v371
      %v1224 = vmul.f32 %v1219, %v370
      %v1225 = vmul.f32 %v1221, %v371
      %s1226 = scalar_lea.vmem %s2, 128
      %v1227 = vld [vmem:[%s1226] sm:$0xff]
      %v1228 = vld [vmem:[%s1226 + $0x8] sm:$0xff]
      %v1230 = vsel %vm417, %v1227, 0
      %v1233 = vsel %vm417, %v1228, 0
      %1235 = vmatprep.subr.mxu0 %v1223
      %1236 = vmatpush1.msra.mxu0 %v1222
      %1237 = vmatprep.subr.mxu0 %v1225
      %1238 = vmatpush1.msra.mxu0 %v1224
      %1239 = vmatprep.subr.mxu0 0.0
      %1240 = vmatpush1.msra.mxu0 0.0
      %1241 = vmatprep.subr.mxu0 0.0
      %1242 = vmatpush1.msra.mxu0 0.0
      %1243 = vmatprep.subr.mxu0 0.0
      %1244 = vmatpush1.msra.mxu0 0.0
      %1245 = vmatprep.subr.mxu0 0.0
      %1246 = vmatpush1.msra.mxu0 0.0
      %1247 = vmatprep.subr.mxu0 0.0
      %1248 = vmatpush1.msra.mxu0 0.0
      %1249 = vmatprep.subr.mxu0 0.0
      %1250 = vmatpush1.msra.mxu0 0.0
      %1251 = vmatprep.subr.mxu0 0.0
      %1252 = vmatpush1.msra.mxu0 0.0
      %1253 = vmatprep.subr.mxu0 0.0
      %1254 = vmatpush1.msra.mxu0 0.0
      %1255 = vmatprep.subr.mxu0 0.0
      %1256 = vmatpush1.msra.mxu0 0.0
      %1257 = vmatprep.subr.mxu0 0.0
      %1258 = vmatpush1.msra.mxu0 0.0
      %1259 = vmatprep.subr.mxu0 0.0
      %1260 = vmatpush1.msra.mxu0 0.0
      %1261 = vmatprep.subr.mxu0 0.0
      %1262 = vmatpush1.msra.mxu0 0.0
      %1263 = vmatprep.subr.mxu0 0.0
      %1264 = vmatpush1.msra.mxu0 0.0
      %1265 = vmatprep.subr.mxu0 0.0
      %1266 = vmatpush1.msra.mxu0 0.0
      %1267 = vmatprep.subr.mxu0 0.0
      %1268 = vmatpush1.msra.mxu0 0.0
      %1269 = vmatprep.subr.mxu0 0.0
      %1270 = vmatpush1.msra.mxu0 0.0
      %1271 = vmatprep.subr.mxu0 0.0
      %1272 = vmatpush1.msra.mxu0 0.0
      %1273 = vmatprep.subr.mxu0 0.0
      %1274 = vmatpush1.msra.mxu0 0.0
      %1275 = vmatprep.subr.mxu0 0.0
      %1276 = vmatpush1.msra.mxu0 0.0
      %1277 = vmatprep.subr.mxu0 0.0
      %1278 = vmatpush1.msra.mxu0 0.0
      %1279 = vmatprep.subr.mxu0 0.0
      %1280 = vmatpush1.msra.mxu0 0.0
      %1281 = vmatprep.subr.mxu0 0.0
      %1282 = vmatpush1.msra.mxu0 0.0
      %1283 = vmatprep.subr.mxu0 0.0
      %1284 = vmatpush1.msra.mxu0 0.0
      %1285 = vmatprep.subr.mxu0 0.0
      %1286 = vmatpush1.msra.mxu0 0.0
      %1287 = vmatprep.subr.mxu0 0.0
      %1288 = vmatpush1.msra.mxu0 0.0
      %1289 = vmatprep.subr.mxu0 0.0
      %1290 = vmatpush1.msra.mxu0 0.0
      %1291 = vmatprep.subr.mxu0 0.0
      %1292 = vmatpush1.msra.mxu0 0.0
      %1293 = vmatprep.subr.mxu0 0.0
      %1294 = vmatpush1.msra.mxu0 0.0
      %1295 = vmatprep.subr.mxu0 0.0
      %1296 = vmatpush1.msra.mxu0 0.0
      %1297 = vmatprep.subr.mxu0 0.0
      %1298 = vmatpush1.msra.mxu0 0.0
      %1299 = vmatprep.mubr.f32.mxu0 0.0
      %1300 = vmatmul.mubr.f32.gmra.mrb[0].mxu0 %v1230
      %v1301 = vpop.f32.mrb[0].mxu0
      %v1302 = vadd.f32 0.0, %v1301
      %v1303 = vpop.f32.mrb[0].mxu0
      %v1304 = vadd.f32 0.0, %v1303
      %1305 = vmatprep.mubr.f32.mxu0 0.0
      %1306 = vmatmul.mubr.f32.gmra.mrb[0].mxu0 %v1233
      %v1307 = vpop.f32.mrb[0].mxu0
      %v1308 = vadd.f32 0.0, %v1307
      %v1309 = vpop.f32.mrb[0].mxu0
      %v1310 = vadd.f32 0.0, %v1309
      %1311 = vdwg.mxu0
      %v1312 = vadd.f32 %v1205, %v1302
      %v1313 = vadd.f32 %v1206, %v1304
      %v1314 = vadd.f32 %v1207, %v1308
      %v1315 = vadd.f32 %v1208, %v1310
      %1317 = vset.pattern.permute.xlu0 0
      %1318 = vperm.xlu0 %1317, %v376
      %v1319 = vpop.permute.xlu0 %1318
      %1322 = vset.pattern.permute.xlu0 0
      %1323 = vperm.xlu0 %1322, %v377
      %v1324 = vpop.permute.xlu0 %1323
      %v1326 = vadd.f32 %v1312, %v1319
      %v1327 = vadd.f32 %v1313, %v1319
      %v1328 = vadd.f32 %v1314, %v1324
      %v1329 = vadd.f32 %v1315, %v1324
      %v1330 = vld [vmem:[%s291] sm:$0xff]
      %v1331 = vld [vmem:[%s4] sm:$0xff]
      %v1332 = vld [vmem:[%s4 + $0x8] sm:$0xff]
      %v1333 = vld [vmem:[%s4 + $0x10] sm:$0xff]
      %v1334 = vld [vmem:[%s4 + $0x18] sm:$0xff]
      %v1335 = vld [vmem:[%s5] sm:$0x1]
      %v1337 = vlaneseq
      %v1338 = vshrl.u32 %v1337, 7
      %v1339 = vsub.s32 0, %v1338
      %v1340 = vrot.slane %v1335, %v1339
      %vm1342 = vcmask 261120
      %v1344 = vsel %vm1342, %v1330, 0
      %1346 = vmatprep.subr.mxu0 0.0
      %1347 = vmatpush1.msra.mxu0 %v1331
      %1348 = vmatprep.subr.mxu0 0.0
      %1349 = vmatpush1.msra.mxu0 %v1332
      %1350 = vmatprep.subr.mxu0 0.0
      %1351 = vmatpush1.msra.mxu0 %v1333
      %1352 = vmatprep.subr.mxu0 0.0
      %1353 = vmatpush1.msra.mxu0 %v1334
      %1354 = vmatprep.subr.mxu0 0.0
      %1355 = vmatpush1.msra.mxu0 0.0
      %1356 = vmatprep.subr.mxu0 0.0
      %1357 = vmatpush1.msra.mxu0 0.0
      %1358 = vmatprep.subr.mxu0 0.0
      %1359 = vmatpush1.msra.mxu0 0.0
      %1360 = vmatprep.subr.mxu0 0.0
      %1361 = vmatpush1.msra.mxu0 0.0
      %1362 = vmatprep.subr.mxu0 0.0
      %1363 = vmatpush1.msra.mxu0 0.0
      %1364 = vmatprep.subr.mxu0 0.0
      %1365 = vmatpush1.msra.mxu0 0.0
      %1366 = vmatprep.subr.mxu0 0.0
      %1367 = vmatpush1.msra.mxu0 0.0
      %1368 = vmatprep.subr.mxu0 0.0
      %1369 = vmatpush1.msra.mxu0 0.0
      %1370 = vmatprep.subr.mxu0 0.0
      %1371 = vmatpush1.msra.mxu0 0.0
      %1372 = vmatprep.subr.mxu0 0.0
      %1373 = vmatpush1.msra.mxu0 0.0
      %1374 = vmatprep.subr.mxu0 0.0
      %1375 = vmatpush1.msra.mxu0 0.0
      %1376 = vmatprep.subr.mxu0 0.0
      %1377 = vmatpush1.msra.mxu0 0.0
      %1378 = vmatprep.subr.mxu0 0.0
      %1379 = vmatpush1.msra.mxu0 0.0
      %1380 = vmatprep.subr.mxu0 0.0
      %1381 = vmatpush1.msra.mxu0 0.0
      %1382 = vmatprep.subr.mxu0 0.0
      %1383 = vmatpush1.msra.mxu0 0.0
      %1384 = vmatprep.subr.mxu0 0.0
      %1385 = vmatpush1.msra.mxu0 0.0
      %1386 = vmatprep.subr.mxu0 0.0
      %1387 = vmatpush1.msra.mxu0 0.0
      %1388 = vmatprep.subr.mxu0 0.0
      %1389 = vmatpush1.msra.mxu0 0.0
      %1390 = vmatprep.subr.mxu0 0.0
      %1391 = vmatpush1.msra.mxu0 0.0
      %1392 = vmatprep.subr.mxu0 0.0
      %1393 = vmatpush1.msra.mxu0 0.0
      %1394 = vmatprep.subr.mxu0 0.0
      %1395 = vmatpush1.msra.mxu0 0.0
      %1396 = vmatprep.subr.mxu0 0.0
      %1397 = vmatpush1.msra.mxu0 0.0
      %1398 = vmatprep.subr.mxu0 0.0
      %1399 = vmatpush1.msra.mxu0 0.0
      %1400 = vmatprep.subr.mxu0 0.0
      %1401 = vmatpush1.msra.mxu0 0.0
      %1402 = vmatprep.subr.mxu0 0.0
      %1403 = vmatpush1.msra.mxu0 0.0
      %1404 = vmatprep.subr.mxu0 0.0
      %1405 = vmatpush1.msra.mxu0 0.0
      %1406 = vmatprep.subr.mxu0 0.0
      %1407 = vmatpush1.msra.mxu0 0.0
      %1408 = vmatprep.subr.mxu0 0.0
      %1409 = vmatpush1.msra.mxu0 0.0
      %1410 = vmatprep.mubr.f32.mxu0 0.0
      %1411 = vmatmul.mubr.f32.gmra.mrb[0].mxu0 %v1344
      %v1412 = vpop.f32.mrb[0].mxu0
      %v1413 = vadd.f32 %v1340, %v1412
      %v1414 = vpop.f32.mrb[0].mxu0
      %1415 = vdwg.mxu0
      %v1417 = vsel %vm417, %v1413, 0
      %1419 = vmatprep.subr.mxu0 %v373
      %1420 = vmatpush1.msra.mxu0 %v372
      %1421 = vmatprep.subr.mxu0 %v375
      %1422 = vmatpush1.msra.mxu0 %v374
      %1423 = vmatprep.subr.mxu0 0.0
      %1424 = vmatpush1.msra.mxu0 0.0
      %1425 = vmatprep.subr.mxu0 0.0
      %1426 = vmatpush1.msra.mxu0 0.0
      %1427 = vmatprep.subr.mxu0 0.0
      %1428 = vmatpush1.msra.mxu0 0.0
      %1429 = vmatprep.subr.mxu0 0.0
      %1430 = vmatpush1.msra.mxu0 0.0
      %1431 = vmatprep.subr.mxu0 0.0
      %1432 = vmatpush1.msra.mxu0 0.0
      %1433 = vmatprep.subr.mxu0 0.0
      %1434 = vmatpush1.msra.mxu0 0.0
      %1435 = vmatprep.subr.mxu0 0.0
      %1436 = vmatpush1.msra.mxu0 0.0
      %1437 = vmatprep.subr.mxu0 0.0
      %1438 = vmatpush1.msra.mxu0 0.0
      %1439 = vmatprep.subr.mxu0 0.0
      %1440 = vmatpush1.msra.mxu0 0.0
      %1441 = vmatprep.subr.mxu0 0.0
      %1442 = vmatpush1.msra.mxu0 0.0
      %1443 = vmatprep.subr.mxu0 0.0
      %1444 = vmatpush1.msra.mxu0 0.0
      %1445 = vmatprep.subr.mxu0 0.0
      %1446 = vmatpush1.msra.mxu0 0.0
      %1447 = vmatprep.subr.mxu0 0.0
      %1448 = vmatpush1.msra.mxu0 0.0
      %1449 = vmatprep.subr.mxu0 0.0
      %1450 = vmatpush1.msra.mxu0 0.0
      %1451 = vmatprep.subr.mxu0 0.0
      %1452 = vmatpush1.msra.mxu0 0.0
      %1453 = vmatprep.subr.mxu0 0.0
      %1454 = vmatpush1.msra.mxu0 0.0
      %1455 = vmatprep.subr.mxu0 0.0
      %1456 = vmatpush1.msra.mxu0 0.0
      %1457 = vmatprep.subr.mxu0 0.0
      %1458 = vmatpush1.msra.mxu0 0.0
      %1459 = vmatprep.subr.mxu0 0.0
      %1460 = vmatpush1.msra.mxu0 0.0
      %1461 = vmatprep.subr.mxu0 0.0
      %1462 = vmatpush1.msra.mxu0 0.0
      %1463 = vmatprep.subr.mxu0 0.0
      %1464 = vmatpush1.msra.mxu0 0.0
      %1465 = vmatprep.subr.mxu0 0.0
      %1466 = vmatpush1.msra.mxu0 0.0
      %1467 = vmatprep.subr.mxu0 0.0
      %1468 = vmatpush1.msra.mxu0 0.0
      %1469 = vmatprep.subr.mxu0 0.0
      %1470 = vmatpush1.msra.mxu0 0.0
      %1471 = vmatprep.subr.mxu0 0.0
      %1472 = vmatpush1.msra.mxu0 0.0
      %1473 = vmatprep.subr.mxu0 0.0
      %1474 = vmatpush1.msra.mxu0 0.0
      %1475 = vmatprep.subr.mxu0 0.0
      %1476 = vmatpush1.msra.mxu0 0.0
      %1477 = vmatprep.subr.mxu0 0.0
      %1478 = vmatpush1.msra.mxu0 0.0
      %1479 = vmatprep.subr.mxu0 0.0
      %1480 = vmatpush1.msra.mxu0 0.0
      %1481 = vmatprep.subr.mxu0 0.0
      %1482 = vmatpush1.msra.mxu0 0.0
      %1483 = vmatprep.mubr.f32.mxu0 0.0
      %1484 = vmatmul.mubr.f32.gmra.mrb[0].mxu0 %v1417
      %v1485 = vpop.f32.mrb[0].mxu0
      %v1486 = vadd.f32 0.0, %v1485
      %v1487 = vpop.f32.mrb[0].mxu0
      %v1488 = vadd.f32 0.0, %v1487
      %1489 = vdwg.mxu0
      %v1490 = vrot.slane %v1486, 4
      %v1491 = vmax.f32 %v1486, %v1490
      %v1492 = vrot.slane %v1491, 2
      %v1493 = vmax.f32 %v1491, %v1492
      %v1494 = vrot.slane %v1493, 1
      %v1495 = vmax.f32 %v1493, %v1494
      %v1496 = vrot.slane %v1488, 4
      %v1497 = vmax.f32 %v1488, %v1496
      %v1498 = vrot.slane %v1497, 2
      %v1499 = vmax.f32 %v1497, %v1498
      %v1500 = vrot.slane %v1499, 1
      %v1501 = vmax.f32 %v1499, %v1500
      %v1502 = vmul.f32 %v1495, 0.25
      %v1503 = vmul.f32 %v1501, 0.25
      %s1504 = sld [smem:[#allocation2]]
      %v1505 = vstv %s1504
      %v1506 = vadd.f32 %v1502, %v1505
      %v1507 = vadd.f32 %v1503, %v1505
      %v1508 = vsub.f32 0.0, %v1506
      %v1509 = vsub.f32 0.0, %v1507
      %v1510 = vmul.f32 %v1508, 1.442695
      %v1511 = vpow.pop %v1510
      %v1512 = vmul.f32 %v1509, 1.442695
      %v1513 = vpow.pop %v1512
      %v1514 = vadd.f32 %v1511, 1.0
      %v1515 = vadd.f32 %v1513, 1.0
      %v1516 = vrcp.pop %v1514
      %v1517 = vmul.f32 1.0, %v1516
      %v1518 = vrcp.pop %v1515
      %v1519 = vmul.f32 1.0, %v1518
      %v1520 = vmul.f32 %v1326, %v1517
      %v1521 = vmul.f32 %v1327, %v1519
      %v1522 = vmul.f32 %v1328, %v1517
      %v1523 = vmul.f32 %v1329, %v1519
      %1524 = vst [vmem:[%s296] sm:$0xff] %v1520
      %1525 = vst [vmem:[%s296 + $0x8] sm:$0xff] %v1521
      %1526 = vst [vmem:[%s296 + $0x10] sm:$0xff] %v1522
      %1527 = vst [vmem:[%s296 + $0x18] sm:$0xff] %v1523
      %p1528 = scmp.lt.s32.totalorder %s19, 1
      %s1529 = scalar_select %p1528, %s19, 1
      %s1530 = smul.addr %s1529, 4
      %s1531 = smul.addr %s1530, 8
      %s1532 = scalar_lea.vmem %s7, %s1531
      // Predicated region
      $region49: #{c2f_attn_forward.6} parent=47 // pred_check
        %p1533 = pneg %p194
      $region50: #{c2f_attn_forward.6} parent=47 // pred_check_branch
        %1535 = sbr.rel (%p1533) target = $region52
      $region51: #{c2f_attn_forward.6} parent=47 // pred_region
        _
      $region52: #{c2f_attn_forward.6} parent=47 // pred_fallthru
        _
    $region48: #{c2f_attn_forward.6} parent=5 // pred_fallthru
      _
    %p1536 = scmp.le.s32.totalorder 2, %s14
    // Predicated region
    $region53: #{c2f_attn_forward.6} parent=5 // pred_check
      %p1537 = pneg %p1536
    $region54: #{c2f_attn_forward.6} parent=5 // pred_check_branch
      %1539 = sbr.rel (%p1537) target = $region56
    $region55: #{c2f_attn_forward.6} parent=5 // pred_region
      %s1540 = ssub.s32 %s14, 2
      // Predicated region
      $region57: #{c2f_attn_forward.6} parent=55 // pred_check
        %p1541 = pneg %p200
      $region58: #{c2f_attn_forward.6} parent=55 // pred_check_branch
        %1543 = sbr.rel (%p1541) target = $region60
      $region59: #{c2f_attn_forward.6} parent=55 // pred_region
        %p1544 = scmp.lt.s32.totalorder %s20, 1
        %s1545 = scalar_select %p1544, %s20, 1
        %s1546 = smul.addr %s1545, 4
        %s1547 = smul.addr %s1546, 8
        %s1548 = scalar_lea.vmem %s7, %s1547
      $region60: #{c2f_attn_forward.6} parent=55 // pred_fallthru
        _
    $region56: #{c2f_attn_forward.6} parent=5 // pred_fallthru
      _
  $region6: #{c2f_attn_forward.6} parent=0 // loop_footer
    %s18 = sadd.s32 1, %s14
  $region7: #{c2f_attn_forward.6} parent=0 // loop_footer_branch
    %13 = sbr.rel target = $region3
  $region8: #{c2f_attn_forward.6} parent=0 // loop_exit
    _

// kernel: c2f_attn_forward.5
$region0: #{c2f_attn_forward.5}
  #allocation0 [shape = 'u32[]', space=smem, size = 0x4, offset = 0x4, fixed_abs, tag = 'smem constant byte address 0x4 - core index']
  #allocation1 [shape = 'u32[144,128]{1,0:T(1,128)}', space=vmem, size = 0x12000, scoped, tag = 'internal scratch']
  %s0 = inlined_call_operand.vmem [shape: f32[2,16,256], index: 0, kind: input, shape index: {}]
  %s1 = inlined_call_operand.vmem [shape: f32[9,16,16], index: 1, kind: input, shape index: {}]
  %s2 = inlined_call_operand.vmem [shape: f32[16,1], index: 2, kind: input, shape index: {}]
  %s3 = inlined_call_operand.vmem [shape: f32[9,16,16], index: 3, kind: input, shape index: {}]
  %s4 = inlined_call_operand.vmem [shape: f32[16,1], index: 4, kind: input, shape index: {}]
  %s5 = inlined_call_operand.vmem [shape: f32[2,16,256], index: 5, kind: output, shape index: {}]
  %s6 = sld [smem:[#allocation0]]
  $region53: #{c2f_attn_forward.5} parent=0
    _
  %s8 = ssub.s32 1, %s6
  %s9 = scalar_select 0, %s8, %s6
  loop: start=0, step=1, limit=4
  $region2: #{c2f_attn_forward.5} parent=0 // loop_pre_header
    _
  $region3: #{c2f_attn_forward.5} parent=0 // loop_header
    %s11 = sphi 0, %s15
    %p12 = scmp.ge.s32.totalorder %s11, 4
    %s21 = sphi 0, %s23
    %s24 = sphi 0, %s21
    %s25 = sphi 0, %s24
    %s41 = sphi 0, %s25
    %s45 = sphi 0, %s45
    %s47 = sphi 0, %s45
    %s48 = sphi 0, %s47
    %s62 = sphi 0, %s48
    %s66 = sphi 0, %s66
    %s68 = sphi 0, %s66
    %s69 = sphi 0, %s68
    %s83 = sphi 0, %s69
    %s87 = sphi 0, %s87
    %s89 = sphi 0, %s87
    %s90 = sphi 0, %s89
    %s104 = sphi 0, %s90
    %s108 = sphi 0, %s108
    %s110 = sphi 0, %s108
    %s111 = sphi 0, %s110
    %s125 = sphi 0, %s111
    %s131 = sphi 0, %s133
    %s134 = sphi 0, %s131
    %s135 = sphi 0, %s134
    %s151 = sphi 0, %s135
  $region4: #{c2f_attn_forward.5} parent=0 // loop_header_branch
    %14 = sbr.rel (%p12) target = $region8
  $region5: #{c2f_attn_forward.5} parent=0 // loop_body
    %s16 = ssub.s32 %s11, 1
    %s17 = ssub.s32 %s11, 2
    %s18 = sadd.s32 %s11, 1
    %s19 = ssub.s32 %s11, %s18
    %p20 = scmp.eq.s32.totalorder %s19, 0
    %s22 = sadd.s32 %s21, 1
    %s23 = scalar_select %p20, %s21, %s22
    %p26 = pneg %p20
    %p27 = scmp.eq.s32.totalorder %s11, 1
    %p28 = por %p26, %p27
    %p29 = scmp.ne.s32.totalorder %s21, %s24
    %p30 = scmp.eq.s32.totalorder %s11, 0
    %p31 = por %p29, %p30
    %p32 = scmp.ne.s32.totalorder %s21, %s24
    %p33 = scmp.eq.s32.totalorder %s16, 1
    %p34 = por %p32, %p33
    %p35 = scmp.ne.s32.totalorder %s24, %s25
    %p36 = scmp.eq.s32.totalorder %s16, 0
    %p37 = por %p35, %p36
    %p38 = scmp.ne.s32.totalorder %s24, %s25
    %p39 = scmp.eq.s32.totalorder %s17, 1
    %p40 = por %p38, %p39
    %p42 = scmp.ne.s32.totalorder %s25, %s41
    %p43 = scmp.eq.s32.totalorder %s17, 0
    %p44 = por %p42, %p43
    %s46 = sadd.s32 %s45, 1
    %p49 = scmp.eq.s32.totalorder %s11, 1
    %p50 = scmp.ne.s32.totalorder %s45, %s47
    %p51 = scmp.eq.s32.totalorder %s11, 0
    %p52 = por %p50, %p51
    %p53 = scmp.ne.s32.totalorder %s45, %s47
    %p54 = scmp.eq.s32.totalorder %s16, 1
    %p55 = por %p53, %p54
    %p56 = scmp.ne.s32.totalorder %s47, %s48
    %p57 = scmp.eq.s32.totalorder %s16, 0
    %p58 = por %p56, %p57
    %p59 = scmp.ne.s32.totalorder %s47, %s48
    %p60 = scmp.eq.s32.totalorder %s17, 1
    %p61 = por %p59, %p60
    %p63 = scmp.ne.s32.totalorder %s48, %s62
    %p64 = scmp.eq.s32.totalorder %s17, 0
    %p65 = por %p63, %p64
    %s67 = sadd.s32 %s66, 1
    %p70 = scmp.eq.s32.totalorder %s11, 1
    %p71 = scmp.ne.s32.totalorder %s66, %s68
    %p72 = scmp.eq.s32.totalorder %s11, 0
    %p73 = por %p71, %p72
    %p74 = scmp.ne.s32.totalorder %s66, %s68
    %p75 = scmp.eq.s32.totalorder %s16, 1
    %p76 = por %p74, %p75
    %p77 = scmp.ne.s32.totalorder %s68, %s69
    %p78 = scmp.eq.s32.totalorder %s16, 0
    %p79 = por %p77, %p78
    %p80 = scmp.ne.s32.totalorder %s68, %s69
    %p81 = scmp.eq.s32.totalorder %s17, 1
    %p82 = por %p80, %p81
    %p84 = scmp.ne.s32.totalorder %s69, %s83
    %p85 = scmp.eq.s32.totalorder %s17, 0
    %p86 = por %p84, %p85
    %s88 = sadd.s32 %s87, 1
    %p91 = scmp.eq.s32.totalorder %s11, 1
    %p92 = scmp.ne.s32.totalorder %s87, %s89
    %p93 = scmp.eq.s32.totalorder %s11, 0
    %p94 = por %p92, %p93
    %p95 = scmp.ne.s32.totalorder %s87, %s89
    %p96 = scmp.eq.s32.totalorder %s16, 1
    %p97 = por %p95, %p96
    %p98 = scmp.ne.s32.totalorder %s89, %s90
    %p99 = scmp.eq.s32.totalorder %s16, 0
    %p100 = por %p98, %p99
    %p101 = scmp.ne.s32.totalorder %s89, %s90
    %p102 = scmp.eq.s32.totalorder %s17, 1
    %p103 = por %p101, %p102
    %p105 = scmp.ne.s32.totalorder %s90, %s104
    %p106 = scmp.eq.s32.totalorder %s17, 0
    %p107 = por %p105, %p106
    %s109 = sadd.s32 %s108, 1
    %p112 = scmp.eq.s32.totalorder %s11, 1
    %p113 = scmp.ne.s32.totalorder %s108, %s110
    %p114 = scmp.eq.s32.totalorder %s11, 0
    %p115 = por %p113, %p114
    %p116 = scmp.ne.s32.totalorder %s108, %s110
    %p117 = scmp.eq.s32.totalorder %s16, 1
    %p118 = por %p116, %p117
    %p119 = scmp.ne.s32.totalorder %s110, %s111
    %p120 = scmp.eq.s32.totalorder %s16, 0
    %p121 = por %p119, %p120
    %p122 = scmp.ne.s32.totalorder %s110, %s111
    %p123 = scmp.eq.s32.totalorder %s17, 1
    %p124 = por %p122, %p123
    %p126 = scmp.ne.s32.totalorder %s111, %s125
    %p127 = scmp.eq.s32.totalorder %s17, 0
    %p128 = por %p126, %p127
    %s129 = ssub.s32 %s11, %s18
    %p130 = scmp.eq.s32.totalorder %s129, 0
    %s132 = sadd.s32 %s131, 1
    %s133 = scalar_select %p130, %s131, %s132
    %p136 = pneg %p130
    %p137 = scmp.eq.s32.totalorder %s11, 1
    %p138 = por %p136, %p137
    %p139 = scmp.ne.s32.totalorder %s131, %s134
    %p140 = scmp.eq.s32.totalorder %s11, 0
    %p141 = por %p139, %p140
    %p142 = scmp.ne.s32.totalorder %s131, %s134
    %p143 = scmp.eq.s32.totalorder %s16, 1
    %p144 = por %p142, %p143
    %p145 = scmp.ne.s32.totalorder %s134, %s135
    %p146 = scmp.eq.s32.totalorder %s16, 0
    %p147 = por %p145, %p146
    %p148 = scmp.ne.s32.totalorder %s134, %s135
    %p149 = scmp.eq.s32.totalorder %s17, 1
    %p150 = por %p148, %p149
    %p152 = scmp.ne.s32.totalorder %s135, %s151
    %p153 = scmp.eq.s32.totalorder %s17, 0
    %p154 = por %p152, %p153
    %p155 = scmp.le.s32.totalorder 1, %s11
    %p156 = scmp.lt.s32.totalorder %s11, 3
    %p157 = pnand %p155, %p156
    %p158 = pneg %p157
    // Predicated region
    $region9: #{c2f_attn_forward.5} parent=5 // pred_check
      _
    $region10: #{c2f_attn_forward.5} parent=5 // pred_check_branch
      %160 = sbr.rel (%p157) target = $region12
    $region11: #{c2f_attn_forward.5} parent=5 // pred_region
      %s161 = ssub.s32 %s11, 1
      // Predicated region
      $region13: #{c2f_attn_forward.5} parent=11 // pred_check
        %p162 = pneg %p58
      $region14: #{c2f_attn_forward.5} parent=11 // pred_check_branch
        %164 = sbr.rel (%p162) target = $region16
      $region15: #{c2f_attn_forward.5} parent=11 // pred_region
        _
      $region16: #{c2f_attn_forward.5} parent=11 // pred_fallthru
        _
      // Predicated region
      $region17: #{c2f_attn_forward.5} parent=11 // pred_check
        %p165 = pneg %p79
      $region18: #{c2f_attn_forward.5} parent=11 // pred_check_branch
        %167 = sbr.rel (%p165) target = $region20
      $region19: #{c2f_attn_forward.5} parent=11 // pred_region
        _
      $region20: #{c2f_attn_forward.5} parent=11 // pred_fallthru
        _
      // Predicated region
      $region21: #{c2f_attn_forward.5} parent=11 // pred_check
        %p168 = pneg %p100
      $region22: #{c2f_attn_forward.5} parent=11 // pred_check_branch
        %170 = sbr.rel (%p168) target = $region24
      $region23: #{c2f_attn_forward.5} parent=11 // pred_region
        _
      $region24: #{c2f_attn_forward.5} parent=11 // pred_fallthru
        _
      // Predicated region
      $region25: #{c2f_attn_forward.5} parent=11 // pred_check
        %p171 = pneg %p121
      $region26: #{c2f_attn_forward.5} parent=11 // pred_check_branch
        %173 = sbr.rel (%p171) target = $region28
      $region27: #{c2f_attn_forward.5} parent=11 // pred_region
        _
      $region28: #{c2f_attn_forward.5} parent=11 // pred_fallthru
        _
    $region12: #{c2f_attn_forward.5} parent=5 // pred_fallthru
      _
    %p174 = scmp.lt.s32.totalorder %s11, 2
    // Predicated region
    $region29: #{c2f_attn_forward.5} parent=5 // pred_check
      %p175 = pneg %p174
    $region30: #{c2f_attn_forward.5} parent=5 // pred_check_branch
      %177 = sbr.rel (%p175) target = $region32
    $region31: #{c2f_attn_forward.5} parent=5 // pred_region
      // Predicated region
      $region33: #{c2f_attn_forward.5} parent=31 // pred_check
        %p178 = pneg %p31
      $region34: #{c2f_attn_forward.5} parent=31 // pred_check_branch
        %180 = sbr.rel (%p178) target = $region36
      $region35: #{c2f_attn_forward.5} parent=31 // pred_region
        %p181 = scmp.lt.s32.totalorder %s11, 1
        %s182 = scalar_select %p181, %s11, 1
        %s183 = smul.addr %s182, 4
        %s184 = smul.addr %s183, 8
        %s185 = scalar_lea.vmem %s0, %s184
      $region36: #{c2f_attn_forward.5} parent=31 // pred_fallthru
        _
    $region32: #{c2f_attn_forward.5} parent=5 // pred_fallthru
      _
    %p186 = scmp.le.s32.totalorder 1, %s11
    %p187 = scmp.lt.s32.totalorder %s11, 3
    %p188 = pnand %p186, %p187
    %p189 = pneg %p188
    // Predicated region
    $region37: #{c2f_attn_forward.5} parent=5 // pred_check
      _
    $region38: #{c2f_attn_forward.5} parent=5 // pred_check_branch
      %191 = sbr.rel (%p188) target = $region40
    $region39: #{c2f_attn_forward.5} parent=5 // pred_region
      %s192 = ssub.s32 %s11, 1
      %p193 = scmp.lt.s32.totalorder %s16, 1
      %s194 = scalar_select %p193, %s16, 1
      %s195 = smul.addr %s194, 4
      %s196 = smul.addr %s195, 8
      %s197 = scalar_lea.vmem %s0, %s196
      %p198 = pneg %p37
      %p199 = pneg %p34
      %p200 = pneg %p58
      %p201 = pneg %p55
      %p202 = pneg %p79
      %p203 = pneg %p76
      %p204 = pneg %p100
      %p205 = pneg %p97
      %p206 = pneg %p121
      %p207 = pneg %p118
      %p208 = pneg %p147
      %p209 = pneg %p144
      %p210 = scmp.lt.s32.totalorder %s16, 1
      %s211 = scalar_select %p210, %s16, 1
      %s212 = smul.addr %s211, 4
      %s213 = smul.addr %s212, 8
      %s214 = scalar_lea.vmem %s5, %s213
      %p215 = scmp.lt.s32.totalorder %s16, 1
      %s216 = scalar_select %p215, %s16, 1
      %s217 = smul.addr %s216, 4
      %s218 = smul.addr %s217, 8
      %s219 = scalar_lea.vmem %s0, %s218
      %p220 = scmp.lt.s32.totalorder %s16, 1
      %s221 = scalar_select %p220, %s16, 1
      %s222 = smul.addr %s221, 4
      %s223 = smul.addr %s222, 8
      %s224 = scalar_lea.vmem %s5, %s223
      %v225 = vlaneseq
      %v226 = vand.u32 %v225, 127
      %v227 = vadd.s32 %v226, 128
      %vm228 = vcmp.lt.s32.totalorder %v226, 0
      %v229 = vsub.s32 0, %v226
      %v230 = vsel %vm228, %v229, %v226
      %v231 = vshrl.u32 %v230, 4
      %v232 = vand.u32 %v230, 15
      %v233 = vsub.s32 0, %v232
      %v234 = vsel %vm228, %v233, %v232
      %vm235 = vcmp.lt.s32.totalorder %v227, 0
      %v236 = vsub.s32 0, %v227
      %v237 = vsel %vm235, %v236, %v227
      %v238 = vshrl.u32 %v237, 4
      %v239 = vand.u32 %v237, 15
      %v240 = vsub.s32 0, %v239
      %v241 = vsel %vm235, %v240, %v239
      %vm242 = vcmp.ne.s32.totalorder %v234, 0
      %vm243 = vcmp.ne.s32.totalorder %v241, 0
      %vm244 = vcmp.lt.s32.totalorder %v234, 0
      %vm245 = vcmp.lt.s32.totalorder %v241, 0
      %vm246 = vmand %vm244, %vm242
      %vm247 = vmand %vm245, %vm243
      %v248 = vadd.s32 %v234, 16
      %v249 = vadd.s32 %v241, 16
      %v250 = vsel %vm246, %v248, %v234
      %v251 = vsel %vm247, %v249, %v241
      %vm252 = vcmp.ge.s32.totalorder %v226, 16
      %vm253 = vcmp.ge.s32.totalorder %v227, 16
      %vm254 = vcmp.ge.s32.totalorder %v250, 1
      %vm255 = vcmp.ge.s32.totalorder %v251, 1
      %vm256 = vmand %vm252, %vm254
      %vm257 = vmand %vm253, %vm255
      %v258 = vsel %vm256, 1, 0
      %v259 = vsel %vm257, 1, 0
      %v260 = vcvt.s32.f32 %v258
      %v261 = vcvt.s32.f32 %v259
      %v262 = vsel %vm252, 1, 0
      %v263 = vsel %vm253, 1, 0
      %v264 = vcvt.s32.f32 %v262
      %v265 = vcvt.s32.f32 %v263
      %vm266 = vcmp.lt.s32.totalorder %v250, 15
      %vm267 = vcmp.lt.s32.totalorder %v251, 15
      %vm268 = vmand %vm252, %vm266
      %vm269 = vmand %vm253, %vm267
      %v270 = vsel %vm268, 1, 0
      %v271 = vsel %vm269, 1, 0
      %v272 = vcvt.s32.f32 %v270
      %v273 = vcvt.s32.f32 %v271
      %v274 = vsel %vm254, 1, 0
      %v275 = vsel %vm255, 1, 0
      %v276 = vcvt.s32.f32 %v274
      %v277 = vcvt.s32.f32 %v275
      %v278 = vsel %vm266, 1, 0
      %v279 = vsel %vm267, 1, 0
      %v280 = vcvt.s32.f32 %v278
      %v281 = vcvt.s32.f32 %v279
      %vm282 = vcmp.lt.s32.totalorder %v226, 240
      %vm283 = vcmp.lt.s32.totalorder %v227, 240
      %vm284 = vmand %vm282, %vm254
      %vm285 = vmand %vm283, %vm255
      %v286 = vsel %vm284, 1, 0
      %v287 = vsel %vm285, 1, 0
      %v288 = vcvt.s32.f32 %v286
      %v289 = vcvt.s32.f32 %v287
      %v290 = vsel %vm282, 1, 0
      %v291 = vsel %vm283, 1, 0
      %v292 = vcvt.s32.f32 %v290
      %v293 = vcvt.s32.f32 %v291
      %vm294 = vmand %vm282, %vm266
      %vm295 = vmand %vm283, %vm267
      %v296 = vsel %vm294, 1, 0
      %v297 = vsel %vm295, 1, 0
      %v298 = vcvt.s32.f32 %v296
      %v299 = vcvt.s32.f32 %v297
      %v300 = vld [vmem:[%s219] sm:$0xff]
      %v301 = vld [vmem:[%s219 + $0x8] sm:$0xff]
      %v302 = vld [vmem:[%s219 + $0x10] sm:$0xff]
      %v303 = vld [vmem:[%s219 + $0x18] sm:$0xff]
      %v304 = vld [vmem:[%s2] sm:$0xff]
      %v305 = vld [vmem:[%s2 + $0x8] sm:$0xff]
      %306 = vrot.lane.b32.xlu0 %v300, 17
      %v307 = vpop.permute.xlu0 %306
      %308 = vrot.lane.b32.xlu0 %v302, 17
      %v309 = vpop.permute.xlu0 %308
      %310 = vrot.lane.b32.xlu0 %v301, 17
      %v311 = vpop.permute.xlu0 %310
      %312 = vrot.lane.b32.xlu0 %v303, 17
      %v313 = vpop.permute.xlu0 %312
      %vm314 = vcmp.lt.s32.totalorder %v226, 17
      %v315 = vsel %vm314, %v307, %v311
      %v316 = vsel %vm314, %v309, %v313
      %v317 = vsel %vm314, %v311, %v307
      %v318 = vsel %vm314, %v313, %v309
      %v319 = vmul.f32 %v317, %v260
      %v320 = vmul.f32 %v315, %v261
      %v321 = vmul.f32 %v318, %v260
      %v322 = vmul.f32 %v316, %v261
      %v323 = vld [vmem:[%s1] sm:$0xff]
      %v324 = vld [vmem:[%s1 + $0x8] sm:$0xff]
      %325 = vrot.lane.b32.xlu0 %v300, 16
      %v326 = vpop.permute.xlu0 %325
      %327 = vrot.lane.b32.xlu0 %v302, 16
      %v328 = vpop.permute.xlu0 %327
      %329 = vrot.lane.b32.xlu0 %v301, 16
      %v330 = vpop.permute.xlu0 %329
      %331 = vrot.lane.b32.xlu0 %v303, 16
      %v332 = vpop.permute.xlu0 %331
      %vm333 = vcmp.lt.s32.totalorder %v226, 16
      %v334 = vsel %vm333, %v326, %v330
      %v335 = vsel %vm333, %v328, %v332
      %v336 = vsel %vm333, %v330, %v326
      %v337 = vsel %vm333, %v332, %v328
      %v338 = vmul.f32 %v336, %v264
      %v339 = vmul.f32 %v334, %v265
      %v340 = vmul.f32 %v337, %v264
      %v341 = vmul.f32 %v335, %v265
      %s342 = scalar_lea.vmem %s1, 16
      %v343 = vld [vmem:[%s342] sm:$0xff]
      %v344 = vld [vmem:[%s342 + $0x8] sm:$0xff]
      %vm345 = vcmask 130048
      %v347 = vsel %vm345, %v343, 0
      %v350 = vsel %vm345, %v344, 0
      %352 = vmatprep.subr.mxu0 %v339
      %353 = vmatpush1.msra.mxu0 %v338
      %354 = vmatprep.subr.mxu0 %v341
      %355 = vmatpush1.msra.mxu0 %v340
      %356 = vmatprep.subr.mxu0 0.0
      %357 = vmatpush1.msra.mxu0 0.0
      %358 = vmatprep.subr.mxu0 0.0
      %359 = vmatpush1.msra.mxu0 0.0
      %360 = vmatprep.subr.mxu0 0.0
      %361 = vmatpush1.msra.mxu0 0.0
      %362 = vmatprep.subr.mxu0 0.0
      %363 = vmatpush1.msra.mxu0 0.0
      %364 = vmatprep.subr.mxu0 0.0
      %365 = vmatpush1.msra.mxu0 0.0
      %366 = vmatprep.subr.mxu0 0.0
      %367 = vmatpush1.msra.mxu0 0.0
      %368 = vmatprep.subr.mxu0 0.0
      %369 = vmatpush1.msra.mxu0 0.0
      %370 = vmatprep.subr.mxu0 0.0
      %371 = vmatpush1.msra.mxu0 0.0
      %372 = vmatprep.subr.mxu0 0.0
      %373 = vmatpush1.msra.mxu0 0.0
      %374 = vmatprep.subr.mxu0 0.0
      %375 = vmatpush1.msra.mxu0 0.0
      %376 = vmatprep.subr.mxu0 0.0
      %377 = vmatpush1.msra.mxu0 0.0
      %378 = vmatprep.subr.mxu0 0.0
      %379 = vmatpush1.msra.mxu0 0.0
      %380 = vmatprep.subr.mxu0 0.0
      %381 = vmatpush1.msra.mxu0 0.0
      %382 = vmatprep.subr.mxu0 0.0
      %383 = vmatpush1.msra.mxu0 0.0
      %384 = vmatprep.subr.mxu0 0.0
      %385 = vmatpush1.msra.mxu0 0.0
      %386 = vmatprep.subr.mxu0 0.0
      %387 = vmatpush1.msra.mxu0 0.0
      %388 = vmatprep.subr.mxu0 0.0
      %389 = vmatpush1.msra.mxu0 0.0
      %390 = vmatprep.subr.mxu0 0.0
      %391 = vmatpush1.msra.mxu0 0.0
      %392 = vmatprep.subr.mxu0 0.0
      %393 = vmatpush1.msra.mxu0 0.0
      %394 = vmatprep.subr.mxu0 0.0
      %395 = vmatpush1.msra.mxu0 0.0
      %396 = vmatprep.subr.mxu0 0.0
      %397 = vmatpush1.msra.mxu0 0.0
      %398 = vmatprep.subr.mxu0 0.0
      %399 = vmatpush1.msra.mxu0 0.0
      %400 = vmatprep.subr.mxu0 0.0
      %401 = vmatpush1.msra.mxu0 0.0
      %402 = vmatprep.subr.mxu0 0.0
      %403 = vmatpush1.msra.mxu0 0.0
      %404 = vmatprep.subr.mxu0 0.0
      %405 = vmatpush1.msra.mxu0 0.0
      %406 = vmatprep.subr.mxu0 0.0
      %407 = vmatpush1.msra.mxu0 0.0
      %408 = vmatprep.subr.mxu0 0.0
      %409 = vmatpush1.msra.mxu0 0.0
      %410 = vmatprep.subr.mxu0 0.0
      %411 = vmatpush1.msra.mxu0 0.0
      %412 = vmatprep.subr.mxu0 0.0
      %413 = vmatpush1.msra.mxu0 0.0
      %414 = vmatprep.subr.mxu0 0.0
      %415 = vmatpush1.msra.mxu0 0.0
      %416 = vmatprep.mubr.f32.mxu0 0.0
      %417 = vmatmul.mubr.f32.gmra.mrb[0].mxu0 %v347
      %v418 = vpop.f32.mrb[0].mxu0
      %v419 = vadd.f32 0.0, %v418
      %v420 = vpop.f32.mrb[0].mxu0
      %v421 = vadd.f32 0.0, %v420
      %422 = vmatprep.mubr.f32.mxu0 0.0
      %423 = vmatmul.mubr.f32.gmra.mrb[0].mxu0 %v350
      %v424 = vpop.f32.mrb[0].mxu0
      %v425 = vadd.f32 0.0, %v424
      %v426 = vpop.f32.mrb[0].mxu0
      %v427 = vadd.f32 0.0, %v426
      %428 = vdwg.mxu0
      %v430 = vsel %vm345, %v323, 0
      %v433 = vsel %vm345, %v324, 0
      %435 = vmatprep.subr.mxu0 %v320
      %436 = vmatpush1.msra.mxu0 %v319
      %437 = vmatprep.subr.mxu0 %v322
      %438 = vmatpush1.msra.mxu0 %v321
      %439 = vmatprep.subr.mxu0 0.0
      %440 = vmatpush1.msra.mxu0 0.0
      %441 = vmatprep.subr.mxu0 0.0
      %442 = vmatpush1.msra.mxu0 0.0
      %443 = vmatprep.subr.mxu0 0.0
      %444 = vmatpush1.msra.mxu0 0.0
      %445 = vmatprep.subr.mxu0 0.0
      %446 = vmatpush1.msra.mxu0 0.0
      %447 = vmatprep.subr.mxu0 0.0
      %448 = vmatpush1.msra.mxu0 0.0
      %449 = vmatprep.subr.mxu0 0.0
      %450 = vmatpush1.msra.mxu0 0.0
      %451 = vmatprep.subr.mxu0 0.0
      %452 = vmatpush1.msra.mxu0 0.0
      %453 = vmatprep.subr.mxu0 0.0
      %454 = vmatpush1.msra.mxu0 0.0
      %455 = vmatprep.subr.mxu0 0.0
      %456 = vmatpush1.msra.mxu0 0.0
      %457 = vmatprep.subr.mxu0 0.0
      %458 = vmatpush1.msra.mxu0 0.0
      %459 = vmatprep.subr.mxu0 0.0
      %460 = vmatpush1.msra.mxu0 0.0
      %461 = vmatprep.subr.mxu0 0.0
      %462 = vmatpush1.msra.mxu0 0.0
      %463 = vmatprep.subr.mxu0 0.0
      %464 = vmatpush1.msra.mxu0 0.0
      %465 = vmatprep.subr.mxu0 0.0
      %466 = vmatpush1.msra.mxu0 0.0
      %467 = vmatprep.subr.mxu0 0.0
      %468 = vmatpush1.msra.mxu0 0.0
      %469 = vmatprep.subr.mxu0 0.0
      %470 = vmatpush1.msra.mxu0 0.0
      %471 = vmatprep.subr.mxu0 0.0
      %472 = vmatpush1.msra.mxu0 0.0
      %473 = vmatprep.subr.mxu0 0.0
      %474 = vmatpush1.msra.mxu0 0.0
      %475 = vmatprep.subr.mxu0 0.0
      %476 = vmatpush1.msra.mxu0 0.0
      %477 = vmatprep.subr.mxu0 0.0
      %478 = vmatpush1.msra.mxu0 0.0
      %479 = vmatprep.subr.mxu0 0.0
      %480 = vmatpush1.msra.mxu0 0.0
      %481 = vmatprep.subr.mxu0 0.0
      %482 = vmatpush1.msra.mxu0 0.0
      %483 = vmatprep.subr.mxu0 0.0
      %484 = vmatpush1.msra.mxu0 0.0
      %485 = vmatprep.subr.mxu0 0.0
      %486 = vmatpush1.msra.mxu0 0.0
      %487 = vmatprep.subr.mxu0 0.0
      %488 = vmatpush1.msra.mxu0 0.0
      %489 = vmatprep.subr.mxu0 0.0
      %490 = vmatpush1.msra.mxu0 0.0
      %491 = vmatprep.subr.mxu0 0.0
      %492 = vmatpush1.msra.mxu0 0.0
      %493 = vmatprep.subr.mxu0 0.0
      %494 = vmatpush1.msra.mxu0 0.0
      %495 = vmatprep.subr.mxu0 0.0
      %496 = vmatpush1.msra.mxu0 0.0
      %497 = vmatprep.subr.mxu0 0.0
      %498 = vmatpush1.msra.mxu0 0.0
      %499 = vmatprep.mubr.f32.mxu0 0.0
      %500 = vmatmul.mubr.f32.gmra.mrb[0].mxu0 %v430
      %v501 = vpop.f32.mrb[0].mxu0
      %v502 = vadd.f32 %v419, %v501
      %v503 = vpop.f32.mrb[0].mxu0
      %v504 = vadd.f32 %v421, %v503
      %505 = vmatprep.mubr.f32.mxu0 0.0
      %506 = vmatmul.mubr.f32.gmra.mrb[0].mxu0 %v433
      %v507 = vpop.f32.mrb[0].mxu0
      %v508 = vadd.f32 %v425, %v507
      %v509 = vpop.f32.mrb[0].mxu0
      %v510 = vadd.f32 %v427, %v509
      %511 = vdwg.mxu0
      %512 = vrot.lane.b32.xlu0 %v300, 15
      %v513 = vpop.permute.xlu0 %512
      %514 = vrot.lane.b32.xlu0 %v302, 15
      %v515 = vpop.permute.xlu0 %514
      %516 = vrot.lane.b32.xlu0 %v301, 15
      %v517 = vpop.permute.xlu0 %516
      %518 = vrot.lane.b32.xlu0 %v303, 15
      %v519 = vpop.permute.xlu0 %518
      %vm520 = vcmp.lt.s32.totalorder %v226, 15
      %v521 = vsel %vm520, %v513, %v517
      %v522 = vsel %vm520, %v515, %v519
      %v523 = vsel %vm520, %v517, %v513
      %v524 = vsel %vm520, %v519, %v515
      %v525 = vmul.f32 %v523, %v272
      %v526 = vmul.f32 %v521, %v273
      %v527 = vmul.f32 %v524, %v272
      %v528 = vmul.f32 %v522, %v273
      %s529 = scalar_lea.vmem %s1, 32
      %v530 = vld [vmem:[%s529] sm:$0xff]
      %v531 = vld [vmem:[%s529 + $0x8] sm:$0xff]
      %v533 = vsel %vm345, %v530, 0
      %v536 = vsel %vm345, %v531, 0
      %538 = vmatprep.subr.mxu0 %v526
      %539 = vmatpush1.msra.mxu0 %v525
      %540 = vmatprep.subr.mxu0 %v528
      %541 = vmatpush1.msra.mxu0 %v527
      %542 = vmatprep.subr.mxu0 0.0
      %543 = vmatpush1.msra.mxu0 0.0
      %544 = vmatprep.subr.mxu0 0.0
      %545 = vmatpush1.msra.mxu0 0.0
      %546 = vmatprep.subr.mxu0 0.0
      %547 = vmatpush1.msra.mxu0 0.0
      %548 = vmatprep.subr.mxu0 0.0
      %549 = vmatpush1.msra.mxu0 0.0
      %550 = vmatprep.subr.mxu0 0.0
      %551 = vmatpush1.msra.mxu0 0.0
      %552 = vmatprep.subr.mxu0 0.0
      %553 = vmatpush1.msra.mxu0 0.0
      %554 = vmatprep.subr.mxu0 0.0
      %555 = vmatpush1.msra.mxu0 0.0
      %556 = vmatprep.subr.mxu0 0.0
      %557 = vmatpush1.msra.mxu0 0.0
      %558 = vmatprep.subr.mxu0 0.0
      %559 = vmatpush1.msra.mxu0 0.0
      %560 = vmatprep.subr.mxu0 0.0
      %561 = vmatpush1.msra.mxu0 0.0
      %562 = vmatprep.subr.mxu0 0.0
      %563 = vmatpush1.msra.mxu0 0.0
      %564 = vmatprep.subr.mxu0 0.0
      %565 = vmatpush1.msra.mxu0 0.0
      %566 = vmatprep.subr.mxu0 0.0
      %567 = vmatpush1.msra.mxu0 0.0
      %568 = vmatprep.subr.mxu0 0.0
      %569 = vmatpush1.msra.mxu0 0.0
      %570 = vmatprep.subr.mxu0 0.0
      %571 = vmatpush1.msra.mxu0 0.0
      %572 = vmatprep.subr.mxu0 0.0
      %573 = vmatpush1.msra.mxu0 0.0
      %574 = vmatprep.subr.mxu0 0.0
      %575 = vmatpush1.msra.mxu0 0.0
      %576 = vmatprep.subr.mxu0 0.0
      %577 = vmatpush1.msra.mxu0 0.0
      %578 = vmatprep.subr.mxu0 0.0
      %579 = vmatpush1.msra.mxu0 0.0
      %580 = vmatprep.subr.mxu0 0.0
      %581 = vmatpush1.msra.mxu0 0.0
      %582 = vmatprep.subr.mxu0 0.0
      %583 = vmatpush1.msra.mxu0 0.0
      %584 = vmatprep.subr.mxu0 0.0
      %585 = vmatpush1.msra.mxu0 0.0
      %586 = vmatprep.subr.mxu0 0.0
      %587 = vmatpush1.msra.mxu0 0.0
      %588 = vmatprep.subr.mxu0 0.0
      %589 = vmatpush1.msra.mxu0 0.0
      %590 = vmatprep.subr.mxu0 0.0
      %591 = vmatpush1.msra.mxu0 0.0
      %592 = vmatprep.subr.mxu0 0.0
      %593 = vmatpush1.msra.mxu0 0.0
      %594 = vmatprep.subr.mxu0 0.0
      %595 = vmatpush1.msra.mxu0 0.0
      %596 = vmatprep.subr.mxu0 0.0
      %597 = vmatpush1.msra.mxu0 0.0
      %598 = vmatprep.subr.mxu0 0.0
      %599 = vmatpush1.msra.mxu0 0.0
      %600 = vmatprep.subr.mxu0 0.0
      %601 = vmatpush1.msra.mxu0 0.0
      %602 = vmatprep.mubr.f32.mxu0 0.0
      %603 = vmatmul.mubr.f32.gmra.mrb[0].mxu0 %v533
      %v604 = vpop.f32.mrb[0].mxu0
      %v605 = vadd.f32 0.0, %v604
      %v606 = vpop.f32.mrb[0].mxu0
      %v607 = vadd.f32 0.0, %v606
      %608 = vmatprep.mubr.f32.mxu0 0.0
      %609 = vmatmul.mubr.f32.gmra.mrb[0].mxu0 %v536
      %v610 = vpop.f32.mrb[0].mxu0
      %v611 = vadd.f32 0.0, %v610
      %v612 = vpop.f32.mrb[0].mxu0
      %v613 = vadd.f32 0.0, %v612
      %614 = vdwg.mxu0
      %v615 = vadd.f32 %v502, %v605
      %v616 = vadd.f32 %v504, %v607
      %v617 = vadd.f32 %v508, %v611
      %v618 = vadd.f32 %v510, %v613
      %619 = vrot.lane.b32.xlu0 %v300, 1
      %v620 = vpop.permute.xlu0 %619
      %621 = vrot.lane.b32.xlu0 %v302, 1
      %v622 = vpop.permute.xlu0 %621
      %623 = vrot.lane.b32.xlu0 %v301, 1
      %v624 = vpop.permute.xlu0 %623
      %625 = vrot.lane.b32.xlu0 %v303, 1
      %v626 = vpop.permute.xlu0 %625
      %vm627 = vcmp.lt.s32.totalorder %v226, 1
      %v628 = vsel %vm627, %v620, %v624
      %v629 = vsel %vm627, %v622, %v626
      %v630 = vsel %vm627, %v624, %v620
      %v631 = vsel %vm627, %v626, %v622
      %v632 = vmul.f32 %v630, %v276
      %v633 = vmul.f32 %v628, %v277
      %v634 = vmul.f32 %v631, %v276
      %v635 = vmul.f32 %v629, %v277
      %s636 = scalar_lea.vmem %s1, 48
      %v637 = vld [vmem:[%s636] sm:$0xff]
      %v638 = vld [vmem:[%s636 + $0x8] sm:$0xff]
      %v640 = vsel %vm345, %v637, 0
      %v643 = vsel %vm345, %v638, 0
      %645 = vmatprep.subr.mxu0 %v633
      %646 = vmatpush1.msra.mxu0 %v632
      %647 = vmatprep.subr.mxu0 %v635
      %648 = vmatpush1.msra.mxu0 %v634
      %649 = vmatprep.subr.mxu0 0.0
      %650 = vmatpush1.msra.mxu0 0.0
      %651 = vmatprep.subr.mxu0 0.0
      %652 = vmatpush1.msra.mxu0 0.0
      %653 = vmatprep.subr.mxu0 0.0
      %654 = vmatpush1.msra.mxu0 0.0
      %655 = vmatprep.subr.mxu0 0.0
      %656 = vmatpush1.msra.mxu0 0.0
      %657 = vmatprep.subr.mxu0 0.0
      %658 = vmatpush1.msra.mxu0 0.0
      %659 = vmatprep.subr.mxu0 0.0
      %660 = vmatpush1.msra.mxu0 0.0
      %661 = vmatprep.subr.mxu0 0.0
      %662 = vmatpush1.msra.mxu0 0.0
      %663 = vmatprep.subr.mxu0 0.0
      %664 = vmatpush1.msra.mxu0 0.0
      %665 = vmatprep.subr.mxu0 0.0
      %666 = vmatpush1.msra.mxu0 0.0
      %667 = vmatprep.subr.mxu0 0.0
      %668 = vmatpush1.msra.mxu0 0.0
      %669 = vmatprep.subr.mxu0 0.0
      %670 = vmatpush1.msra.mxu0 0.0
      %671 = vmatprep.subr.mxu0 0.0
      %672 = vmatpush1.msra.mxu0 0.0
      %673 = vmatprep.subr.mxu0 0.0
      %674 = vmatpush1.msra.mxu0 0.0
      %675 = vmatprep.subr.mxu0 0.0
      %676 = vmatpush1.msra.mxu0 0.0
      %677 = vmatprep.subr.mxu0 0.0
      %678 = vmatpush1.msra.mxu0 0.0
      %679 = vmatprep.subr.mxu0 0.0
      %680 = vmatpush1.msra.mxu0 0.0
      %681 = vmatprep.subr.mxu0 0.0
      %682 = vmatpush1.msra.mxu0 0.0
      %683 = vmatprep.subr.mxu0 0.0
      %684 = vmatpush1.msra.mxu0 0.0
      %685 = vmatprep.subr.mxu0 0.0
      %686 = vmatpush1.msra.mxu0 0.0
      %687 = vmatprep.subr.mxu0 0.0
      %688 = vmatpush1.msra.mxu0 0.0
      %689 = vmatprep.subr.mxu0 0.0
      %690 = vmatpush1.msra.mxu0 0.0
      %691 = vmatprep.subr.mxu0 0.0
      %692 = vmatpush1.msra.mxu0 0.0
      %693 = vmatprep.subr.mxu0 0.0
      %694 = vmatpush1.msra.mxu0 0.0
      %695 = vmatprep.subr.mxu0 0.0
      %696 = vmatpush1.msra.mxu0 0.0
      %697 = vmatprep.subr.mxu0 0.0
      %698 = vmatpush1.msra.mxu0 0.0
      %699 = vmatprep.subr.mxu0 0.0
      %700 = vmatpush1.msra.mxu0 0.0
      %701 = vmatprep.subr.mxu0 0.0
      %702 = vmatpush1.msra.mxu0 0.0
      %703 = vmatprep.subr.mxu0 0.0
      %704 = vmatpush1.msra.mxu0 0.0
      %705 = vmatprep.subr.mxu0 0.0
      %706 = vmatpush1.msra.mxu0 0.0
      %707 = vmatprep.subr.mxu0 0.0
      %708 = vmatpush1.msra.mxu0 0.0
      %709 = vmatprep.mubr.f32.mxu0 0.0
      %710 = vmatmul.mubr.f32.gmra.mrb[0].mxu0 %v640
      %v711 = vpop.f32.mrb[0].mxu0
      %v712 = vadd.f32 0.0, %v711
      %v713 = vpop.f32.mrb[0].mxu0
      %v714 = vadd.f32 0.0, %v713
      %715 = vmatprep.mubr.f32.mxu0 0.0
      %716 = vmatmul.mubr.f32.gmra.mrb[0].mxu0 %v643
      %v717 = vpop.f32.mrb[0].mxu0
      %v718 = vadd.f32 0.0, %v717
      %v719 = vpop.f32.mrb[0].mxu0
      %v720 = vadd.f32 0.0, %v719
      %721 = vdwg.mxu0
      %v722 = vadd.f32 %v615, %v712
      %v723 = vadd.f32 %v616, %v714
      %v724 = vadd.f32 %v617, %v718
      %v725 = vadd.f32 %v618, %v720
      %s726 = scalar_lea.vmem %s1, 64
      %v727 = vld [vmem:[%s726] sm:$0xff]
      %v728 = vld [vmem:[%s726 + $0x8] sm:$0xff]
      %v730 = vsel %vm345, %v727, 0
      %v733 = vsel %vm345, %v728, 0
      %735 = vmatprep.subr.mxu0 %v301
      %736 = vmatpush1.msra.mxu0 %v300
      %737 = vmatprep.subr.mxu0 %v303
      %738 = vmatpush1.msra.mxu0 %v302
      %739 = vmatprep.subr.mxu0 0.0
      %740 = vmatpush1.msra.mxu0 0.0
      %741 = vmatprep.subr.mxu0 0.0
      %742 = vmatpush1.msra.mxu0 0.0
      %743 = vmatprep.subr.mxu0 0.0
      %744 = vmatpush1.msra.mxu0 0.0
      %745 = vmatprep.subr.mxu0 0.0
      %746 = vmatpush1.msra.mxu0 0.0
      %747 = vmatprep.subr.mxu0 0.0
      %748 = vmatpush1.msra.mxu0 0.0
      %749 = vmatprep.subr.mxu0 0.0
      %750 = vmatpush1.msra.mxu0 0.0
      %751 = vmatprep.subr.mxu0 0.0
      %752 = vmatpush1.msra.mxu0 0.0
      %753 = vmatprep.subr.mxu0 0.0
      %754 = vmatpush1.msra.mxu0 0.0
      %755 = vmatprep.subr.mxu0 0.0
      %756 = vmatpush1.msra.mxu0 0.0
      %757 = vmatprep.subr.mxu0 0.0
      %758 = vmatpush1.msra.mxu0 0.0
      %759 = vmatprep.subr.mxu0 0.0
      %760 = vmatpush1.msra.mxu0 0.0
      %761 = vmatprep.subr.mxu0 0.0
      %762 = vmatpush1.msra.mxu0 0.0
      %763 = vmatprep.subr.mxu0 0.0
      %764 = vmatpush1.msra.mxu0 0.0
      %765 = vmatprep.subr.mxu0 0.0
      %766 = vmatpush1.msra.mxu0 0.0
      %767 = vmatprep.subr.mxu0 0.0
      %768 = vmatpush1.msra.mxu0 0.0
      %769 = vmatprep.subr.mxu0 0.0
      %770 = vmatpush1.msra.mxu0 0.0
      %771 = vmatprep.subr.mxu0 0.0
      %772 = vmatpush1.msra.mxu0 0.0
      %773 = vmatprep.subr.mxu0 0.0
      %774 = vmatpush1.msra.mxu0 0.0
      %775 = vmatprep.subr.mxu0 0.0
      %776 = vmatpush1.msra.mxu0 0.0
      %777 = vmatprep.subr.mxu0 0.0
      %778 = vmatpush1.msra.mxu0 0.0
      %779 = vmatprep.subr.mxu0 0.0
      %780 = vmatpush1.msra.mxu0 0.0
      %781 = vmatprep.subr.mxu0 0.0
      %782 = vmatpush1.msra.mxu0 0.0
      %783 = vmatprep.subr.mxu0 0.0
      %784 = vmatpush1.msra.mxu0 0.0
      %785 = vmatprep.subr.mxu0 0.0
      %786 = vmatpush1.msra.mxu0 0.0
      %787 = vmatprep.subr.mxu0 0.0
      %788 = vmatpush1.msra.mxu0 0.0
      %789 = vmatprep.subr.mxu0 0.0
      %790 = vmatpush1.msra.mxu0 0.0
      %791 = vmatprep.subr.mxu0 0.0
      %792 = vmatpush1.msra.mxu0 0.0
      %793 = vmatprep.subr.mxu0 0.0
      %794 = vmatpush1.msra.mxu0 0.0
      %795 = vmatprep.subr.mxu0 0.0
      %796 = vmatpush1.msra.mxu0 0.0
      %797 = vmatprep.subr.mxu0 0.0
      %798 = vmatpush1.msra.mxu0 0.0
      %799 = vmatprep.mubr.f32.mxu0 0.0
      %800 = vmatmul.mubr.f32.gmra.mrb[0].mxu0 %v730
      %v801 = vpop.f32.mrb[0].mxu0
      %v802 = vadd.f32 0.0, %v801
      %v803 = vpop.f32.mrb[0].mxu0
      %v804 = vadd.f32 0.0, %v803
      %805 = vmatprep.mubr.f32.mxu0 0.0
      %806 = vmatmul.mubr.f32.gmra.mrb[0].mxu0 %v733
      %v807 = vpop.f32.mrb[0].mxu0
      %v808 = vadd.f32 0.0, %v807
      %v809 = vpop.f32.mrb[0].mxu0
      %v810 = vadd.f32 0.0, %v809
      %811 = vdwg.mxu0
      %v812 = vadd.f32 %v722, %v802
      %v813 = vadd.f32 %v723, %v804
      %v814 = vadd.f32 %v724, %v808
      %v815 = vadd.f32 %v725, %v810
      %816 = vrot.lane.b32.xlu0 %v300, 127
      %v817 = vpop.permute.xlu0 %816
      %818 = vrot.lane.b32.xlu0 %v302, 127
      %v819 = vpop.permute.xlu0 %818
      %820 = vrot.lane.b32.xlu0 %v301, 127
      %v821 = vpop.permute.xlu0 %820
      %822 = vrot.lane.b32.xlu0 %v303, 127
      %v823 = vpop.permute.xlu0 %822
      %vm824 = vcmp.lt.s32.totalorder %v226, 127
      %v825 = vsel %vm824, %v817, %v821
      %v826 = vsel %vm824, %v819, %v823
      %v827 = vsel %vm824, %v821, %v817
      %v828 = vsel %vm824, %v823, %v819
      %v829 = vmul.f32 %v825, %v280
      %v830 = vmul.f32 %v827, %v281
      %v831 = vmul.f32 %v826, %v280
      %v832 = vmul.f32 %v828, %v281
      %s833 = scalar_lea.vmem %s1, 80
      %v834 = vld [vmem:[%s833] sm:$0xff]
      %v835 = vld [vmem:[%s833 + $0x8] sm:$0xff]
      %v837 = vsel %vm345, %v834, 0
      %v840 = vsel %vm345, %v835, 0
      %842 = vmatprep.subr.mxu0 %v830
      %843 = vmatpush1.msra.mxu0 %v829
      %844 = vmatprep.subr.mxu0 %v832
      %845 = vmatpush1.msra.mxu0 %v831
      %846 = vmatprep.subr.mxu0 0.0
      %847 = vmatpush1.msra.mxu0 0.0
      %848 = vmatprep.subr.mxu0 0.0
      %849 = vmatpush1.msra.mxu0 0.0
      %850 = vmatprep.subr.mxu0 0.0
      %851 = vmatpush1.msra.mxu0 0.0
      %852 = vmatprep.subr.mxu0 0.0
      %853 = vmatpush1.msra.mxu0 0.0
      %854 = vmatprep.subr.mxu0 0.0
      %855 = vmatpush1.msra.mxu0 0.0
      %856 = vmatprep.subr.mxu0 0.0
      %857 = vmatpush1.msra.mxu0 0.0
      %858 = vmatprep.subr.mxu0 0.0
      %859 = vmatpush1.msra.mxu0 0.0
      %860 = vmatprep.subr.mxu0 0.0
      %861 = vmatpush1.msra.mxu0 0.0
      %862 = vmatprep.subr.mxu0 0.0
      %863 = vmatpush1.msra.mxu0 0.0
      %864 = vmatprep.subr.mxu0 0.0
      %865 = vmatpush1.msra.mxu0 0.0
      %866 = vmatprep.subr.mxu0 0.0
      %867 = vmatpush1.msra.mxu0 0.0
      %868 = vmatprep.subr.mxu0 0.0
      %869 = vmatpush1.msra.mxu0 0.0
      %870 = vmatprep.subr.mxu0 0.0
      %871 = vmatpush1.msra.mxu0 0.0
      %872 = vmatprep.subr.mxu0 0.0
      %873 = vmatpush1.msra.mxu0 0.0
      %874 = vmatprep.subr.mxu0 0.0
      %875 = vmatpush1.msra.mxu0 0.0
      %876 = vmatprep.subr.mxu0 0.0
      %877 = vmatpush1.msra.mxu0 0.0
      %878 = vmatprep.subr.mxu0 0.0
      %879 = vmatpush1.msra.mxu0 0.0
      %880 = vmatprep.subr.mxu0 0.0
      %881 = vmatpush1.msra.mxu0 0.0
      %882 = vmatprep.subr.mxu0 0.0
      %883 = vmatpush1.msra.mxu0 0.0
      %884 = vmatprep.subr.mxu0 0.0
      %885 = vmatpush1.msra.mxu0 0.0
      %886 = vmatprep.subr.mxu0 0.0
      %887 = vmatpush1.msra.mxu0 0.0
      %888 = vmatprep.subr.mxu0 0.0
      %889 = vmatpush1.msra.mxu0 0.0
      %890 = vmatprep.subr.mxu0 0.0
      %891 = vmatpush1.msra.mxu0 0.0
      %892 = vmatprep.subr.mxu0 0.0
      %893 = vmatpush1.msra.mxu0 0.0
      %894 = vmatprep.subr.mxu0 0.0
      %895 = vmatpush1.msra.mxu0 0.0
      %896 = vmatprep.subr.mxu0 0.0
      %897 = vmatpush1.msra.mxu0 0.0
      %898 = vmatprep.subr.mxu0 0.0
      %899 = vmatpush1.msra.mxu0 0.0
      %900 = vmatprep.subr.mxu0 0.0
      %901 = vmatpush1.msra.mxu0 0.0
      %902 = vmatprep.subr.mxu0 0.0
      %903 = vmatpush1.msra.mxu0 0.0
      %904 = vmatprep.subr.mxu0 0.0
      %905 = vmatpush1.msra.mxu0 0.0
      %906 = vmatprep.mubr.f32.mxu0 0.0
      %907 = vmatmul.mubr.f32.gmra.mrb[0].mxu0 %v837
      %v908 = vpop.f32.mrb[0].mxu0
      %v909 = vadd.f32 0.0, %v908
      %v910 = vpop.f32.mrb[0].mxu0
      %v911 = vadd.f32 0.0, %v910
      %912 = vmatprep.mubr.f32.mxu0 0.0
      %913 = vmatmul.mubr.f32.gmra.mrb[0].mxu0 %v840
      %v914 = vpop.f32.mrb[0].mxu0
      %v915 = vadd.f32 0.0, %v914
      %v916 = vpop.f32.mrb[0].mxu0
      %v917 = vadd.f32 0.0, %v916
      %918 = vdwg.mxu0
      %v919 = vadd.f32 %v812, %v909
      %v920 = vadd.f32 %v813, %v911
      %v921 = vadd.f32 %v814, %v915
      %v922 = vadd.f32 %v815, %v917
      %923 = vrot.lane.b32.xlu0 %v300, 113
      %v924 = vpop.permute.xlu0 %923
      %925 = vrot.lane.b32.xlu0 %v302, 113
      %v926 = vpop.permute.xlu0 %925
      %927 = vrot.lane.b32.xlu0 %v301, 113
      %v928 = vpop.permute.xlu0 %927
      %929 = vrot.lane.b32.xlu0 %v303, 113
      %v930 = vpop.permute.xlu0 %929
      %vm931 = vcmp.lt.s32.totalorder %v226, 113
      %v932 = vsel %vm931, %v924, %v928
      %v933 = vsel %vm931, %v926, %v930
      %v934 = vsel %vm931, %v928, %v924
      %v935 = vsel %vm931, %v930, %v926
      %v936 = vmul.f32 %v932, %v288
      %v937 = vmul.f32 %v934, %v289
      %v938 = vmul.f32 %v933, %v288
      %v939 = vmul.f32 %v935, %v289
      %s940 = scalar_lea.vmem %s1, 96
      %v941 = vld [vmem:[%s940] sm:$0xff]
      %v942 = vld [vmem:[%s940 + $0x8] sm:$0xff]
      %v944 = vsel %vm345, %v941, 0
      %v947 = vsel %vm345, %v942, 0
      %949 = vmatprep.subr.mxu0 %v937
      %950 = vmatpush1.msra.mxu0 %v936
      %951 = vmatprep.subr.mxu0 %v939
      %952 = vmatpush1.msra.mxu0 %v938
      %953 = vmatprep.subr.mxu0 0.0
      %954 = vmatpush1.msra.mxu0 0.0
      %955 = vmatprep.subr.mxu0 0.0
      %956 = vmatpush1.msra.mxu0 0.0
      %957 = vmatprep.subr.mxu0 0.0
      %958 = vmatpush1.msra.mxu0 0.0
      %959 = vmatprep.subr.mxu0 0.0
      %960 = vmatpush1.msra.mxu0 0.0
      %961 = vmatprep.subr.mxu0 0.0
      %962 = vmatpush1.msra.mxu0 0.0
      %963 = vmatprep.subr.mxu0 0.0
      %964 = vmatpush1.msra.mxu0 0.0
      %965 = vmatprep.subr.mxu0 0.0
      %966 = vmatpush1.msra.mxu0 0.0
      %967 = vmatprep.subr.mxu0 0.0
      %968 = vmatpush1.msra.mxu0 0.0
      %969 = vmatprep.subr.mxu0 0.0
      %970 = vmatpush1.msra.mxu0 0.0
      %971 = vmatprep.subr.mxu0 0.0
      %972 = vmatpush1.msra.mxu0 0.0
      %973 = vmatprep.subr.mxu0 0.0
      %974 = vmatpush1.msra.mxu0 0.0
      %975 = vmatprep.subr.mxu0 0.0
      %976 = vmatpush1.msra.mxu0 0.0
      %977 = vmatprep.subr.mxu0 0.0
      %978 = vmatpush1.msra.mxu0 0.0
      %979 = vmatprep.subr.mxu0 0.0
      %980 = vmatpush1.msra.mxu0 0.0
      %981 = vmatprep.subr.mxu0 0.0
      %982 = vmatpush1.msra.mxu0 0.0
      %983 = vmatprep.subr.mxu0 0.0
      %984 = vmatpush1.msra.mxu0 0.0
      %985 = vmatprep.subr.mxu0 0.0
      %986 = vmatpush1.msra.mxu0 0.0
      %987 = vmatprep.subr.mxu0 0.0
      %988 = vmatpush1.msra.mxu0 0.0
      %989 = vmatprep.subr.mxu0 0.0
      %990 = vmatpush1.msra.mxu0 0.0
      %991 = vmatprep.subr.mxu0 0.0
      %992 = vmatpush1.msra.mxu0 0.0
      %993 = vmatprep.subr.mxu0 0.0
      %994 = vmatpush1.msra.mxu0 0.0
      %995 = vmatprep.subr.mxu0 0.0
      %996 = vmatpush1.msra.mxu0 0.0
      %997 = vmatprep.subr.mxu0 0.0
      %998 = vmatpush1.msra.mxu0 0.0
      %999 = vmatprep.subr.mxu0 0.0
      %1000 = vmatpush1.msra.mxu0 0.0
      %1001 = vmatprep.subr.mxu0 0.0
      %1002 = vmatpush1.msra.mxu0 0.0
      %1003 = vmatprep.subr.mxu0 0.0
      %1004 = vmatpush1.msra.mxu0 0.0
      %1005 = vmatprep.subr.mxu0 0.0
      %1006 = vmatpush1.msra.mxu0 0.0
      %1007 = vmatprep.subr.mxu0 0.0
      %1008 = vmatpush1.msra.mxu0 0.0
      %1009 = vmatprep.subr.mxu0 0.0
      %1010 = vmatpush1.msra.mxu0 0.0
      %1011 = vmatprep.subr.mxu0 0.0
      %1012 = vmatpush1.msra.mxu0 0.0
      %1013 = vmatprep.mubr.f32.mxu0 0.0
      %1014 = vmatmul.mubr.f32.gmra.mrb[0].mxu0 %v944
      %v1015 = vpop.f32.mrb[0].mxu0
      %v1016 = vadd.f32 0.0, %v1015
      %v1017 = vpop.f32.mrb[0].mxu0
      %v1018 = vadd.f32 0.0, %v1017
      %1019 = vmatprep.mubr.f32.mxu0 0.0
      %1020 = vmatmul.mubr.f32.gmra.mrb[0].mxu0 %v947
      %v1021 = vpop.f32.mrb[0].mxu0
      %v1022 = vadd.f32 0.0, %v1021
      %v1023 = vpop.f32.mrb[0].mxu0
      %v1024 = vadd.f32 0.0, %v1023
      %1025 = vdwg.mxu0
      %v1026 = vadd.f32 %v919, %v1016
      %v1027 = vadd.f32 %v920, %v1018
      %v1028 = vadd.f32 %v921, %v1022
      %v1029 = vadd.f32 %v922, %v1024
      %1030 = vrot.lane.b32.xlu0 %v300, 112
      %v1031 = vpop.permute.xlu0 %1030
      %1032 = vrot.lane.b32.xlu0 %v302, 112
      %v1033 = vpop.permute.xlu0 %1032
      %1034 = vrot.lane.b32.xlu0 %v301, 112
      %v1035 = vpop.permute.xlu0 %1034
      %1036 = vrot.lane.b32.xlu0 %v303, 112
      %v1037 = vpop.permute.xlu0 %1036
      %vm1038 = vcmp.lt.s32.totalorder %v226, 112
      %v1039 = vsel %vm1038, %v1031, %v1035
      %v1040 = vsel %vm1038, %v1033, %v1037
      %v1041 = vsel %vm1038, %v1035, %v1031
      %v1042 = vsel %vm1038, %v1037, %v1033
      %v1043 = vmul.f32 %v1039, %v292
      %v1044 = vmul.f32 %v1041, %v293
      %v1045 = vmul.f32 %v1040, %v292
      %v1046 = vmul.f32 %v1042, %v293
      %s1047 = scalar_lea.vmem %s1, 112
      %v1048 = vld [vmem:[%s1047] sm:$0xff]
      %v1049 = vld [vmem:[%s1047 + $0x8] sm:$0xff]
      %v1051 = vsel %vm345, %v1048, 0
      %v1054 = vsel %vm345, %v1049, 0
      %1056 = vmatprep.subr.mxu0 %v1044
      %1057 = vmatpush1.msra.mxu0 %v1043
      %1058 = vmatprep.subr.mxu0 %v1046
      %1059 = vmatpush1.msra.mxu0 %v1045
      %1060 = vmatprep.subr.mxu0 0.0
      %1061 = vmatpush1.msra.mxu0 0.0
      %1062 = vmatprep.subr.mxu0 0.0
      %1063 = vmatpush1.msra.mxu0 0.0
      %1064 = vmatprep.subr.mxu0 0.0
      %1065 = vmatpush1.msra.mxu0 0.0
      %1066 = vmatprep.subr.mxu0 0.0
      %1067 = vmatpush1.msra.mxu0 0.0
      %1068 = vmatprep.subr.mxu0 0.0
      %1069 = vmatpush1.msra.mxu0 0.0
      %1070 = vmatprep.subr.mxu0 0.0
      %1071 = vmatpush1.msra.mxu0 0.0
      %1072 = vmatprep.subr.mxu0 0.0
      %1073 = vmatpush1.msra.mxu0 0.0
      %1074 = vmatprep.subr.mxu0 0.0
      %1075 = vmatpush1.msra.mxu0 0.0
      %1076 = vmatprep.subr.mxu0 0.0
      %1077 = vmatpush1.msra.mxu0 0.0
      %1078 = vmatprep.subr.mxu0 0.0
      %1079 = vmatpush1.msra.mxu0 0.0
      %1080 = vmatprep.subr.mxu0 0.0
      %1081 = vmatpush1.msra.mxu0 0.0
      %1082 = vmatprep.subr.mxu0 0.0
      %1083 = vmatpush1.msra.mxu0 0.0
      %1084 = vmatprep.subr.mxu0 0.0
      %1085 = vmatpush1.msra.mxu0 0.0
      %1086 = vmatprep.subr.mxu0 0.0
      %1087 = vmatpush1.msra.mxu0 0.0
      %1088 = vmatprep.subr.mxu0 0.0
      %1089 = vmatpush1.msra.mxu0 0.0
      %1090 = vmatprep.subr.mxu0 0.0
      %1091 = vmatpush1.msra.mxu0 0.0
      %1092 = vmatprep.subr.mxu0 0.0
      %1093 = vmatpush1.msra.mxu0 0.0
      %1094 = vmatprep.subr.mxu0 0.0
      %1095 = vmatpush1.msra.mxu0 0.0
      %1096 = vmatprep.subr.mxu0 0.0
      %1097 = vmatpush1.msra.mxu0 0.0
      %1098 = vmatprep.subr.mxu0 0.0
      %1099 = vmatpush1.msra.mxu0 0.0
      %1100 = vmatprep.subr.mxu0 0.0
      %1101 = vmatpush1.msra.mxu0 0.0
      %1102 = vmatprep.subr.mxu0 0.0
      %1103 = vmatpush1.msra.mxu0 0.0
      %1104 = vmatprep.subr.mxu0 0.0
      %1105 = vmatpush1.msra.mxu0 0.0
      %1106 = vmatprep.subr.mxu0 0.0
      %1107 = vmatpush1.msra.mxu0 0.0
      %1108 = vmatprep.subr.mxu0 0.0
      %1109 = vmatpush1.msra.mxu0 0.0
      %1110 = vmatprep.subr.mxu0 0.0
      %1111 = vmatpush1.msra.mxu0 0.0
      %1112 = vmatprep.subr.mxu0 0.0
      %1113 = vmatpush1.msra.mxu0 0.0
      %1114 = vmatprep.subr.mxu0 0.0
      %1115 = vmatpush1.msra.mxu0 0.0
      %1116 = vmatprep.subr.mxu0 0.0
      %1117 = vmatpush1.msra.mxu0 0.0
      %1118 = vmatprep.subr.mxu0 0.0
      %1119 = vmatpush1.msra.mxu0 0.0
      %1120 = vmatprep.mubr.f32.mxu0 0.0
      %1121 = vmatmul.mubr.f32.gmra.mrb[0].mxu0 %v1051
      %v1122 = vpop.f32.mrb[0].mxu0
      %v1123 = vadd.f32 0.0, %v1122
      %v1124 = vpop.f32.mrb[0].mxu0
      %v1125 = vadd.f32 0.0, %v1124
      %1126 = vmatprep.mubr.f32.mxu0 0.0
      %1127 = vmatmul.mubr.f32.gmra.mrb[0].mxu0 %v1054
      %v1128 = vpop.f32.mrb[0].mxu0
      %v1129 = vadd.f32 0.0, %v1128
      %v1130 = vpop.f32.mrb[0].mxu0
      %v1131 = vadd.f32 0.0, %v1130
      %1132 = vdwg.mxu0
      %v1133 = vadd.f32 %v1026, %v1123
      %v1134 = vadd.f32 %v1027, %v1125
      %v1135 = vadd.f32 %v1028, %v1129
      %v1136 = vadd.f32 %v1029, %v1131
      %1137 = vrot.lane.b32.xlu0 %v300, 111
      %v1138 = vpop.permute.xlu0 %1137
      %1139 = vrot.lane.b32.xlu0 %v302, 111
      %v1140 = vpop.permute.xlu0 %1139
      %1141 = vrot.lane.b32.xlu0 %v301, 111
      %v1142 = vpop.permute.xlu0 %1141
      %1143 = vrot.lane.b32.xlu0 %v303, 111
      %v1144 = vpop.permute.xlu0 %1143
      %vm1145 = vcmp.lt.s32.totalorder %v226, 111
      %v1146 = vsel %vm1145, %v1138, %v1142
      %v1147 = vsel %vm1145, %v1140, %v1144
      %v1148 = vsel %vm1145, %v1142, %v1138
      %v1149 = vsel %vm1145, %v1144, %v1140
      %v1150 = vmul.f32 %v1146, %v298
      %v1151 = vmul.f32 %v1148, %v299
      %v1152 = vmul.f32 %v1147, %v298
      %v1153 = vmul.f32 %v1149, %v299
      %s1154 = scalar_lea.vmem %s1, 128
      %v1155 = vld [vmem:[%s1154] sm:$0xff]
      %v1156 = vld [vmem:[%s1154 + $0x8] sm:$0xff]
      %v1158 = vsel %vm345, %v1155, 0
      %v1161 = vsel %vm345, %v1156, 0
      %1163 = vmatprep.subr.mxu0 %v1151
      %1164 = vmatpush1.msra.mxu0 %v1150
      %1165 = vmatprep.subr.mxu0 %v1153
      %1166 = vmatpush1.msra.mxu0 %v1152
      %1167 = vmatprep.subr.mxu0 0.0
      %1168 = vmatpush1.msra.mxu0 0.0
      %1169 = vmatprep.subr.mxu0 0.0
      %1170 = vmatpush1.msra.mxu0 0.0
      %1171 = vmatprep.subr.mxu0 0.0
      %1172 = vmatpush1.msra.mxu0 0.0
      %1173 = vmatprep.subr.mxu0 0.0
      %1174 = vmatpush1.msra.mxu0 0.0
      %1175 = vmatprep.subr.mxu0 0.0
      %1176 = vmatpush1.msra.mxu0 0.0
      %1177 = vmatprep.subr.mxu0 0.0
      %1178 = vmatpush1.msra.mxu0 0.0
      %1179 = vmatprep.subr.mxu0 0.0
      %1180 = vmatpush1.msra.mxu0 0.0
      %1181 = vmatprep.subr.mxu0 0.0
      %1182 = vmatpush1.msra.mxu0 0.0
      %1183 = vmatprep.subr.mxu0 0.0
      %1184 = vmatpush1.msra.mxu0 0.0
      %1185 = vmatprep.subr.mxu0 0.0
      %1186 = vmatpush1.msra.mxu0 0.0
      %1187 = vmatprep.subr.mxu0 0.0
      %1188 = vmatpush1.msra.mxu0 0.0
      %1189 = vmatprep.subr.mxu0 0.0
      %1190 = vmatpush1.msra.mxu0 0.0
      %1191 = vmatprep.subr.mxu0 0.0
      %1192 = vmatpush1.msra.mxu0 0.0
      %1193 = vmatprep.subr.mxu0 0.0
      %1194 = vmatpush1.msra.mxu0 0.0
      %1195 = vmatprep.subr.mxu0 0.0
      %1196 = vmatpush1.msra.mxu0 0.0
      %1197 = vmatprep.subr.mxu0 0.0
      %1198 = vmatpush1.msra.mxu0 0.0
      %1199 = vmatprep.subr.mxu0 0.0
      %1200 = vmatpush1.msra.mxu0 0.0
      %1201 = vmatprep.subr.mxu0 0.0
      %1202 = vmatpush1.msra.mxu0 0.0
      %1203 = vmatprep.subr.mxu0 0.0
      %1204 = vmatpush1.msra.mxu0 0.0
      %1205 = vmatprep.subr.mxu0 0.0
      %1206 = vmatpush1.msra.mxu0 0.0
      %1207 = vmatprep.subr.mxu0 0.0
      %1208 = vmatpush1.msra.mxu0 0.0
      %1209 = vmatprep.subr.mxu0 0.0
      %1210 = vmatpush1.msra.mxu0 0.0
      %1211 = vmatprep.subr.mxu0 0.0
      %1212 = vmatpush1.msra.mxu0 0.0
      %1213 = vmatprep.subr.mxu0 0.0
      %1214 = vmatpush1.msra.mxu0 0.0
      %1215 = vmatprep.subr.mxu0 0.0
      %1216 = vmatpush1.msra.mxu0 0.0
      %1217 = vmatprep.subr.mxu0 0.0
      %1218 = vmatpush1.msra.mxu0 0.0
      %1219 = vmatprep.subr.mxu0 0.0
      %1220 = vmatpush1.msra.mxu0 0.0
      %1221 = vmatprep.subr.mxu0 0.0
      %1222 = vmatpush1.msra.mxu0 0.0
      %1223 = vmatprep.subr.mxu0 0.0
      %1224 = vmatpush1.msra.mxu0 0.0
      %1225 = vmatprep.subr.mxu0 0.0
      %1226 = vmatpush1.msra.mxu0 0.0
      %1227 = vmatprep.mubr.f32.mxu0 0.0
      %1228 = vmatmul.mubr.f32.gmra.mrb[0].mxu0 %v1158
      %v1229 = vpop.f32.mrb[0].mxu0
      %v1230 = vadd.f32 0.0, %v1229
      %v1231 = vpop.f32.mrb[0].mxu0
      %v1232 = vadd.f32 0.0, %v1231
      %1233 = vmatprep.mubr.f32.mxu0 0.0
      %1234 = vmatmul.mubr.f32.gmra.mrb[0].mxu0 %v1161
      %v1235 = vpop.f32.mrb[0].mxu0
      %v1236 = vadd.f32 0.0, %v1235
      %v1237 = vpop.f32.mrb[0].mxu0
      %v1238 = vadd.f32 0.0, %v1237
      %1239 = vdwg.mxu0
      %v1240 = vadd.f32 %v1133, %v1230
      %v1241 = vadd.f32 %v1134, %v1232
      %v1242 = vadd.f32 %v1135, %v1236
      %v1243 = vadd.f32 %v1136, %v1238
      %1245 = vset.pattern.permute.xlu0 0
      %1246 = vperm.xlu0 %1245, %v304
      %v1247 = vpop.permute.xlu0 %1246
      %1250 = vset.pattern.permute.xlu0 0
      %1251 = vperm.xlu0 %1250, %v305
      %v1252 = vpop.permute.xlu0 %1251
      %v1254 = vadd.f32 %v1240, %v1247
      %v1255 = vadd.f32 %v1241, %v1247
      %v1256 = vadd.f32 %v1242, %v1252
      %v1257 = vadd.f32 %v1243, %v1252
      %v1258 = vsub.f32 0.0, %v1254
      %v1259 = vsub.f32 0.0, %v1255
      %v1260 = vsub.f32 0.0, %v1256
      %v1261 = vsub.f32 0.0, %v1257
      %v1262 = vmul.f32 %v1258, 1.442695
      %v1263 = vpow.pop %v1262
      %v1264 = vmul.f32 %v1259, 1.442695
      %v1265 = vpow.pop %v1264
      %v1266 = vmul.f32 %v1260, 1.442695
      %v1267 = vpow.pop %v1266
      %v1268 = vmul.f32 %v1261, 1.442695
      %v1269 = vpow.pop %v1268
      %v1270 = vadd.f32 %v1263, 1.0
      %v1271 = vadd.f32 %v1265, 1.0
      %v1272 = vadd.f32 %v1267, 1.0
      %v1273 = vadd.f32 %v1269, 1.0
      %v1274 = vrcp.pop %v1270
      %v1275 = vmul.f32 %v1254, %v1274
      %v1276 = vrcp.pop %v1271
      %v1277 = vmul.f32 %v1255, %v1276
      %v1278 = vrcp.pop %v1272
      %v1279 = vmul.f32 %v1256, %v1278
      %v1280 = vrcp.pop %v1273
      %v1281 = vmul.f32 %v1257, %v1280
      %v1282 = vld [vmem:[%s4] sm:$0xff]
      %v1283 = vld [vmem:[%s4 + $0x8] sm:$0xff]
      %1284 = vrot.lane.b32.xlu0 %v1275, 17
      %v1285 = vpop.permute.xlu0 %1284
      %1286 = vrot.lane.b32.xlu0 %v1279, 17
      %v1287 = vpop.permute.xlu0 %1286
      %1288 = vrot.lane.b32.xlu0 %v1277, 17
      %v1289 = vpop.permute.xlu0 %1288
      %1290 = vrot.lane.b32.xlu0 %v1281, 17
      %v1291 = vpop.permute.xlu0 %1290
      %v1292 = vsel %vm314, %v1285, %v1289
      %v1293 = vsel %vm314, %v1287, %v1291
      %v1294 = vsel %vm314, %v1289, %v1285
      %v1295 = vsel %vm314, %v1291, %v1287
      %v1296 = vmul.f32 %v1294, %v260
      %v1297 = vmul.f32 %v1292, %v261
      %v1298 = vmul.f32 %v1295, %v260
      %v1299 = vmul.f32 %v1293, %v261
      %v1300 = vld [vmem:[%s3] sm:$0xff]
      %v1301 = vld [vmem:[%s3 + $0x8] sm:$0xff]
      %1302 = vrot.lane.b32.xlu0 %v1275, 16
      %v1303 = vpop.permute.xlu0 %1302
      %1304 = vrot.lane.b32.xlu0 %v1279, 16
      %v1305 = vpop.permute.xlu0 %1304
      %1306 = vrot.lane.b32.xlu0 %v1277, 16
      %v1307 = vpop.permute.xlu0 %1306
      %1308 = vrot.lane.b32.xlu0 %v1281, 16
      %v1309 = vpop.permute.xlu0 %1308
      %v1310 = vsel %vm333, %v1303, %v1307
      %v1311 = vsel %vm333, %v1305, %v1309
      %v1312 = vsel %vm333, %v1307, %v1303
      %v1313 = vsel %vm333, %v1309, %v1305
      %v1314 = vmul.f32 %v1312, %v264
      %v1315 = vmul.f32 %v1310, %v265
      %v1316 = vmul.f32 %v1313, %v264
      %v1317 = vmul.f32 %v1311, %v265
      %s1318 = scalar_lea.vmem %s3, 16
      %v1319 = vld [vmem:[%s1318] sm:$0xff]
      %v1320 = vld [vmem:[%s1318 + $0x8] sm:$0xff]
      %v1322 = vsel %vm345, %v1319, 0
      %v1325 = vsel %vm345, %v1320, 0
      %1327 = vmatprep.subr.mxu0 %v1315
      %1328 = vmatpush1.msra.mxu0 %v1314
      %1329 = vmatprep.subr.mxu0 %v1317
      %1330 = vmatpush1.msra.mxu0 %v1316
      %1331 = vmatprep.subr.mxu0 0.0
      %1332 = vmatpush1.msra.mxu0 0.0
      %1333 = vmatprep.subr.mxu0 0.0
      %1334 = vmatpush1.msra.mxu0 0.0
      %1335 = vmatprep.subr.mxu0 0.0
      %1336 = vmatpush1.msra.mxu0 0.0
      %1337 = vmatprep.subr.mxu0 0.0
      %1338 = vmatpush1.msra.mxu0 0.0
      %1339 = vmatprep.subr.mxu0 0.0
      %1340 = vmatpush1.msra.mxu0 0.0
      %1341 = vmatprep.subr.mxu0 0.0
      %1342 = vmatpush1.msra.mxu0 0.0
      %1343 = vmatprep.subr.mxu0 0.0
      %1344 = vmatpush1.msra.mxu0 0.0
      %1345 = vmatprep.subr.mxu0 0.0
      %1346 = vmatpush1.msra.mxu0 0.0
      %1347 = vmatprep.subr.mxu0 0.0
      %1348 = vmatpush1.msra.mxu0 0.0
      %1349 = vmatprep.subr.mxu0 0.0
      %1350 = vmatpush1.msra.mxu0 0.0
      %1351 = vmatprep.subr.mxu0 0.0
      %1352 = vmatpush1.msra.mxu0 0.0
      %1353 = vmatprep.subr.mxu0 0.0
      %1354 = vmatpush1.msra.mxu0 0.0
      %1355 = vmatprep.subr.mxu0 0.0
      %1356 = vmatpush1.msra.mxu0 0.0
      %1357 = vmatprep.subr.mxu0 0.0
      %1358 = vmatpush1.msra.mxu0 0.0
      %1359 = vmatprep.subr.mxu0 0.0
      %1360 = vmatpush1.msra.mxu0 0.0
      %1361 = vmatprep.subr.mxu0 0.0
      %1362 = vmatpush1.msra.mxu0 0.0
      %1363 = vmatprep.subr.mxu0 0.0
      %1364 = vmatpush1.msra.mxu0 0.0
      %1365 = vmatprep.subr.mxu0 0.0
      %1366 = vmatpush1.msra.mxu0 0.0
      %1367 = vmatprep.subr.mxu0 0.0
      %1368 = vmatpush1.msra.mxu0 0.0
      %1369 = vmatprep.subr.mxu0 0.0
      %1370 = vmatpush1.msra.mxu0 0.0
      %1371 = vmatprep.subr.mxu0 0.0
      %1372 = vmatpush1.msra.mxu0 0.0
      %1373 = vmatprep.subr.mxu0 0.0
      %1374 = vmatpush1.msra.mxu0 0.0
      %1375 = vmatprep.subr.mxu0 0.0
      %1376 = vmatpush1.msra.mxu0 0.0
      %1377 = vmatprep.subr.mxu0 0.0
      %1378 = vmatpush1.msra.mxu0 0.0
      %1379 = vmatprep.subr.mxu0 0.0
      %1380 = vmatpush1.msra.mxu0 0.0
      %1381 = vmatprep.subr.mxu0 0.0
      %1382 = vmatpush1.msra.mxu0 0.0
      %1383 = vmatprep.subr.mxu0 0.0
      %1384 = vmatpush1.msra.mxu0 0.0
      %1385 = vmatprep.subr.mxu0 0.0
      %1386 = vmatpush1.msra.mxu0 0.0
      %1387 = vmatprep.subr.mxu0 0.0
      %1388 = vmatpush1.msra.mxu0 0.0
      %1389 = vmatprep.subr.mxu0 0.0
      %1390 = vmatpush1.msra.mxu0 0.0
      %1391 = vmatprep.mubr.f32.mxu0 0.0
      %1392 = vmatmul.mubr.f32.gmra.mrb[0].mxu0 %v1322
      %v1393 = vpop.f32.mrb[0].mxu0
      %v1394 = vadd.f32 0.0, %v1393
      %v1395 = vpop.f32.mrb[0].mxu0
      %v1396 = vadd.f32 0.0, %v1395
      %1397 = vmatprep.mubr.f32.mxu0 0.0
      %1398 = vmatmul.mubr.f32.gmra.mrb[0].mxu0 %v1325
      %v1399 = vpop.f32.mrb[0].mxu0
      %v1400 = vadd.f32 0.0, %v1399
      %v1401 = vpop.f32.mrb[0].mxu0
      %v1402 = vadd.f32 0.0, %v1401
      %1403 = vdwg.mxu0
      %v1405 = vsel %vm345, %v1300, 0
      %v1408 = vsel %vm345, %v1301, 0
      %1410 = vmatprep.subr.mxu0 %v1297
      %1411 = vmatpush1.msra.mxu0 %v1296
      %1412 = vmatprep.subr.mxu0 %v1299
      %1413 = vmatpush1.msra.mxu0 %v1298
      %1414 = vmatprep.subr.mxu0 0.0
      %1415 = vmatpush1.msra.mxu0 0.0
      %1416 = vmatprep.subr.mxu0 0.0
      %1417 = vmatpush1.msra.mxu0 0.0
      %1418 = vmatprep.subr.mxu0 0.0
      %1419 = vmatpush1.msra.mxu0 0.0
      %1420 = vmatprep.subr.mxu0 0.0
      %1421 = vmatpush1.msra.mxu0 0.0
      %1422 = vmatprep.subr.mxu0 0.0
      %1423 = vmatpush1.msra.mxu0 0.0
      %1424 = vmatprep.subr.mxu0 0.0
      %1425 = vmatpush1.msra.mxu0 0.0
      %1426 = vmatprep.subr.mxu0 0.0
      %1427 = vmatpush1.msra.mxu0 0.0
      %1428 = vmatprep.subr.mxu0 0.0
      %1429 = vmatpush1.msra.mxu0 0.0
      %1430 = vmatprep.subr.mxu0 0.0
      %1431 = vmatpush1.msra.mxu0 0.0
      %1432 = vmatprep.subr.mxu0 0.0
      %1433 = vmatpush1.msra.mxu0 0.0
      %1434 = vmatprep.subr.mxu0 0.0
      %1435 = vmatpush1.msra.mxu0 0.0
      %1436 = vmatprep.subr.mxu0 0.0
      %1437 = vmatpush1.msra.mxu0 0.0
      %1438 = vmatprep.subr.mxu0 0.0
      %1439 = vmatpush1.msra.mxu0 0.0
      %1440 = vmatprep.subr.mxu0 0.0
      %1441 = vmatpush1.msra.mxu0 0.0
      %1442 = vmatprep.subr.mxu0 0.0
      %1443 = vmatpush1.msra.mxu0 0.0
      %1444 = vmatprep.subr.mxu0 0.0
      %1445 = vmatpush1.msra.mxu0 0.0
      %1446 = vmatprep.subr.mxu0 0.0
      %1447 = vmatpush1.msra.mxu0 0.0
      %1448 = vmatprep.subr.mxu0 0.0
      %1449 = vmatpush1.msra.mxu0 0.0
      %1450 = vmatprep.subr.mxu0 0.0
      %1451 = vmatpush1.msra.mxu0 0.0
      %1452 = vmatprep.subr.mxu0 0.0
      %1453 = vmatpush1.msra.mxu0 0.0
      %1454 = vmatprep.subr.mxu0 0.0
      %1455 = vmatpush1.msra.mxu0 0.0
      %1456 = vmatprep.subr.mxu0 0.0
      %1457 = vmatpush1.msra.mxu0 0.0
      %1458 = vmatprep.subr.mxu0 0.0
      %1459 = vmatpush1.msra.mxu0 0.0
      %1460 = vmatprep.subr.mxu0 0.0
      %1461 = vmatpush1.msra.mxu0 0.0
      %1462 = vmatprep.subr.mxu0 0.0
      %1463 = vmatpush1.msra.mxu0 0.0
      %1464 = vmatprep.subr.mxu0 0.0
      %1465 = vmatpush1.msra.mxu0 0.0
      %1466 = vmatprep.subr.mxu0 0.0
      %1467 = vmatpush1.msra.mxu0 0.0
      %1468 = vmatprep.subr.mxu0 0.0
      %1469 = vmatpush1.msra.mxu0 0.0
      %1470 = vmatprep.subr.mxu0 0.0
      %1471 = vmatpush1.msra.mxu0 0.0
      %1472 = vmatprep.subr.mxu0 0.0
      %1473 = vmatpush1.msra.mxu0 0.0
      %1474 = vmatprep.mubr.f32.mxu0 0.0
      %1475 = vmatmul.mubr.f32.gmra.mrb[0].mxu0 %v1405
      %v1476 = vpop.f32.mrb[0].mxu0
      %v1477 = vadd.f32 %v1394, %v1476
      %v1478 = vpop.f32.mrb[0].mxu0
      %v1479 = vadd.f32 %v1396, %v1478
      %1480 = vmatprep.mubr.f32.mxu0 0.0
      %1481 = vmatmul.mubr.f32.gmra.mrb[0].mxu0 %v1408
      %v1482 = vpop.f32.mrb[0].mxu0
      %v1483 = vadd.f32 %v1400, %v1482
      %v1484 = vpop.f32.mrb[0].mxu0
      %v1485 = vadd.f32 %v1402, %v1484
      %1486 = vdwg.mxu0
      %1487 = vrot.lane.b32.xlu0 %v1275, 15
      %v1488 = vpop.permute.xlu0 %1487
      %1489 = vrot.lane.b32.xlu0 %v1279, 15
      %v1490 = vpop.permute.xlu0 %1489
      %1491 = vrot.lane.b32.xlu0 %v1277, 15
      %v1492 = vpop.permute.xlu0 %1491
      %1493 = vrot.lane.b32.xlu0 %v1281, 15
      %v1494 = vpop.permute.xlu0 %1493
      %v1495 = vsel %vm520, %v1488, %v1492
      %v1496 = vsel %vm520, %v1490, %v1494
      %v1497 = vsel %vm520, %v1492, %v1488
      %v1498 = vsel %vm520, %v1494, %v1490
      %v1499 = vmul.f32 %v1497, %v272
      %v1500 = vmul.f32 %v1495, %v273
      %v1501 = vmul.f32 %v1498, %v272
      %v1502 = vmul.f32 %v1496, %v273
      %s1503 = scalar_lea.vmem %s3, 32
      %v1504 = vld [vmem:[%s1503] sm:$0xff]
      %v1505 = vld [vmem:[%s1503 + $0x8] sm:$0xff]
      %v1507 = vsel %vm345, %v1504, 0
      %v1510 = vsel %vm345, %v1505, 0
      %1512 = vmatprep.subr.mxu0 %v1500
      %1513 = vmatpush1.msra.mxu0 %v1499
      %1514 = vmatprep.subr.mxu0 %v1502
      %1515 = vmatpush1.msra.mxu0 %v1501
      %1516 = vmatprep.subr.mxu0 0.0
      %1517 = vmatpush1.msra.mxu0 0.0
      %1518 = vmatprep.subr.mxu0 0.0
      %1519 = vmatpush1.msra.mxu0 0.0
      %1520 = vmatprep.subr.mxu0 0.0
      %1521 = vmatpush1.msra.mxu0 0.0
      %1522 = vmatprep.subr.mxu0 0.0
      %1523 = vmatpush1.msra.mxu0 0.0
      %1524 = vmatprep.subr.mxu0 0.0
      %1525 = vmatpush1.msra.mxu0 0.0
      %1526 = vmatprep.subr.mxu0 0.0
      %1527 = vmatpush1.msra.mxu0 0.0
      %1528 = vmatprep.subr.mxu0 0.0
      %1529 = vmatpush1.msra.mxu0 0.0
      %1530 = vmatprep.subr.mxu0 0.0
      %1531 = vmatpush1.msra.mxu0 0.0
      %1532 = vmatprep.subr.mxu0 0.0
      %1533 = vmatpush1.msra.mxu0 0.0
      %1534 = vmatprep.subr.mxu0 0.0
      %1535 = vmatpush1.msra.mxu0 0.0
      %1536 = vmatprep.subr.mxu0 0.0
      %1537 = vmatpush1.msra.mxu0 0.0
      %1538 = vmatprep.subr.mxu0 0.0
      %1539 = vmatpush1.msra.mxu0 0.0
      %1540 = vmatprep.subr.mxu0 0.0
      %1541 = vmatpush1.msra.mxu0 0.0
      %1542 = vmatprep.subr.mxu0 0.0
      %1543 = vmatpush1.msra.mxu0 0.0
      %1544 = vmatprep.subr.mxu0 0.0
      %1545 = vmatpush1.msra.mxu0 0.0
      %1546 = vmatprep.subr.mxu0 0.0
      %1547 = vmatpush1.msra.mxu0 0.0
      %1548 = vmatprep.subr.mxu0 0.0
      %1549 = vmatpush1.msra.mxu0 0.0
      %1550 = vmatprep.subr.mxu0 0.0
      %1551 = vmatpush1.msra.mxu0 0.0
      %1552 = vmatprep.subr.mxu0 0.0
      %1553 = vmatpush1.msra.mxu0 0.0
      %1554 = vmatprep.subr.mxu0 0.0
      %1555 = vmatpush1.msra.mxu0 0.0
      %1556 = vmatprep.subr.mxu0 0.0
      %1557 = vmatpush1.msra.mxu0 0.0
      %1558 = vmatprep.subr.mxu0 0.0
      %1559 = vmatpush1.msra.mxu0 0.0
      %1560 = vmatprep.subr.mxu0 0.0
      %1561 = vmatpush1.msra.mxu0 0.0
      %1562 = vmatprep.subr.mxu0 0.0
      %1563 = vmatpush1.msra.mxu0 0.0
      %1564 = vmatprep.subr.mxu0 0.0
      %1565 = vmatpush1.msra.mxu0 0.0
      %1566 = vmatprep.subr.mxu0 0.0
      %1567 = vmatpush1.msra.mxu0 0.0
      %1568 = vmatprep.subr.mxu0 0.0
      %1569 = vmatpush1.msra.mxu0 0.0
      %1570 = vmatprep.subr.mxu0 0.0
      %1571 = vmatpush1.msra.mxu0 0.0
      %1572 = vmatprep.subr.mxu0 0.0
      %1573 = vmatpush1.msra.mxu0 0.0
      %1574 = vmatprep.subr.mxu0 0.0
      %1575 = vmatpush1.msra.mxu0 0.0
      %1576 = vmatprep.mubr.f32.mxu0 0.0
      %1577 = vmatmul.mubr.f32.gmra.mrb[0].mxu0 %v1507
      %v1578 = vpop.f32.mrb[0].mxu0
      %v1579 = vadd.f32 0.0, %v1578
      %v1580 = vpop.f32.mrb[0].mxu0
      %v1581 = vadd.f32 0.0, %v1580
      %1582 = vmatprep.mubr.f32.mxu0 0.0
      %1583 = vmatmul.mubr.f32.gmra.mrb[0].mxu0 %v1510
      %v1584 = vpop.f32.mrb[0].mxu0
      %v1585 = vadd.f32 0.0, %v1584
      %v1586 = vpop.f32.mrb[0].mxu0
      %v1587 = vadd.f32 0.0, %v1586
      %1588 = vdwg.mxu0
      %v1589 = vadd.f32 %v1477, %v1579
      %v1590 = vadd.f32 %v1479, %v1581
      %v1591 = vadd.f32 %v1483, %v1585
      %v1592 = vadd.f32 %v1485, %v1587
      %1593 = vrot.lane.b32.xlu0 %v1275, 1
      %v1594 = vpop.permute.xlu0 %1593
      %1595 = vrot.lane.b32.xlu0 %v1279, 1
      %v1596 = vpop.permute.xlu0 %1595
      %1597 = vrot.lane.b32.xlu0 %v1277, 1
      %v1598 = vpop.permute.xlu0 %1597
      %1599 = vrot.lane.b32.xlu0 %v1281, 1
      %v1600 = vpop.permute.xlu0 %1599
      %v1601 = vsel %vm627, %v1594, %v1598
      %v1602 = vsel %vm627, %v1596, %v1600
      %v1603 = vsel %vm627, %v1598, %v1594
      %v1604 = vsel %vm627, %v1600, %v1596
      %v1605 = vmul.f32 %v1603, %v276
      %v1606 = vmul.f32 %v1601, %v277
      %v1607 = vmul.f32 %v1604, %v276
      %v1608 = vmul.f32 %v1602, %v277
      %s1609 = scalar_lea.vmem %s3, 48
      %v1610 = vld [vmem:[%s1609] sm:$0xff]
      %v1611 = vld [vmem:[%s1609 + $0x8] sm:$0xff]
      %v1613 = vsel %vm345, %v1610, 0
      %v1616 = vsel %vm345, %v1611, 0
      %1618 = vmatprep.subr.mxu0 %v1606
      %1619 = vmatpush1.msra.mxu0 %v1605
      %1620 = vmatprep.subr.mxu0 %v1608
      %1621 = vmatpush1.msra.mxu0 %v1607
      %1622 = vmatprep.subr.mxu0 0.0
      %1623 = vmatpush1.msra.mxu0 0.0
      %1624 = vmatprep.subr.mxu0 0.0
      %1625 = vmatpush1.msra.mxu0 0.0
      %1626 = vmatprep.subr.mxu0 0.0
      %1627 = vmatpush1.msra.mxu0 0.0
      %1628 = vmatprep.subr.mxu0 0.0
      %1629 = vmatpush1.msra.mxu0 0.0
      %1630 = vmatprep.subr.mxu0 0.0
      %1631 = vmatpush1.msra.mxu0 0.0
      %1632 = vmatprep.subr.mxu0 0.0
      %1633 = vmatpush1.msra.mxu0 0.0
      %1634 = vmatprep.subr.mxu0 0.0
      %1635 = vmatpush1.msra.mxu0 0.0
      %1636 = vmatprep.subr.mxu0 0.0
      %1637 = vmatpush1.msra.mxu0 0.0
      %1638 = vmatprep.subr.mxu0 0.0
      %1639 = vmatpush1.msra.mxu0 0.0
      %1640 = vmatprep.subr.mxu0 0.0
      %1641 = vmatpush1.msra.mxu0 0.0
      %1642 = vmatprep.subr.mxu0 0.0
      %1643 = vmatpush1.msra.mxu0 0.0
      %1644 = vmatprep.subr.mxu0 0.0
      %1645 = vmatpush1.msra.mxu0 0.0
      %1646 = vmatprep.subr.mxu0 0.0
      %1647 = vmatpush1.msra.mxu0 0.0
      %1648 = vmatprep.subr.mxu0 0.0
      %1649 = vmatpush1.msra.mxu0 0.0
      %1650 = vmatprep.subr.mxu0 0.0
      %1651 = vmatpush1.msra.mxu0 0.0
      %1652 = vmatprep.subr.mxu0 0.0
      %1653 = vmatpush1.msra.mxu0 0.0
      %1654 = vmatprep.subr.mxu0 0.0
      %1655 = vmatpush1.msra.mxu0 0.0
      %1656 = vmatprep.subr.mxu0 0.0
      %1657 = vmatpush1.msra.mxu0 0.0
      %1658 = vmatprep.subr.mxu0 0.0
      %1659 = vmatpush1.msra.mxu0 0.0
      %1660 = vmatprep.subr.mxu0 0.0
      %1661 = vmatpush1.msra.mxu0 0.0
      %1662 = vmatprep.subr.mxu0 0.0
      %1663 = vmatpush1.msra.mxu0 0.0
      %1664 = vmatprep.subr.mxu0 0.0
      %1665 = vmatpush1.msra.mxu0 0.0
      %1666 = vmatprep.subr.mxu0 0.0
      %1667 = vmatpush1.msra.mxu0 0.0
      %1668 = vmatprep.subr.mxu0 0.0
      %1669 = vmatpush1.msra.mxu0 0.0
      %1670 = vmatprep.subr.mxu0 0.0
      %1671 = vmatpush1.msra.mxu0 0.0
      %1672 = vmatprep.subr.mxu0 0.0
      %1673 = vmatpush1.msra.mxu0 0.0
      %1674 = vmatprep.subr.mxu0 0.0
      %1675 = vmatpush1.msra.mxu0 0.0
      %1676 = vmatprep.subr.mxu0 0.0
      %1677 = vmatpush1.msra.mxu0 0.0
      %1678 = vmatprep.subr.mxu0 0.0
      %1679 = vmatpush1.msra.mxu0 0.0
      %1680 = vmatprep.subr.mxu0 0.0
      %1681 = vmatpush1.msra.mxu0 0.0
      %1682 = vmatprep.mubr.f32.mxu0 0.0
      %1683 = vmatmul.mubr.f32.gmra.mrb[0].mxu0 %v1613
      %v1684 = vpop.f32.mrb[0].mxu0
      %v1685 = vadd.f32 0.0, %v1684
      %v1686 = vpop.f32.mrb[0].mxu0
      %v1687 = vadd.f32 0.0, %v1686
      %1688 = vmatprep.mubr.f32.mxu0 0.0
      %1689 = vmatmul.mubr.f32.gmra.mrb[0].mxu0 %v1616
      %v1690 = vpop.f32.mrb[0].mxu0
      %v1691 = vadd.f32 0.0, %v1690
      %v1692 = vpop.f32.mrb[0].mxu0
      %v1693 = vadd.f32 0.0, %v1692
      %1694 = vdwg.mxu0
      %v1695 = vadd.f32 %v1589, %v1685
      %v1696 = vadd.f32 %v1590, %v1687
      %v1697 = vadd.f32 %v1591, %v1691
      %v1698 = vadd.f32 %v1592, %v1693
      %s1699 = scalar_lea.vmem %s3, 64
      %v1700 = vld [vmem:[%s1699] sm:$0xff]
      %v1701 = vld [vmem:[%s1699 + $0x8] sm:$0xff]
      %v1703 = vsel %vm345, %v1700, 0
      %v1706 = vsel %vm345, %v1701, 0
      %1708 = vmatprep.subr.mxu0 %v1277
      %1709 = vmatpush1.msra.mxu0 %v1275
      %1710 = vmatprep.subr.mxu0 %v1281
      %1711 = vmatpush1.msra.mxu0 %v1279
      %1712 = vmatprep.subr.mxu0 0.0
      %1713 = vmatpush1.msra.mxu0 0.0
      %1714 = vmatprep.subr.mxu0 0.0
      %1715 = vmatpush1.msra.mxu0 0.0
      %1716 = vmatprep.subr.mxu0 0.0
      %1717 = vmatpush1.msra.mxu0 0.0
      %1718 = vmatprep.subr.mxu0 0.0
      %1719 = vmatpush1.msra.mxu0 0.0
      %1720 = vmatprep.subr.mxu0 0.0
      %1721 = vmatpush1.msra.mxu0 0.0
      %1722 = vmatprep.subr.mxu0 0.0
      %1723 = vmatpush1.msra.mxu0 0.0
      %1724 = vmatprep.subr.mxu0 0.0
      %1725 = vmatpush1.msra.mxu0 0.0
      %1726 = vmatprep.subr.mxu0 0.0
      %1727 = vmatpush1.msra.mxu0 0.0
      %1728 = vmatprep.subr.mxu0 0.0
      %1729 = vmatpush1.msra.mxu0 0.0
      %1730 = vmatprep.subr.mxu0 0.0
      %1731 = vmatpush1.msra.mxu0 0.0
      %1732 = vmatprep.subr.mxu0 0.0
      %1733 = vmatpush1.msra.mxu0 0.0
      %1734 = vmatprep.subr.mxu0 0.0
      %1735 = vmatpush1.msra.mxu0 0.0
      %1736 = vmatprep.subr.mxu0 0.0
      %1737 = vmatpush1.msra.mxu0 0.0
      %1738 = vmatprep.subr.mxu0 0.0
      %1739 = vmatpush1.msra.mxu0 0.0
      %1740 = vmatprep.subr.mxu0 0.0
      %1741 = vmatpush1.msra.mxu0 0.0
      %1742 = vmatprep.subr.mxu0 0.0
      %1743 = vmatpush1.msra.mxu0 0.0
      %1744 = vmatprep.subr.mxu0 0.0
      %1745 = vmatpush1.msra.mxu0 0.0
      %1746 = vmatprep.subr.mxu0 0.0
      %1747 = vmatpush1.msra.mxu0 0.0
      %1748 = vmatprep.subr.mxu0 0.0
      %1749 = vmatpush1.msra.mxu0 0.0
      %1750 = vmatprep.subr.mxu0 0.0
      %1751 = vmatpush1.msra.mxu0 0.0
      %1752 = vmatprep.subr.mxu0 0.0
      %1753 = vmatpush1.msra.mxu0 0.0
      %1754 = vmatprep.subr.mxu0 0.0
      %1755 = vmatpush1.msra.mxu0 0.0
      %1756 = vmatprep.subr.mxu0 0.0
      %1757 = vmatpush1.msra.mxu0 0.0
      %1758 = vmatprep.subr.mxu0 0.0
      %1759 = vmatpush1.msra.mxu0 0.0
      %1760 = vmatprep.subr.mxu0 0.0
      %1761 = vmatpush1.msra.mxu0 0.0
      %1762 = vmatprep.subr.mxu0 0.0
      %1763 = vmatpush1.msra.mxu0 0.0
      %1764 = vmatprep.subr.mxu0 0.0
      %1765 = vmatpush1.msra.mxu0 0.0
      %1766 = vmatprep.subr.mxu0 0.0
      %1767 = vmatpush1.msra.mxu0 0.0
      %1768 = vmatprep.subr.mxu0 0.0
      %1769 = vmatpush1.msra.mxu0 0.0
      %1770 = vmatprep.subr.mxu0 0.0
      %1771 = vmatpush1.msra.mxu0 0.0
      %1772 = vmatprep.mubr.f32.mxu0 0.0
      %1773 = vmatmul.mubr.f32.gmra.mrb[0].mxu0 %v1703
      %v1774 = vpop.f32.mrb[0].mxu0
      %v1775 = vadd.f32 0.0, %v1774
      %v1776 = vpop.f32.mrb[0].mxu0
      %v1777 = vadd.f32 0.0, %v1776
      %1778 = vmatprep.mubr.f32.mxu0 0.0
      %1779 = vmatmul.mubr.f32.gmra.mrb[0].mxu0 %v1706
      %v1780 = vpop.f32.mrb[0].mxu0
      %v1781 = vadd.f32 0.0, %v1780
      %v1782 = vpop.f32.mrb[0].mxu0
      %v1783 = vadd.f32 0.0, %v1782
      %1784 = vdwg.mxu0
      %v1785 = vadd.f32 %v1695, %v1775
      %v1786 = vadd.f32 %v1696, %v1777
      %v1787 = vadd.f32 %v1697, %v1781
      %v1788 = vadd.f32 %v1698, %v1783
      %1789 = vrot.lane.b32.xlu0 %v1275, 127
      %v1790 = vpop.permute.xlu0 %1789
      %1791 = vrot.lane.b32.xlu0 %v1279, 127
      %v1792 = vpop.permute.xlu0 %1791
      %1793 = vrot.lane.b32.xlu0 %v1277, 127
      %v1794 = vpop.permute.xlu0 %1793
      %1795 = vrot.lane.b32.xlu0 %v1281, 127
      %v1796 = vpop.permute.xlu0 %1795
      %v1797 = vsel %vm824, %v1790, %v1794
      %v1798 = vsel %vm824, %v1792, %v1796
      %v1799 = vsel %vm824, %v1794, %v1790
      %v1800 = vsel %vm824, %v1796, %v1792
      %v1801 = vmul.f32 %v1797, %v280
      %v1802 = vmul.f32 %v1799, %v281
      %v1803 = vmul.f32 %v1798, %v280
      %v1804 = vmul.f32 %v1800, %v281
      %s1805 = scalar_lea.vmem %s3, 80
      %v1806 = vld [vmem:[%s1805] sm:$0xff]
      %v1807 = vld [vmem:[%s1805 + $0x8] sm:$0xff]
      %v1809 = vsel %vm345, %v1806, 0
      %v1812 = vsel %vm345, %v1807, 0
      %1814 = vmatprep.subr.mxu0 %v1802
      %1815 = vmatpush1.msra.mxu0 %v1801
      %1816 = vmatprep.subr.mxu0 %v1804
      %1817 = vmatpush1.msra.mxu0 %v1803
      %1818 = vmatprep.subr.mxu0 0.0
      %1819 = vmatpush1.msra.mxu0 0.0
      %1820 = vmatprep.subr.mxu0 0.0
      %1821 = vmatpush1.msra.mxu0 0.0
      %1822 = vmatprep.subr.mxu0 0.0
      %1823 = vmatpush1.msra.mxu0 0.0
      %1824 = vmatprep.subr.mxu0 0.0
      %1825 = vmatpush1.msra.mxu0 0.0
      %1826 = vmatprep.subr.mxu0 0.0
      %1827 = vmatpush1.msra.mxu0 0.0
      %1828 = vmatprep.subr.mxu0 0.0
      %1829 = vmatpush1.msra.mxu0 0.0
      %1830 = vmatprep.subr.mxu0 0.0
      %1831 = vmatpush1.msra.mxu0 0.0
      %1832 = vmatprep.subr.mxu0 0.0
      %1833 = vmatpush1.msra.mxu0 0.0
      %1834 = vmatprep.subr.mxu0 0.0
      %1835 = vmatpush1.msra.mxu0 0.0
      %1836 = vmatprep.subr.mxu0 0.0
      %1837 = vmatpush1.msra.mxu0 0.0
      %1838 = vmatprep.subr.mxu0 0.0
      %1839 = vmatpush1.msra.mxu0 0.0
      %1840 = vmatprep.subr.mxu0 0.0
      %1841 = vmatpush1.msra.mxu0 0.0
      %1842 = vmatprep.subr.mxu0 0.0
      %1843 = vmatpush1.msra.mxu0 0.0
      %1844 = vmatprep.subr.mxu0 0.0
      %1845 = vmatpush1.msra.mxu0 0.0
      %1846 = vmatprep.subr.mxu0 0.0
      %1847 = vmatpush1.msra.mxu0 0.0
      %1848 = vmatprep.subr.mxu0 0.0
      %1849 = vmatpush1.msra.mxu0 0.0
      %1850 = vmatprep.subr.mxu0 0.0
      %1851 = vmatpush1.msra.mxu0 0.0
      %1852 = vmatprep.subr.mxu0 0.0
      %1853 = vmatpush1.msra.mxu0 0.0
      %1854 = vmatprep.subr.mxu0 0.0
      %1855 = vmatpush1.msra.mxu0 0.0
      %1856 = vmatprep.subr.mxu0 0.0
      %1857 = vmatpush1.msra.mxu0 0.0
      %1858 = vmatprep.subr.mxu0 0.0
      %1859 = vmatpush1.msra.mxu0 0.0
      %1860 = vmatprep.subr.mxu0 0.0
      %1861 = vmatpush1.msra.mxu0 0.0
      %1862 = vmatprep.subr.mxu0 0.0
      %1863 = vmatpush1.msra.mxu0 0.0
      %1864 = vmatprep.subr.mxu0 0.0
      %1865 = vmatpush1.msra.mxu0 0.0
      %1866 = vmatprep.subr.mxu0 0.0
      %1867 = vmatpush1.msra.mxu0 0.0
      %1868 = vmatprep.subr.mxu0 0.0
      %1869 = vmatpush1.msra.mxu0 0.0
      %1870 = vmatprep.subr.mxu0 0.0
      %1871 = vmatpush1.msra.mxu0 0.0
      %1872 = vmatprep.subr.mxu0 0.0
      %1873 = vmatpush1.msra.mxu0 0.0
      %1874 = vmatprep.subr.mxu0 0.0
      %1875 = vmatpush1.msra.mxu0 0.0
      %1876 = vmatprep.subr.mxu0 0.0
      %1877 = vmatpush1.msra.mxu0 0.0
      %1878 = vmatprep.mubr.f32.mxu0 0.0
      %1879 = vmatmul.mubr.f32.gmra.mrb[0].mxu0 %v1809
      %v1880 = vpop.f32.mrb[0].mxu0
      %v1881 = vadd.f32 0.0, %v1880
      %v1882 = vpop.f32.mrb[0].mxu0
      %v1883 = vadd.f32 0.0, %v1882
      %1884 = vmatprep.mubr.f32.mxu0 0.0
      %1885 = vmatmul.mubr.f32.gmra.mrb[0].mxu0 %v1812
      %v1886 = vpop.f32.mrb[0].mxu0
      %v1887 = vadd.f32 0.0, %v1886
      %v1888 = vpop.f32.mrb[0].mxu0
      %v1889 = vadd.f32 0.0, %v1888
      %1890 = vdwg.mxu0
      %v1891 = vadd.f32 %v1785, %v1881
      %v1892 = vadd.f32 %v1786, %v1883
      %v1893 = vadd.f32 %v1787, %v1887
      %v1894 = vadd.f32 %v1788, %v1889
      %1895 = vrot.lane.b32.xlu0 %v1275, 113
      %v1896 = vpop.permute.xlu0 %1895
      %1897 = vrot.lane.b32.xlu0 %v1279, 113
      %v1898 = vpop.permute.xlu0 %1897
      %1899 = vrot.lane.b32.xlu0 %v1277, 113
      %v1900 = vpop.permute.xlu0 %1899
      %1901 = vrot.lane.b32.xlu0 %v1281, 113
      %v1902 = vpop.permute.xlu0 %1901
      %v1903 = vsel %vm931, %v1896, %v1900
      %v1904 = vsel %vm931, %v1898, %v1902
      %v1905 = vsel %vm931, %v1900, %v1896
      %v1906 = vsel %vm931, %v1902, %v1898
      %v1907 = vmul.f32 %v1903, %v288
      %v1908 = vmul.f32 %v1905, %v289
      %v1909 = vmul.f32 %v1904, %v288
      %v1910 = vmul.f32 %v1906, %v289
      %s1911 = scalar_lea.vmem %s3, 96
      %v1912 = vld [vmem:[%s1911] sm:$0xff]
      %v1913 = vld [vmem:[%s1911 + $0x8] sm:$0xff]
      %v1915 = vsel %vm345, %v1912, 0
      %v1918 = vsel %vm345, %v1913, 0
      %1920 = vmatprep.subr.mxu0 %v1908
      %1921 = vmatpush1.msra.mxu0 %v1907
      %1922 = vmatprep.subr.mxu0 %v1910
      %1923 = vmatpush1.msra.mxu0 %v1909
      %1924 = vmatprep.subr.mxu0 0.0
      %1925 = vmatpush1.msra.mxu0 0.0
      %1926 = vmatprep.subr.mxu0 0.0
      %1927 = vmatpush1.msra.mxu0 0.0
      %1928 = vmatprep.subr.mxu0 0.0
      %1929 = vmatpush1.msra.mxu0 0.0
      %1930 = vmatprep.subr.mxu0 0.0
      %1931 = vmatpush1.msra.mxu0 0.0
      %1932 = vmatprep.subr.mxu0 0.0
      %1933 = vmatpush1.msra.mxu0 0.0
      %1934 = vmatprep.subr.mxu0 0.0
      %1935 = vmatpush1.msra.mxu0 0.0
      %1936 = vmatprep.subr.mxu0 0.0
      %1937 = vmatpush1.msra.mxu0 0.0
      %1938 = vmatprep.subr.mxu0 0.0
      %1939 = vmatpush1.msra.mxu0 0.0
      %1940 = vmatprep.subr.mxu0 0.0
      %1941 = vmatpush1.msra.mxu0 0.0
      %1942 = vmatprep.subr.mxu0 0.0
      %1943 = vmatpush1.msra.mxu0 0.0
      %1944 = vmatprep.subr.mxu0 0.0
      %1945 = vmatpush1.msra.mxu0 0.0
      %1946 = vmatprep.subr.mxu0 0.0
      %1947 = vmatpush1.msra.mxu0 0.0
      %1948 = vmatprep.subr.mxu0 0.0
      %1949 = vmatpush1.msra.mxu0 0.0
      %1950 = vmatprep.subr.mxu0 0.0
      %1951 = vmatpush1.msra.mxu0 0.0
      %1952 = vmatprep.subr.mxu0 0.0
      %1953 = vmatpush1.msra.mxu0 0.0
      %1954 = vmatprep.subr.mxu0 0.0
      %1955 = vmatpush1.msra.mxu0 0.0
      %1956 = vmatprep.subr.mxu0 0.0
      %1957 = vmatpush1.msra.mxu0 0.0
      %1958 = vmatprep.subr.mxu0 0.0
      %1959 = vmatpush1.msra.mxu0 0.0
      %1960 = vmatprep.subr.mxu0 0.0
      %1961 = vmatpush1.msra.mxu0 0.0
      %1962 = vmatprep.subr.mxu0 0.0
      %1963 = vmatpush1.msra.mxu0 0.0
      %1964 = vmatprep.subr.mxu0 0.0
      %1965 = vmatpush1.msra.mxu0 0.0
      %1966 = vmatprep.subr.mxu0 0.0
      %1967 = vmatpush1.msra.mxu0 0.0
      %1968 = vmatprep.subr.mxu0 0.0
      %1969 = vmatpush1.msra.mxu0 0.0
      %1970 = vmatprep.subr.mxu0 0.0
      %1971 = vmatpush1.msra.mxu0 0.0
      %1972 = vmatprep.subr.mxu0 0.0
      %1973 = vmatpush1.msra.mxu0 0.0
      %1974 = vmatprep.subr.mxu0 0.0
      %1975 = vmatpush1.msra.mxu0 0.0
      %1976 = vmatprep.subr.mxu0 0.0
      %1977 = vmatpush1.msra.mxu0 0.0
      %1978 = vmatprep.subr.mxu0 0.0
      %1979 = vmatpush1.msra.mxu0 0.0
      %1980 = vmatprep.subr.mxu0 0.0
      %1981 = vmatpush1.msra.mxu0 0.0
      %1982 = vmatprep.subr.mxu0 0.0
      %1983 = vmatpush1.msra.mxu0 0.0
      %1984 = vmatprep.mubr.f32.mxu0 0.0
      %1985 = vmatmul.mubr.f32.gmra.mrb[0].mxu0 %v1915
      %v1986 = vpop.f32.mrb[0].mxu0
      %v1987 = vadd.f32 0.0, %v1986
      %v1988 = vpop.f32.mrb[0].mxu0
      %v1989 = vadd.f32 0.0, %v1988
      %1990 = vmatprep.mubr.f32.mxu0 0.0
      %1991 = vmatmul.mubr.f32.gmra.mrb[0].mxu0 %v1918
      %v1992 = vpop.f32.mrb[0].mxu0
      %v1993 = vadd.f32 0.0, %v1992
      %v1994 = vpop.f32.mrb[0].mxu0
      %v1995 = vadd.f32 0.0, %v1994
      %1996 = vdwg.mxu0
      %v1997 = vadd.f32 %v1891, %v1987
      %v1998 = vadd.f32 %v1892, %v1989
      %v1999 = vadd.f32 %v1893, %v1993
      %v2000 = vadd.f32 %v1894, %v1995
      %2001 = vrot.lane.b32.xlu0 %v1275, 112
      %v2002 = vpop.permute.xlu0 %2001
      %2003 = vrot.lane.b32.xlu0 %v1279, 112
      %v2004 = vpop.permute.xlu0 %2003
      %2005 = vrot.lane.b32.xlu0 %v1277, 112
      %v2006 = vpop.permute.xlu0 %2005
      %2007 = vrot.lane.b32.xlu0 %v1281, 112
      %v2008 = vpop.permute.xlu0 %2007
      %v2009 = vsel %vm1038, %v2002, %v2006
      %v2010 = vsel %vm1038, %v2004, %v2008
      %v2011 = vsel %vm1038, %v2006, %v2002
      %v2012 = vsel %vm1038, %v2008, %v2004
      %v2013 = vmul.f32 %v2009, %v292
      %v2014 = vmul.f32 %v2011, %v293
      %v2015 = vmul.f32 %v2010, %v292
      %v2016 = vmul.f32 %v2012, %v293
      %s2017 = scalar_lea.vmem %s3, 112
      %v2018 = vld [vmem:[%s2017] sm:$0xff]
      %v2019 = vld [vmem:[%s2017 + $0x8] sm:$0xff]
      %v2021 = vsel %vm345, %v2018, 0
      %v2024 = vsel %vm345, %v2019, 0
      %2026 = vmatprep.subr.mxu0 %v2014
      %2027 = vmatpush1.msra.mxu0 %v2013
      %2028 = vmatprep.subr.mxu0 %v2016
      %2029 = vmatpush1.msra.mxu0 %v2015
      %2030 = vmatprep.subr.mxu0 0.0
      %2031 = vmatpush1.msra.mxu0 0.0
      %2032 = vmatprep.subr.mxu0 0.0
      %2033 = vmatpush1.msra.mxu0 0.0
      %2034 = vmatprep.subr.mxu0 0.0
      %2035 = vmatpush1.msra.mxu0 0.0
      %2036 = vmatprep.subr.mxu0 0.0
      %2037 = vmatpush1.msra.mxu0 0.0
      %2038 = vmatprep.subr.mxu0 0.0
      %2039 = vmatpush1.msra.mxu0 0.0
      %2040 = vmatprep.subr.mxu0 0.0
      %2041 = vmatpush1.msra.mxu0 0.0
      %2042 = vmatprep.subr.mxu0 0.0
      %2043 = vmatpush1.msra.mxu0 0.0
      %2044 = vmatprep.subr.mxu0 0.0
      %2045 = vmatpush1.msra.mxu0 0.0
      %2046 = vmatprep.subr.mxu0 0.0
      %2047 = vmatpush1.msra.mxu0 0.0
      %2048 = vmatprep.subr.mxu0 0.0
      %2049 = vmatpush1.msra.mxu0 0.0
      %2050 = vmatprep.subr.mxu0 0.0
      %2051 = vmatpush1.msra.mxu0 0.0
      %2052 = vmatprep.subr.mxu0 0.0
      %2053 = vmatpush1.msra.mxu0 0.0
      %2054 = vmatprep.subr.mxu0 0.0
      %2055 = vmatpush1.msra.mxu0 0.0
      %2056 = vmatprep.subr.mxu0 0.0
      %2057 = vmatpush1.msra.mxu0 0.0
      %2058 = vmatprep.subr.mxu0 0.0
      %2059 = vmatpush1.msra.mxu0 0.0
      %2060 = vmatprep.subr.mxu0 0.0
      %2061 = vmatpush1.msra.mxu0 0.0
      %2062 = vmatprep.subr.mxu0 0.0
      %2063 = vmatpush1.msra.mxu0 0.0
      %2064 = vmatprep.subr.mxu0 0.0
      %2065 = vmatpush1.msra.mxu0 0.0
      %2066 = vmatprep.subr.mxu0 0.0
      %2067 = vmatpush1.msra.mxu0 0.0
      %2068 = vmatprep.subr.mxu0 0.0
      %2069 = vmatpush1.msra.mxu0 0.0
      %2070 = vmatprep.subr.mxu0 0.0
      %2071 = vmatpush1.msra.mxu0 0.0
      %2072 = vmatprep.subr.mxu0 0.0
      %2073 = vmatpush1.msra.mxu0 0.0
      %2074 = vmatprep.subr.mxu0 0.0
      %2075 = vmatpush1.msra.mxu0 0.0
      %2076 = vmatprep.subr.mxu0 0.0
      %2077 = vmatpush1.msra.mxu0 0.0
      %2078 = vmatprep.subr.mxu0 0.0
      %2079 = vmatpush1.msra.mxu0 0.0
      %2080 = vmatprep.subr.mxu0 0.0
      %2081 = vmatpush1.msra.mxu0 0.0
      %2082 = vmatprep.subr.mxu0 0.0
      %2083 = vmatpush1.msra.mxu0 0.0
      %2084 = vmatprep.subr.mxu0 0.0
      %2085 = vmatpush1.msra.mxu0 0.0
      %2086 = vmatprep.subr.mxu0 0.0
      %2087 = vmatpush1.msra.mxu0 0.0
      %2088 = vmatprep.subr.mxu0 0.0
      %2089 = vmatpush1.msra.mxu0 0.0
      %2090 = vmatprep.mubr.f32.mxu0 0.0
      %2091 = vmatmul.mubr.f32.gmra.mrb[0].mxu0 %v2021
      %v2092 = vpop.f32.mrb[0].mxu0
      %v2093 = vadd.f32 0.0, %v2092
      %v2094 = vpop.f32.mrb[0].mxu0
      %v2095 = vadd.f32 0.0, %v2094
      %2096 = vmatprep.mubr.f32.mxu0 0.0
      %2097 = vmatmul.mubr.f32.gmra.mrb[0].mxu0 %v2024
      %v2098 = vpop.f32.mrb[0].mxu0
      %v2099 = vadd.f32 0.0, %v2098
      %v2100 = vpop.f32.mrb[0].mxu0
      %v2101 = vadd.f32 0.0, %v2100
      %2102 = vdwg.mxu0
      %v2103 = vadd.f32 %v1997, %v2093
      %v2104 = vadd.f32 %v1998, %v2095
      %v2105 = vadd.f32 %v1999, %v2099
      %v2106 = vadd.f32 %v2000, %v2101
      %2107 = vrot.lane.b32.xlu0 %v1275, 111
      %v2108 = vpop.permute.xlu0 %2107
      %2109 = vrot.lane.b32.xlu0 %v1279, 111
      %v2110 = vpop.permute.xlu0 %2109
      %2111 = vrot.lane.b32.xlu0 %v1277, 111
      %v2112 = vpop.permute.xlu0 %2111
      %2113 = vrot.lane.b32.xlu0 %v1281, 111
      %v2114 = vpop.permute.xlu0 %2113
      %v2115 = vsel %vm1145, %v2108, %v2112
      %v2116 = vsel %vm1145, %v2110, %v2114
      %v2117 = vsel %vm1145, %v2112, %v2108
      %v2118 = vsel %vm1145, %v2114, %v2110
      %v2119 = vmul.f32 %v2115, %v298
      %v2120 = vmul.f32 %v2117, %v299
      %v2121 = vmul.f32 %v2116, %v298
      %v2122 = vmul.f32 %v2118, %v299
      %s2123 = scalar_lea.vmem %s3, 128
      %v2124 = vld [vmem:[%s2123] sm:$0xff]
      %v2125 = vld [vmem:[%s2123 + $0x8] sm:$0xff]
      %v2127 = vsel %vm345, %v2124, 0
      %v2130 = vsel %vm345, %v2125, 0
      %2132 = vmatprep.subr.mxu0 %v2120
      %2133 = vmatpush1.msra.mxu0 %v2119
      %2134 = vmatprep.subr.mxu0 %v2122
      %2135 = vmatpush1.msra.mxu0 %v2121
      %2136 = vmatprep.subr.mxu0 0.0
      %2137 = vmatpush1.msra.mxu0 0.0
      %2138 = vmatprep.subr.mxu0 0.0
      %2139 = vmatpush1.msra.mxu0 0.0
      %2140 = vmatprep.subr.mxu0 0.0
      %2141 = vmatpush1.msra.mxu0 0.0
      %2142 = vmatprep.subr.mxu0 0.0
      %2143 = vmatpush1.msra.mxu0 0.0
      %2144 = vmatprep.subr.mxu0 0.0
      %2145 = vmatpush1.msra.mxu0 0.0
      %2146 = vmatprep.subr.mxu0 0.0
      %2147 = vmatpush1.msra.mxu0 0.0
      %2148 = vmatprep.subr.mxu0 0.0
      %2149 = vmatpush1.msra.mxu0 0.0
      %2150 = vmatprep.subr.mxu0 0.0
      %2151 = vmatpush1.msra.mxu0 0.0
      %2152 = vmatprep.subr.mxu0 0.0
      %2153 = vmatpush1.msra.mxu0 0.0
      %2154 = vmatprep.subr.mxu0 0.0
      %2155 = vmatpush1.msra.mxu0 0.0
      %2156 = vmatprep.subr.mxu0 0.0
      %2157 = vmatpush1.msra.mxu0 0.0
      %2158 = vmatprep.subr.mxu0 0.0
      %2159 = vmatpush1.msra.mxu0 0.0
      %2160 = vmatprep.subr.mxu0 0.0
      %2161 = vmatpush1.msra.mxu0 0.0
      %2162 = vmatprep.subr.mxu0 0.0
      %2163 = vmatpush1.msra.mxu0 0.0
      %2164 = vmatprep.subr.mxu0 0.0
      %2165 = vmatpush1.msra.mxu0 0.0
      %2166 = vmatprep.subr.mxu0 0.0
      %2167 = vmatpush1.msra.mxu0 0.0
      %2168 = vmatprep.subr.mxu0 0.0
      %2169 = vmatpush1.msra.mxu0 0.0
      %2170 = vmatprep.subr.mxu0 0.0
      %2171 = vmatpush1.msra.mxu0 0.0
      %2172 = vmatprep.subr.mxu0 0.0
      %2173 = vmatpush1.msra.mxu0 0.0
      %2174 = vmatprep.subr.mxu0 0.0
      %2175 = vmatpush1.msra.mxu0 0.0
      %2176 = vmatprep.subr.mxu0 0.0
      %2177 = vmatpush1.msra.mxu0 0.0
      %2178 = vmatprep.subr.mxu0 0.0
      %2179 = vmatpush1.msra.mxu0 0.0
      %2180 = vmatprep.subr.mxu0 0.0
      %2181 = vmatpush1.msra.mxu0 0.0
      %2182 = vmatprep.subr.mxu0 0.0
      %2183 = vmatpush1.msra.mxu0 0.0
      %2184 = vmatprep.subr.mxu0 0.0
      %2185 = vmatpush1.msra.mxu0 0.0
      %2186 = vmatprep.subr.mxu0 0.0
      %2187 = vmatpush1.msra.mxu0 0.0
      %2188 = vmatprep.subr.mxu0 0.0
      %2189 = vmatpush1.msra.mxu0 0.0
      %2190 = vmatprep.subr.mxu0 0.0
      %2191 = vmatpush1.msra.mxu0 0.0
      %2192 = vmatprep.subr.mxu0 0.0
      %2193 = vmatpush1.msra.mxu0 0.0
      %2194 = vmatprep.subr.mxu0 0.0
      %2195 = vmatpush1.msra.mxu0 0.0
      %2196 = vmatprep.mubr.f32.mxu0 0.0
      %2197 = vmatmul.mubr.f32.gmra.mrb[0].mxu0 %v2127
      %v2198 = vpop.f32.mrb[0].mxu0
      %v2199 = vadd.f32 0.0, %v2198
      %v2200 = vpop.f32.mrb[0].mxu0
      %v2201 = vadd.f32 0.0, %v2200
      %2202 = vmatprep.mubr.f32.mxu0 0.0
      %2203 = vmatmul.mubr.f32.gmra.mrb[0].mxu0 %v2130
      %v2204 = vpop.f32.mrb[0].mxu0
      %v2205 = vadd.f32 0.0, %v2204
      %v2206 = vpop.f32.mrb[0].mxu0
      %v2207 = vadd.f32 0.0, %v2206
      %2208 = vdwg.mxu0
      %v2209 = vadd.f32 %v2103, %v2199
      %v2210 = vadd.f32 %v2104, %v2201
      %v2211 = vadd.f32 %v2105, %v2205
      %v2212 = vadd.f32 %v2106, %v2207
      %2214 = vset.pattern.permute.xlu0 0
      %2215 = vperm.xlu0 %2214, %v1282
      %v2216 = vpop.permute.xlu0 %2215
      %2219 = vset.pattern.permute.xlu0 0
      %2220 = vperm.xlu0 %2219, %v1283
      %v2221 = vpop.permute.xlu0 %2220
      %v2223 = vadd.f32 %v2209, %v2216
      %v2224 = vadd.f32 %v2210, %v2216
      %v2225 = vadd.f32 %v2211, %v2221
      %v2226 = vadd.f32 %v2212, %v2221
      %v2227 = vsub.f32 0.0, %v2223
      %v2228 = vsub.f32 0.0, %v2224
      %v2229 = vsub.f32 0.0, %v2225
      %v2230 = vsub.f32 0.0, %v2226
      %v2231 = vmul.f32 %v2227, 1.442695
      %v2232 = vpow.pop %v2231
      %v2233 = vmul.f32 %v2228, 1.442695
      %v2234 = vpow.pop %v2233
      %v2235 = vmul.f32 %v2229, 1.442695
      %v2236 = vpow.pop %v2235
      %v2237 = vmul.f32 %v2230, 1.442695
      %v2238 = vpow.pop %v2237
      %v2239 = vadd.f32 %v2232, 1.0
      %v2240 = vadd.f32 %v2234, 1.0
      %v2241 = vadd.f32 %v2236, 1.0
      %v2242 = vadd.f32 %v2238, 1.0
      %v2243 = vrcp.pop %v2239
      %v2244 = vmul.f32 %v2223, %v2243
      %v2245 = vrcp.pop %v2240
      %v2246 = vmul.f32 %v2224, %v2245
      %v2247 = vrcp.pop %v2241
      %v2248 = vmul.f32 %v2225, %v2247
      %v2249 = vrcp.pop %v2242
      %v2250 = vmul.f32 %v2226, %v2249
      %2251 = vst [vmem:[%s224] sm:$0xff] %v2244
      %2252 = vst [vmem:[%s224 + $0x8] sm:$0xff] %v2246
      %2253 = vst [vmem:[%s224 + $0x10] sm:$0xff] %v2248
      %2254 = vst [vmem:[%s224 + $0x18] sm:$0xff] %v2250
      %p2255 = scmp.lt.s32.totalorder %s16, 1
      %s2256 = scalar_select %p2255, %s16, 1
      %s2257 = smul.addr %s2256, 4
      %s2258 = smul.addr %s2257, 8
      %s2259 = scalar_lea.vmem %s5, %s2258
      // Predicated region
      $region41: #{c2f_attn_forward.5} parent=39 // pred_check
        %p2260 = pneg %p144
      $region42: #{c2f_attn_forward.5} parent=39 // pred_check_branch
        %2262 = sbr.rel (%p2260) target = $region44
      $region43: #{c2f_attn_forward.5} parent=39 // pred_region
        _
      $region44: #{c2f_attn_forward.5} parent=39 // pred_fallthru
        _
    $region40: #{c2f_attn_forward.5} parent=5 // pred_fallthru
      _
    %p2263 = scmp.le.s32.totalorder 2, %s11
    // Predicated region
    $region45: #{c2f_attn_forward.5} parent=5 // pred_check
      %p2264 = pneg %p2263
    $region46: #{c2f_attn_forward.5} parent=5 // pred_check_branch
      %2266 = sbr.rel (%p2264) target = $region48
    $region47: #{c2f_attn_forward.5} parent=5 // pred_region
      %s2267 = ssub.s32 %s11, 2
      // Predicated region
      $region49: #{c2f_attn_forward.5} parent=47 // pred_check
        %p2268 = pneg %p150
      $region50: #{c2f_attn_forward.5} parent=47 // pred_check_branch
        %2270 = sbr.rel (%p2268) target = $region52
      $region51: #{c2f_attn_forward.5} parent=47 // pred_region
        %p2271 = scmp.lt.s32.totalorder %s17, 1
        %s2272 = scalar_select %p2271, %s17, 1
        %s2273 = smul.addr %s2272, 4
        %s2274 = smul.addr %s2273, 8
        %s2275 = scalar_lea.vmem %s5, %s2274
      $region52: #{c2f_attn_forward.5} parent=47 // pred_fallthru
        _
    $region48: #{c2f_attn_forward.5} parent=5 // pred_fallthru
      _
  $region6: #{c2f_attn_forward.5} parent=0 // loop_footer
    %s15 = sadd.s32 1, %s11
  $region7: #{c2f_attn_forward.5} parent=0 // loop_footer_branch
    %10 = sbr.rel target = $region3
  $region8: #{c2f_attn_forward.5} parent=0 // loop_exit
    _

</llo_original>
